<compile_context>
chip_gen: v6e
topology: v6e:2x2x1
jax: 0.10.0
libtpu: 0.0.40
codegen_flags: <defaults>
</compile_context>

<pallas_src>
import functools
import itertools
import math

import jax
import jax.numpy as jnp
from jax.experimental import pallas as pl
from jax.experimental.pallas import tpu as pltpu

FRAME_NUM = 4
COMBS = list(itertools.combinations(range(FRAME_NUM), 2))   # 6 pairs
CLASS_NUM = math.factorial(FRAME_NUM) // 2                   # 12
CLASS_PAD = 128       # logits padded to a full lane width (sliced in wrapper)

FEAT_DIM = 512        # backbone feature dim
CNN_LAST_DIM = 1024
COMB_FC1_OUT = 512
CONV_COUT = 32        # stand-in stem channels
COUT_PAD = 128        # stem channels padded to a full lane width
K_PAD = 128           # im2col K (3*27 = 81) padded to a full lane width


# ----------------------------- Pallas kernels ------------------------------

def _stem_kernel(pm_ref, wc_ref, bc_ref, wp_ref, bp_ref, o_ref, *, clips, spatial):
    """Fused: conv-as-matmul (+bias+ReLU) -> per-clip global avg pool -> 512-d
    projection (+bias+ReLU). Everything stays VMEM-resident."""
    conv = jnp.dot(pm_ref[...], wc_ref[...], preferred_element_type=jnp.float32)
    conv = jnp.maximum(conv + bc_ref[...], 0.0)                  # (clips*spatial, COUT_PAD)
    pooled = jnp.mean(conv.reshape(clips, spatial, COUT_PAD), axis=1)   # (clips, COUT_PAD)
    feats = jnp.dot(pooled.astype(jnp.bfloat16), wp_ref[...],
                    preferred_element_type=jnp.float32)
    o_ref[...] = jnp.maximum(feats + bp_ref[...], 0.0)           # (clips, FEAT_DIM)


def _fc_stack_kernel(f_ref, w1_ref, b1_ref, w2a_ref, w2b_ref, b2_ref,
                     w3_ref, b3_ref, o_ref, *, batch):
    """Fused: cnn_last (Linear+foldedBN+ReLU), all six pairwise comb_fc1
    (Linear+foldedBN+ReLU) via the linear G/K decomposition, and comb_fc2 as
    per-pair partial matmuls into a lane-padded accumulator.
    Dropout = identity in eval."""
    h = jnp.dot(f_ref[...].astype(jnp.bfloat16), w1_ref[...],
                preferred_element_type=jnp.float32)
    h = jnp.maximum(h + b1_ref[...], 0.0)                        # (seq*batch, 1024) f32
    hb = h.astype(jnp.bfloat16)                                  # single cast

    # Linearity of comb_fc1: pair(a, b) = h[a] @ w2a + h[b] @ w2b + b2, with
    # a in {0,1,2} and b in {1,2,3}, so two contiguous matmuls cover all pairs.
    g = jnp.dot(hb[0:3 * batch, :], w2a_ref[...],
                preferred_element_type=jnp.float32)              # (3*batch, 512)
    k = jnp.dot(hb[batch:4 * batch, :], w2b_ref[...],
                preferred_element_type=jnp.float32)              # (3*batch, 512)

    b2 = b2_ref[...]
    acc = jnp.zeros((batch, CLASS_PAD), jnp.float32)
    for idx, (a, b) in enumerate(COMBS):
        pair = g[a * batch:(a + 1) * batch, :] + k[(b - 1) * batch:b * batch, :] + b2
        pair = jnp.maximum(pair, 0.0).astype(jnp.bfloat16)       # (batch, 512)
        acc = acc + jnp.dot(
            pair, w3_ref[idx * COMB_FC1_OUT:(idx + 1) * COMB_FC1_OUT, :],
            preferred_element_type=jnp.float32)
    o_ref[...] = acc + b3_ref[...]                               # (batch, CLASS_PAD)


# ------------------------------ model pieces -------------------------------

def fold_bn_into_linear(w, b, gamma, beta, mean, var, eps=1e-5):
    """Fold eval-mode BatchNorm1d into a PyTorch-layout Linear (w: (out, in)).
    Returns an (in, out) weight for x @ w and the folded bias."""
    scale = gamma / jnp.sqrt(var + eps)
    w_f = (w * scale[:, None]).T
    b_f = (b - mean) * scale + beta
    return w_f, b_f


def prepare_params(params):
    """One-time weight prep (call OUTSIDE jit): BN folding, transposes,
    zero-padding to lane-friendly widths, bf16 casts."""
    cout = params["conv_w"].shape[0]
    cin = params["conv_w"].shape[1]
    K = cin * 27

    # conv weight columns are ordered c*27 + (kt*9 + kh*3 + kw) — matches the
    # channels-last patch layout built in stem_features().
    w_conv = params["conv_w"].reshape(cout, K).T                       # (K, cout)
    w_conv_p = jnp.zeros((K_PAD, COUT_PAD), jnp.bfloat16).at[:K, :cout].set(
        w_conv.astype(jnp.bfloat16))
    b_conv_p = jnp.zeros((1, COUT_PAD), jnp.float32).at[0, :cout].set(
        params["conv_b"])
    w_proj_p = jnp.zeros((COUT_PAD, FEAT_DIM), jnp.bfloat16).at[:cout, :].set(
        params["proj_w"].T.astype(jnp.bfloat16))
    b_proj_p = params["proj_b"].reshape(1, FEAT_DIM).astype(jnp.float32)

    w1, b1 = fold_bn_into_linear(params["cnn_last_w"], params["cnn_last_b"],
                                 params["bn1_g"], params["bn1_b"],
                                 params["bn1_m"], params["bn1_v"])
    w2, b2 = fold_bn_into_linear(params["comb_fc1_w"], params["comb_fc1_b"],
                                 params["bn2_g"], params["bn2_b"],
                                 params["bn2_m"], params["bn2_v"])
    w2 = w2.astype(jnp.bfloat16)                                       # (2048, 512)

    w3 = params["comb_fc2_w"].T.astype(jnp.bfloat16)                   # (3072, 12)
    w3_p = jnp.zeros((w3.shape[0], CLASS_PAD), jnp.bfloat16).at[:, :CLASS_NUM].set(w3)
    b3_p = jnp.zeros((1, CLASS_PAD), jnp.float32).at[0, :CLASS_NUM].set(
        params["comb_fc2_b"])

    return {
        "w_conv": w_conv_p, "b_conv": b_conv_p,
        "w_proj": w_proj_p, "b_proj": b_proj_p,
        "w1": w1.astype(jnp.bfloat16), "b1": b1.reshape(1, -1).astype(jnp.float32),
        "w2a": w2[:CNN_LAST_DIM, :], "w2b": w2[CNN_LAST_DIM:, :],
        "b2": b2.reshape(1, -1).astype(jnp.float32),
        "w3": w3_p, "b3": b3_p,
    }


def _choose_groups(n_clips, spatial):
    """Size-derived stem grid: keep the (double-buffered) pm block under a
    VMEM budget, prefer >=4 'parallel' steps (>=2 per v7x core) when that does
    not shrink blocks below a useful DMA size, and keep both the pm block and
    the (cpg, FEAT_DIM) output block 8-sublane aligned."""
    bytes_per_clip = spatial * K_PAD * 2            # bf16 patches
    budget = 4 << 20                                # per-block budget (x2 by pipeline)
    min_block = 256 << 10
    best = 1
    for g in range(1, n_clips + 1):
        if n_clips % g:
            continue
        cpg = n_clips // g
        if g != 1 and cpg % 8:
            continue                                # keep blocks sublane-aligned
        block = cpg * bytes_per_clip
        if block > budget and g != n_clips:
            continue                                # still too big; keep splitting
        best = g
        if g >= 4 or block <= min_block:
            break                                   # enough steps, or work already tiny
    return best


def stem_features(clips, prep):
    """clips: (N, C, T, H, W) -> (N, FEAT_DIM) features, one fused pallas_call.

    Stand-in backbone: Conv3d(k=3, s=2, p=1)+ReLU (im2col matmul), global
    average pool, 512-d projection+ReLU.
    """
    # TODO(synk): full ResNet18-3D residual stack not reproduced; stem+GAP+proj stands in.
    N, C, T, H, W = clips.shape
    To, Ho, Wo = (T - 1) // 2 + 1, (H - 1) // 2 + 1, (W - 1) // 2 + 1
    spatial = To * Ho * Wo
    K = C * 27

    # im2col in channels-last order (patch column = c*27 + (kt*9+kh*3+kw),
    # matching the prepared weight). Cast to bf16 BEFORE stacking the taps.
    # TODO(synk): patch gather stays in XLA glue; with C=3 an in-kernel gather
    # would be hopelessly lane-sparse in VMEM.
    xcl = jnp.transpose(clips, (0, 2, 3, 4, 1)).astype(jnp.bfloat16)   # (N,T,H,W,C)
    xp = jnp.pad(xcl, ((0, 0), (1, 1), (1, 1), (1, 1), (0, 0)))
    taps = []
    for kt in range(3):
        for kh in range(3):
            for kw in range(3):
                taps.append(xp[:,
                               kt:kt + 2 * To - 1:2,
                               kh:kh + 2 * Ho - 1:2,
                               kw:kw + 2 * Wo - 1:2, :])
    patches = jnp.stack(taps, axis=-1)                                 # (N,To,Ho,Wo,C,27)
    pm = patches.reshape(N * spatial, K)
    pm = jnp.pad(pm, ((0, 0), (0, K_PAD - K)))                         # lane-dense K

    groups = _choose_groups(N, spatial)
    cpg = N // groups

    return pl.pallas_call(
        functools.partial(_stem_kernel, clips=cpg, spatial=spatial),
        out_shape=jax.ShapeDtypeStruct((N, FEAT_DIM), jnp.float32),
        grid=(groups,),
        in_specs=[
            pl.BlockSpec((cpg * spatial, K_PAD), lambda g: (g, 0)),
            pl.BlockSpec((K_PAD, COUT_PAD), lambda g: (0, 0)),
            pl.BlockSpec((1, COUT_PAD), lambda g: (0, 0)),
            pl.BlockSpec((COUT_PAD, FEAT_DIM), lambda g: (0, 0)),
            pl.BlockSpec((1, FEAT_DIM), lambda g: (0, 0)),
        ],
        out_specs=pl.BlockSpec((cpg, FEAT_DIM), lambda g: (g, 0)),
        compiler_params=pltpu.CompilerParams(dimension_semantics=("parallel",)),
    )(pm, prep["w_conv"], prep["b_conv"], prep["w_proj"], prep["b_proj"])


def fc_stack(feats, prep, *, batch):
    """feats: (seq*batch, 512) -> logits (batch, CLASS_NUM). One fused call."""
    # TODO(synk): this call is weight-DMA bound (~4 MiB of fc weights vs ~25
    # MFLOP at batch=2); amortizing it needs a larger effective batch or full
    # stem+fc fusion with the weights prefetched behind the stem steps.
    out = pl.pallas_call(
        functools.partial(_fc_stack_kernel, batch=batch),
        out_shape=jax.ShapeDtypeStruct((batch, CLASS_PAD), jnp.float32),
    )(feats, prep["w1"], prep["b1"], prep["w2a"], prep["w2b"], prep["b2"],
      prep["w3"], prep["b3"])
    return out[:, :CLASS_NUM]


def cnn3d_opn_forward(x, prep):
    """x: (B, seq, T, C, H, W) -> (B, CLASS_NUM)."""
    B, S, T, C, H, W = x.shape
    assert S == FRAME_NUM, "pair slicing assumes seq == FRAME_NUM"
    xs = jnp.transpose(x, (1, 0, 3, 2, 4, 5))                          # (S, B, C, T, H, W)
    clips = xs.reshape(S * B, C, T, H, W)
    feats = stem_features(clips, prep)                                 # (S*B, 512)
    return fc_stack(feats, prep, batch=B)                              # (B, 12)


# ------------------------------- init / main -------------------------------

def init_params(key, cout=CONV_COUT):
    ks = jax.random.split(key, 13)

    def kaiming(k, shape, fan_in):
        return jax.random.normal(k, shape, jnp.float32) * jnp.sqrt(2.0 / fan_in)

    p = {}
    p["conv_w"] = kaiming(ks[0], (cout, 3, 3, 3, 3), 3 * 27)
    p["conv_b"] = jnp.zeros((cout,), jnp.float32)
    p["proj_w"] = kaiming(ks[1], (FEAT_DIM, cout), cout)
    p["proj_b"] = jnp.zeros((FEAT_DIM,), jnp.float32)
    p["cnn_last_w"] = kaiming(ks[2], (CNN_LAST_DIM, FEAT_DIM), FEAT_DIM)
    p["cnn_last_b"] = jnp.zeros((CNN_LAST_DIM,), jnp.float32)
    p["bn1_g"] = 1.0 + 0.1 * jax.random.normal(ks[3], (CNN_LAST_DIM,), jnp.float32)
    p["bn1_b"] = 0.1 * jax.random.normal(ks[4], (CNN_LAST_DIM,), jnp.float32)
    p["bn1_m"] = 0.1 * jax.random.normal(ks[5], (CNN_LAST_DIM,), jnp.float32)
    p["bn1_v"] = 1.0 + 0.1 * jnp.abs(jax.random.normal(ks[6], (CNN_LAST_DIM,), jnp.float32))
    p["comb_fc1_w"] = kaiming(ks[7], (COMB_FC1_OUT, 2 * CNN_LAST_DIM), 2 * CNN_LAST_DIM)
    p["comb_fc1_b"] = jnp.zeros((COMB_FC1_OUT,), jnp.float32)
    p["bn2_g"] = 1.0 + 0.1 * jax.random.normal(ks[8], (COMB_FC1_OUT,), jnp.float32)
    p["bn2_b"] = 0.1 * jax.random.normal(ks[9], (COMB_FC1_OUT,), jnp.float32)
    p["bn2_m"] = 0.1 * jax.random.normal(ks[10], (COMB_FC1_OUT,), jnp.float32)
    p["bn2_v"] = 1.0 + 0.1 * jnp.abs(jax.random.normal(ks[11], (COMB_FC1_OUT,), jnp.float32))
    p["comb_fc2_w"] = kaiming(ks[12], (CLASS_NUM, COMB_FC1_OUT * len(COMBS)),
                              COMB_FC1_OUT * len(COMBS))
    p["comb_fc2_b"] = jnp.zeros((CLASS_NUM,), jnp.float32)
    return p


if __name__ == "__main__":
    key = jax.random.PRNGKey(0)
    k_param, k_x = jax.random.split(key)
    params = init_params(k_param)
    prep = prepare_params(params)        # weight folding/padding done once, outside jit

    B, S, T, C, H, W = 2, FRAME_NUM, 4, 3, 16, 16
    x = jax.random.normal(k_x, (B, S, T, C, H, W), jnp.float32)

    out = jax.jit(cnn3d_opn_forward)(x, prep)
    out = jax.block_until_ready(out)

    assert out.shape == (B, CLASS_NUM), out.shape
    assert bool(jnp.all(jnp.isfinite(out)))
    print("KERNEL_OK")
</pallas_src>

<mosaic_0001>
module attributes {stable_mosaic.version = 11 : i64} {
  func.func @_stem_kernel(%arg0: i32, %arg1: memref<1024x128xbf16, #tpu.memory_space<vmem>>, %arg2: memref<128x128xbf16, #tpu.memory_space<vmem>>, %arg3: memref<1x128xf32, #tpu.memory_space<vmem>>, %arg4: memref<128x512xbf16, #tpu.memory_space<vmem>>, %arg5: memref<1x512xf32, #tpu.memory_space<vmem>>, %arg6: memref<8x512xf32, #tpu.memory_space<vmem>>) attributes {dimension_semantics = [#tpu.dimension_semantics<parallel>], iteration_bounds = array<i64: 1>, scalar_prefetch = 0 : i64, scratch_operands = 0 : i64, tpu.core_type = #tpu.core_type<tc>, window_params = [{transform_indices = @transform_0, window_bounds = array<i64: 1024, 128>}, {pipeline_mode = #tpu.pipeline_mode<synchronous>, transform_indices = @transform_1, window_bounds = array<i64: 128, 128>}, {pipeline_mode = #tpu.pipeline_mode<synchronous>, transform_indices = @transform_2, window_bounds = array<i64: 1, 128>}, {pipeline_mode = #tpu.pipeline_mode<synchronous>, transform_indices = @transform_3, window_bounds = array<i64: 128, 512>}, {pipeline_mode = #tpu.pipeline_mode<synchronous>, transform_indices = @transform_4, window_bounds = array<i64: 1, 512>}, {transform_indices = @transform_5, window_bounds = array<i64: 8, 512>}]} {
    %c0 = arith.constant 0 : index
    %c0_0 = arith.constant 0 : index
    %0 = vector.load %arg1[%c0, %c0_0] : memref<1024x128xbf16, #tpu.memory_space<vmem>>, vector<1024x128xbf16>
    %c0_1 = arith.constant 0 : index
    %c0_2 = arith.constant 0 : index
    %1 = vector.load %arg2[%c0_1, %c0_2] : memref<128x128xbf16, #tpu.memory_space<vmem>>, vector<128x128xbf16>
    %cst = arith.constant dense<0.000000e+00> : vector<1024x128xf32>
    %2 = tpu.matmul %0, %1, %cst {dimension_numbers = #tpu.dot_dimension_numbers<[1], [0], [0], [1], [0, 0, 1, 1], [], []>} : vector<1024x128xbf16>, vector<128x128xbf16>, vector<1024x128xf32> -> vector<1024x128xf32>
    %c0_3 = arith.constant 0 : index
    %c0_4 = arith.constant 0 : index
    %3 = vector.load %arg3[%c0_3, %c0_4] : memref<1x128xf32, #tpu.memory_space<vmem>>, vector<1x128xf32>
    %4 = vector.broadcast %3 : vector<1x128xf32> to vector<1024x128xf32>
    %5 = arith.addf %2, %4 : vector<1024x128xf32>
    %cst_5 = arith.constant 0.000000e+00 : f32
    %6 = vector.broadcast %cst_5 : f32 to vector<1024x128xf32>
    %7 = arith.maximumf %5, %6 : vector<1024x128xf32>
    %8 = vector.shape_cast %7 : vector<1024x128xf32> to vector<8x128x128xf32>
    %cst_6 = arith.constant dense<0.000000e+00> : vector<8x128xf32>
    %9 = vector.multi_reduction <add>, %8, %cst_6 [1] : vector<8x128x128xf32> to vector<8x128xf32>
    %cst_7 = arith.constant 1.280000e+02 : f32
    %10 = vector.broadcast %cst_7 : f32 to vector<8x128xf32>
    %11 = arith.divf %9, %10 : vector<8x128xf32>
    %12 = arith.truncf %11 : vector<8x128xf32> to vector<8x128xbf16>
    %c0_8 = arith.constant 0 : index
    %c0_9 = arith.constant 0 : index
    %13 = vector.load %arg4[%c0_8, %c0_9] : memref<128x512xbf16, #tpu.memory_space<vmem>>, vector<128x512xbf16>
    %cst_10 = arith.constant dense<0.000000e+00> : vector<8x512xf32>
    %14 = tpu.matmul %12, %13, %cst_10 {dimension_numbers = #tpu.dot_dimension_numbers<[1], [0], [0], [1], [0, 0, 1, 1], [], []>} : vector<8x128xbf16>, vector<128x512xbf16>, vector<8x512xf32> -> vector<8x512xf32>
    %c0_11 = arith.constant 0 : index
    %c0_12 = arith.constant 0 : index
    %15 = vector.load %arg5[%c0_11, %c0_12] : memref<1x512xf32, #tpu.memory_space<vmem>>, vector<1x512xf32>
    %16 = vector.broadcast %15 : vector<1x512xf32> to vector<8x512xf32>
    %17 = arith.addf %14, %16 : vector<8x512xf32>
    %cst_13 = arith.constant 0.000000e+00 : f32
    %18 = vector.broadcast %cst_13 : f32 to vector<8x512xf32>
    %19 = arith.maximumf %17, %18 : vector<8x512xf32>
    %c0_14 = arith.constant 0 : index
    %c0_15 = arith.constant 0 : index
    %20 = vector.load %arg6[%c0_14, %c0_15] : memref<8x512xf32, #tpu.memory_space<vmem>>, vector<8x512xf32>
    tpu.vector_store %arg6[%c0_14, %c0_15], %19 {strides = array<i32>} : memref<8x512xf32, #tpu.memory_space<vmem>>, vector<8x512xf32>,
    return
  }
  func.func @transform_0(%arg0: i32) -> (i32, i32) {
    %c0_i32 = arith.constant 0 : i32
    %c0_i32_0 = arith.constant 0 : i32
    return %arg0, %c0_i32 : i32, i32
  }
  func.func @transform_1(%arg0: i32) -> (i32, i32) {
    %c0_i32 = arith.constant 0 : i32
    %c0_i32_0 = arith.constant 0 : i32
    %c0_i32_1 = arith.constant 0 : i32
    return %c0_i32, %c0_i32_0 : i32, i32
  }
  func.func @transform_2(%arg0: i32) -> (i32, i32) {
    %c0_i32 = arith.constant 0 : i32
    %c0_i32_0 = arith.constant 0 : i32
    %c0_i32_1 = arith.constant 0 : i32
    return %c0_i32, %c0_i32_0 : i32, i32
  }
  func.func @transform_3(%arg0: i32) -> (i32, i32) {
    %c0_i32 = arith.constant 0 : i32
    %c0_i32_0 = arith.constant 0 : i32
    %c0_i32_1 = arith.constant 0 : i32
    return %c0_i32, %c0_i32_0 : i32, i32
  }
  func.func @transform_4(%arg0: i32) -> (i32, i32) {
    %c0_i32 = arith.constant 0 : i32
    %c0_i32_0 = arith.constant 0 : i32
    %c0_i32_1 = arith.constant 0 : i32
    return %c0_i32, %c0_i32_0 : i32, i32
  }
  func.func @transform_5(%arg0: i32) -> (i32, i32) {
    %c0_i32 = arith.constant 0 : i32
    %c0_i32_0 = arith.constant 0 : i32
    return %arg0, %c0_i32 : i32, i32
  }
}

module attributes {stable_mosaic.version = 11 : i64} {
  func.func @_fc_stack_kernel(%arg0: memref<8x512xf32, #tpu.memory_space<vmem>>, %arg1: memref<512x1024xbf16, #tpu.memory_space<vmem>>, %arg2: memref<1x1024xf32, #tpu.memory_space<vmem>>, %arg3: memref<1024x512xbf16, #tpu.memory_space<vmem>>, %arg4: memref<1024x512xbf16, #tpu.memory_space<vmem>>, %arg5: memref<1x512xf32, #tpu.memory_space<vmem>>, %arg6: memref<3072x128xbf16, #tpu.memory_space<vmem>>, %arg7: memref<1x128xf32, #tpu.memory_space<vmem>>, %arg8: memref<2x128xf32, #tpu.memory_space<vmem>>) attributes {dimension_semantics = [], scalar_prefetch = 0 : i64, scratch_operands = 0 : i64, tpu.core_type = #tpu.core_type<tc>} {
    %c0 = arith.constant 0 : index
    %c0_0 = arith.constant 0 : index
    %0 = vector.load %arg0[%c0, %c0_0] : memref<8x512xf32, #tpu.memory_space<vmem>>, vector<8x512xf32>
    %1 = arith.truncf %0 : vector<8x512xf32> to vector<8x512xbf16>
    %c0_1 = arith.constant 0 : index
    %c0_2 = arith.constant 0 : index
    %2 = vector.load %arg1[%c0_1, %c0_2] : memref<512x1024xbf16, #tpu.memory_space<vmem>>, vector<512x1024xbf16>
    %cst = arith.constant dense<0.000000e+00> : vector<8x1024xf32>
    %3 = tpu.matmul %1, %2, %cst {dimension_numbers = #tpu.dot_dimension_numbers<[1], [0], [0], [1], [0, 0, 1, 1], [], []>} : vector<8x512xbf16>, vector<512x1024xbf16>, vector<8x1024xf32> -> vector<8x1024xf32>
    %c0_3 = arith.constant 0 : index
    %c0_4 = arith.constant 0 : index
    %4 = vector.load %arg2[%c0_3, %c0_4] : memref<1x1024xf32, #tpu.memory_space<vmem>>, vector<1x1024xf32>
    %5 = vector.broadcast %4 : vector<1x1024xf32> to vector<8x1024xf32>
    %6 = arith.addf %3, %5 : vector<8x1024xf32>
    %cst_5 = arith.constant 0.000000e+00 : f32
    %7 = vector.broadcast %cst_5 : f32 to vector<8x1024xf32>
    %8 = arith.maximumf %6, %7 : vector<8x1024xf32>
    %9 = arith.truncf %8 : vector<8x1024xf32> to vector<8x1024xbf16>
    %10 = vector.extract_strided_slice %9 {offsets = [0, 0], sizes = [6, 1024], strides = [1, 1]} : vector<8x1024xbf16> to vector<6x1024xbf16>
    %c0_6 = arith.constant 0 : index
    %c0_7 = arith.constant 0 : index
    %11 = vector.load %arg3[%c0_6, %c0_7] : memref<1024x512xbf16, #tpu.memory_space<vmem>>, vector<1024x512xbf16>
    %cst_8 = arith.constant dense<0.000000e+00> : vector<6x512xf32>
    %12 = tpu.matmul %10, %11, %cst_8 {dimension_numbers = #tpu.dot_dimension_numbers<[1], [0], [0], [1], [0, 0, 1, 1], [], []>} : vector<6x1024xbf16>, vector<1024x512xbf16>, vector<6x512xf32> -> vector<6x512xf32>
    %13 = vector.extract_strided_slice %9 {offsets = [2, 0], sizes = [6, 1024], strides = [1, 1]} : vector<8x1024xbf16> to vector<6x1024xbf16>
    %c0_9 = arith.constant 0 : index
    %c0_10 = arith.constant 0 : index
    %14 = vector.load %arg4[%c0_9, %c0_10] : memref<1024x512xbf16, #tpu.memory_space<vmem>>, vector<1024x512xbf16>
    %cst_11 = arith.constant dense<0.000000e+00> : vector<6x512xf32>
    %15 = tpu.matmul %13, %14, %cst_11 {dimension_numbers = #tpu.dot_dimension_numbers<[1], [0], [0], [1], [0, 0, 1, 1], [], []>} : vector<6x1024xbf16>, vector<1024x512xbf16>, vector<6x512xf32> -> vector<6x512xf32>
    %c0_12 = arith.constant 0 : index
    %c0_13 = arith.constant 0 : index
    %16 = vector.load %arg5[%c0_12, %c0_13] : memref<1x512xf32, #tpu.memory_space<vmem>>, vector<1x512xf32>
    %cst_14 = arith.constant 0.000000e+00 : f32
    %17 = vector.broadcast %cst_14 : f32 to vector<2x128xf32>
    %18 = vector.extract_strided_slice %12 {offsets = [0, 0], sizes = [2, 512], strides = [1, 1]} : vector<6x512xf32> to vector<2x512xf32>
    %19 = vector.extract_strided_slice %15 {offsets = [0, 0], sizes = [2, 512], strides = [1, 1]} : vector<6x512xf32> to vector<2x512xf32>
    %20 = arith.addf %18, %19 : vector<2x512xf32>
    %21 = vector.broadcast %16 : vector<1x512xf32> to vector<2x512xf32>
    %22 = arith.addf %20, %21 : vector<2x512xf32>
    %cst_15 = arith.constant 0.000000e+00 : f32
    %23 = vector.broadcast %cst_15 : f32 to vector<2x512xf32>
    %24 = arith.maximumf %22, %23 : vector<2x512xf32>
    %25 = arith.truncf %24 : vector<2x512xf32> to vector<2x512xbf16>
    %c0_16 = arith.constant 0 : index
    %c0_17 = arith.constant 0 : index
    %26 = vector.load %arg6[%c0_16, %c0_17] : memref<3072x128xbf16, #tpu.memory_space<vmem>>, vector<512x128xbf16>
    %cst_18 = arith.constant dense<0.000000e+00> : vector<2x128xf32>
    %27 = tpu.matmul %25, %26, %cst_18 {dimension_numbers = #tpu.dot_dimension_numbers<[1], [0], [0], [1], [0, 0, 1, 1], [], []>} : vector<2x512xbf16>, vector<512x128xbf16>, vector<2x128xf32> -> vector<2x128xf32>
    %28 = arith.addf %17, %27 : vector<2x128xf32>
    %29 = vector.extract_strided_slice %12 {offsets = [0, 0], sizes = [2, 512], strides = [1, 1]} : vector<6x512xf32> to vector<2x512xf32>
    %30 = vector.extract_strided_slice %15 {offsets = [2, 0], sizes = [2, 512], strides = [1, 1]} : vector<6x512xf32> to vector<2x512xf32>
    %31 = arith.addf %29, %30 : vector<2x512xf32>
    %32 = vector.broadcast %16 : vector<1x512xf32> to vector<2x512xf32>
    %33 = arith.addf %31, %32 : vector<2x512xf32>
    %cst_19 = arith.constant 0.000000e+00 : f32
    %34 = vector.broadcast %cst_19 : f32 to vector<2x512xf32>
    %35 = arith.maximumf %33, %34 : vector<2x512xf32>
    %36 = arith.truncf %35 : vector<2x512xf32> to vector<2x512xbf16>
    %c512 = arith.constant 512 : index
    %c0_20 = arith.constant 0 : index
    %37 = vector.load %arg6[%c512, %c0_20] : memref<3072x128xbf16, #tpu.memory_space<vmem>>, vector<512x128xbf16>
    %cst_21 = arith.constant dense<0.000000e+00> : vector<2x128xf32>
    %38 = tpu.matmul %36, %37, %cst_21 {dimension_numbers = #tpu.dot_dimension_numbers<[1], [0], [0], [1], [0, 0, 1, 1], [], []>} : vector<2x512xbf16>, vector<512x128xbf16>, vector<2x128xf32> -> vector<2x128xf32>
    %39 = arith.addf %28, %38 : vector<2x128xf32>
    %40 = vector.extract_strided_slice %12 {offsets = [0, 0], sizes = [2, 512], strides = [1, 1]} : vector<6x512xf32> to vector<2x512xf32>
    %41 = vector.extract_strided_slice %15 {offsets = [4, 0], sizes = [2, 512], strides = [1, 1]} : vector<6x512xf32> to vector<2x512xf32>
    %42 = arith.addf %40, %41 : vector<2x512xf32>
    %43 = vector.broadcast %16 : vector<1x512xf32> to vector<2x512xf32>
    %44 = arith.addf %42, %43 : vector<2x512xf32>
    %cst_22 = arith.constant 0.000000e+00 : f32
    %45 = vector.broadcast %cst_22 : f32 to vector<2x512xf32>
    %46 = arith.maximumf %44, %45 : vector<2x512xf32>
    %47 = arith.truncf %46 : vector<2x512xf32> to vector<2x512xbf16>
    %c1024 = arith.constant 1024 : index
    %c0_23 = arith.constant 0 : index
    %48 = vector.load %arg6[%c1024, %c0_23] : memref<3072x128xbf16, #tpu.memory_space<vmem>>, vector<512x128xbf16>
    %cst_24 = arith.constant dense<0.000000e+00> : vector<2x128xf32>
    %49 = tpu.matmul %47, %48, %cst_24 {dimension_numbers = #tpu.dot_dimension_numbers<[1], [0], [0], [1], [0, 0, 1, 1], [], []>} : vector<2x512xbf16>, vector<512x128xbf16>, vector<2x128xf32> -> vector<2x128xf32>
    %50 = arith.addf %39, %49 : vector<2x128xf32>
    %51 = vector.extract_strided_slice %12 {offsets = [2, 0], sizes = [2, 512], strides = [1, 1]} : vector<6x512xf32> to vector<2x512xf32>
    %52 = vector.extract_strided_slice %15 {offsets = [2, 0], sizes = [2, 512], strides = [1, 1]} : vector<6x512xf32> to vector<2x512xf32>
    %53 = arith.addf %51, %52 : vector<2x512xf32>
    %54 = vector.broadcast %16 : vector<1x512xf32> to vector<2x512xf32>
    %55 = arith.addf %53, %54 : vector<2x512xf32>
    %cst_25 = arith.constant 0.000000e+00 : f32
    %56 = vector.broadcast %cst_25 : f32 to vector<2x512xf32>
    %57 = arith.maximumf %55, %56 : vector<2x512xf32>
    %58 = arith.truncf %57 : vector<2x512xf32> to vector<2x512xbf16>
    %c1536 = arith.constant 1536 : index
    %c0_26 = arith.constant 0 : index
    %59 = vector.load %arg6[%c1536, %c0_26] : memref<3072x128xbf16, #tpu.memory_space<vmem>>, vector<512x128xbf16>
    %cst_27 = arith.constant dense<0.000000e+00> : vector<2x128xf32>
    %60 = tpu.matmul %58, %59, %cst_27 {dimension_numbers = #tpu.dot_dimension_numbers<[1], [0], [0], [1], [0, 0, 1, 1], [], []>} : vector<2x512xbf16>, vector<512x128xbf16>, vector<2x128xf32> -> vector<2x128xf32>
    %61 = arith.addf %50, %60 : vector<2x128xf32>
    %62 = vector.extract_strided_slice %12 {offsets = [2, 0], sizes = [2, 512], strides = [1, 1]} : vector<6x512xf32> to vector<2x512xf32>
    %63 = vector.extract_strided_slice %15 {offsets = [4, 0], sizes = [2, 512], strides = [1, 1]} : vector<6x512xf32> to vector<2x512xf32>
    %64 = arith.addf %62, %63 : vector<2x512xf32>
    %65 = vector.broadcast %16 : vector<1x512xf32> to vector<2x512xf32>
    %66 = arith.addf %64, %65 : vector<2x512xf32>
    %cst_28 = arith.constant 0.000000e+00 : f32
    %67 = vector.broadcast %cst_28 : f32 to vector<2x512xf32>
    %68 = arith.maximumf %66, %67 : vector<2x512xf32>
    %69 = arith.truncf %68 : vector<2x512xf32> to vector<2x512xbf16>
    %c2048 = arith.constant 2048 : index
    %c0_29 = arith.constant 0 : index
    %70 = vector.load %arg6[%c2048, %c0_29] : memref<3072x128xbf16, #tpu.memory_space<vmem>>, vector<512x128xbf16>
    %cst_30 = arith.constant dense<0.000000e+00> : vector<2x128xf32>
    %71 = tpu.matmul %69, %70, %cst_30 {dimension_numbers = #tpu.dot_dimension_numbers<[1], [0], [0], [1], [0, 0, 1, 1], [], []>} : vector<2x512xbf16>, vector<512x128xbf16>, vector<2x128xf32> -> vector<2x128xf32>
    %72 = arith.addf %61, %71 : vector<2x128xf32>
    %73 = vector.extract_strided_slice %12 {offsets = [4, 0], sizes = [2, 512], strides = [1, 1]} : vector<6x512xf32> to vector<2x512xf32>
    %74 = vector.extract_strided_slice %15 {offsets = [4, 0], sizes = [2, 512], strides = [1, 1]} : vector<6x512xf32> to vector<2x512xf32>
    %75 = arith.addf %73, %74 : vector<2x512xf32>
    %76 = vector.broadcast %16 : vector<1x512xf32> to vector<2x512xf32>
    %77 = arith.addf %75, %76 : vector<2x512xf32>
    %cst_31 = arith.constant 0.000000e+00 : f32
    %78 = vector.broadcast %cst_31 : f32 to vector<2x512xf32>
    %79 = arith.maximumf %77, %78 : vector<2x512xf32>
    %80 = arith.truncf %79 : vector<2x512xf32> to vector<2x512xbf16>
    %c2560 = arith.constant 2560 : index
    %c0_32 = arith.constant 0 : index
    %81 = vector.load %arg6[%c2560, %c0_32] : memref<3072x128xbf16, #tpu.memory_space<vmem>>, vector<512x128xbf16>
    %cst_33 = arith.constant dense<0.000000e+00> : vector<2x128xf32>
    %82 = tpu.matmul %80, %81, %cst_33 {dimension_numbers = #tpu.dot_dimension_numbers<[1], [0], [0], [1], [0, 0, 1, 1], [], []>} : vector<2x512xbf16>, vector<512x128xbf16>, vector<2x128xf32> -> vector<2x128xf32>
    %83 = arith.addf %72, %82 : vector<2x128xf32>
    %c0_34 = arith.constant 0 : index
    %c0_35 = arith.constant 0 : index
    %84 = vector.load %arg7[%c0_34, %c0_35] : memref<1x128xf32, #tpu.memory_space<vmem>>, vector<1x128xf32>
    %85 = vector.broadcast %84 : vector<1x128xf32> to vector<2x128xf32>
    %86 = arith.addf %83, %85 : vector<2x128xf32>
    %c0_36 = arith.constant 0 : index
    %c0_37 = arith.constant 0 : index
    %87 = vector.load %arg8[%c0_36, %c0_37] : memref<2x128xf32, #tpu.memory_space<vmem>>, vector<2x128xf32>
    tpu.vector_store %arg8[%c0_36, %c0_37], %86 {strides = array<i32>} : memref<2x128xf32, #tpu.memory_space<vmem>>, vector<2x128xf32>,
    return
  }
}

</mosaic_0001>

<llo_original>
// kernel: cnn3d_opn_forward.2
$region0: #{cnn3d_opn_forward.2}
  #allocation0 [shape = 'u32[]', space=smem, size = 0x4, offset = 0x4, fixed_abs, tag = 'smem constant byte address 0x4 - core index']
  #allocation1 [shape = 'u32[144,128]{1,0:T(1,128)}', space=vmem, size = 0x12000, scoped, tag = 'internal scratch']
  %s0 = inlined_call_operand.vmem [shape: bf16[1024,128], index: 0, kind: input, shape index: {}]
  %s1 = inlined_call_operand.vmem [shape: bf16[128,128], index: 1, kind: input, shape index: {}]
  %s2 = inlined_call_operand.vmem [shape: f32[1,128], index: 2, kind: input, shape index: {}]
  %s3 = inlined_call_operand.vmem [shape: bf16[128,512], index: 3, kind: input, shape index: {}]
  %s4 = inlined_call_operand.vmem [shape: f32[1,512], index: 4, kind: input, shape index: {}]
  %s5 = inlined_call_operand.vmem [shape: f32[8,512], index: 5, kind: output, shape index: {}]
  %s6 = sld [smem:[#allocation0]]
  $region30: #{cnn3d_opn_forward.2} parent=0
    _
  %s8 = ssub.s32 1, %s6
  %s9 = scalar_select 0, %s8, %s6
  // Predicated region
  $region2: #{cnn3d_opn_forward.2} parent=0 // pred_check
    _
  $region3: #{cnn3d_opn_forward.2} parent=0 // pred_check_branch
    %11 = sbr.rel (0) target = $region5
  $region4: #{cnn3d_opn_forward.2} parent=0 // pred_region
    _
  $region5: #{cnn3d_opn_forward.2} parent=0 // pred_fallthru
    _
  // Predicated region
  $region6: #{cnn3d_opn_forward.2} parent=0 // pred_check
    _
  $region7: #{cnn3d_opn_forward.2} parent=0 // pred_check_branch
    %13 = sbr.rel (0) target = $region9
  $region8: #{cnn3d_opn_forward.2} parent=0 // pred_region
    _
  $region9: #{cnn3d_opn_forward.2} parent=0 // pred_fallthru
    _
  // Predicated region
  $region10: #{cnn3d_opn_forward.2} parent=0 // pred_check
    _
  $region11: #{cnn3d_opn_forward.2} parent=0 // pred_check_branch
    %15 = sbr.rel (0) target = $region13
  $region12: #{cnn3d_opn_forward.2} parent=0 // pred_region
    _
  $region13: #{cnn3d_opn_forward.2} parent=0 // pred_fallthru
    _
  // Predicated region
  $region14: #{cnn3d_opn_forward.2} parent=0 // pred_check
    _
  $region15: #{cnn3d_opn_forward.2} parent=0 // pred_check_branch
    %17 = sbr.rel (0) target = $region17
  $region16: #{cnn3d_opn_forward.2} parent=0 // pred_region
    _
  $region17: #{cnn3d_opn_forward.2} parent=0 // pred_fallthru
    _
  // Predicated region
  $region18: #{cnn3d_opn_forward.2} parent=0 // pred_check
    _
  $region19: #{cnn3d_opn_forward.2} parent=0 // pred_check_branch
    %19 = sbr.rel (0) target = $region21
  $region20: #{cnn3d_opn_forward.2} parent=0 // pred_region
    _
  $region21: #{cnn3d_opn_forward.2} parent=0 // pred_fallthru
    _
  %v21 = vld [vmem:[%s0] sm:$0xf]
  %v22 = vld [vmem:[%s0 + $0x4] sm:$0xf]
  %v23 = vld [vmem:[%s0 + $0x8] sm:$0xf]
  %v24 = vld [vmem:[%s0 + $0xc] sm:$0xf]
  %v25 = vld [vmem:[%s0 + $0x10] sm:$0xf]
  %v26 = vld [vmem:[%s0 + $0x14] sm:$0xf]
  %v27 = vld [vmem:[%s0 + $0x18] sm:$0xf]
  %v28 = vld [vmem:[%s0 + $0x1c] sm:$0xf]
  %v29 = vld [vmem:[%s0 + $0x20] sm:$0xf]
  %v30 = vld [vmem:[%s0 + $0x24] sm:$0xf]
  %v31 = vld [vmem:[%s0 + $0x28] sm:$0xf]
  %v32 = vld [vmem:[%s0 + $0x2c] sm:$0xf]
  %v33 = vld [vmem:[%s0 + $0x30] sm:$0xf]
  %v34 = vld [vmem:[%s0 + $0x34] sm:$0xf]
  %v35 = vld [vmem:[%s0 + $0x38] sm:$0xf]
  %v36 = vld [vmem:[%s0 + $0x3c] sm:$0xf]
  %v37 = vld [vmem:[%s0 + $0x40] sm:$0xf]
  %v38 = vld [vmem:[%s0 + $0x44] sm:$0xf]
  %v39 = vld [vmem:[%s0 + $0x48] sm:$0xf]
  %v40 = vld [vmem:[%s0 + $0x4c] sm:$0xf]
  %v41 = vld [vmem:[%s0 + $0x50] sm:$0xf]
  %v42 = vld [vmem:[%s0 + $0x54] sm:$0xf]
  %v43 = vld [vmem:[%s0 + $0x58] sm:$0xf]
  %v44 = vld [vmem:[%s0 + $0x5c] sm:$0xf]
  %v45 = vld [vmem:[%s0 + $0x60] sm:$0xf]
  %v46 = vld [vmem:[%s0 + $0x64] sm:$0xf]
  %v47 = vld [vmem:[%s0 + $0x68] sm:$0xf]
  %v48 = vld [vmem:[%s0 + $0x6c] sm:$0xf]
  %v49 = vld [vmem:[%s0 + $0x70] sm:$0xf]
  %v50 = vld [vmem:[%s0 + $0x74] sm:$0xf]
  %v51 = vld [vmem:[%s0 + $0x78] sm:$0xf]
  %v52 = vld [vmem:[%s0 + $0x7c] sm:$0xf]
  %v53 = vld [vmem:[%s0 + $0x80] sm:$0xf]
  %v54 = vld [vmem:[%s0 + $0x84] sm:$0xf]
  %v55 = vld [vmem:[%s0 + $0x88] sm:$0xf]
  %v56 = vld [vmem:[%s0 + $0x8c] sm:$0xf]
  %v57 = vld [vmem:[%s0 + $0x90] sm:$0xf]
  %v58 = vld [vmem:[%s0 + $0x94] sm:$0xf]
  %v59 = vld [vmem:[%s0 + $0x98] sm:$0xf]
  %v60 = vld [vmem:[%s0 + $0x9c] sm:$0xf]
  %v61 = vld [vmem:[%s0 + $0xa0] sm:$0xf]
  %v62 = vld [vmem:[%s0 + $0xa4] sm:$0xf]
  %v63 = vld [vmem:[%s0 + $0xa8] sm:$0xf]
  %v64 = vld [vmem:[%s0 + $0xac] sm:$0xf]
  %v65 = vld [vmem:[%s0 + $0xb0] sm:$0xf]
  %v66 = vld [vmem:[%s0 + $0xb4] sm:$0xf]
  %v67 = vld [vmem:[%s0 + $0xb8] sm:$0xf]
  %v68 = vld [vmem:[%s0 + $0xbc] sm:$0xf]
  %v69 = vld [vmem:[%s0 + $0xc0] sm:$0xf]
  %v70 = vld [vmem:[%s0 + $0xc4] sm:$0xf]
  %v71 = vld [vmem:[%s0 + $0xc8] sm:$0xf]
  %v72 = vld [vmem:[%s0 + $0xcc] sm:$0xf]
  %v73 = vld [vmem:[%s0 + $0xd0] sm:$0xf]
  %v74 = vld [vmem:[%s0 + $0xd4] sm:$0xf]
  %v75 = vld [vmem:[%s0 + $0xd8] sm:$0xf]
  %v76 = vld [vmem:[%s0 + $0xdc] sm:$0xf]
  %v77 = vld [vmem:[%s0 + $0xe0] sm:$0xf]
  %v78 = vld [vmem:[%s0 + $0xe4] sm:$0xf]
  %v79 = vld [vmem:[%s0 + $0xe8] sm:$0xf]
  %v80 = vld [vmem:[%s0 + $0xec] sm:$0xf]
  %v81 = vld [vmem:[%s0 + $0xf0] sm:$0xf]
  %v82 = vld [vmem:[%s0 + $0xf4] sm:$0xf]
  %v83 = vld [vmem:[%s0 + $0xf8] sm:$0xf]
  %v84 = vld [vmem:[%s0 + $0xfc] sm:$0xf]
  %v85 = vld [vmem:[%s0 + $0x100] sm:$0xf]
  %v86 = vld [vmem:[%s0 + $0x104] sm:$0xf]
  %v87 = vld [vmem:[%s0 + $0x108] sm:$0xf]
  %v88 = vld [vmem:[%s0 + $0x10c] sm:$0xf]
  %v89 = vld [vmem:[%s0 + $0x110] sm:$0xf]
  %v90 = vld [vmem:[%s0 + $0x114] sm:$0xf]
  %v91 = vld [vmem:[%s0 + $0x118] sm:$0xf]
  %v92 = vld [vmem:[%s0 + $0x11c] sm:$0xf]
  %v93 = vld [vmem:[%s0 + $0x120] sm:$0xf]
  %v94 = vld [vmem:[%s0 + $0x124] sm:$0xf]
  %v95 = vld [vmem:[%s0 + $0x128] sm:$0xf]
  %v96 = vld [vmem:[%s0 + $0x12c] sm:$0xf]
  %v97 = vld [vmem:[%s0 + $0x130] sm:$0xf]
  %v98 = vld [vmem:[%s0 + $0x134] sm:$0xf]
  %v99 = vld [vmem:[%s0 + $0x138] sm:$0xf]
  %v100 = vld [vmem:[%s0 + $0x13c] sm:$0xf]
  %v101 = vld [vmem:[%s0 + $0x140] sm:$0xf]
  %v102 = vld [vmem:[%s0 + $0x144] sm:$0xf]
  %v103 = vld [vmem:[%s0 + $0x148] sm:$0xf]
  %v104 = vld [vmem:[%s0 + $0x14c] sm:$0xf]
  %v105 = vld [vmem:[%s0 + $0x150] sm:$0xf]
  %v106 = vld [vmem:[%s0 + $0x154] sm:$0xf]
  %v107 = vld [vmem:[%s0 + $0x158] sm:$0xf]
  %v108 = vld [vmem:[%s0 + $0x15c] sm:$0xf]
  %v109 = vld [vmem:[%s0 + $0x160] sm:$0xf]
  %v110 = vld [vmem:[%s0 + $0x164] sm:$0xf]
  %v111 = vld [vmem:[%s0 + $0x168] sm:$0xf]
  %v112 = vld [vmem:[%s0 + $0x16c] sm:$0xf]
  %v113 = vld [vmem:[%s0 + $0x170] sm:$0xf]
  %v114 = vld [vmem:[%s0 + $0x174] sm:$0xf]
  %v115 = vld [vmem:[%s0 + $0x178] sm:$0xf]
  %v116 = vld [vmem:[%s0 + $0x17c] sm:$0xf]
  %v117 = vld [vmem:[%s0 + $0x180] sm:$0xf]
  %v118 = vld [vmem:[%s0 + $0x184] sm:$0xf]
  %v119 = vld [vmem:[%s0 + $0x188] sm:$0xf]
  %v120 = vld [vmem:[%s0 + $0x18c] sm:$0xf]
  %v121 = vld [vmem:[%s0 + $0x190] sm:$0xf]
  %v122 = vld [vmem:[%s0 + $0x194] sm:$0xf]
  %v123 = vld [vmem:[%s0 + $0x198] sm:$0xf]
  %v124 = vld [vmem:[%s0 + $0x19c] sm:$0xf]
  %v125 = vld [vmem:[%s0 + $0x1a0] sm:$0xf]
  %v126 = vld [vmem:[%s0 + $0x1a4] sm:$0xf]
  %v127 = vld [vmem:[%s0 + $0x1a8] sm:$0xf]
  %v128 = vld [vmem:[%s0 + $0x1ac] sm:$0xf]
  %v129 = vld [vmem:[%s0 + $0x1b0] sm:$0xf]
  %v130 = vld [vmem:[%s0 + $0x1b4] sm:$0xf]
  %v131 = vld [vmem:[%s0 + $0x1b8] sm:$0xf]
  %v132 = vld [vmem:[%s0 + $0x1bc] sm:$0xf]
  %v133 = vld [vmem:[%s0 + $0x1c0] sm:$0xf]
  %v134 = vld [vmem:[%s0 + $0x1c4] sm:$0xf]
  %v135 = vld [vmem:[%s0 + $0x1c8] sm:$0xf]
  %v136 = vld [vmem:[%s0 + $0x1cc] sm:$0xf]
  %v137 = vld [vmem:[%s0 + $0x1d0] sm:$0xf]
  %v138 = vld [vmem:[%s0 + $0x1d4] sm:$0xf]
  %v139 = vld [vmem:[%s0 + $0x1d8] sm:$0xf]
  %v140 = vld [vmem:[%s0 + $0x1dc] sm:$0xf]
  %v141 = vld [vmem:[%s0 + $0x1e0] sm:$0xf]
  %v142 = vld [vmem:[%s0 + $0x1e4] sm:$0xf]
  %v143 = vld [vmem:[%s0 + $0x1e8] sm:$0xf]
  %v144 = vld [vmem:[%s0 + $0x1ec] sm:$0xf]
  %v145 = vld [vmem:[%s0 + $0x1f0] sm:$0xf]
  %v146 = vld [vmem:[%s0 + $0x1f4] sm:$0xf]
  %v147 = vld [vmem:[%s0 + $0x1f8] sm:$0xf]
  %v148 = vld [vmem:[%s0 + $0x1fc] sm:$0xf]
  %v149 = vld [vmem:[%s1] sm:$0xf]
  %v150 = vld [vmem:[%s1 + $0x4] sm:$0xf]
  %v151 = vld [vmem:[%s1 + $0x8] sm:$0xf]
  %v152 = vld [vmem:[%s1 + $0xc] sm:$0xf]
  %v153 = vld [vmem:[%s1 + $0x10] sm:$0xf]
  %v154 = vld [vmem:[%s1 + $0x14] sm:$0xf]
  %v155 = vld [vmem:[%s1 + $0x18] sm:$0xf]
  %v156 = vld [vmem:[%s1 + $0x1c] sm:$0xf]
  %v157 = vld [vmem:[%s1 + $0x20] sm:$0xf]
  %v158 = vld [vmem:[%s1 + $0x24] sm:$0xf]
  %v159 = vld [vmem:[%s1 + $0x28] sm:$0xf]
  %v160 = vld [vmem:[%s1 + $0x2c] sm:$0xf]
  %v161 = vld [vmem:[%s1 + $0x30] sm:$0xf]
  %v162 = vld [vmem:[%s1 + $0x34] sm:$0xf]
  %v163 = vld [vmem:[%s1 + $0x38] sm:$0xf]
  %v164 = vld [vmem:[%s1 + $0x3c] sm:$0xf]
  %v165 = vld [vmem:[%s2] sm:$0x1]
  %v167 = vlaneseq
  %v168 = vshrl.u32 %v167, 7
  %v169 = vsub.s32 0, %v168
  %v170 = vrot.slane %v165, %v169
  %v300 = vunpack.c.l.b16 %v21
  %v301 = vunpack.c.l.b16 %v22
  %v302 = vunpack.c.l.b16 %v23
  %v303 = vunpack.c.l.b16 %v24
  %v304 = vunpack.c.l.b16 %v25
  %v305 = vunpack.c.l.b16 %v26
  %v306 = vunpack.c.l.b16 %v27
  %v307 = vunpack.c.l.b16 %v28
  %v308 = vunpack.c.l.b16 %v29
  %v309 = vunpack.c.l.b16 %v30
  %v310 = vunpack.c.l.b16 %v31
  %v311 = vunpack.c.l.b16 %v32
  %v312 = vunpack.c.l.b16 %v33
  %v313 = vunpack.c.l.b16 %v34
  %v314 = vunpack.c.l.b16 %v35
  %v315 = vunpack.c.l.b16 %v36
  %v316 = vunpack.c.l.b16 %v37
  %v317 = vunpack.c.l.b16 %v38
  %v318 = vunpack.c.l.b16 %v39
  %v319 = vunpack.c.l.b16 %v40
  %v320 = vunpack.c.l.b16 %v41
  %v321 = vunpack.c.l.b16 %v42
  %v322 = vunpack.c.l.b16 %v43
  %v323 = vunpack.c.l.b16 %v44
  %v324 = vunpack.c.l.b16 %v45
  %v325 = vunpack.c.l.b16 %v46
  %v326 = vunpack.c.l.b16 %v47
  %v327 = vunpack.c.l.b16 %v48
  %v328 = vunpack.c.l.b16 %v49
  %v329 = vunpack.c.l.b16 %v50
  %v330 = vunpack.c.l.b16 %v51
  %v331 = vunpack.c.l.b16 %v52
  %v332 = vunpack.c.l.b16 %v53
  %v333 = vunpack.c.l.b16 %v54
  %v334 = vunpack.c.l.b16 %v55
  %v335 = vunpack.c.l.b16 %v56
  %v336 = vunpack.c.l.b16 %v57
  %v337 = vunpack.c.l.b16 %v58
  %v338 = vunpack.c.l.b16 %v59
  %v339 = vunpack.c.l.b16 %v60
  %v340 = vunpack.c.l.b16 %v61
  %v341 = vunpack.c.l.b16 %v62
  %v342 = vunpack.c.l.b16 %v63
  %v343 = vunpack.c.l.b16 %v64
  %v344 = vunpack.c.l.b16 %v65
  %v345 = vunpack.c.l.b16 %v66
  %v346 = vunpack.c.l.b16 %v67
  %v347 = vunpack.c.l.b16 %v68
  %v348 = vunpack.c.l.b16 %v69
  %v349 = vunpack.c.l.b16 %v70
  %v350 = vunpack.c.l.b16 %v71
  %v351 = vunpack.c.l.b16 %v72
  %v352 = vunpack.c.l.b16 %v73
  %v353 = vunpack.c.l.b16 %v74
  %v354 = vunpack.c.l.b16 %v75
  %v355 = vunpack.c.l.b16 %v76
  %v356 = vunpack.c.l.b16 %v77
  %v357 = vunpack.c.l.b16 %v78
  %v358 = vunpack.c.l.b16 %v79
  %v359 = vunpack.c.l.b16 %v80
  %v360 = vunpack.c.l.b16 %v81
  %v361 = vunpack.c.l.b16 %v82
  %v362 = vunpack.c.l.b16 %v83
  %v363 = vunpack.c.l.b16 %v84
  %v364 = vunpack.c.l.b16 %v85
  %v365 = vunpack.c.l.b16 %v86
  %v366 = vunpack.c.l.b16 %v87
  %v367 = vunpack.c.l.b16 %v88
  %v368 = vunpack.c.l.b16 %v89
  %v369 = vunpack.c.l.b16 %v90
  %v370 = vunpack.c.l.b16 %v91
  %v371 = vunpack.c.l.b16 %v92
  %v372 = vunpack.c.l.b16 %v93
  %v373 = vunpack.c.l.b16 %v94
  %v374 = vunpack.c.l.b16 %v95
  %v375 = vunpack.c.l.b16 %v96
  %v376 = vunpack.c.l.b16 %v97
  %v377 = vunpack.c.l.b16 %v98
  %v378 = vunpack.c.l.b16 %v99
  %v379 = vunpack.c.l.b16 %v100
  %v380 = vunpack.c.l.b16 %v101
  %v381 = vunpack.c.l.b16 %v102
  %v382 = vunpack.c.l.b16 %v103
  %v383 = vunpack.c.l.b16 %v104
  %v384 = vunpack.c.l.b16 %v105
  %v385 = vunpack.c.l.b16 %v106
  %v386 = vunpack.c.l.b16 %v107
  %v387 = vunpack.c.l.b16 %v108
  %v388 = vunpack.c.l.b16 %v109
  %v389 = vunpack.c.l.b16 %v110
  %v390 = vunpack.c.l.b16 %v111
  %v391 = vunpack.c.l.b16 %v112
  %v392 = vunpack.c.l.b16 %v113
  %v393 = vunpack.c.l.b16 %v114
  %v394 = vunpack.c.l.b16 %v115
  %v395 = vunpack.c.l.b16 %v116
  %v396 = vunpack.c.l.b16 %v117
  %v397 = vunpack.c.l.b16 %v118
  %v398 = vunpack.c.l.b16 %v119
  %v399 = vunpack.c.l.b16 %v120
  %v400 = vunpack.c.l.b16 %v121
  %v401 = vunpack.c.l.b16 %v122
  %v402 = vunpack.c.l.b16 %v123
  %v403 = vunpack.c.l.b16 %v124
  %v404 = vunpack.c.l.b16 %v125
  %v405 = vunpack.c.l.b16 %v126
  %v406 = vunpack.c.l.b16 %v127
  %v407 = vunpack.c.l.b16 %v128
  %v408 = vunpack.c.l.b16 %v129
  %v409 = vunpack.c.l.b16 %v130
  %v410 = vunpack.c.l.b16 %v131
  %v411 = vunpack.c.l.b16 %v132
  %v412 = vunpack.c.l.b16 %v133
  %v413 = vunpack.c.l.b16 %v134
  %v414 = vunpack.c.l.b16 %v135
  %v415 = vunpack.c.l.b16 %v136
  %v416 = vunpack.c.l.b16 %v137
  %v417 = vunpack.c.l.b16 %v138
  %v418 = vunpack.c.l.b16 %v139
  %v419 = vunpack.c.l.b16 %v140
  %v420 = vunpack.c.l.b16 %v141
  %v421 = vunpack.c.l.b16 %v142
  %v422 = vunpack.c.l.b16 %v143
  %v423 = vunpack.c.l.b16 %v144
  %v424 = vunpack.c.l.b16 %v145
  %v425 = vunpack.c.l.b16 %v146
  %v426 = vunpack.c.l.b16 %v147
  %v427 = vunpack.c.l.b16 %v148
  %v428 = vpack.c.b16 %v301, %v300
  %v429 = vpack.c.b16 %v303, %v302
  %v430 = vpack.c.b16 %v305, %v304
  %v431 = vpack.c.b16 %v307, %v306
  %v432 = vpack.c.b16 %v309, %v308
  %v433 = vpack.c.b16 %v311, %v310
  %v434 = vpack.c.b16 %v313, %v312
  %v435 = vpack.c.b16 %v315, %v314
  %v436 = vpack.c.b16 %v317, %v316
  %v437 = vpack.c.b16 %v319, %v318
  %v438 = vpack.c.b16 %v321, %v320
  %v439 = vpack.c.b16 %v323, %v322
  %v440 = vpack.c.b16 %v325, %v324
  %v441 = vpack.c.b16 %v327, %v326
  %v442 = vpack.c.b16 %v329, %v328
  %v443 = vpack.c.b16 %v331, %v330
  %v444 = vpack.c.b16 %v333, %v332
  %v445 = vpack.c.b16 %v335, %v334
  %v446 = vpack.c.b16 %v337, %v336
  %v447 = vpack.c.b16 %v339, %v338
  %v448 = vpack.c.b16 %v341, %v340
  %v449 = vpack.c.b16 %v343, %v342
  %v450 = vpack.c.b16 %v345, %v344
  %v451 = vpack.c.b16 %v347, %v346
  %v452 = vpack.c.b16 %v349, %v348
  %v453 = vpack.c.b16 %v351, %v350
  %v454 = vpack.c.b16 %v353, %v352
  %v455 = vpack.c.b16 %v355, %v354
  %v456 = vpack.c.b16 %v357, %v356
  %v457 = vpack.c.b16 %v359, %v358
  %v458 = vpack.c.b16 %v361, %v360
  %v459 = vpack.c.b16 %v363, %v362
  %v460 = vpack.c.b16 %v365, %v364
  %v461 = vpack.c.b16 %v367, %v366
  %v462 = vpack.c.b16 %v369, %v368
  %v463 = vpack.c.b16 %v371, %v370
  %v464 = vpack.c.b16 %v373, %v372
  %v465 = vpack.c.b16 %v375, %v374
  %v466 = vpack.c.b16 %v377, %v376
  %v467 = vpack.c.b16 %v379, %v378
  %v468 = vpack.c.b16 %v381, %v380
  %v469 = vpack.c.b16 %v383, %v382
  %v470 = vpack.c.b16 %v385, %v384
  %v471 = vpack.c.b16 %v387, %v386
  %v472 = vpack.c.b16 %v389, %v388
  %v473 = vpack.c.b16 %v391, %v390
  %v474 = vpack.c.b16 %v393, %v392
  %v475 = vpack.c.b16 %v395, %v394
  %v476 = vpack.c.b16 %v397, %v396
  %v477 = vpack.c.b16 %v399, %v398
  %v478 = vpack.c.b16 %v401, %v400
  %v479 = vpack.c.b16 %v403, %v402
  %v480 = vpack.c.b16 %v405, %v404
  %v481 = vpack.c.b16 %v407, %v406
  %v482 = vpack.c.b16 %v409, %v408
  %v483 = vpack.c.b16 %v411, %v410
  %v484 = vpack.c.b16 %v413, %v412
  %v485 = vpack.c.b16 %v415, %v414
  %v486 = vpack.c.b16 %v417, %v416
  %v487 = vpack.c.b16 %v419, %v418
  %v488 = vpack.c.b16 %v421, %v420
  %v489 = vpack.c.b16 %v423, %v422
  %v490 = vpack.c.b16 %v425, %v424
  %v491 = vpack.c.b16 %v427, %v426
  %v572 = vunpack.c.l.b16 %v149
  %v573 = vunpack.c.l.b16 %v150
  %v574 = vunpack.c.l.b16 %v151
  %v575 = vunpack.c.l.b16 %v152
  %v576 = vunpack.c.l.b16 %v153
  %v577 = vunpack.c.l.b16 %v154
  %v578 = vunpack.c.l.b16 %v155
  %v579 = vunpack.c.l.b16 %v156
  %v580 = vunpack.c.l.b16 %v157
  %v581 = vunpack.c.l.b16 %v158
  %v582 = vunpack.c.l.b16 %v159
  %v583 = vunpack.c.l.b16 %v160
  %v584 = vunpack.c.l.b16 %v161
  %v585 = vunpack.c.l.b16 %v162
  %v586 = vunpack.c.l.b16 %v163
  %v587 = vunpack.c.l.b16 %v164
  %v588 = vpack.c.b16 %v573, %v572
  %v589 = vpack.c.b16 %v575, %v574
  %v590 = vpack.c.b16 %v577, %v576
  %v591 = vpack.c.b16 %v579, %v578
  %v592 = vpack.c.b16 %v581, %v580
  %v593 = vpack.c.b16 %v583, %v582
  %v594 = vpack.c.b16 %v585, %v584
  %v595 = vpack.c.b16 %v587, %v586
  %604 = vmatprep.subr.bf16.mxu0 0
  %605 = vmatpush1.bf16.msra.mxu0 %v595
  %606 = vmatprep.subr.bf16.mxu0 0
  %607 = vmatpush1.bf16.msra.mxu0 %v594
  %608 = vmatprep.subr.bf16.mxu0 0
  %609 = vmatpush1.bf16.msra.mxu0 %v593
  %610 = vmatprep.subr.bf16.mxu0 0
  %611 = vmatpush1.bf16.msra.mxu0 %v592
  %612 = vmatprep.subr.bf16.mxu0 0
  %613 = vmatpush1.bf16.msra.mxu0 %v591
  %614 = vmatprep.subr.bf16.mxu0 0
  %615 = vmatpush1.bf16.msra.mxu0 %v590
  %616 = vmatprep.subr.bf16.mxu0 0
  %617 = vmatpush1.bf16.msra.mxu0 %v589
  %618 = vmatprep.subr.bf16.mxu0 0
  %619 = vmatpush1.bf16.msra.mxu0 %v588
  %620 = vmatprep.subr.bf16.mxu0 0
  %621 = vmatpush2.bf16.msra.mxu0 0
  %622 = vmatprep.subr.bf16.mxu0 0
  %623 = vmatpush2.bf16.msra.mxu0 0
  %624 = vmatprep.subr.bf16.mxu0 0
  %625 = vmatpush2.bf16.msra.mxu0 0
  %626 = vmatprep.subr.bf16.mxu0 0
  %627 = vmatpush2.bf16.msra.mxu0 0
  %628 = vmatprep.subr.bf16.mxu0 0
  %629 = vmatpush2.bf16.msra.mxu0 0
  %630 = vmatprep.subr.bf16.mxu0 0
  %631 = vmatpush2.bf16.msra.mxu0 0
  %632 = vmatprep.subr.bf16.mxu0 0
  %633 = vmatpush2.bf16.msra.mxu0 0
  %634 = vmatprep.subr.bf16.mxu0 0
  %635 = vmatpush2.bf16.msra.mxu0 0
  %636 = vmatprep.mubr.bf16.mxu0 0
  %637 = vmatmul.mubr.bf16.gmra.mxu0 %v428
  %v638 = vpop.f32.mrf.mxu0
  %v639 = vadd.f32 %v170, %v638
  %v640 = vpop.f32.mrf.mxu0
  %v641 = vpop.f32.mrf.mxu0
  %v642 = vadd.f32 %v170, %v641
  %v643 = vpop.f32.mrf.mxu0
  %644 = vmatprep.mubr.bf16.mxu0 0
  %645 = vmatmul.mubr.bf16.gmra.mxu0 %v429
  %v646 = vpop.f32.mrf.mxu0
  %v647 = vadd.f32 %v170, %v646
  %v648 = vpop.f32.mrf.mxu0
  %v649 = vpop.f32.mrf.mxu0
  %v650 = vadd.f32 %v170, %v649
  %v651 = vpop.f32.mrf.mxu0
  %652 = vmatprep.mubr.bf16.mxu0 0
  %653 = vmatmul.mubr.bf16.gmra.mxu0 %v430
  %v654 = vpop.f32.mrf.mxu0
  %v655 = vadd.f32 %v170, %v654
  %v656 = vpop.f32.mrf.mxu0
  %v657 = vpop.f32.mrf.mxu0
  %v658 = vadd.f32 %v170, %v657
  %v659 = vpop.f32.mrf.mxu0
  %660 = vmatprep.mubr.bf16.mxu0 0
  %661 = vmatmul.mubr.bf16.gmra.mxu0 %v431
  %v662 = vpop.f32.mrf.mxu0
  %v663 = vadd.f32 %v170, %v662
  %v664 = vpop.f32.mrf.mxu0
  %v665 = vpop.f32.mrf.mxu0
  %v666 = vadd.f32 %v170, %v665
  %v667 = vpop.f32.mrf.mxu0
  %668 = vmatprep.mubr.bf16.mxu0 0
  %669 = vmatmul.mubr.bf16.gmra.mxu0 %v432
  %v670 = vpop.f32.mrf.mxu0
  %v671 = vadd.f32 %v170, %v670
  %v672 = vpop.f32.mrf.mxu0
  %v673 = vpop.f32.mrf.mxu0
  %v674 = vadd.f32 %v170, %v673
  %v675 = vpop.f32.mrf.mxu0
  %676 = vmatprep.mubr.bf16.mxu0 0
  %677 = vmatmul.mubr.bf16.gmra.mxu0 %v433
  %v678 = vpop.f32.mrf.mxu0
  %v679 = vadd.f32 %v170, %v678
  %v680 = vpop.f32.mrf.mxu0
  %v681 = vpop.f32.mrf.mxu0
  %v682 = vadd.f32 %v170, %v681
  %v683 = vpop.f32.mrf.mxu0
  %684 = vmatprep.mubr.bf16.mxu0 0
  %685 = vmatmul.mubr.bf16.gmra.mxu0 %v434
  %v686 = vpop.f32.mrf.mxu0
  %v687 = vadd.f32 %v170, %v686
  %v688 = vpop.f32.mrf.mxu0
  %v689 = vpop.f32.mrf.mxu0
  %v690 = vadd.f32 %v170, %v689
  %v691 = vpop.f32.mrf.mxu0
  %692 = vmatprep.mubr.bf16.mxu0 0
  %693 = vmatmul.mubr.bf16.gmra.mxu0 %v435
  %v694 = vpop.f32.mrf.mxu0
  %v695 = vadd.f32 %v170, %v694
  %v696 = vpop.f32.mrf.mxu0
  %v697 = vpop.f32.mrf.mxu0
  %v698 = vadd.f32 %v170, %v697
  %v699 = vpop.f32.mrf.mxu0
  %700 = vmatprep.mubr.bf16.mxu0 0
  %701 = vmatmul.mubr.bf16.gmra.mxu0 %v436
  %v702 = vpop.f32.mrf.mxu0
  %v703 = vadd.f32 %v170, %v702
  %v704 = vpop.f32.mrf.mxu0
  %v705 = vpop.f32.mrf.mxu0
  %v706 = vadd.f32 %v170, %v705
  %v707 = vpop.f32.mrf.mxu0
  %708 = vmatprep.mubr.bf16.mxu0 0
  %709 = vmatmul.mubr.bf16.gmra.mxu0 %v437
  %v710 = vpop.f32.mrf.mxu0
  %v711 = vadd.f32 %v170, %v710
  %v712 = vpop.f32.mrf.mxu0
  %v713 = vpop.f32.mrf.mxu0
  %v714 = vadd.f32 %v170, %v713
  %v715 = vpop.f32.mrf.mxu0
  %716 = vmatprep.mubr.bf16.mxu0 0
  %717 = vmatmul.mubr.bf16.gmra.mxu0 %v438
  %v718 = vpop.f32.mrf.mxu0
  %v719 = vadd.f32 %v170, %v718
  %v720 = vpop.f32.mrf.mxu0
  %v721 = vpop.f32.mrf.mxu0
  %v722 = vadd.f32 %v170, %v721
  %v723 = vpop.f32.mrf.mxu0
  %724 = vmatprep.mubr.bf16.mxu0 0
  %725 = vmatmul.mubr.bf16.gmra.mxu0 %v439
  %v726 = vpop.f32.mrf.mxu0
  %v727 = vadd.f32 %v170, %v726
  %v728 = vpop.f32.mrf.mxu0
  %v729 = vpop.f32.mrf.mxu0
  %v730 = vadd.f32 %v170, %v729
  %v731 = vpop.f32.mrf.mxu0
  %732 = vmatprep.mubr.bf16.mxu0 0
  %733 = vmatmul.mubr.bf16.gmra.mxu0 %v440
  %v734 = vpop.f32.mrf.mxu0
  %v735 = vadd.f32 %v170, %v734
  %v736 = vpop.f32.mrf.mxu0
  %v737 = vpop.f32.mrf.mxu0
  %v738 = vadd.f32 %v170, %v737
  %v739 = vpop.f32.mrf.mxu0
  %740 = vmatprep.mubr.bf16.mxu0 0
  %741 = vmatmul.mubr.bf16.gmra.mxu0 %v441
  %v742 = vpop.f32.mrf.mxu0
  %v743 = vadd.f32 %v170, %v742
  %v744 = vpop.f32.mrf.mxu0
  %v745 = vpop.f32.mrf.mxu0
  %v746 = vadd.f32 %v170, %v745
  %v747 = vpop.f32.mrf.mxu0
  %748 = vmatprep.mubr.bf16.mxu0 0
  %749 = vmatmul.mubr.bf16.gmra.mxu0 %v442
  %v750 = vpop.f32.mrf.mxu0
  %v751 = vadd.f32 %v170, %v750
  %v752 = vpop.f32.mrf.mxu0
  %v753 = vpop.f32.mrf.mxu0
  %v754 = vadd.f32 %v170, %v753
  %v755 = vpop.f32.mrf.mxu0
  %756 = vmatprep.mubr.bf16.mxu0 0
  %757 = vmatmul.mubr.bf16.gmra.mxu0 %v443
  %v758 = vpop.f32.mrf.mxu0
  %v759 = vadd.f32 %v170, %v758
  %v760 = vpop.f32.mrf.mxu0
  %v761 = vpop.f32.mrf.mxu0
  %v762 = vadd.f32 %v170, %v761
  %v763 = vpop.f32.mrf.mxu0
  %764 = vmatprep.mubr.bf16.mxu0 0
  %765 = vmatmul.mubr.bf16.gmra.mxu0 %v444
  %v766 = vpop.f32.mrf.mxu0
  %v767 = vadd.f32 %v170, %v766
  %v768 = vpop.f32.mrf.mxu0
  %v769 = vpop.f32.mrf.mxu0
  %v770 = vadd.f32 %v170, %v769
  %v771 = vpop.f32.mrf.mxu0
  %772 = vmatprep.mubr.bf16.mxu0 0
  %773 = vmatmul.mubr.bf16.gmra.mxu0 %v445
  %v774 = vpop.f32.mrf.mxu0
  %v775 = vadd.f32 %v170, %v774
  %v776 = vpop.f32.mrf.mxu0
  %v777 = vpop.f32.mrf.mxu0
  %v778 = vadd.f32 %v170, %v777
  %v779 = vpop.f32.mrf.mxu0
  %780 = vmatprep.mubr.bf16.mxu0 0
  %781 = vmatmul.mubr.bf16.gmra.mxu0 %v446
  %v782 = vpop.f32.mrf.mxu0
  %v783 = vadd.f32 %v170, %v782
  %v784 = vpop.f32.mrf.mxu0
  %v785 = vpop.f32.mrf.mxu0
  %v786 = vadd.f32 %v170, %v785
  %v787 = vpop.f32.mrf.mxu0
  %788 = vmatprep.mubr.bf16.mxu0 0
  %789 = vmatmul.mubr.bf16.gmra.mxu0 %v447
  %v790 = vpop.f32.mrf.mxu0
  %v791 = vadd.f32 %v170, %v790
  %v792 = vpop.f32.mrf.mxu0
  %v793 = vpop.f32.mrf.mxu0
  %v794 = vadd.f32 %v170, %v793
  %v795 = vpop.f32.mrf.mxu0
  %796 = vmatprep.mubr.bf16.mxu0 0
  %797 = vmatmul.mubr.bf16.gmra.mxu0 %v448
  %v798 = vpop.f32.mrf.mxu0
  %v799 = vadd.f32 %v170, %v798
  %v800 = vpop.f32.mrf.mxu0
  %v801 = vpop.f32.mrf.mxu0
  %v802 = vadd.f32 %v170, %v801
  %v803 = vpop.f32.mrf.mxu0
  %804 = vmatprep.mubr.bf16.mxu0 0
  %805 = vmatmul.mubr.bf16.gmra.mxu0 %v449
  %v806 = vpop.f32.mrf.mxu0
  %v807 = vadd.f32 %v170, %v806
  %v808 = vpop.f32.mrf.mxu0
  %v809 = vpop.f32.mrf.mxu0
  %v810 = vadd.f32 %v170, %v809
  %v811 = vpop.f32.mrf.mxu0
  %812 = vmatprep.mubr.bf16.mxu0 0
  %813 = vmatmul.mubr.bf16.gmra.mxu0 %v450
  %v814 = vpop.f32.mrf.mxu0
  %v815 = vadd.f32 %v170, %v814
  %v816 = vpop.f32.mrf.mxu0
  %v817 = vpop.f32.mrf.mxu0
  %v818 = vadd.f32 %v170, %v817
  %v819 = vpop.f32.mrf.mxu0
  %820 = vmatprep.mubr.bf16.mxu0 0
  %821 = vmatmul.mubr.bf16.gmra.mxu0 %v451
  %v822 = vpop.f32.mrf.mxu0
  %v823 = vadd.f32 %v170, %v822
  %v824 = vpop.f32.mrf.mxu0
  %v825 = vpop.f32.mrf.mxu0
  %v826 = vadd.f32 %v170, %v825
  %v827 = vpop.f32.mrf.mxu0
  %828 = vmatprep.mubr.bf16.mxu0 0
  %829 = vmatmul.mubr.bf16.gmra.mxu0 %v452
  %v830 = vpop.f32.mrf.mxu0
  %v831 = vadd.f32 %v170, %v830
  %v832 = vpop.f32.mrf.mxu0
  %v833 = vpop.f32.mrf.mxu0
  %v834 = vadd.f32 %v170, %v833
  %v835 = vpop.f32.mrf.mxu0
  %836 = vmatprep.mubr.bf16.mxu0 0
  %837 = vmatmul.mubr.bf16.gmra.mxu0 %v453
  %v838 = vpop.f32.mrf.mxu0
  %v839 = vadd.f32 %v170, %v838
  %v840 = vpop.f32.mrf.mxu0
  %v841 = vpop.f32.mrf.mxu0
  %v842 = vadd.f32 %v170, %v841
  %v843 = vpop.f32.mrf.mxu0
  %844 = vmatprep.mubr.bf16.mxu0 0
  %845 = vmatmul.mubr.bf16.gmra.mxu0 %v454
  %v846 = vpop.f32.mrf.mxu0
  %v847 = vadd.f32 %v170, %v846
  %v848 = vpop.f32.mrf.mxu0
  %v849 = vpop.f32.mrf.mxu0
  %v850 = vadd.f32 %v170, %v849
  %v851 = vpop.f32.mrf.mxu0
  %852 = vmatprep.mubr.bf16.mxu0 0
  %853 = vmatmul.mubr.bf16.gmra.mxu0 %v455
  %v854 = vpop.f32.mrf.mxu0
  %v855 = vadd.f32 %v170, %v854
  %v856 = vpop.f32.mrf.mxu0
  %v857 = vpop.f32.mrf.mxu0
  %v858 = vadd.f32 %v170, %v857
  %v859 = vpop.f32.mrf.mxu0
  %860 = vmatprep.mubr.bf16.mxu0 0
  %861 = vmatmul.mubr.bf16.gmra.mxu0 %v456
  %v862 = vpop.f32.mrf.mxu0
  %v863 = vadd.f32 %v170, %v862
  %v864 = vpop.f32.mrf.mxu0
  %v865 = vpop.f32.mrf.mxu0
  %v866 = vadd.f32 %v170, %v865
  %v867 = vpop.f32.mrf.mxu0
  %868 = vmatprep.mubr.bf16.mxu0 0
  %869 = vmatmul.mubr.bf16.gmra.mxu0 %v457
  %v870 = vpop.f32.mrf.mxu0
  %v871 = vadd.f32 %v170, %v870
  %v872 = vpop.f32.mrf.mxu0
  %v873 = vpop.f32.mrf.mxu0
  %v874 = vadd.f32 %v170, %v873
  %v875 = vpop.f32.mrf.mxu0
  %876 = vmatprep.mubr.bf16.mxu0 0
  %877 = vmatmul.mubr.bf16.gmra.mxu0 %v458
  %v878 = vpop.f32.mrf.mxu0
  %v879 = vadd.f32 %v170, %v878
  %v880 = vpop.f32.mrf.mxu0
  %v881 = vpop.f32.mrf.mxu0
  %v882 = vadd.f32 %v170, %v881
  %v883 = vpop.f32.mrf.mxu0
  %884 = vmatprep.mubr.bf16.mxu0 0
  %885 = vmatmul.mubr.bf16.gmra.mxu0 %v459
  %v886 = vpop.f32.mrf.mxu0
  %v887 = vadd.f32 %v170, %v886
  %v888 = vpop.f32.mrf.mxu0
  %v889 = vpop.f32.mrf.mxu0
  %v890 = vadd.f32 %v170, %v889
  %v891 = vpop.f32.mrf.mxu0
  %892 = vmatprep.mubr.bf16.mxu0 0
  %893 = vmatmul.mubr.bf16.gmra.mxu0 %v460
  %v894 = vpop.f32.mrf.mxu0
  %v895 = vadd.f32 %v170, %v894
  %v896 = vpop.f32.mrf.mxu0
  %v897 = vpop.f32.mrf.mxu0
  %v898 = vadd.f32 %v170, %v897
  %v899 = vpop.f32.mrf.mxu0
  %900 = vmatprep.mubr.bf16.mxu0 0
  %901 = vmatmul.mubr.bf16.gmra.mxu0 %v461
  %v902 = vpop.f32.mrf.mxu0
  %v903 = vadd.f32 %v170, %v902
  %v904 = vpop.f32.mrf.mxu0
  %v905 = vpop.f32.mrf.mxu0
  %v906 = vadd.f32 %v170, %v905
  %v907 = vpop.f32.mrf.mxu0
  %908 = vmatprep.mubr.bf16.mxu0 0
  %909 = vmatmul.mubr.bf16.gmra.mxu0 %v462
  %v910 = vpop.f32.mrf.mxu0
  %v911 = vadd.f32 %v170, %v910
  %v912 = vpop.f32.mrf.mxu0
  %v913 = vpop.f32.mrf.mxu0
  %v914 = vadd.f32 %v170, %v913
  %v915 = vpop.f32.mrf.mxu0
  %916 = vmatprep.mubr.bf16.mxu0 0
  %917 = vmatmul.mubr.bf16.gmra.mxu0 %v463
  %v918 = vpop.f32.mrf.mxu0
  %v919 = vadd.f32 %v170, %v918
  %v920 = vpop.f32.mrf.mxu0
  %v921 = vpop.f32.mrf.mxu0
  %v922 = vadd.f32 %v170, %v921
  %v923 = vpop.f32.mrf.mxu0
  %924 = vmatprep.mubr.bf16.mxu0 0
  %925 = vmatmul.mubr.bf16.gmra.mxu0 %v464
  %v926 = vpop.f32.mrf.mxu0
  %v927 = vadd.f32 %v170, %v926
  %v928 = vpop.f32.mrf.mxu0
  %v929 = vpop.f32.mrf.mxu0
  %v930 = vadd.f32 %v170, %v929
  %v931 = vpop.f32.mrf.mxu0
  %932 = vmatprep.mubr.bf16.mxu0 0
  %933 = vmatmul.mubr.bf16.gmra.mxu0 %v465
  %v934 = vpop.f32.mrf.mxu0
  %v935 = vadd.f32 %v170, %v934
  %v936 = vpop.f32.mrf.mxu0
  %v937 = vpop.f32.mrf.mxu0
  %v938 = vadd.f32 %v170, %v937
  %v939 = vpop.f32.mrf.mxu0
  %940 = vmatprep.mubr.bf16.mxu0 0
  %941 = vmatmul.mubr.bf16.gmra.mxu0 %v466
  %v942 = vpop.f32.mrf.mxu0
  %v943 = vadd.f32 %v170, %v942
  %v944 = vpop.f32.mrf.mxu0
  %v945 = vpop.f32.mrf.mxu0
  %v946 = vadd.f32 %v170, %v945
  %v947 = vpop.f32.mrf.mxu0
  %948 = vmatprep.mubr.bf16.mxu0 0
  %949 = vmatmul.mubr.bf16.gmra.mxu0 %v467
  %v950 = vpop.f32.mrf.mxu0
  %v951 = vadd.f32 %v170, %v950
  %v952 = vpop.f32.mrf.mxu0
  %v953 = vpop.f32.mrf.mxu0
  %v954 = vadd.f32 %v170, %v953
  %v955 = vpop.f32.mrf.mxu0
  %956 = vmatprep.mubr.bf16.mxu0 0
  %957 = vmatmul.mubr.bf16.gmra.mxu0 %v468
  %v958 = vpop.f32.mrf.mxu0
  %v959 = vadd.f32 %v170, %v958
  %v960 = vpop.f32.mrf.mxu0
  %v961 = vpop.f32.mrf.mxu0
  %v962 = vadd.f32 %v170, %v961
  %v963 = vpop.f32.mrf.mxu0
  %964 = vmatprep.mubr.bf16.mxu0 0
  %965 = vmatmul.mubr.bf16.gmra.mxu0 %v469
  %v966 = vpop.f32.mrf.mxu0
  %v967 = vadd.f32 %v170, %v966
  %v968 = vpop.f32.mrf.mxu0
  %v969 = vpop.f32.mrf.mxu0
  %v970 = vadd.f32 %v170, %v969
  %v971 = vpop.f32.mrf.mxu0
  %972 = vmatprep.mubr.bf16.mxu0 0
  %973 = vmatmul.mubr.bf16.gmra.mxu0 %v470
  %v974 = vpop.f32.mrf.mxu0
  %v975 = vadd.f32 %v170, %v974
  %v976 = vpop.f32.mrf.mxu0
  %v977 = vpop.f32.mrf.mxu0
  %v978 = vadd.f32 %v170, %v977
  %v979 = vpop.f32.mrf.mxu0
  %980 = vmatprep.mubr.bf16.mxu0 0
  %981 = vmatmul.mubr.bf16.gmra.mxu0 %v471
  %v982 = vpop.f32.mrf.mxu0
  %v983 = vadd.f32 %v170, %v982
  %v984 = vpop.f32.mrf.mxu0
  %v985 = vpop.f32.mrf.mxu0
  %v986 = vadd.f32 %v170, %v985
  %v987 = vpop.f32.mrf.mxu0
  %988 = vmatprep.mubr.bf16.mxu0 0
  %989 = vmatmul.mubr.bf16.gmra.mxu0 %v472
  %v990 = vpop.f32.mrf.mxu0
  %v991 = vadd.f32 %v170, %v990
  %v992 = vpop.f32.mrf.mxu0
  %v993 = vpop.f32.mrf.mxu0
  %v994 = vadd.f32 %v170, %v993
  %v995 = vpop.f32.mrf.mxu0
  %996 = vmatprep.mubr.bf16.mxu0 0
  %997 = vmatmul.mubr.bf16.gmra.mxu0 %v473
  %v998 = vpop.f32.mrf.mxu0
  %v999 = vadd.f32 %v170, %v998
  %v1000 = vpop.f32.mrf.mxu0
  %v1001 = vpop.f32.mrf.mxu0
  %v1002 = vadd.f32 %v170, %v1001
  %v1003 = vpop.f32.mrf.mxu0
  %1004 = vmatprep.mubr.bf16.mxu0 0
  %1005 = vmatmul.mubr.bf16.gmra.mxu0 %v474
  %v1006 = vpop.f32.mrf.mxu0
  %v1007 = vadd.f32 %v170, %v1006
  %v1008 = vpop.f32.mrf.mxu0
  %v1009 = vpop.f32.mrf.mxu0
  %v1010 = vadd.f32 %v170, %v1009
  %v1011 = vpop.f32.mrf.mxu0
  %1012 = vmatprep.mubr.bf16.mxu0 0
  %1013 = vmatmul.mubr.bf16.gmra.mxu0 %v475
  %v1014 = vpop.f32.mrf.mxu0
  %v1015 = vadd.f32 %v170, %v1014
  %v1016 = vpop.f32.mrf.mxu0
  %v1017 = vpop.f32.mrf.mxu0
  %v1018 = vadd.f32 %v170, %v1017
  %v1019 = vpop.f32.mrf.mxu0
  %1020 = vmatprep.mubr.bf16.mxu0 0
  %1021 = vmatmul.mubr.bf16.gmra.mxu0 %v476
  %v1022 = vpop.f32.mrf.mxu0
  %v1023 = vadd.f32 %v170, %v1022
  %v1024 = vpop.f32.mrf.mxu0
  %v1025 = vpop.f32.mrf.mxu0
  %v1026 = vadd.f32 %v170, %v1025
  %v1027 = vpop.f32.mrf.mxu0
  %1028 = vmatprep.mubr.bf16.mxu0 0
  %1029 = vmatmul.mubr.bf16.gmra.mxu0 %v477
  %v1030 = vpop.f32.mrf.mxu0
  %v1031 = vadd.f32 %v170, %v1030
  %v1032 = vpop.f32.mrf.mxu0
  %v1033 = vpop.f32.mrf.mxu0
  %v1034 = vadd.f32 %v170, %v1033
  %v1035 = vpop.f32.mrf.mxu0
  %1036 = vmatprep.mubr.bf16.mxu0 0
  %1037 = vmatmul.mubr.bf16.gmra.mxu0 %v478
  %v1038 = vpop.f32.mrf.mxu0
  %v1039 = vadd.f32 %v170, %v1038
  %v1040 = vpop.f32.mrf.mxu0
  %v1041 = vpop.f32.mrf.mxu0
  %v1042 = vadd.f32 %v170, %v1041
  %v1043 = vpop.f32.mrf.mxu0
  %1044 = vmatprep.mubr.bf16.mxu0 0
  %1045 = vmatmul.mubr.bf16.gmra.mxu0 %v479
  %v1046 = vpop.f32.mrf.mxu0
  %v1047 = vadd.f32 %v170, %v1046
  %v1048 = vpop.f32.mrf.mxu0
  %v1049 = vpop.f32.mrf.mxu0
  %v1050 = vadd.f32 %v170, %v1049
  %v1051 = vpop.f32.mrf.mxu0
  %1052 = vmatprep.mubr.bf16.mxu0 0
  %1053 = vmatmul.mubr.bf16.gmra.mxu0 %v480
  %v1054 = vpop.f32.mrf.mxu0
  %v1055 = vadd.f32 %v170, %v1054
  %v1056 = vpop.f32.mrf.mxu0
  %v1057 = vpop.f32.mrf.mxu0
  %v1058 = vadd.f32 %v170, %v1057
  %v1059 = vpop.f32.mrf.mxu0
  %1060 = vmatprep.mubr.bf16.mxu0 0
  %1061 = vmatmul.mubr.bf16.gmra.mxu0 %v481
  %v1062 = vpop.f32.mrf.mxu0
  %v1063 = vadd.f32 %v170, %v1062
  %v1064 = vpop.f32.mrf.mxu0
  %v1065 = vpop.f32.mrf.mxu0
  %v1066 = vadd.f32 %v170, %v1065
  %v1067 = vpop.f32.mrf.mxu0
  %1068 = vmatprep.mubr.bf16.mxu0 0
  %1069 = vmatmul.mubr.bf16.gmra.mxu0 %v482
  %v1070 = vpop.f32.mrf.mxu0
  %v1071 = vadd.f32 %v170, %v1070
  %v1072 = vpop.f32.mrf.mxu0
  %v1073 = vpop.f32.mrf.mxu0
  %v1074 = vadd.f32 %v170, %v1073
  %v1075 = vpop.f32.mrf.mxu0
  %1076 = vmatprep.mubr.bf16.mxu0 0
  %1077 = vmatmul.mubr.bf16.gmra.mxu0 %v483
  %v1078 = vpop.f32.mrf.mxu0
  %v1079 = vadd.f32 %v170, %v1078
  %v1080 = vpop.f32.mrf.mxu0
  %v1081 = vpop.f32.mrf.mxu0
  %v1082 = vadd.f32 %v170, %v1081
  %v1083 = vpop.f32.mrf.mxu0
  %1084 = vmatprep.mubr.bf16.mxu0 0
  %1085 = vmatmul.mubr.bf16.gmra.mxu0 %v484
  %v1086 = vpop.f32.mrf.mxu0
  %v1087 = vadd.f32 %v170, %v1086
  %v1088 = vpop.f32.mrf.mxu0
  %v1089 = vpop.f32.mrf.mxu0
  %v1090 = vadd.f32 %v170, %v1089
  %v1091 = vpop.f32.mrf.mxu0
  %1092 = vmatprep.mubr.bf16.mxu0 0
  %1093 = vmatmul.mubr.bf16.gmra.mxu0 %v485
  %v1094 = vpop.f32.mrf.mxu0
  %v1095 = vadd.f32 %v170, %v1094
  %v1096 = vpop.f32.mrf.mxu0
  %v1097 = vpop.f32.mrf.mxu0
  %v1098 = vadd.f32 %v170, %v1097
  %v1099 = vpop.f32.mrf.mxu0
  %1100 = vmatprep.mubr.bf16.mxu0 0
  %1101 = vmatmul.mubr.bf16.gmra.mxu0 %v486
  %v1102 = vpop.f32.mrf.mxu0
  %v1103 = vadd.f32 %v170, %v1102
  %v1104 = vpop.f32.mrf.mxu0
  %v1105 = vpop.f32.mrf.mxu0
  %v1106 = vadd.f32 %v170, %v1105
  %v1107 = vpop.f32.mrf.mxu0
  %1108 = vmatprep.mubr.bf16.mxu0 0
  %1109 = vmatmul.mubr.bf16.gmra.mxu0 %v487
  %v1110 = vpop.f32.mrf.mxu0
  %v1111 = vadd.f32 %v170, %v1110
  %v1112 = vpop.f32.mrf.mxu0
  %v1113 = vpop.f32.mrf.mxu0
  %v1114 = vadd.f32 %v170, %v1113
  %v1115 = vpop.f32.mrf.mxu0
  %1116 = vmatprep.mubr.bf16.mxu0 0
  %1117 = vmatmul.mubr.bf16.gmra.mxu0 %v488
  %v1118 = vpop.f32.mrf.mxu0
  %v1119 = vadd.f32 %v170, %v1118
  %v1120 = vpop.f32.mrf.mxu0
  %v1121 = vpop.f32.mrf.mxu0
  %v1122 = vadd.f32 %v170, %v1121
  %v1123 = vpop.f32.mrf.mxu0
  %1124 = vmatprep.mubr.bf16.mxu0 0
  %1125 = vmatmul.mubr.bf16.gmra.mxu0 %v489
  %v1126 = vpop.f32.mrf.mxu0
  %v1127 = vadd.f32 %v170, %v1126
  %v1128 = vpop.f32.mrf.mxu0
  %v1129 = vpop.f32.mrf.mxu0
  %v1130 = vadd.f32 %v170, %v1129
  %v1131 = vpop.f32.mrf.mxu0
  %1132 = vmatprep.mubr.bf16.mxu0 0
  %1133 = vmatmul.mubr.bf16.gmra.mxu0 %v490
  %v1134 = vpop.f32.mrf.mxu0
  %v1135 = vadd.f32 %v170, %v1134
  %v1136 = vpop.f32.mrf.mxu0
  %v1137 = vpop.f32.mrf.mxu0
  %v1138 = vadd.f32 %v170, %v1137
  %v1139 = vpop.f32.mrf.mxu0
  %1140 = vmatprep.mubr.bf16.mxu0 0
  %1141 = vmatmul.mubr.bf16.gmra.mxu0 %v491
  %v1142 = vpop.f32.mrf.mxu0
  %v1143 = vadd.f32 %v170, %v1142
  %v1144 = vpop.f32.mrf.mxu0
  %v1145 = vpop.f32.mrf.mxu0
  %v1146 = vadd.f32 %v170, %v1145
  %v1147 = vpop.f32.mrf.mxu0
  %1148 = vdwg.mxu0
  %v1149 = vmax.f32 %v639, 0.0
  %v1150 = vmax.f32 %v642, 0.0
  %v1151 = vmax.f32 %v647, 0.0
  %v1152 = vmax.f32 %v650, 0.0
  %v1153 = vmax.f32 %v655, 0.0
  %v1154 = vmax.f32 %v658, 0.0
  %v1155 = vmax.f32 %v663, 0.0
  %v1156 = vmax.f32 %v666, 0.0
  %v1157 = vmax.f32 %v671, 0.0
  %v1158 = vmax.f32 %v674, 0.0
  %v1159 = vmax.f32 %v679, 0.0
  %v1160 = vmax.f32 %v682, 0.0
  %v1161 = vmax.f32 %v687, 0.0
  %v1162 = vmax.f32 %v690, 0.0
  %v1163 = vmax.f32 %v695, 0.0
  %v1164 = vmax.f32 %v698, 0.0
  %v1165 = vmax.f32 %v703, 0.0
  %v1166 = vmax.f32 %v706, 0.0
  %v1167 = vmax.f32 %v711, 0.0
  %v1168 = vmax.f32 %v714, 0.0
  %v1169 = vmax.f32 %v719, 0.0
  %v1170 = vmax.f32 %v722, 0.0
  %v1171 = vmax.f32 %v727, 0.0
  %v1172 = vmax.f32 %v730, 0.0
  %v1173 = vmax.f32 %v735, 0.0
  %v1174 = vmax.f32 %v738, 0.0
  %v1175 = vmax.f32 %v743, 0.0
  %v1176 = vmax.f32 %v746, 0.0
  %v1177 = vmax.f32 %v751, 0.0
  %v1178 = vmax.f32 %v754, 0.0
  %v1179 = vmax.f32 %v759, 0.0
  %v1180 = vmax.f32 %v762, 0.0
  %v1181 = vmax.f32 %v767, 0.0
  %v1182 = vmax.f32 %v770, 0.0
  %v1183 = vmax.f32 %v775, 0.0
  %v1184 = vmax.f32 %v778, 0.0
  %v1185 = vmax.f32 %v783, 0.0
  %v1186 = vmax.f32 %v786, 0.0
  %v1187 = vmax.f32 %v791, 0.0
  %v1188 = vmax.f32 %v794, 0.0
  %v1189 = vmax.f32 %v799, 0.0
  %v1190 = vmax.f32 %v802, 0.0
  %v1191 = vmax.f32 %v807, 0.0
  %v1192 = vmax.f32 %v810, 0.0
  %v1193 = vmax.f32 %v815, 0.0
  %v1194 = vmax.f32 %v818, 0.0
  %v1195 = vmax.f32 %v823, 0.0
  %v1196 = vmax.f32 %v826, 0.0
  %v1197 = vmax.f32 %v831, 0.0
  %v1198 = vmax.f32 %v834, 0.0
  %v1199 = vmax.f32 %v839, 0.0
  %v1200 = vmax.f32 %v842, 0.0
  %v1201 = vmax.f32 %v847, 0.0
  %v1202 = vmax.f32 %v850, 0.0
  %v1203 = vmax.f32 %v855, 0.0
  %v1204 = vmax.f32 %v858, 0.0
  %v1205 = vmax.f32 %v863, 0.0
  %v1206 = vmax.f32 %v866, 0.0
  %v1207 = vmax.f32 %v871, 0.0
  %v1208 = vmax.f32 %v874, 0.0
  %v1209 = vmax.f32 %v879, 0.0
  %v1210 = vmax.f32 %v882, 0.0
  %v1211 = vmax.f32 %v887, 0.0
  %v1212 = vmax.f32 %v890, 0.0
  %v1213 = vmax.f32 %v895, 0.0
  %v1214 = vmax.f32 %v898, 0.0
  %v1215 = vmax.f32 %v903, 0.0
  %v1216 = vmax.f32 %v906, 0.0
  %v1217 = vmax.f32 %v911, 0.0
  %v1218 = vmax.f32 %v914, 0.0
  %v1219 = vmax.f32 %v919, 0.0
  %v1220 = vmax.f32 %v922, 0.0
  %v1221 = vmax.f32 %v927, 0.0
  %v1222 = vmax.f32 %v930, 0.0
  %v1223 = vmax.f32 %v935, 0.0
  %v1224 = vmax.f32 %v938, 0.0
  %v1225 = vmax.f32 %v943, 0.0
  %v1226 = vmax.f32 %v946, 0.0
  %v1227 = vmax.f32 %v951, 0.0
  %v1228 = vmax.f32 %v954, 0.0
  %v1229 = vmax.f32 %v959, 0.0
  %v1230 = vmax.f32 %v962, 0.0
  %v1231 = vmax.f32 %v967, 0.0
  %v1232 = vmax.f32 %v970, 0.0
  %v1233 = vmax.f32 %v975, 0.0
  %v1234 = vmax.f32 %v978, 0.0
  %v1235 = vmax.f32 %v983, 0.0
  %v1236 = vmax.f32 %v986, 0.0
  %v1237 = vmax.f32 %v991, 0.0
  %v1238 = vmax.f32 %v994, 0.0
  %v1239 = vmax.f32 %v999, 0.0
  %v1240 = vmax.f32 %v1002, 0.0
  %v1241 = vmax.f32 %v1007, 0.0
  %v1242 = vmax.f32 %v1010, 0.0
  %v1243 = vmax.f32 %v1015, 0.0
  %v1244 = vmax.f32 %v1018, 0.0
  %v1245 = vmax.f32 %v1023, 0.0
  %v1246 = vmax.f32 %v1026, 0.0
  %v1247 = vmax.f32 %v1031, 0.0
  %v1248 = vmax.f32 %v1034, 0.0
  %v1249 = vmax.f32 %v1039, 0.0
  %v1250 = vmax.f32 %v1042, 0.0
  %v1251 = vmax.f32 %v1047, 0.0
  %v1252 = vmax.f32 %v1050, 0.0
  %v1253 = vmax.f32 %v1055, 0.0
  %v1254 = vmax.f32 %v1058, 0.0
  %v1255 = vmax.f32 %v1063, 0.0
  %v1256 = vmax.f32 %v1066, 0.0
  %v1257 = vmax.f32 %v1071, 0.0
  %v1258 = vmax.f32 %v1074, 0.0
  %v1259 = vmax.f32 %v1079, 0.0
  %v1260 = vmax.f32 %v1082, 0.0
  %v1261 = vmax.f32 %v1087, 0.0
  %v1262 = vmax.f32 %v1090, 0.0
  %v1263 = vmax.f32 %v1095, 0.0
  %v1264 = vmax.f32 %v1098, 0.0
  %v1265 = vmax.f32 %v1103, 0.0
  %v1266 = vmax.f32 %v1106, 0.0
  %v1267 = vmax.f32 %v1111, 0.0
  %v1268 = vmax.f32 %v1114, 0.0
  %v1269 = vmax.f32 %v1119, 0.0
  %v1270 = vmax.f32 %v1122, 0.0
  %v1271 = vmax.f32 %v1127, 0.0
  %v1272 = vmax.f32 %v1130, 0.0
  %v1273 = vmax.f32 %v1135, 0.0
  %v1274 = vmax.f32 %v1138, 0.0
  %v1275 = vmax.f32 %v1143, 0.0
  %v1276 = vmax.f32 %v1146, 0.0
  %v1277 = vadd.f32 %v1149, %v1150
  %v1278 = vadd.f32 %v1277, %v1151
  %v1279 = vadd.f32 %v1278, %v1152
  %v1280 = vadd.f32 %v1279, %v1153
  %v1281 = vadd.f32 %v1280, %v1154
  %v1282 = vadd.f32 %v1281, %v1155
  %v1283 = vadd.f32 %v1282, %v1156
  %v1284 = vadd.f32 %v1283, %v1157
  %v1285 = vadd.f32 %v1284, %v1158
  %v1286 = vadd.f32 %v1285, %v1159
  %v1287 = vadd.f32 %v1286, %v1160
  %v1288 = vadd.f32 %v1287, %v1161
  %v1289 = vadd.f32 %v1288, %v1162
  %v1290 = vadd.f32 %v1289, %v1163
  %v1291 = vadd.f32 %v1290, %v1164
  %v1292 = vrot.slane %v1291, 4
  %v1293 = vadd.f32 %v1291, %v1292
  %v1294 = vrot.slane %v1293, 2
  %v1295 = vadd.f32 %v1293, %v1294
  %v1296 = vrot.slane %v1295, 1
  %v1297 = vadd.f32 %v1295, %v1296
  %v1298 = vadd.f32 %v1165, %v1166
  %v1299 = vadd.f32 %v1298, %v1167
  %v1300 = vadd.f32 %v1299, %v1168
  %v1301 = vadd.f32 %v1300, %v1169
  %v1302 = vadd.f32 %v1301, %v1170
  %v1303 = vadd.f32 %v1302, %v1171
  %v1304 = vadd.f32 %v1303, %v1172
  %v1305 = vadd.f32 %v1304, %v1173
  %v1306 = vadd.f32 %v1305, %v1174
  %v1307 = vadd.f32 %v1306, %v1175
  %v1308 = vadd.f32 %v1307, %v1176
  %v1309 = vadd.f32 %v1308, %v1177
  %v1310 = vadd.f32 %v1309, %v1178
  %v1311 = vadd.f32 %v1310, %v1179
  %v1312 = vadd.f32 %v1311, %v1180
  %v1313 = vrot.slane %v1312, 4
  %v1314 = vadd.f32 %v1312, %v1313
  %v1315 = vrot.slane %v1314, 2
  %v1316 = vadd.f32 %v1314, %v1315
  %v1317 = vrot.slane %v1316, 1
  %v1318 = vadd.f32 %v1316, %v1317
  %v1319 = vadd.f32 %v1181, %v1182
  %v1320 = vadd.f32 %v1319, %v1183
  %v1321 = vadd.f32 %v1320, %v1184
  %v1322 = vadd.f32 %v1321, %v1185
  %v1323 = vadd.f32 %v1322, %v1186
  %v1324 = vadd.f32 %v1323, %v1187
  %v1325 = vadd.f32 %v1324, %v1188
  %v1326 = vadd.f32 %v1325, %v1189
  %v1327 = vadd.f32 %v1326, %v1190
  %v1328 = vadd.f32 %v1327, %v1191
  %v1329 = vadd.f32 %v1328, %v1192
  %v1330 = vadd.f32 %v1329, %v1193
  %v1331 = vadd.f32 %v1330, %v1194
  %v1332 = vadd.f32 %v1331, %v1195
  %v1333 = vadd.f32 %v1332, %v1196
  %v1334 = vrot.slane %v1333, 4
  %v1335 = vadd.f32 %v1333, %v1334
  %v1336 = vrot.slane %v1335, 2
  %v1337 = vadd.f32 %v1335, %v1336
  %v1338 = vrot.slane %v1337, 1
  %v1339 = vadd.f32 %v1337, %v1338
  %v1340 = vadd.f32 %v1197, %v1198
  %v1341 = vadd.f32 %v1340, %v1199
  %v1342 = vadd.f32 %v1341, %v1200
  %v1343 = vadd.f32 %v1342, %v1201
  %v1344 = vadd.f32 %v1343, %v1202
  %v1345 = vadd.f32 %v1344, %v1203
  %v1346 = vadd.f32 %v1345, %v1204
  %v1347 = vadd.f32 %v1346, %v1205
  %v1348 = vadd.f32 %v1347, %v1206
  %v1349 = vadd.f32 %v1348, %v1207
  %v1350 = vadd.f32 %v1349, %v1208
  %v1351 = vadd.f32 %v1350, %v1209
  %v1352 = vadd.f32 %v1351, %v1210
  %v1353 = vadd.f32 %v1352, %v1211
  %v1354 = vadd.f32 %v1353, %v1212
  %v1355 = vrot.slane %v1354, 4
  %v1356 = vadd.f32 %v1354, %v1355
  %v1357 = vrot.slane %v1356, 2
  %v1358 = vadd.f32 %v1356, %v1357
  %v1359 = vrot.slane %v1358, 1
  %v1360 = vadd.f32 %v1358, %v1359
  %v1361 = vadd.f32 %v1213, %v1214
  %v1362 = vadd.f32 %v1361, %v1215
  %v1363 = vadd.f32 %v1362, %v1216
  %v1364 = vadd.f32 %v1363, %v1217
  %v1365 = vadd.f32 %v1364, %v1218
  %v1366 = vadd.f32 %v1365, %v1219
  %v1367 = vadd.f32 %v1366, %v1220
  %v1368 = vadd.f32 %v1367, %v1221
  %v1369 = vadd.f32 %v1368, %v1222
  %v1370 = vadd.f32 %v1369, %v1223
  %v1371 = vadd.f32 %v1370, %v1224
  %v1372 = vadd.f32 %v1371, %v1225
  %v1373 = vadd.f32 %v1372, %v1226
  %v1374 = vadd.f32 %v1373, %v1227
  %v1375 = vadd.f32 %v1374, %v1228
  %v1376 = vrot.slane %v1375, 4
  %v1377 = vadd.f32 %v1375, %v1376
  %v1378 = vrot.slane %v1377, 2
  %v1379 = vadd.f32 %v1377, %v1378
  %v1380 = vrot.slane %v1379, 1
  %v1381 = vadd.f32 %v1379, %v1380
  %v1382 = vadd.f32 %v1229, %v1230
  %v1383 = vadd.f32 %v1382, %v1231
  %v1384 = vadd.f32 %v1383, %v1232
  %v1385 = vadd.f32 %v1384, %v1233
  %v1386 = vadd.f32 %v1385, %v1234
  %v1387 = vadd.f32 %v1386, %v1235
  %v1388 = vadd.f32 %v1387, %v1236
  %v1389 = vadd.f32 %v1388, %v1237
  %v1390 = vadd.f32 %v1389, %v1238
  %v1391 = vadd.f32 %v1390, %v1239
  %v1392 = vadd.f32 %v1391, %v1240
  %v1393 = vadd.f32 %v1392, %v1241
  %v1394 = vadd.f32 %v1393, %v1242
  %v1395 = vadd.f32 %v1394, %v1243
  %v1396 = vadd.f32 %v1395, %v1244
  %v1397 = vrot.slane %v1396, 4
  %v1398 = vadd.f32 %v1396, %v1397
  %v1399 = vrot.slane %v1398, 2
  %v1400 = vadd.f32 %v1398, %v1399
  %v1401 = vrot.slane %v1400, 1
  %v1402 = vadd.f32 %v1400, %v1401
  %v1403 = vadd.f32 %v1245, %v1246
  %v1404 = vadd.f32 %v1403, %v1247
  %v1405 = vadd.f32 %v1404, %v1248
  %v1406 = vadd.f32 %v1405, %v1249
  %v1407 = vadd.f32 %v1406, %v1250
  %v1408 = vadd.f32 %v1407, %v1251
  %v1409 = vadd.f32 %v1408, %v1252
  %v1410 = vadd.f32 %v1409, %v1253
  %v1411 = vadd.f32 %v1410, %v1254
  %v1412 = vadd.f32 %v1411, %v1255
  %v1413 = vadd.f32 %v1412, %v1256
  %v1414 = vadd.f32 %v1413, %v1257
  %v1415 = vadd.f32 %v1414, %v1258
  %v1416 = vadd.f32 %v1415, %v1259
  %v1417 = vadd.f32 %v1416, %v1260
  %v1418 = vrot.slane %v1417, 4
  %v1419 = vadd.f32 %v1417, %v1418
  %v1420 = vrot.slane %v1419, 2
  %v1421 = vadd.f32 %v1419, %v1420
  %v1422 = vrot.slane %v1421, 1
  %v1423 = vadd.f32 %v1421, %v1422
  %v1424 = vadd.f32 %v1261, %v1262
  %v1425 = vadd.f32 %v1424, %v1263
  %v1426 = vadd.f32 %v1425, %v1264
  %v1427 = vadd.f32 %v1426, %v1265
  %v1428 = vadd.f32 %v1427, %v1266
  %v1429 = vadd.f32 %v1428, %v1267
  %v1430 = vadd.f32 %v1429, %v1268
  %v1431 = vadd.f32 %v1430, %v1269
  %v1432 = vadd.f32 %v1431, %v1270
  %v1433 = vadd.f32 %v1432, %v1271
  %v1434 = vadd.f32 %v1433, %v1272
  %v1435 = vadd.f32 %v1434, %v1273
  %v1436 = vadd.f32 %v1435, %v1274
  %v1437 = vadd.f32 %v1436, %v1275
  %v1438 = vadd.f32 %v1437, %v1276
  %v1439 = vrot.slane %v1438, 4
  %v1440 = vadd.f32 %v1438, %v1439
  %v1441 = vrot.slane %v1440, 2
  %v1442 = vadd.f32 %v1440, %v1441
  %v1443 = vrot.slane %v1442, 1
  %v1444 = vadd.f32 %v1442, %v1443
  %v1445 = vrcp.pop 128.0
  %v1446 = vmul.f32 %v1297, %v1445
  %v1447 = vmul.f32 %v1318, %v1445
  %v1448 = vmul.f32 %v1339, %v1445
  %v1449 = vmul.f32 %v1360, %v1445
  %v1450 = vmul.f32 %v1381, %v1445
  %v1451 = vmul.f32 %v1402, %v1445
  %v1452 = vmul.f32 %v1423, %v1445
  %v1453 = vmul.f32 %v1444, %v1445
  %v1454 = vpack.c.bf16 %v1446, %v1446
  %v1455 = vpack.c.bf16 %v1447, %v1447
  %v1456 = vpack.c.bf16 %v1448, %v1448
  %v1457 = vpack.c.bf16 %v1449, %v1449
  %v1458 = vpack.c.bf16 %v1450, %v1450
  %v1459 = vpack.c.bf16 %v1451, %v1451
  %v1460 = vpack.c.bf16 %v1452, %v1452
  %v1461 = vpack.c.bf16 %v1453, %v1453
  %v1462 = vld [vmem:[%s3] sm:$0xff]
  %v1463 = vld [vmem:[%s3 + $0x8] sm:$0xff]
  %v1464 = vld [vmem:[%s3 + $0x10] sm:$0xff]
  %v1465 = vld [vmem:[%s3 + $0x18] sm:$0xff]
  %v1466 = vld [vmem:[%s3 + $0x20] sm:$0xff]
  %v1467 = vld [vmem:[%s3 + $0x28] sm:$0xff]
  %v1468 = vld [vmem:[%s3 + $0x30] sm:$0xff]
  %v1469 = vld [vmem:[%s3 + $0x38] sm:$0xff]
  %v1470 = vld [vmem:[%s3 + $0x40] sm:$0xff]
  %v1471 = vld [vmem:[%s3 + $0x48] sm:$0xff]
  %v1472 = vld [vmem:[%s3 + $0x50] sm:$0xff]
  %v1473 = vld [vmem:[%s3 + $0x58] sm:$0xff]
  %v1474 = vld [vmem:[%s3 + $0x60] sm:$0xff]
  %v1475 = vld [vmem:[%s3 + $0x68] sm:$0xff]
  %v1476 = vld [vmem:[%s3 + $0x70] sm:$0xff]
  %v1477 = vld [vmem:[%s3 + $0x78] sm:$0xff]
  %v1478 = vld [vmem:[%s3 + $0x80] sm:$0xff]
  %v1479 = vld [vmem:[%s3 + $0x88] sm:$0xff]
  %v1480 = vld [vmem:[%s3 + $0x90] sm:$0xff]
  %v1481 = vld [vmem:[%s3 + $0x98] sm:$0xff]
  %v1482 = vld [vmem:[%s3 + $0xa0] sm:$0xff]
  %v1483 = vld [vmem:[%s3 + $0xa8] sm:$0xff]
  %v1484 = vld [vmem:[%s3 + $0xb0] sm:$0xff]
  %v1485 = vld [vmem:[%s3 + $0xb8] sm:$0xff]
  %v1486 = vld [vmem:[%s3 + $0xc0] sm:$0xff]
  %v1487 = vld [vmem:[%s3 + $0xc8] sm:$0xff]
  %v1488 = vld [vmem:[%s3 + $0xd0] sm:$0xff]
  %v1489 = vld [vmem:[%s3 + $0xd8] sm:$0xff]
  %v1490 = vld [vmem:[%s3 + $0xe0] sm:$0xff]
  %v1491 = vld [vmem:[%s3 + $0xe8] sm:$0xff]
  %v1492 = vld [vmem:[%s3 + $0xf0] sm:$0xff]
  %v1493 = vld [vmem:[%s3 + $0xf8] sm:$0xff]
  %v1494 = vld [vmem:[%s4] sm:$0xf]
  %v1496 = vlaneseq
  %v1497 = vshrl.u32 %v1496, 7
  %v1498 = vsub.s32 0, %v1497
  %v1499 = vrot.slane %v1494, %v1498
  %v1500 = vlaneseq
  %v1501 = vshrl.u32 %v1500, 7
  %v1502 = vsub.s32 1, %v1501
  %v1503 = vrot.slane %v1494, %v1502
  %v1504 = vlaneseq
  %v1505 = vshrl.u32 %v1504, 7
  %v1506 = vsub.s32 2, %v1505
  %v1507 = vrot.slane %v1494, %v1506
  %v1508 = vlaneseq
  %v1509 = vshrl.u32 %v1508, 7
  %v1510 = vsub.s32 3, %v1509
  %v1511 = vrot.slane %v1494, %v1510
  %v1524 = vunpack.c.l.b16 %v1454
  %v1525 = vunpack.c.l.b16 %v1455
  %v1526 = vunpack.c.l.b16 %v1456
  %v1527 = vunpack.c.l.b16 %v1457
  %v1528 = vunpack.c.l.b16 %v1458
  %v1529 = vunpack.c.l.b16 %v1459
  %v1530 = vunpack.c.l.b16 %v1460
  %v1531 = vunpack.c.l.b16 %v1461
  %vm1532 = vcmask 1041409
  %v1533 = vsel %vm1532, %v1525, %v1524
  %vm1534 = vcmask 1042434
  %v1535 = vsel %vm1534, %v1526, %v1533
  %vm1536 = vcmask 1043459
  %v1537 = vsel %vm1536, %v1527, %v1535
  %vm1538 = vcmask 1044484
  %v1539 = vsel %vm1538, %v1528, %v1537
  %vm1540 = vcmask 1045509
  %v1541 = vsel %vm1540, %v1529, %v1539
  %vm1542 = vcmask 1046534
  %v1543 = vsel %vm1542, %v1530, %v1541
  %vm1544 = vcmask 1047559
  %v1545 = vsel %vm1544, %v1531, %v1543
  %v1546 = vpack.c.b16 %v1545, %v1545
  %v1580 = vunpack.c.l.b16 %v1462
  %v1581 = vunpack.c.h.b16 %v1462
  %v1582 = vunpack.c.l.b16 %v1463
  %v1583 = vunpack.c.h.b16 %v1463
  %v1584 = vunpack.c.l.b16 %v1464
  %v1585 = vunpack.c.h.b16 %v1464
  %v1586 = vunpack.c.l.b16 %v1465
  %v1587 = vunpack.c.h.b16 %v1465
  %v1588 = vunpack.c.l.b16 %v1466
  %v1589 = vunpack.c.h.b16 %v1466
  %v1590 = vunpack.c.l.b16 %v1467
  %v1591 = vunpack.c.h.b16 %v1467
  %v1592 = vunpack.c.l.b16 %v1468
  %v1593 = vunpack.c.h.b16 %v1468
  %v1594 = vunpack.c.l.b16 %v1469
  %v1595 = vunpack.c.h.b16 %v1469
  %v1596 = vunpack.c.l.b16 %v1470
  %v1597 = vunpack.c.h.b16 %v1470
  %v1598 = vunpack.c.l.b16 %v1471
  %v1599 = vunpack.c.h.b16 %v1471
  %v1600 = vunpack.c.l.b16 %v1472
  %v1601 = vunpack.c.h.b16 %v1472
  %v1602 = vunpack.c.l.b16 %v1473
  %v1603 = vunpack.c.h.b16 %v1473
  %v1604 = vunpack.c.l.b16 %v1474
  %v1605 = vunpack.c.h.b16 %v1474
  %v1606 = vunpack.c.l.b16 %v1475
  %v1607 = vunpack.c.h.b16 %v1475
  %v1608 = vunpack.c.l.b16 %v1476
  %v1609 = vunpack.c.h.b16 %v1476
  %v1610 = vunpack.c.l.b16 %v1477
  %v1611 = vunpack.c.h.b16 %v1477
  %v1612 = vunpack.c.l.b16 %v1478
  %v1613 = vunpack.c.h.b16 %v1478
  %v1614 = vunpack.c.l.b16 %v1479
  %v1615 = vunpack.c.h.b16 %v1479
  %v1616 = vunpack.c.l.b16 %v1480
  %v1617 = vunpack.c.h.b16 %v1480
  %v1618 = vunpack.c.l.b16 %v1481
  %v1619 = vunpack.c.h.b16 %v1481
  %v1620 = vunpack.c.l.b16 %v1482
  %v1621 = vunpack.c.h.b16 %v1482
  %v1622 = vunpack.c.l.b16 %v1483
  %v1623 = vunpack.c.h.b16 %v1483
  %v1624 = vunpack.c.l.b16 %v1484
  %v1625 = vunpack.c.h.b16 %v1484
  %v1626 = vunpack.c.l.b16 %v1485
  %v1627 = vunpack.c.h.b16 %v1485
  %v1628 = vunpack.c.l.b16 %v1486
  %v1629 = vunpack.c.h.b16 %v1486
  %v1630 = vunpack.c.l.b16 %v1487
  %v1631 = vunpack.c.h.b16 %v1487
  %v1632 = vunpack.c.l.b16 %v1488
  %v1633 = vunpack.c.h.b16 %v1488
  %v1634 = vunpack.c.l.b16 %v1489
  %v1635 = vunpack.c.h.b16 %v1489
  %v1636 = vunpack.c.l.b16 %v1490
  %v1637 = vunpack.c.h.b16 %v1490
  %v1638 = vunpack.c.l.b16 %v1491
  %v1639 = vunpack.c.h.b16 %v1491
  %v1640 = vunpack.c.l.b16 %v1492
  %v1641 = vunpack.c.h.b16 %v1492
  %v1642 = vunpack.c.l.b16 %v1493
  %v1643 = vunpack.c.h.b16 %v1493
  %v1644 = vpack.c.b16 %v1584, %v1580
  %v1645 = vpack.c.b16 %v1585, %v1581
  %v1646 = vpack.c.b16 %v1586, %v1582
  %v1647 = vpack.c.b16 %v1587, %v1583
  %v1648 = vpack.c.b16 %v1592, %v1588
  %v1649 = vpack.c.b16 %v1593, %v1589
  %v1650 = vpack.c.b16 %v1594, %v1590
  %v1651 = vpack.c.b16 %v1595, %v1591
  %v1652 = vpack.c.b16 %v1600, %v1596
  %v1653 = vpack.c.b16 %v1601, %v1597
  %v1654 = vpack.c.b16 %v1602, %v1598
  %v1655 = vpack.c.b16 %v1603, %v1599
  %v1656 = vpack.c.b16 %v1608, %v1604
  %v1657 = vpack.c.b16 %v1609, %v1605
  %v1658 = vpack.c.b16 %v1610, %v1606
  %v1659 = vpack.c.b16 %v1611, %v1607
  %v1660 = vpack.c.b16 %v1616, %v1612
  %v1661 = vpack.c.b16 %v1617, %v1613
  %v1662 = vpack.c.b16 %v1618, %v1614
  %v1663 = vpack.c.b16 %v1619, %v1615
  %v1664 = vpack.c.b16 %v1624, %v1620
  %v1665 = vpack.c.b16 %v1625, %v1621
  %v1666 = vpack.c.b16 %v1626, %v1622
  %v1667 = vpack.c.b16 %v1627, %v1623
  %v1668 = vpack.c.b16 %v1632, %v1628
  %v1669 = vpack.c.b16 %v1633, %v1629
  %v1670 = vpack.c.b16 %v1634, %v1630
  %v1671 = vpack.c.b16 %v1635, %v1631
  %v1672 = vpack.c.b16 %v1640, %v1636
  %v1673 = vpack.c.b16 %v1641, %v1637
  %v1674 = vpack.c.b16 %v1642, %v1638
  %v1675 = vpack.c.b16 %v1643, %v1639
  %1708 = vmatprep.subr.bf16.mxu0 %v1673
  %1709 = vmatpush1.bf16.msra.mxu0 %v1672
  %1710 = vmatprep.subr.bf16.mxu0 %v1669
  %1711 = vmatpush1.bf16.msra.mxu0 %v1668
  %1712 = vmatprep.subr.bf16.mxu0 %v1665
  %1713 = vmatpush1.bf16.msra.mxu0 %v1664
  %1714 = vmatprep.subr.bf16.mxu0 %v1661
  %1715 = vmatpush1.bf16.msra.mxu0 %v1660
  %1716 = vmatprep.subr.bf16.mxu0 %v1657
  %1717 = vmatpush1.bf16.msra.mxu0 %v1656
  %1718 = vmatprep.subr.bf16.mxu0 %v1653
  %1719 = vmatpush1.bf16.msra.mxu0 %v1652
  %1720 = vmatprep.subr.bf16.mxu0 %v1649
  %1721 = vmatpush1.bf16.msra.mxu0 %v1648
  %1722 = vmatprep.subr.bf16.mxu0 %v1645
  %1723 = vmatpush1.bf16.msra.mxu0 %v1644
  %1724 = vmatprep.subr.bf16.mxu0 0
  %1725 = vmatpush2.bf16.msra.mxu0 0
  %1726 = vmatprep.subr.bf16.mxu0 0
  %1727 = vmatpush2.bf16.msra.mxu0 0
  %1728 = vmatprep.subr.bf16.mxu0 0
  %1729 = vmatpush2.bf16.msra.mxu0 0
  %1730 = vmatprep.subr.bf16.mxu0 0
  %1731 = vmatpush2.bf16.msra.mxu0 0
  %1732 = vmatprep.subr.bf16.mxu0 0
  %1733 = vmatpush2.bf16.msra.mxu0 0
  %1734 = vmatprep.subr.bf16.mxu0 0
  %1735 = vmatpush2.bf16.msra.mxu0 0
  %1736 = vmatprep.subr.bf16.mxu0 0
  %1737 = vmatpush2.bf16.msra.mxu0 0
  %1738 = vmatprep.subr.bf16.mxu0 0
  %1739 = vmatpush2.bf16.msra.mxu0 0
  %1740 = vmatprep.mubr.bf16.mxu0 0
  %1741 = vmatmul.mubr.bf16.gmra.mxu0 %v1546
  %v1742 = vpop.f32.mrf.mxu0
  %v1743 = vadd.f32 %v1499, %v1742
  %v1744 = vpop.f32.mrf.mxu0
  %v1745 = vadd.f32 %v1503, %v1744
  %v1746 = vpop.f32.mrf.mxu0
  %v1747 = vpop.f32.mrf.mxu0
  %1748 = vdwg.mxu0
  %1749 = vmatprep.subr.bf16.mxu0 %v1675
  %1750 = vmatpush1.bf16.msra.mxu0 %v1674
  %1751 = vmatprep.subr.bf16.mxu0 %v1671
  %1752 = vmatpush1.bf16.msra.mxu0 %v1670
  %1753 = vmatprep.subr.bf16.mxu0 %v1667
  %1754 = vmatpush1.bf16.msra.mxu0 %v1666
  %1755 = vmatprep.subr.bf16.mxu0 %v1663
  %1756 = vmatpush1.bf16.msra.mxu0 %v1662
  %1757 = vmatprep.subr.bf16.mxu0 %v1659
  %1758 = vmatpush1.bf16.msra.mxu0 %v1658
  %1759 = vmatprep.subr.bf16.mxu0 %v1655
  %1760 = vmatpush1.bf16.msra.mxu0 %v1654
  %1761 = vmatprep.subr.bf16.mxu0 %v1651
  %1762 = vmatpush1.bf16.msra.mxu0 %v1650
  %1763 = vmatprep.subr.bf16.mxu0 %v1647
  %1764 = vmatpush1.bf16.msra.mxu0 %v1646
  %1765 = vmatprep.subr.bf16.mxu0 0
  %1766 = vmatpush2.bf16.msra.mxu0 0
  %1767 = vmatprep.subr.bf16.mxu0 0
  %1768 = vmatpush2.bf16.msra.mxu0 0
  %1769 = vmatprep.subr.bf16.mxu0 0
  %1770 = vmatpush2.bf16.msra.mxu0 0
  %1771 = vmatprep.subr.bf16.mxu0 0
  %1772 = vmatpush2.bf16.msra.mxu0 0
  %1773 = vmatprep.subr.bf16.mxu0 0
  %1774 = vmatpush2.bf16.msra.mxu0 0
  %1775 = vmatprep.subr.bf16.mxu0 0
  %1776 = vmatpush2.bf16.msra.mxu0 0
  %1777 = vmatprep.subr.bf16.mxu0 0
  %1778 = vmatpush2.bf16.msra.mxu0 0
  %1779 = vmatprep.subr.bf16.mxu0 0
  %1780 = vmatpush2.bf16.msra.mxu0 0
  %1781 = vmatprep.mubr.bf16.mxu0 0
  %1782 = vmatmul.mubr.bf16.gmra.mxu0 %v1546
  %v1783 = vpop.f32.mrf.mxu0
  %v1784 = vadd.f32 %v1507, %v1783
  %v1785 = vpop.f32.mrf.mxu0
  %v1786 = vadd.f32 %v1511, %v1785
  %v1787 = vpop.f32.mrf.mxu0
  %v1788 = vpop.f32.mrf.mxu0
  %1789 = vdwg.mxu0
  %v1790 = vmax.f32 %v1743, 0.0
  %v1791 = vmax.f32 %v1745, 0.0
  %v1792 = vmax.f32 %v1784, 0.0
  %v1793 = vmax.f32 %v1786, 0.0
  %1794 = vst [vmem:[%s5] sm:$0xff] %v1790
  %1795 = vst [vmem:[%s5 + $0x8] sm:$0xff] %v1791
  %1796 = vst [vmem:[%s5 + $0x10] sm:$0xff] %v1792
  %1797 = vst [vmem:[%s5 + $0x18] sm:$0xff] %v1793
  // Predicated region
  $region22: #{cnn3d_opn_forward.2} parent=0 // pred_check
    _
  $region23: #{cnn3d_opn_forward.2} parent=0 // pred_check_branch
    %1799 = sbr.rel (0) target = $region25
  $region24: #{cnn3d_opn_forward.2} parent=0 // pred_region
    _
  $region25: #{cnn3d_opn_forward.2} parent=0 // pred_fallthru
    _
  // Predicated region
  $region26: #{cnn3d_opn_forward.2} parent=0 // pred_check
    _
  $region27: #{cnn3d_opn_forward.2} parent=0 // pred_check_branch
    %1801 = sbr.rel (0) target = $region29
  $region28: #{cnn3d_opn_forward.2} parent=0 // pred_region
    _
  $region29: #{cnn3d_opn_forward.2} parent=0 // pred_fallthru
    _

// kernel: cnn3d_opn_forward.3
$region0: #{cnn3d_opn_forward.3}
  #allocation0 [shape = 'u32[]', space=smem, size = 0x4, offset = 0x4, fixed_abs, tag = 'smem constant byte address 0x4 - core index']
  #allocation1 [shape = 'u32[144,128]{1,0:T(1,128)}', space=vmem, size = 0x12000, scoped, tag = 'internal scratch']
  %s0 = inlined_call_operand.vmem [shape: f32[8,512], index: 0, kind: input, shape index: {}]
  %s1 = inlined_call_operand.vmem [shape: bf16[512,1024], index: 1, kind: input, shape index: {}]
  %s2 = inlined_call_operand.vmem [shape: f32[1,1024], index: 2, kind: input, shape index: {}]
  %s3 = inlined_call_operand.vmem [shape: bf16[1024,512], index: 3, kind: input, shape index: {}]
  %s4 = inlined_call_operand.vmem [shape: bf16[1024,512], index: 4, kind: input, shape index: {}]
  %s5 = inlined_call_operand.vmem [shape: f32[1,512], index: 5, kind: input, shape index: {}]
  %s6 = inlined_call_operand.vmem [shape: bf16[3072,128], index: 6, kind: input, shape index: {}]
  %s7 = inlined_call_operand.vmem [shape: f32[1,128], index: 7, kind: input, shape index: {}]
  %s8 = inlined_call_operand.hbm [shape: f32[2,128], index: 8, kind: output, shape index: {}]
  %s9 = sld [smem:[#allocation0]]
  $region42: #{cnn3d_opn_forward.3} parent=0
    _
  %s11 = ssub.s32 1, %s9
  %s12 = scalar_select 0, %s11, %s9
  $region1: #{cnn3d_opn_forward.3} parent=0
    #allocation2 [shape = 'u8[1024]{0}', space=vmem, size = 0x400, scoped, tag = 'output window, operand 0, single buffered']
    #allocation3 [shape = 's32[1]{0}', space=sflag, size = 0x4, scoped, tag = 'scoped memory for cnn3d_opn_forward.3']
    %13 = vsyncpa [#allocation3], 0
    // Predicated region
    $region2: #{cnn3d_opn_forward.3} parent=1 // pred_check
      _
    $region3: #{cnn3d_opn_forward.3} parent=1 // pred_check_branch
      %15 = sbr.rel (0) target = $region5
    $region4: #{cnn3d_opn_forward.3} parent=1 // pred_region
      _
    $region5: #{cnn3d_opn_forward.3} parent=1 // pred_fallthru
      _
    // Predicated region
    $region6: #{cnn3d_opn_forward.3} parent=1 // pred_check
      _
    $region7: #{cnn3d_opn_forward.3} parent=1 // pred_check_branch
      %17 = sbr.rel (0) target = $region9
    $region8: #{cnn3d_opn_forward.3} parent=1 // pred_region
      _
    $region9: #{cnn3d_opn_forward.3} parent=1 // pred_fallthru
      _
    // Predicated region
    $region10: #{cnn3d_opn_forward.3} parent=1 // pred_check
      _
    $region11: #{cnn3d_opn_forward.3} parent=1 // pred_check_branch
      %19 = sbr.rel (0) target = $region13
    $region12: #{cnn3d_opn_forward.3} parent=1 // pred_region
      _
    $region13: #{cnn3d_opn_forward.3} parent=1 // pred_fallthru
      _
    // Predicated region
    $region14: #{cnn3d_opn_forward.3} parent=1 // pred_check
      _
    $region15: #{cnn3d_opn_forward.3} parent=1 // pred_check_branch
      %21 = sbr.rel (0) target = $region17
    $region16: #{cnn3d_opn_forward.3} parent=1 // pred_region
      _
    $region17: #{cnn3d_opn_forward.3} parent=1 // pred_fallthru
      _
    // Predicated region
    $region18: #{cnn3d_opn_forward.3} parent=1 // pred_check
      _
    $region19: #{cnn3d_opn_forward.3} parent=1 // pred_check_branch
      %23 = sbr.rel (0) target = $region21
    $region20: #{cnn3d_opn_forward.3} parent=1 // pred_region
      _
    $region21: #{cnn3d_opn_forward.3} parent=1 // pred_fallthru
      _
    // Predicated region
    $region22: #{cnn3d_opn_forward.3} parent=1 // pred_check
      _
    $region23: #{cnn3d_opn_forward.3} parent=1 // pred_check_branch
      %25 = sbr.rel (0) target = $region25
    $region24: #{cnn3d_opn_forward.3} parent=1 // pred_region
      _
    $region25: #{cnn3d_opn_forward.3} parent=1 // pred_fallthru
      _
    // Predicated region
    $region26: #{cnn3d_opn_forward.3} parent=1 // pred_check
      _
    $region27: #{cnn3d_opn_forward.3} parent=1 // pred_check_branch
      %27 = sbr.rel (0) target = $region29
    $region28: #{cnn3d_opn_forward.3} parent=1 // pred_region
      _
    $region29: #{cnn3d_opn_forward.3} parent=1 // pred_fallthru
      _
    // Predicated region
    $region30: #{cnn3d_opn_forward.3} parent=1 // pred_check
      _
    $region31: #{cnn3d_opn_forward.3} parent=1 // pred_check_branch
      %29 = sbr.rel (0) target = $region33
    $region32: #{cnn3d_opn_forward.3} parent=1 // pred_region
      _
    $region33: #{cnn3d_opn_forward.3} parent=1 // pred_fallthru
      _
    %v31 = vld [vmem:[%s0] sm:$0xff]
    %v32 = vld [vmem:[%s0 + $0x8] sm:$0xff]
    %v33 = vld [vmem:[%s0 + $0x10] sm:$0xff]
    %v34 = vld [vmem:[%s0 + $0x18] sm:$0xff]
    %v35 = vpack.c.bf16 %v31, %v31
    %v36 = vpack.c.bf16 %v32, %v32
    %v37 = vpack.c.bf16 %v33, %v33
    %v38 = vpack.c.bf16 %v34, %v34
    %v39 = vld [vmem:[%s1] sm:$0xff]
    %v40 = vld [vmem:[%s1 + $0x8] sm:$0xff]
    %v41 = vld [vmem:[%s1 + $0x10] sm:$0xff]
    %v42 = vld [vmem:[%s1 + $0x18] sm:$0xff]
    %v43 = vld [vmem:[%s1 + $0x20] sm:$0xff]
    %v44 = vld [vmem:[%s1 + $0x28] sm:$0xff]
    %v45 = vld [vmem:[%s1 + $0x30] sm:$0xff]
    %v46 = vld [vmem:[%s1 + $0x38] sm:$0xff]
    %v47 = vld [vmem:[%s1 + $0x40] sm:$0xff]
    %v48 = vld [vmem:[%s1 + $0x48] sm:$0xff]
    %v49 = vld [vmem:[%s1 + $0x50] sm:$0xff]
    %v50 = vld [vmem:[%s1 + $0x58] sm:$0xff]
    %v51 = vld [vmem:[%s1 + $0x60] sm:$0xff]
    %v52 = vld [vmem:[%s1 + $0x68] sm:$0xff]
    %v53 = vld [vmem:[%s1 + $0x70] sm:$0xff]
    %v54 = vld [vmem:[%s1 + $0x78] sm:$0xff]
    %v55 = vld [vmem:[%s1 + $0x80] sm:$0xff]
    %v56 = vld [vmem:[%s1 + $0x88] sm:$0xff]
    %v57 = vld [vmem:[%s1 + $0x90] sm:$0xff]
    %v58 = vld [vmem:[%s1 + $0x98] sm:$0xff]
    %v59 = vld [vmem:[%s1 + $0xa0] sm:$0xff]
    %v60 = vld [vmem:[%s1 + $0xa8] sm:$0xff]
    %v61 = vld [vmem:[%s1 + $0xb0] sm:$0xff]
    %v62 = vld [vmem:[%s1 + $0xb8] sm:$0xff]
    %v63 = vld [vmem:[%s1 + $0xc0] sm:$0xff]
    %v64 = vld [vmem:[%s1 + $0xc8] sm:$0xff]
    %v65 = vld [vmem:[%s1 + $0xd0] sm:$0xff]
    %v66 = vld [vmem:[%s1 + $0xd8] sm:$0xff]
    %v67 = vld [vmem:[%s1 + $0xe0] sm:$0xff]
    %v68 = vld [vmem:[%s1 + $0xe8] sm:$0xff]
    %v69 = vld [vmem:[%s1 + $0xf0] sm:$0xff]
    %v70 = vld [vmem:[%s1 + $0xf8] sm:$0xff]
    %v71 = vld [vmem:[%s1 + $0x100] sm:$0xff]
    %v72 = vld [vmem:[%s1 + $0x108] sm:$0xff]
    %v73 = vld [vmem:[%s1 + $0x110] sm:$0xff]
    %v74 = vld [vmem:[%s1 + $0x118] sm:$0xff]
    %v75 = vld [vmem:[%s1 + $0x120] sm:$0xff]
    %v76 = vld [vmem:[%s1 + $0x128] sm:$0xff]
    %v77 = vld [vmem:[%s1 + $0x130] sm:$0xff]
    %v78 = vld [vmem:[%s1 + $0x138] sm:$0xff]
    %v79 = vld [vmem:[%s1 + $0x140] sm:$0xff]
    %v80 = vld [vmem:[%s1 + $0x148] sm:$0xff]
    %v81 = vld [vmem:[%s1 + $0x150] sm:$0xff]
    %v82 = vld [vmem:[%s1 + $0x158] sm:$0xff]
    %v83 = vld [vmem:[%s1 + $0x160] sm:$0xff]
    %v84 = vld [vmem:[%s1 + $0x168] sm:$0xff]
    %v85 = vld [vmem:[%s1 + $0x170] sm:$0xff]
    %v86 = vld [vmem:[%s1 + $0x178] sm:$0xff]
    %v87 = vld [vmem:[%s1 + $0x180] sm:$0xff]
    %v88 = vld [vmem:[%s1 + $0x188] sm:$0xff]
    %v89 = vld [vmem:[%s1 + $0x190] sm:$0xff]
    %v90 = vld [vmem:[%s1 + $0x198] sm:$0xff]
    %v91 = vld [vmem:[%s1 + $0x1a0] sm:$0xff]
    %v92 = vld [vmem:[%s1 + $0x1a8] sm:$0xff]
    %v93 = vld [vmem:[%s1 + $0x1b0] sm:$0xff]
    %v94 = vld [vmem:[%s1 + $0x1b8] sm:$0xff]
    %v95 = vld [vmem:[%s1 + $0x1c0] sm:$0xff]
    %v96 = vld [vmem:[%s1 + $0x1c8] sm:$0xff]
    %v97 = vld [vmem:[%s1 + $0x1d0] sm:$0xff]
    %v98 = vld [vmem:[%s1 + $0x1d8] sm:$0xff]
    %v99 = vld [vmem:[%s1 + $0x1e0] sm:$0xff]
    %v100 = vld [vmem:[%s1 + $0x1e8] sm:$0xff]
    %v101 = vld [vmem:[%s1 + $0x1f0] sm:$0xff]
    %v102 = vld [vmem:[%s1 + $0x1f8] sm:$0xff]
    %v103 = vld [vmem:[%s1 + $0x200] sm:$0xff]
    %v104 = vld [vmem:[%s1 + $0x208] sm:$0xff]
    %v105 = vld [vmem:[%s1 + $0x210] sm:$0xff]
    %v106 = vld [vmem:[%s1 + $0x218] sm:$0xff]
    %v107 = vld [vmem:[%s1 + $0x220] sm:$0xff]
    %v108 = vld [vmem:[%s1 + $0x228] sm:$0xff]
    %v109 = vld [vmem:[%s1 + $0x230] sm:$0xff]
    %v110 = vld [vmem:[%s1 + $0x238] sm:$0xff]
    %v111 = vld [vmem:[%s1 + $0x240] sm:$0xff]
    %v112 = vld [vmem:[%s1 + $0x248] sm:$0xff]
    %v113 = vld [vmem:[%s1 + $0x250] sm:$0xff]
    %v114 = vld [vmem:[%s1 + $0x258] sm:$0xff]
    %v115 = vld [vmem:[%s1 + $0x260] sm:$0xff]
    %v116 = vld [vmem:[%s1 + $0x268] sm:$0xff]
    %v117 = vld [vmem:[%s1 + $0x270] sm:$0xff]
    %v118 = vld [vmem:[%s1 + $0x278] sm:$0xff]
    %v119 = vld [vmem:[%s1 + $0x280] sm:$0xff]
    %v120 = vld [vmem:[%s1 + $0x288] sm:$0xff]
    %v121 = vld [vmem:[%s1 + $0x290] sm:$0xff]
    %v122 = vld [vmem:[%s1 + $0x298] sm:$0xff]
    %v123 = vld [vmem:[%s1 + $0x2a0] sm:$0xff]
    %v124 = vld [vmem:[%s1 + $0x2a8] sm:$0xff]
    %v125 = vld [vmem:[%s1 + $0x2b0] sm:$0xff]
    %v126 = vld [vmem:[%s1 + $0x2b8] sm:$0xff]
    %v127 = vld [vmem:[%s1 + $0x2c0] sm:$0xff]
    %v128 = vld [vmem:[%s1 + $0x2c8] sm:$0xff]
    %v129 = vld [vmem:[%s1 + $0x2d0] sm:$0xff]
    %v130 = vld [vmem:[%s1 + $0x2d8] sm:$0xff]
    %v131 = vld [vmem:[%s1 + $0x2e0] sm:$0xff]
    %v132 = vld [vmem:[%s1 + $0x2e8] sm:$0xff]
    %v133 = vld [vmem:[%s1 + $0x2f0] sm:$0xff]
    %v134 = vld [vmem:[%s1 + $0x2f8] sm:$0xff]
    %v135 = vld [vmem:[%s1 + $0x300] sm:$0xff]
    %v136 = vld [vmem:[%s1 + $0x308] sm:$0xff]
    %v137 = vld [vmem:[%s1 + $0x310] sm:$0xff]
    %v138 = vld [vmem:[%s1 + $0x318] sm:$0xff]
    %v139 = vld [vmem:[%s1 + $0x320] sm:$0xff]
    %v140 = vld [vmem:[%s1 + $0x328] sm:$0xff]
    %v141 = vld [vmem:[%s1 + $0x330] sm:$0xff]
    %v142 = vld [vmem:[%s1 + $0x338] sm:$0xff]
    %v143 = vld [vmem:[%s1 + $0x340] sm:$0xff]
    %v144 = vld [vmem:[%s1 + $0x348] sm:$0xff]
    %v145 = vld [vmem:[%s1 + $0x350] sm:$0xff]
    %v146 = vld [vmem:[%s1 + $0x358] sm:$0xff]
    %v147 = vld [vmem:[%s1 + $0x360] sm:$0xff]
    %v148 = vld [vmem:[%s1 + $0x368] sm:$0xff]
    %v149 = vld [vmem:[%s1 + $0x370] sm:$0xff]
    %v150 = vld [vmem:[%s1 + $0x378] sm:$0xff]
    %v151 = vld [vmem:[%s1 + $0x380] sm:$0xff]
    %v152 = vld [vmem:[%s1 + $0x388] sm:$0xff]
    %v153 = vld [vmem:[%s1 + $0x390] sm:$0xff]
    %v154 = vld [vmem:[%s1 + $0x398] sm:$0xff]
    %v155 = vld [vmem:[%s1 + $0x3a0] sm:$0xff]
    %v156 = vld [vmem:[%s1 + $0x3a8] sm:$0xff]
    %v157 = vld [vmem:[%s1 + $0x3b0] sm:$0xff]
    %v158 = vld [vmem:[%s1 + $0x3b8] sm:$0xff]
    %v159 = vld [vmem:[%s1 + $0x3c0] sm:$0xff]
    %v160 = vld [vmem:[%s1 + $0x3c8] sm:$0xff]
    %v161 = vld [vmem:[%s1 + $0x3d0] sm:$0xff]
    %v162 = vld [vmem:[%s1 + $0x3d8] sm:$0xff]
    %v163 = vld [vmem:[%s1 + $0x3e0] sm:$0xff]
    %v164 = vld [vmem:[%s1 + $0x3e8] sm:$0xff]
    %v165 = vld [vmem:[%s1 + $0x3f0] sm:$0xff]
    %v166 = vld [vmem:[%s1 + $0x3f8] sm:$0xff]
    %v167 = vld [vmem:[%s1 + $0x400] sm:$0xff]
    %v168 = vld [vmem:[%s1 + $0x408] sm:$0xff]
    %v169 = vld [vmem:[%s1 + $0x410] sm:$0xff]
    %v170 = vld [vmem:[%s1 + $0x418] sm:$0xff]
    %v171 = vld [vmem:[%s1 + $0x420] sm:$0xff]
    %v172 = vld [vmem:[%s1 + $0x428] sm:$0xff]
    %v173 = vld [vmem:[%s1 + $0x430] sm:$0xff]
    %v174 = vld [vmem:[%s1 + $0x438] sm:$0xff]
    %v175 = vld [vmem:[%s1 + $0x440] sm:$0xff]
    %v176 = vld [vmem:[%s1 + $0x448] sm:$0xff]
    %v177 = vld [vmem:[%s1 + $0x450] sm:$0xff]
    %v178 = vld [vmem:[%s1 + $0x458] sm:$0xff]
    %v179 = vld [vmem:[%s1 + $0x460] sm:$0xff]
    %v180 = vld [vmem:[%s1 + $0x468] sm:$0xff]
    %v181 = vld [vmem:[%s1 + $0x470] sm:$0xff]
    %v182 = vld [vmem:[%s1 + $0x478] sm:$0xff]
    %v183 = vld [vmem:[%s1 + $0x480] sm:$0xff]
    %v184 = vld [vmem:[%s1 + $0x488] sm:$0xff]
    %v185 = vld [vmem:[%s1 + $0x490] sm:$0xff]
    %v186 = vld [vmem:[%s1 + $0x498] sm:$0xff]
    %v187 = vld [vmem:[%s1 + $0x4a0] sm:$0xff]
    %v188 = vld [vmem:[%s1 + $0x4a8] sm:$0xff]
    %v189 = vld [vmem:[%s1 + $0x4b0] sm:$0xff]
    %v190 = vld [vmem:[%s1 + $0x4b8] sm:$0xff]
    %v191 = vld [vmem:[%s1 + $0x4c0] sm:$0xff]
    %v192 = vld [vmem:[%s1 + $0x4c8] sm:$0xff]
    %v193 = vld [vmem:[%s1 + $0x4d0] sm:$0xff]
    %v194 = vld [vmem:[%s1 + $0x4d8] sm:$0xff]
    %v195 = vld [vmem:[%s1 + $0x4e0] sm:$0xff]
    %v196 = vld [vmem:[%s1 + $0x4e8] sm:$0xff]
    %v197 = vld [vmem:[%s1 + $0x4f0] sm:$0xff]
    %v198 = vld [vmem:[%s1 + $0x4f8] sm:$0xff]
    %v199 = vld [vmem:[%s1 + $0x500] sm:$0xff]
    %v200 = vld [vmem:[%s1 + $0x508] sm:$0xff]
    %v201 = vld [vmem:[%s1 + $0x510] sm:$0xff]
    %v202 = vld [vmem:[%s1 + $0x518] sm:$0xff]
    %v203 = vld [vmem:[%s1 + $0x520] sm:$0xff]
    %v204 = vld [vmem:[%s1 + $0x528] sm:$0xff]
    %v205 = vld [vmem:[%s1 + $0x530] sm:$0xff]
    %v206 = vld [vmem:[%s1 + $0x538] sm:$0xff]
    %v207 = vld [vmem:[%s1 + $0x540] sm:$0xff]
    %v208 = vld [vmem:[%s1 + $0x548] sm:$0xff]
    %v209 = vld [vmem:[%s1 + $0x550] sm:$0xff]
    %v210 = vld [vmem:[%s1 + $0x558] sm:$0xff]
    %v211 = vld [vmem:[%s1 + $0x560] sm:$0xff]
    %v212 = vld [vmem:[%s1 + $0x568] sm:$0xff]
    %v213 = vld [vmem:[%s1 + $0x570] sm:$0xff]
    %v214 = vld [vmem:[%s1 + $0x578] sm:$0xff]
    %v215 = vld [vmem:[%s1 + $0x580] sm:$0xff]
    %v216 = vld [vmem:[%s1 + $0x588] sm:$0xff]
    %v217 = vld [vmem:[%s1 + $0x590] sm:$0xff]
    %v218 = vld [vmem:[%s1 + $0x598] sm:$0xff]
    %v219 = vld [vmem:[%s1 + $0x5a0] sm:$0xff]
    %v220 = vld [vmem:[%s1 + $0x5a8] sm:$0xff]
    %v221 = vld [vmem:[%s1 + $0x5b0] sm:$0xff]
    %v222 = vld [vmem:[%s1 + $0x5b8] sm:$0xff]
    %v223 = vld [vmem:[%s1 + $0x5c0] sm:$0xff]
    %v224 = vld [vmem:[%s1 + $0x5c8] sm:$0xff]
    %v225 = vld [vmem:[%s1 + $0x5d0] sm:$0xff]
    %v226 = vld [vmem:[%s1 + $0x5d8] sm:$0xff]
    %v227 = vld [vmem:[%s1 + $0x5e0] sm:$0xff]
    %v228 = vld [vmem:[%s1 + $0x5e8] sm:$0xff]
    %v229 = vld [vmem:[%s1 + $0x5f0] sm:$0xff]
    %v230 = vld [vmem:[%s1 + $0x5f8] sm:$0xff]
    %v231 = vld [vmem:[%s1 + $0x600] sm:$0xff]
    %v232 = vld [vmem:[%s1 + $0x608] sm:$0xff]
    %v233 = vld [vmem:[%s1 + $0x610] sm:$0xff]
    %v234 = vld [vmem:[%s1 + $0x618] sm:$0xff]
    %v235 = vld [vmem:[%s1 + $0x620] sm:$0xff]
    %v236 = vld [vmem:[%s1 + $0x628] sm:$0xff]
    %v237 = vld [vmem:[%s1 + $0x630] sm:$0xff]
    %v238 = vld [vmem:[%s1 + $0x638] sm:$0xff]
    %v239 = vld [vmem:[%s1 + $0x640] sm:$0xff]
    %v240 = vld [vmem:[%s1 + $0x648] sm:$0xff]
    %v241 = vld [vmem:[%s1 + $0x650] sm:$0xff]
    %v242 = vld [vmem:[%s1 + $0x658] sm:$0xff]
    %v243 = vld [vmem:[%s1 + $0x660] sm:$0xff]
    %v244 = vld [vmem:[%s1 + $0x668] sm:$0xff]
    %v245 = vld [vmem:[%s1 + $0x670] sm:$0xff]
    %v246 = vld [vmem:[%s1 + $0x678] sm:$0xff]
    %v247 = vld [vmem:[%s1 + $0x680] sm:$0xff]
    %v248 = vld [vmem:[%s1 + $0x688] sm:$0xff]
    %v249 = vld [vmem:[%s1 + $0x690] sm:$0xff]
    %v250 = vld [vmem:[%s1 + $0x698] sm:$0xff]
    %v251 = vld [vmem:[%s1 + $0x6a0] sm:$0xff]
    %v252 = vld [vmem:[%s1 + $0x6a8] sm:$0xff]
    %v253 = vld [vmem:[%s1 + $0x6b0] sm:$0xff]
    %v254 = vld [vmem:[%s1 + $0x6b8] sm:$0xff]
    %v255 = vld [vmem:[%s1 + $0x6c0] sm:$0xff]
    %v256 = vld [vmem:[%s1 + $0x6c8] sm:$0xff]
    %v257 = vld [vmem:[%s1 + $0x6d0] sm:$0xff]
    %v258 = vld [vmem:[%s1 + $0x6d8] sm:$0xff]
    %v259 = vld [vmem:[%s1 + $0x6e0] sm:$0xff]
    %v260 = vld [vmem:[%s1 + $0x6e8] sm:$0xff]
    %v261 = vld [vmem:[%s1 + $0x6f0] sm:$0xff]
    %v262 = vld [vmem:[%s1 + $0x6f8] sm:$0xff]
    %v263 = vld [vmem:[%s1 + $0x700] sm:$0xff]
    %v264 = vld [vmem:[%s1 + $0x708] sm:$0xff]
    %v265 = vld [vmem:[%s1 + $0x710] sm:$0xff]
    %v266 = vld [vmem:[%s1 + $0x718] sm:$0xff]
    %v267 = vld [vmem:[%s1 + $0x720] sm:$0xff]
    %v268 = vld [vmem:[%s1 + $0x728] sm:$0xff]
    %v269 = vld [vmem:[%s1 + $0x730] sm:$0xff]
    %v270 = vld [vmem:[%s1 + $0x738] sm:$0xff]
    %v271 = vld [vmem:[%s1 + $0x740] sm:$0xff]
    %v272 = vld [vmem:[%s1 + $0x748] sm:$0xff]
    %v273 = vld [vmem:[%s1 + $0x750] sm:$0xff]
    %v274 = vld [vmem:[%s1 + $0x758] sm:$0xff]
    %v275 = vld [vmem:[%s1 + $0x760] sm:$0xff]
    %v276 = vld [vmem:[%s1 + $0x768] sm:$0xff]
    %v277 = vld [vmem:[%s1 + $0x770] sm:$0xff]
    %v278 = vld [vmem:[%s1 + $0x778] sm:$0xff]
    %v279 = vld [vmem:[%s1 + $0x780] sm:$0xff]
    %v280 = vld [vmem:[%s1 + $0x788] sm:$0xff]
    %v281 = vld [vmem:[%s1 + $0x790] sm:$0xff]
    %v282 = vld [vmem:[%s1 + $0x798] sm:$0xff]
    %v283 = vld [vmem:[%s1 + $0x7a0] sm:$0xff]
    %v284 = vld [vmem:[%s1 + $0x7a8] sm:$0xff]
    %v285 = vld [vmem:[%s1 + $0x7b0] sm:$0xff]
    %v286 = vld [vmem:[%s1 + $0x7b8] sm:$0xff]
    %v287 = vld [vmem:[%s1 + $0x7c0] sm:$0xff]
    %v288 = vld [vmem:[%s1 + $0x7c8] sm:$0xff]
    %v289 = vld [vmem:[%s1 + $0x7d0] sm:$0xff]
    %v290 = vld [vmem:[%s1 + $0x7d8] sm:$0xff]
    %v291 = vld [vmem:[%s1 + $0x7e0] sm:$0xff]
    %v292 = vld [vmem:[%s1 + $0x7e8] sm:$0xff]
    %v293 = vld [vmem:[%s1 + $0x7f0] sm:$0xff]
    %v294 = vld [vmem:[%s1 + $0x7f8] sm:$0xff]
    %v295 = vld [vmem:[%s2] sm:$0xff]
    %v297 = vlaneseq
    %v298 = vshrl.u32 %v297, 7
    %v299 = vsub.s32 0, %v298
    %v300 = vrot.slane %v295, %v299
    %v301 = vlaneseq
    %v302 = vshrl.u32 %v301, 7
    %v303 = vsub.s32 1, %v302
    %v304 = vrot.slane %v295, %v303
    %v305 = vlaneseq
    %v306 = vshrl.u32 %v305, 7
    %v307 = vsub.s32 2, %v306
    %v308 = vrot.slane %v295, %v307
    %v309 = vlaneseq
    %v310 = vshrl.u32 %v309, 7
    %v311 = vsub.s32 3, %v310
    %v312 = vrot.slane %v295, %v311
    %v313 = vlaneseq
    %v314 = vshrl.u32 %v313, 7
    %v315 = vsub.s32 4, %v314
    %v316 = vrot.slane %v295, %v315
    %v317 = vlaneseq
    %v318 = vshrl.u32 %v317, 7
    %v319 = vsub.s32 5, %v318
    %v320 = vrot.slane %v295, %v319
    %v321 = vlaneseq
    %v322 = vshrl.u32 %v321, 7
    %v323 = vsub.s32 6, %v322
    %v324 = vrot.slane %v295, %v323
    %v325 = vlaneseq
    %v326 = vshrl.u32 %v325, 7
    %v327 = vsub.s32 7, %v326
    %v328 = vrot.slane %v295, %v327
    %v593 = vunpack.c.l.b16 %v39
    %v594 = vunpack.c.h.b16 %v39
    %v595 = vunpack.c.l.b16 %v40
    %v596 = vunpack.c.h.b16 %v40
    %v597 = vunpack.c.l.b16 %v41
    %v598 = vunpack.c.h.b16 %v41
    %v599 = vunpack.c.l.b16 %v42
    %v600 = vunpack.c.h.b16 %v42
    %v601 = vunpack.c.l.b16 %v43
    %v602 = vunpack.c.h.b16 %v43
    %v603 = vunpack.c.l.b16 %v44
    %v604 = vunpack.c.h.b16 %v44
    %v605 = vunpack.c.l.b16 %v45
    %v606 = vunpack.c.h.b16 %v45
    %v607 = vunpack.c.l.b16 %v46
    %v608 = vunpack.c.h.b16 %v46
    %v609 = vunpack.c.l.b16 %v47
    %v610 = vunpack.c.h.b16 %v47
    %v611 = vunpack.c.l.b16 %v48
    %v612 = vunpack.c.h.b16 %v48
    %v613 = vunpack.c.l.b16 %v49
    %v614 = vunpack.c.h.b16 %v49
    %v615 = vunpack.c.l.b16 %v50
    %v616 = vunpack.c.h.b16 %v50
    %v617 = vunpack.c.l.b16 %v51
    %v618 = vunpack.c.h.b16 %v51
    %v619 = vunpack.c.l.b16 %v52
    %v620 = vunpack.c.h.b16 %v52
    %v621 = vunpack.c.l.b16 %v53
    %v622 = vunpack.c.h.b16 %v53
    %v623 = vunpack.c.l.b16 %v54
    %v624 = vunpack.c.h.b16 %v54
    %v625 = vunpack.c.l.b16 %v55
    %v626 = vunpack.c.h.b16 %v55
    %v627 = vunpack.c.l.b16 %v56
    %v628 = vunpack.c.h.b16 %v56
    %v629 = vunpack.c.l.b16 %v57
    %v630 = vunpack.c.h.b16 %v57
    %v631 = vunpack.c.l.b16 %v58
    %v632 = vunpack.c.h.b16 %v58
    %v633 = vunpack.c.l.b16 %v59
    %v634 = vunpack.c.h.b16 %v59
    %v635 = vunpack.c.l.b16 %v60
    %v636 = vunpack.c.h.b16 %v60
    %v637 = vunpack.c.l.b16 %v61
    %v638 = vunpack.c.h.b16 %v61
    %v639 = vunpack.c.l.b16 %v62
    %v640 = vunpack.c.h.b16 %v62
    %v641 = vunpack.c.l.b16 %v63
    %v642 = vunpack.c.h.b16 %v63
    %v643 = vunpack.c.l.b16 %v64
    %v644 = vunpack.c.h.b16 %v64
    %v645 = vunpack.c.l.b16 %v65
    %v646 = vunpack.c.h.b16 %v65
    %v647 = vunpack.c.l.b16 %v66
    %v648 = vunpack.c.h.b16 %v66
    %v649 = vunpack.c.l.b16 %v67
    %v650 = vunpack.c.h.b16 %v67
    %v651 = vunpack.c.l.b16 %v68
    %v652 = vunpack.c.h.b16 %v68
    %v653 = vunpack.c.l.b16 %v69
    %v654 = vunpack.c.h.b16 %v69
    %v655 = vunpack.c.l.b16 %v70
    %v656 = vunpack.c.h.b16 %v70
    %v657 = vunpack.c.l.b16 %v71
    %v658 = vunpack.c.h.b16 %v71
    %v659 = vunpack.c.l.b16 %v72
    %v660 = vunpack.c.h.b16 %v72
    %v661 = vunpack.c.l.b16 %v73
    %v662 = vunpack.c.h.b16 %v73
    %v663 = vunpack.c.l.b16 %v74
    %v664 = vunpack.c.h.b16 %v74
    %v665 = vunpack.c.l.b16 %v75
    %v666 = vunpack.c.h.b16 %v75
    %v667 = vunpack.c.l.b16 %v76
    %v668 = vunpack.c.h.b16 %v76
    %v669 = vunpack.c.l.b16 %v77
    %v670 = vunpack.c.h.b16 %v77
    %v671 = vunpack.c.l.b16 %v78
    %v672 = vunpack.c.h.b16 %v78
    %v673 = vunpack.c.l.b16 %v79
    %v674 = vunpack.c.h.b16 %v79
    %v675 = vunpack.c.l.b16 %v80
    %v676 = vunpack.c.h.b16 %v80
    %v677 = vunpack.c.l.b16 %v81
    %v678 = vunpack.c.h.b16 %v81
    %v679 = vunpack.c.l.b16 %v82
    %v680 = vunpack.c.h.b16 %v82
    %v681 = vunpack.c.l.b16 %v83
    %v682 = vunpack.c.h.b16 %v83
    %v683 = vunpack.c.l.b16 %v84
    %v684 = vunpack.c.h.b16 %v84
    %v685 = vunpack.c.l.b16 %v85
    %v686 = vunpack.c.h.b16 %v85
    %v687 = vunpack.c.l.b16 %v86
    %v688 = vunpack.c.h.b16 %v86
    %v689 = vunpack.c.l.b16 %v87
    %v690 = vunpack.c.h.b16 %v87
    %v691 = vunpack.c.l.b16 %v88
    %v692 = vunpack.c.h.b16 %v88
    %v693 = vunpack.c.l.b16 %v89
    %v694 = vunpack.c.h.b16 %v89
    %v695 = vunpack.c.l.b16 %v90
    %v696 = vunpack.c.h.b16 %v90
    %v697 = vunpack.c.l.b16 %v91
    %v698 = vunpack.c.h.b16 %v91
    %v699 = vunpack.c.l.b16 %v92
    %v700 = vunpack.c.h.b16 %v92
    %v701 = vunpack.c.l.b16 %v93
    %v702 = vunpack.c.h.b16 %v93
    %v703 = vunpack.c.l.b16 %v94
    %v704 = vunpack.c.h.b16 %v94
    %v705 = vunpack.c.l.b16 %v95
    %v706 = vunpack.c.h.b16 %v95
    %v707 = vunpack.c.l.b16 %v96
    %v708 = vunpack.c.h.b16 %v96
    %v709 = vunpack.c.l.b16 %v97
    %v710 = vunpack.c.h.b16 %v97
    %v711 = vunpack.c.l.b16 %v98
    %v712 = vunpack.c.h.b16 %v98
    %v713 = vunpack.c.l.b16 %v99
    %v714 = vunpack.c.h.b16 %v99
    %v715 = vunpack.c.l.b16 %v100
    %v716 = vunpack.c.h.b16 %v100
    %v717 = vunpack.c.l.b16 %v101
    %v718 = vunpack.c.h.b16 %v101
    %v719 = vunpack.c.l.b16 %v102
    %v720 = vunpack.c.h.b16 %v102
    %v721 = vunpack.c.l.b16 %v103
    %v722 = vunpack.c.h.b16 %v103
    %v723 = vunpack.c.l.b16 %v104
    %v724 = vunpack.c.h.b16 %v104
    %v725 = vunpack.c.l.b16 %v105
    %v726 = vunpack.c.h.b16 %v105
    %v727 = vunpack.c.l.b16 %v106
    %v728 = vunpack.c.h.b16 %v106
    %v729 = vunpack.c.l.b16 %v107
    %v730 = vunpack.c.h.b16 %v107
    %v731 = vunpack.c.l.b16 %v108
    %v732 = vunpack.c.h.b16 %v108
    %v733 = vunpack.c.l.b16 %v109
    %v734 = vunpack.c.h.b16 %v109
    %v735 = vunpack.c.l.b16 %v110
    %v736 = vunpack.c.h.b16 %v110
    %v737 = vunpack.c.l.b16 %v111
    %v738 = vunpack.c.h.b16 %v111
    %v739 = vunpack.c.l.b16 %v112
    %v740 = vunpack.c.h.b16 %v112
    %v741 = vunpack.c.l.b16 %v113
    %v742 = vunpack.c.h.b16 %v113
    %v743 = vunpack.c.l.b16 %v114
    %v744 = vunpack.c.h.b16 %v114
    %v745 = vunpack.c.l.b16 %v115
    %v746 = vunpack.c.h.b16 %v115
    %v747 = vunpack.c.l.b16 %v116
    %v748 = vunpack.c.h.b16 %v116
    %v749 = vunpack.c.l.b16 %v117
    %v750 = vunpack.c.h.b16 %v117
    %v751 = vunpack.c.l.b16 %v118
    %v752 = vunpack.c.h.b16 %v118
    %v753 = vunpack.c.l.b16 %v119
    %v754 = vunpack.c.h.b16 %v119
    %v755 = vunpack.c.l.b16 %v120
    %v756 = vunpack.c.h.b16 %v120
    %v757 = vunpack.c.l.b16 %v121
    %v758 = vunpack.c.h.b16 %v121
    %v759 = vunpack.c.l.b16 %v122
    %v760 = vunpack.c.h.b16 %v122
    %v761 = vunpack.c.l.b16 %v123
    %v762 = vunpack.c.h.b16 %v123
    %v763 = vunpack.c.l.b16 %v124
    %v764 = vunpack.c.h.b16 %v124
    %v765 = vunpack.c.l.b16 %v125
    %v766 = vunpack.c.h.b16 %v125
    %v767 = vunpack.c.l.b16 %v126
    %v768 = vunpack.c.h.b16 %v126
    %v769 = vunpack.c.l.b16 %v127
    %v770 = vunpack.c.h.b16 %v127
    %v771 = vunpack.c.l.b16 %v128
    %v772 = vunpack.c.h.b16 %v128
    %v773 = vunpack.c.l.b16 %v129
    %v774 = vunpack.c.h.b16 %v129
    %v775 = vunpack.c.l.b16 %v130
    %v776 = vunpack.c.h.b16 %v130
    %v777 = vunpack.c.l.b16 %v131
    %v778 = vunpack.c.h.b16 %v131
    %v779 = vunpack.c.l.b16 %v132
    %v780 = vunpack.c.h.b16 %v132
    %v781 = vunpack.c.l.b16 %v133
    %v782 = vunpack.c.h.b16 %v133
    %v783 = vunpack.c.l.b16 %v134
    %v784 = vunpack.c.h.b16 %v134
    %v785 = vunpack.c.l.b16 %v135
    %v786 = vunpack.c.h.b16 %v135
    %v787 = vunpack.c.l.b16 %v136
    %v788 = vunpack.c.h.b16 %v136
    %v789 = vunpack.c.l.b16 %v137
    %v790 = vunpack.c.h.b16 %v137
    %v791 = vunpack.c.l.b16 %v138
    %v792 = vunpack.c.h.b16 %v138
    %v793 = vunpack.c.l.b16 %v139
    %v794 = vunpack.c.h.b16 %v139
    %v795 = vunpack.c.l.b16 %v140
    %v796 = vunpack.c.h.b16 %v140
    %v797 = vunpack.c.l.b16 %v141
    %v798 = vunpack.c.h.b16 %v141
    %v799 = vunpack.c.l.b16 %v142
    %v800 = vunpack.c.h.b16 %v142
    %v801 = vunpack.c.l.b16 %v143
    %v802 = vunpack.c.h.b16 %v143
    %v803 = vunpack.c.l.b16 %v144
    %v804 = vunpack.c.h.b16 %v144
    %v805 = vunpack.c.l.b16 %v145
    %v806 = vunpack.c.h.b16 %v145
    %v807 = vunpack.c.l.b16 %v146
    %v808 = vunpack.c.h.b16 %v146
    %v809 = vunpack.c.l.b16 %v147
    %v810 = vunpack.c.h.b16 %v147
    %v811 = vunpack.c.l.b16 %v148
    %v812 = vunpack.c.h.b16 %v148
    %v813 = vunpack.c.l.b16 %v149
    %v814 = vunpack.c.h.b16 %v149
    %v815 = vunpack.c.l.b16 %v150
    %v816 = vunpack.c.h.b16 %v150
    %v817 = vunpack.c.l.b16 %v151
    %v818 = vunpack.c.h.b16 %v151
    %v819 = vunpack.c.l.b16 %v152
    %v820 = vunpack.c.h.b16 %v152
    %v821 = vunpack.c.l.b16 %v153
    %v822 = vunpack.c.h.b16 %v153
    %v823 = vunpack.c.l.b16 %v154
    %v824 = vunpack.c.h.b16 %v154
    %v825 = vunpack.c.l.b16 %v155
    %v826 = vunpack.c.h.b16 %v155
    %v827 = vunpack.c.l.b16 %v156
    %v828 = vunpack.c.h.b16 %v156
    %v829 = vunpack.c.l.b16 %v157
    %v830 = vunpack.c.h.b16 %v157
    %v831 = vunpack.c.l.b16 %v158
    %v832 = vunpack.c.h.b16 %v158
    %v833 = vunpack.c.l.b16 %v159
    %v834 = vunpack.c.h.b16 %v159
    %v835 = vunpack.c.l.b16 %v160
    %v836 = vunpack.c.h.b16 %v160
    %v837 = vunpack.c.l.b16 %v161
    %v838 = vunpack.c.h.b16 %v161
    %v839 = vunpack.c.l.b16 %v162
    %v840 = vunpack.c.h.b16 %v162
    %v841 = vunpack.c.l.b16 %v163
    %v842 = vunpack.c.h.b16 %v163
    %v843 = vunpack.c.l.b16 %v164
    %v844 = vunpack.c.h.b16 %v164
    %v845 = vunpack.c.l.b16 %v165
    %v846 = vunpack.c.h.b16 %v165
    %v847 = vunpack.c.l.b16 %v166
    %v848 = vunpack.c.h.b16 %v166
    %v849 = vunpack.c.l.b16 %v167
    %v850 = vunpack.c.h.b16 %v167
    %v851 = vunpack.c.l.b16 %v168
    %v852 = vunpack.c.h.b16 %v168
    %v853 = vunpack.c.l.b16 %v169
    %v854 = vunpack.c.h.b16 %v169
    %v855 = vunpack.c.l.b16 %v170
    %v856 = vunpack.c.h.b16 %v170
    %v857 = vunpack.c.l.b16 %v171
    %v858 = vunpack.c.h.b16 %v171
    %v859 = vunpack.c.l.b16 %v172
    %v860 = vunpack.c.h.b16 %v172
    %v861 = vunpack.c.l.b16 %v173
    %v862 = vunpack.c.h.b16 %v173
    %v863 = vunpack.c.l.b16 %v174
    %v864 = vunpack.c.h.b16 %v174
    %v865 = vunpack.c.l.b16 %v175
    %v866 = vunpack.c.h.b16 %v175
    %v867 = vunpack.c.l.b16 %v176
    %v868 = vunpack.c.h.b16 %v176
    %v869 = vunpack.c.l.b16 %v177
    %v870 = vunpack.c.h.b16 %v177
    %v871 = vunpack.c.l.b16 %v178
    %v872 = vunpack.c.h.b16 %v178
    %v873 = vunpack.c.l.b16 %v179
    %v874 = vunpack.c.h.b16 %v179
    %v875 = vunpack.c.l.b16 %v180
    %v876 = vunpack.c.h.b16 %v180
    %v877 = vunpack.c.l.b16 %v181
    %v878 = vunpack.c.h.b16 %v181
    %v879 = vunpack.c.l.b16 %v182
    %v880 = vunpack.c.h.b16 %v182
    %v881 = vunpack.c.l.b16 %v183
    %v882 = vunpack.c.h.b16 %v183
    %v883 = vunpack.c.l.b16 %v184
    %v884 = vunpack.c.h.b16 %v184
    %v885 = vunpack.c.l.b16 %v185
    %v886 = vunpack.c.h.b16 %v185
    %v887 = vunpack.c.l.b16 %v186
    %v888 = vunpack.c.h.b16 %v186
    %v889 = vunpack.c.l.b16 %v187
    %v890 = vunpack.c.h.b16 %v187
    %v891 = vunpack.c.l.b16 %v188
    %v892 = vunpack.c.h.b16 %v188
    %v893 = vunpack.c.l.b16 %v189
    %v894 = vunpack.c.h.b16 %v189
    %v895 = vunpack.c.l.b16 %v190
    %v896 = vunpack.c.h.b16 %v190
    %v897 = vunpack.c.l.b16 %v191
    %v898 = vunpack.c.h.b16 %v191
    %v899 = vunpack.c.l.b16 %v192
    %v900 = vunpack.c.h.b16 %v192
    %v901 = vunpack.c.l.b16 %v193
    %v902 = vunpack.c.h.b16 %v193
    %v903 = vunpack.c.l.b16 %v194
    %v904 = vunpack.c.h.b16 %v194
    %v905 = vunpack.c.l.b16 %v195
    %v906 = vunpack.c.h.b16 %v195
    %v907 = vunpack.c.l.b16 %v196
    %v908 = vunpack.c.h.b16 %v196
    %v909 = vunpack.c.l.b16 %v197
    %v910 = vunpack.c.h.b16 %v197
    %v911 = vunpack.c.l.b16 %v198
    %v912 = vunpack.c.h.b16 %v198
    %v913 = vunpack.c.l.b16 %v199
    %v914 = vunpack.c.h.b16 %v199
    %v915 = vunpack.c.l.b16 %v200
    %v916 = vunpack.c.h.b16 %v200
    %v917 = vunpack.c.l.b16 %v201
    %v918 = vunpack.c.h.b16 %v201
    %v919 = vunpack.c.l.b16 %v202
    %v920 = vunpack.c.h.b16 %v202
    %v921 = vunpack.c.l.b16 %v203
    %v922 = vunpack.c.h.b16 %v203
    %v923 = vunpack.c.l.b16 %v204
    %v924 = vunpack.c.h.b16 %v204
    %v925 = vunpack.c.l.b16 %v205
    %v926 = vunpack.c.h.b16 %v205
    %v927 = vunpack.c.l.b16 %v206
    %v928 = vunpack.c.h.b16 %v206
    %v929 = vunpack.c.l.b16 %v207
    %v930 = vunpack.c.h.b16 %v207
    %v931 = vunpack.c.l.b16 %v208
    %v932 = vunpack.c.h.b16 %v208
    %v933 = vunpack.c.l.b16 %v209
    %v934 = vunpack.c.h.b16 %v209
    %v935 = vunpack.c.l.b16 %v210
    %v936 = vunpack.c.h.b16 %v210
    %v937 = vunpack.c.l.b16 %v211
    %v938 = vunpack.c.h.b16 %v211
    %v939 = vunpack.c.l.b16 %v212
    %v940 = vunpack.c.h.b16 %v212
    %v941 = vunpack.c.l.b16 %v213
    %v942 = vunpack.c.h.b16 %v213
    %v943 = vunpack.c.l.b16 %v214
    %v944 = vunpack.c.h.b16 %v214
    %v945 = vunpack.c.l.b16 %v215
    %v946 = vunpack.c.h.b16 %v215
    %v947 = vunpack.c.l.b16 %v216
    %v948 = vunpack.c.h.b16 %v216
    %v949 = vunpack.c.l.b16 %v217
    %v950 = vunpack.c.h.b16 %v217
    %v951 = vunpack.c.l.b16 %v218
    %v952 = vunpack.c.h.b16 %v218
    %v953 = vunpack.c.l.b16 %v219
    %v954 = vunpack.c.h.b16 %v219
    %v955 = vunpack.c.l.b16 %v220
    %v956 = vunpack.c.h.b16 %v220
    %v957 = vunpack.c.l.b16 %v221
    %v958 = vunpack.c.h.b16 %v221
    %v959 = vunpack.c.l.b16 %v222
    %v960 = vunpack.c.h.b16 %v222
    %v961 = vunpack.c.l.b16 %v223
    %v962 = vunpack.c.h.b16 %v223
    %v963 = vunpack.c.l.b16 %v224
    %v964 = vunpack.c.h.b16 %v224
    %v965 = vunpack.c.l.b16 %v225
    %v966 = vunpack.c.h.b16 %v225
    %v967 = vunpack.c.l.b16 %v226
    %v968 = vunpack.c.h.b16 %v226
    %v969 = vunpack.c.l.b16 %v227
    %v970 = vunpack.c.h.b16 %v227
    %v971 = vunpack.c.l.b16 %v228
    %v972 = vunpack.c.h.b16 %v228
    %v973 = vunpack.c.l.b16 %v229
    %v974 = vunpack.c.h.b16 %v229
    %v975 = vunpack.c.l.b16 %v230
    %v976 = vunpack.c.h.b16 %v230
    %v977 = vunpack.c.l.b16 %v231
    %v978 = vunpack.c.h.b16 %v231
    %v979 = vunpack.c.l.b16 %v232
    %v980 = vunpack.c.h.b16 %v232
    %v981 = vunpack.c.l.b16 %v233
    %v982 = vunpack.c.h.b16 %v233
    %v983 = vunpack.c.l.b16 %v234
    %v984 = vunpack.c.h.b16 %v234
    %v985 = vunpack.c.l.b16 %v235
    %v986 = vunpack.c.h.b16 %v235
    %v987 = vunpack.c.l.b16 %v236
    %v988 = vunpack.c.h.b16 %v236
    %v989 = vunpack.c.l.b16 %v237
    %v990 = vunpack.c.h.b16 %v237
    %v991 = vunpack.c.l.b16 %v238
    %v992 = vunpack.c.h.b16 %v238
    %v993 = vunpack.c.l.b16 %v239
    %v994 = vunpack.c.h.b16 %v239
    %v995 = vunpack.c.l.b16 %v240
    %v996 = vunpack.c.h.b16 %v240
    %v997 = vunpack.c.l.b16 %v241
    %v998 = vunpack.c.h.b16 %v241
    %v999 = vunpack.c.l.b16 %v242
    %v1000 = vunpack.c.h.b16 %v242
    %v1001 = vunpack.c.l.b16 %v243
    %v1002 = vunpack.c.h.b16 %v243
    %v1003 = vunpack.c.l.b16 %v244
    %v1004 = vunpack.c.h.b16 %v244
    %v1005 = vunpack.c.l.b16 %v245
    %v1006 = vunpack.c.h.b16 %v245
    %v1007 = vunpack.c.l.b16 %v246
    %v1008 = vunpack.c.h.b16 %v246
    %v1009 = vunpack.c.l.b16 %v247
    %v1010 = vunpack.c.h.b16 %v247
    %v1011 = vunpack.c.l.b16 %v248
    %v1012 = vunpack.c.h.b16 %v248
    %v1013 = vunpack.c.l.b16 %v249
    %v1014 = vunpack.c.h.b16 %v249
    %v1015 = vunpack.c.l.b16 %v250
    %v1016 = vunpack.c.h.b16 %v250
    %v1017 = vunpack.c.l.b16 %v251
    %v1018 = vunpack.c.h.b16 %v251
    %v1019 = vunpack.c.l.b16 %v252
    %v1020 = vunpack.c.h.b16 %v252
    %v1021 = vunpack.c.l.b16 %v253
    %v1022 = vunpack.c.h.b16 %v253
    %v1023 = vunpack.c.l.b16 %v254
    %v1024 = vunpack.c.h.b16 %v254
    %v1025 = vunpack.c.l.b16 %v255
    %v1026 = vunpack.c.h.b16 %v255
    %v1027 = vunpack.c.l.b16 %v256
    %v1028 = vunpack.c.h.b16 %v256
    %v1029 = vunpack.c.l.b16 %v257
    %v1030 = vunpack.c.h.b16 %v257
    %v1031 = vunpack.c.l.b16 %v258
    %v1032 = vunpack.c.h.b16 %v258
    %v1033 = vunpack.c.l.b16 %v259
    %v1034 = vunpack.c.h.b16 %v259
    %v1035 = vunpack.c.l.b16 %v260
    %v1036 = vunpack.c.h.b16 %v260
    %v1037 = vunpack.c.l.b16 %v261
    %v1038 = vunpack.c.h.b16 %v261
    %v1039 = vunpack.c.l.b16 %v262
    %v1040 = vunpack.c.h.b16 %v262
    %v1041 = vunpack.c.l.b16 %v263
    %v1042 = vunpack.c.h.b16 %v263
    %v1043 = vunpack.c.l.b16 %v264
    %v1044 = vunpack.c.h.b16 %v264
    %v1045 = vunpack.c.l.b16 %v265
    %v1046 = vunpack.c.h.b16 %v265
    %v1047 = vunpack.c.l.b16 %v266
    %v1048 = vunpack.c.h.b16 %v266
    %v1049 = vunpack.c.l.b16 %v267
    %v1050 = vunpack.c.h.b16 %v267
    %v1051 = vunpack.c.l.b16 %v268
    %v1052 = vunpack.c.h.b16 %v268
    %v1053 = vunpack.c.l.b16 %v269
    %v1054 = vunpack.c.h.b16 %v269
    %v1055 = vunpack.c.l.b16 %v270
    %v1056 = vunpack.c.h.b16 %v270
    %v1057 = vunpack.c.l.b16 %v271
    %v1058 = vunpack.c.h.b16 %v271
    %v1059 = vunpack.c.l.b16 %v272
    %v1060 = vunpack.c.h.b16 %v272
    %v1061 = vunpack.c.l.b16 %v273
    %v1062 = vunpack.c.h.b16 %v273
    %v1063 = vunpack.c.l.b16 %v274
    %v1064 = vunpack.c.h.b16 %v274
    %v1065 = vunpack.c.l.b16 %v275
    %v1066 = vunpack.c.h.b16 %v275
    %v1067 = vunpack.c.l.b16 %v276
    %v1068 = vunpack.c.h.b16 %v276
    %v1069 = vunpack.c.l.b16 %v277
    %v1070 = vunpack.c.h.b16 %v277
    %v1071 = vunpack.c.l.b16 %v278
    %v1072 = vunpack.c.h.b16 %v278
    %v1073 = vunpack.c.l.b16 %v279
    %v1074 = vunpack.c.h.b16 %v279
    %v1075 = vunpack.c.l.b16 %v280
    %v1076 = vunpack.c.h.b16 %v280
    %v1077 = vunpack.c.l.b16 %v281
    %v1078 = vunpack.c.h.b16 %v281
    %v1079 = vunpack.c.l.b16 %v282
    %v1080 = vunpack.c.h.b16 %v282
    %v1081 = vunpack.c.l.b16 %v283
    %v1082 = vunpack.c.h.b16 %v283
    %v1083 = vunpack.c.l.b16 %v284
    %v1084 = vunpack.c.h.b16 %v284
    %v1085 = vunpack.c.l.b16 %v285
    %v1086 = vunpack.c.h.b16 %v285
    %v1087 = vunpack.c.l.b16 %v286
    %v1088 = vunpack.c.h.b16 %v286
    %v1089 = vunpack.c.l.b16 %v287
    %v1090 = vunpack.c.h.b16 %v287
    %v1091 = vunpack.c.l.b16 %v288
    %v1092 = vunpack.c.h.b16 %v288
    %v1093 = vunpack.c.l.b16 %v289
    %v1094 = vunpack.c.h.b16 %v289
    %v1095 = vunpack.c.l.b16 %v290
    %v1096 = vunpack.c.h.b16 %v290
    %v1097 = vunpack.c.l.b16 %v291
    %v1098 = vunpack.c.h.b16 %v291
    %v1099 = vunpack.c.l.b16 %v292
    %v1100 = vunpack.c.h.b16 %v292
    %v1101 = vunpack.c.l.b16 %v293
    %v1102 = vunpack.c.h.b16 %v293
    %v1103 = vunpack.c.l.b16 %v294
    %v1104 = vunpack.c.h.b16 %v294
    %v1105 = vpack.c.b16 %v601, %v593
    %v1106 = vpack.c.b16 %v602, %v594
    %v1107 = vpack.c.b16 %v603, %v595
    %v1108 = vpack.c.b16 %v604, %v596
    %v1109 = vpack.c.b16 %v605, %v597
    %v1110 = vpack.c.b16 %v606, %v598
    %v1111 = vpack.c.b16 %v607, %v599
    %v1112 = vpack.c.b16 %v608, %v600
    %v1113 = vpack.c.b16 %v617, %v609
    %v1114 = vpack.c.b16 %v618, %v610
    %v1115 = vpack.c.b16 %v619, %v611
    %v1116 = vpack.c.b16 %v620, %v612
    %v1117 = vpack.c.b16 %v621, %v613
    %v1118 = vpack.c.b16 %v622, %v614
    %v1119 = vpack.c.b16 %v623, %v615
    %v1120 = vpack.c.b16 %v624, %v616
    %v1121 = vpack.c.b16 %v633, %v625
    %v1122 = vpack.c.b16 %v634, %v626
    %v1123 = vpack.c.b16 %v635, %v627
    %v1124 = vpack.c.b16 %v636, %v628
    %v1125 = vpack.c.b16 %v637, %v629
    %v1126 = vpack.c.b16 %v638, %v630
    %v1127 = vpack.c.b16 %v639, %v631
    %v1128 = vpack.c.b16 %v640, %v632
    %v1129 = vpack.c.b16 %v649, %v641
    %v1130 = vpack.c.b16 %v650, %v642
    %v1131 = vpack.c.b16 %v651, %v643
    %v1132 = vpack.c.b16 %v652, %v644
    %v1133 = vpack.c.b16 %v653, %v645
    %v1134 = vpack.c.b16 %v654, %v646
    %v1135 = vpack.c.b16 %v655, %v647
    %v1136 = vpack.c.b16 %v656, %v648
    %v1137 = vpack.c.b16 %v665, %v657
    %v1138 = vpack.c.b16 %v666, %v658
    %v1139 = vpack.c.b16 %v667, %v659
    %v1140 = vpack.c.b16 %v668, %v660
    %v1141 = vpack.c.b16 %v669, %v661
    %v1142 = vpack.c.b16 %v670, %v662
    %v1143 = vpack.c.b16 %v671, %v663
    %v1144 = vpack.c.b16 %v672, %v664
    %v1145 = vpack.c.b16 %v681, %v673
    %v1146 = vpack.c.b16 %v682, %v674
    %v1147 = vpack.c.b16 %v683, %v675
    %v1148 = vpack.c.b16 %v684, %v676
    %v1149 = vpack.c.b16 %v685, %v677
    %v1150 = vpack.c.b16 %v686, %v678
    %v1151 = vpack.c.b16 %v687, %v679
    %v1152 = vpack.c.b16 %v688, %v680
    %v1153 = vpack.c.b16 %v697, %v689
    %v1154 = vpack.c.b16 %v698, %v690
    %v1155 = vpack.c.b16 %v699, %v691
    %v1156 = vpack.c.b16 %v700, %v692
    %v1157 = vpack.c.b16 %v701, %v693
    %v1158 = vpack.c.b16 %v702, %v694
    %v1159 = vpack.c.b16 %v703, %v695
    %v1160 = vpack.c.b16 %v704, %v696
    %v1161 = vpack.c.b16 %v713, %v705
    %v1162 = vpack.c.b16 %v714, %v706
    %v1163 = vpack.c.b16 %v715, %v707
    %v1164 = vpack.c.b16 %v716, %v708
    %v1165 = vpack.c.b16 %v717, %v709
    %v1166 = vpack.c.b16 %v718, %v710
    %v1167 = vpack.c.b16 %v719, %v711
    %v1168 = vpack.c.b16 %v720, %v712
    %v1169 = vpack.c.b16 %v729, %v721
    %v1170 = vpack.c.b16 %v730, %v722
    %v1171 = vpack.c.b16 %v731, %v723
    %v1172 = vpack.c.b16 %v732, %v724
    %v1173 = vpack.c.b16 %v733, %v725
    %v1174 = vpack.c.b16 %v734, %v726
    %v1175 = vpack.c.b16 %v735, %v727
    %v1176 = vpack.c.b16 %v736, %v728
    %v1177 = vpack.c.b16 %v745, %v737
    %v1178 = vpack.c.b16 %v746, %v738
    %v1179 = vpack.c.b16 %v747, %v739
    %v1180 = vpack.c.b16 %v748, %v740
    %v1181 = vpack.c.b16 %v749, %v741
    %v1182 = vpack.c.b16 %v750, %v742
    %v1183 = vpack.c.b16 %v751, %v743
    %v1184 = vpack.c.b16 %v752, %v744
    %v1185 = vpack.c.b16 %v761, %v753
    %v1186 = vpack.c.b16 %v762, %v754
    %v1187 = vpack.c.b16 %v763, %v755
    %v1188 = vpack.c.b16 %v764, %v756
    %v1189 = vpack.c.b16 %v765, %v757
    %v1190 = vpack.c.b16 %v766, %v758
    %v1191 = vpack.c.b16 %v767, %v759
    %v1192 = vpack.c.b16 %v768, %v760
    %v1193 = vpack.c.b16 %v777, %v769
    %v1194 = vpack.c.b16 %v778, %v770
    %v1195 = vpack.c.b16 %v779, %v771
    %v1196 = vpack.c.b16 %v780, %v772
    %v1197 = vpack.c.b16 %v781, %v773
    %v1198 = vpack.c.b16 %v782, %v774
    %v1199 = vpack.c.b16 %v783, %v775
    %v1200 = vpack.c.b16 %v784, %v776
    %v1201 = vpack.c.b16 %v793, %v785
    %v1202 = vpack.c.b16 %v794, %v786
    %v1203 = vpack.c.b16 %v795, %v787
    %v1204 = vpack.c.b16 %v796, %v788
    %v1205 = vpack.c.b16 %v797, %v789
    %v1206 = vpack.c.b16 %v798, %v790
    %v1207 = vpack.c.b16 %v799, %v791
    %v1208 = vpack.c.b16 %v800, %v792
    %v1209 = vpack.c.b16 %v809, %v801
    %v1210 = vpack.c.b16 %v810, %v802
    %v1211 = vpack.c.b16 %v811, %v803
    %v1212 = vpack.c.b16 %v812, %v804
    %v1213 = vpack.c.b16 %v813, %v805
    %v1214 = vpack.c.b16 %v814, %v806
    %v1215 = vpack.c.b16 %v815, %v807
    %v1216 = vpack.c.b16 %v816, %v808
    %v1217 = vpack.c.b16 %v825, %v817
    %v1218 = vpack.c.b16 %v826, %v818
    %v1219 = vpack.c.b16 %v827, %v819
    %v1220 = vpack.c.b16 %v828, %v820
    %v1221 = vpack.c.b16 %v829, %v821
    %v1222 = vpack.c.b16 %v830, %v822
    %v1223 = vpack.c.b16 %v831, %v823
    %v1224 = vpack.c.b16 %v832, %v824
    %v1225 = vpack.c.b16 %v841, %v833
    %v1226 = vpack.c.b16 %v842, %v834
    %v1227 = vpack.c.b16 %v843, %v835
    %v1228 = vpack.c.b16 %v844, %v836
    %v1229 = vpack.c.b16 %v845, %v837
    %v1230 = vpack.c.b16 %v846, %v838
    %v1231 = vpack.c.b16 %v847, %v839
    %v1232 = vpack.c.b16 %v848, %v840
    %v1233 = vpack.c.b16 %v857, %v849
    %v1234 = vpack.c.b16 %v858, %v850
    %v1235 = vpack.c.b16 %v859, %v851
    %v1236 = vpack.c.b16 %v860, %v852
    %v1237 = vpack.c.b16 %v861, %v853
    %v1238 = vpack.c.b16 %v862, %v854
    %v1239 = vpack.c.b16 %v863, %v855
    %v1240 = vpack.c.b16 %v864, %v856
    %v1241 = vpack.c.b16 %v873, %v865
    %v1242 = vpack.c.b16 %v874, %v866
    %v1243 = vpack.c.b16 %v875, %v867
    %v1244 = vpack.c.b16 %v876, %v868
    %v1245 = vpack.c.b16 %v877, %v869
    %v1246 = vpack.c.b16 %v878, %v870
    %v1247 = vpack.c.b16 %v879, %v871
    %v1248 = vpack.c.b16 %v880, %v872
    %v1249 = vpack.c.b16 %v889, %v881
    %v1250 = vpack.c.b16 %v890, %v882
    %v1251 = vpack.c.b16 %v891, %v883
    %v1252 = vpack.c.b16 %v892, %v884
    %v1253 = vpack.c.b16 %v893, %v885
    %v1254 = vpack.c.b16 %v894, %v886
    %v1255 = vpack.c.b16 %v895, %v887
    %v1256 = vpack.c.b16 %v896, %v888
    %v1257 = vpack.c.b16 %v905, %v897
    %v1258 = vpack.c.b16 %v906, %v898
    %v1259 = vpack.c.b16 %v907, %v899
    %v1260 = vpack.c.b16 %v908, %v900
    %v1261 = vpack.c.b16 %v909, %v901
    %v1262 = vpack.c.b16 %v910, %v902
    %v1263 = vpack.c.b16 %v911, %v903
    %v1264 = vpack.c.b16 %v912, %v904
    %v1265 = vpack.c.b16 %v921, %v913
    %v1266 = vpack.c.b16 %v922, %v914
    %v1267 = vpack.c.b16 %v923, %v915
    %v1268 = vpack.c.b16 %v924, %v916
    %v1269 = vpack.c.b16 %v925, %v917
    %v1270 = vpack.c.b16 %v926, %v918
    %v1271 = vpack.c.b16 %v927, %v919
    %v1272 = vpack.c.b16 %v928, %v920
    %v1273 = vpack.c.b16 %v937, %v929
    %v1274 = vpack.c.b16 %v938, %v930
    %v1275 = vpack.c.b16 %v939, %v931
    %v1276 = vpack.c.b16 %v940, %v932
    %v1277 = vpack.c.b16 %v941, %v933
    %v1278 = vpack.c.b16 %v942, %v934
    %v1279 = vpack.c.b16 %v943, %v935
    %v1280 = vpack.c.b16 %v944, %v936
    %v1281 = vpack.c.b16 %v953, %v945
    %v1282 = vpack.c.b16 %v954, %v946
    %v1283 = vpack.c.b16 %v955, %v947
    %v1284 = vpack.c.b16 %v956, %v948
    %v1285 = vpack.c.b16 %v957, %v949
    %v1286 = vpack.c.b16 %v958, %v950
    %v1287 = vpack.c.b16 %v959, %v951
    %v1288 = vpack.c.b16 %v960, %v952
    %v1289 = vpack.c.b16 %v969, %v961
    %v1290 = vpack.c.b16 %v970, %v962
    %v1291 = vpack.c.b16 %v971, %v963
    %v1292 = vpack.c.b16 %v972, %v964
    %v1293 = vpack.c.b16 %v973, %v965
    %v1294 = vpack.c.b16 %v974, %v966
    %v1295 = vpack.c.b16 %v975, %v967
    %v1296 = vpack.c.b16 %v976, %v968
    %v1297 = vpack.c.b16 %v985, %v977
    %v1298 = vpack.c.b16 %v986, %v978
    %v1299 = vpack.c.b16 %v987, %v979
    %v1300 = vpack.c.b16 %v988, %v980
    %v1301 = vpack.c.b16 %v989, %v981
    %v1302 = vpack.c.b16 %v990, %v982
    %v1303 = vpack.c.b16 %v991, %v983
    %v1304 = vpack.c.b16 %v992, %v984
    %v1305 = vpack.c.b16 %v1001, %v993
    %v1306 = vpack.c.b16 %v1002, %v994
    %v1307 = vpack.c.b16 %v1003, %v995
    %v1308 = vpack.c.b16 %v1004, %v996
    %v1309 = vpack.c.b16 %v1005, %v997
    %v1310 = vpack.c.b16 %v1006, %v998
    %v1311 = vpack.c.b16 %v1007, %v999
    %v1312 = vpack.c.b16 %v1008, %v1000
    %v1313 = vpack.c.b16 %v1017, %v1009
    %v1314 = vpack.c.b16 %v1018, %v1010
    %v1315 = vpack.c.b16 %v1019, %v1011
    %v1316 = vpack.c.b16 %v1020, %v1012
    %v1317 = vpack.c.b16 %v1021, %v1013
    %v1318 = vpack.c.b16 %v1022, %v1014
    %v1319 = vpack.c.b16 %v1023, %v1015
    %v1320 = vpack.c.b16 %v1024, %v1016
    %v1321 = vpack.c.b16 %v1033, %v1025
    %v1322 = vpack.c.b16 %v1034, %v1026
    %v1323 = vpack.c.b16 %v1035, %v1027
    %v1324 = vpack.c.b16 %v1036, %v1028
    %v1325 = vpack.c.b16 %v1037, %v1029
    %v1326 = vpack.c.b16 %v1038, %v1030
    %v1327 = vpack.c.b16 %v1039, %v1031
    %v1328 = vpack.c.b16 %v1040, %v1032
    %v1329 = vpack.c.b16 %v1049, %v1041
    %v1330 = vpack.c.b16 %v1050, %v1042
    %v1331 = vpack.c.b16 %v1051, %v1043
    %v1332 = vpack.c.b16 %v1052, %v1044
    %v1333 = vpack.c.b16 %v1053, %v1045
    %v1334 = vpack.c.b16 %v1054, %v1046
    %v1335 = vpack.c.b16 %v1055, %v1047
    %v1336 = vpack.c.b16 %v1056, %v1048
    %v1337 = vpack.c.b16 %v1065, %v1057
    %v1338 = vpack.c.b16 %v1066, %v1058
    %v1339 = vpack.c.b16 %v1067, %v1059
    %v1340 = vpack.c.b16 %v1068, %v1060
    %v1341 = vpack.c.b16 %v1069, %v1061
    %v1342 = vpack.c.b16 %v1070, %v1062
    %v1343 = vpack.c.b16 %v1071, %v1063
    %v1344 = vpack.c.b16 %v1072, %v1064
    %v1345 = vpack.c.b16 %v1081, %v1073
    %v1346 = vpack.c.b16 %v1082, %v1074
    %v1347 = vpack.c.b16 %v1083, %v1075
    %v1348 = vpack.c.b16 %v1084, %v1076
    %v1349 = vpack.c.b16 %v1085, %v1077
    %v1350 = vpack.c.b16 %v1086, %v1078
    %v1351 = vpack.c.b16 %v1087, %v1079
    %v1352 = vpack.c.b16 %v1088, %v1080
    %v1353 = vpack.c.b16 %v1097, %v1089
    %v1354 = vpack.c.b16 %v1098, %v1090
    %v1355 = vpack.c.b16 %v1099, %v1091
    %v1356 = vpack.c.b16 %v1100, %v1092
    %v1357 = vpack.c.b16 %v1101, %v1093
    %v1358 = vpack.c.b16 %v1102, %v1094
    %v1359 = vpack.c.b16 %v1103, %v1095
    %v1360 = vpack.c.b16 %v1104, %v1096
    %1617 = vmatprep.subr.bf16.mxu0 %v1162
    %1618 = vmatpush1.bf16.msra.mxu0 %v1161
    %1619 = vmatprep.subr.bf16.mxu0 %v1154
    %1620 = vmatpush1.bf16.msra.mxu0 %v1153
    %1621 = vmatprep.subr.bf16.mxu0 %v1146
    %1622 = vmatpush1.bf16.msra.mxu0 %v1145
    %1623 = vmatprep.subr.bf16.mxu0 %v1138
    %1624 = vmatpush1.bf16.msra.mxu0 %v1137
    %1625 = vmatprep.subr.bf16.mxu0 %v1130
    %1626 = vmatpush1.bf16.msra.mxu0 %v1129
    %1627 = vmatprep.subr.bf16.mxu0 %v1122
    %1628 = vmatpush1.bf16.msra.mxu0 %v1121
    %1629 = vmatprep.subr.bf16.mxu0 %v1114
    %1630 = vmatpush1.bf16.msra.mxu0 %v1113
    %1631 = vmatprep.subr.bf16.mxu0 %v1106
    %1632 = vmatpush1.bf16.msra.mxu0 %v1105
    %1633 = vmatprep.subr.bf16.mxu0 %v1226
    %1634 = vmatpush2.bf16.msra.mxu0 %v1225
    %1635 = vmatprep.subr.bf16.mxu0 %v1218
    %1636 = vmatpush2.bf16.msra.mxu0 %v1217
    %1637 = vmatprep.subr.bf16.mxu0 %v1210
    %1638 = vmatpush2.bf16.msra.mxu0 %v1209
    %1639 = vmatprep.subr.bf16.mxu0 %v1202
    %1640 = vmatpush2.bf16.msra.mxu0 %v1201
    %1641 = vmatprep.subr.bf16.mxu0 %v1194
    %1642 = vmatpush2.bf16.msra.mxu0 %v1193
    %1643 = vmatprep.subr.bf16.mxu0 %v1186
    %1644 = vmatpush2.bf16.msra.mxu0 %v1185
    %1645 = vmatprep.subr.bf16.mxu0 %v1178
    %1646 = vmatpush2.bf16.msra.mxu0 %v1177
    %1647 = vmatprep.subr.bf16.mxu0 %v1170
    %1648 = vmatpush2.bf16.msra.mxu0 %v1169
    %1649 = vmatprep.mubr.bf16.mxu0 %v36
    %1650 = vmatmul.mubr.bf16.gmra.mxu0 %v35
    %v1651 = vpop.f32.mrf.mxu0
    %v1652 = vadd.f32 %v300, %v1651
    %v1653 = vpop.f32.mrf.mxu0
    %v1654 = vadd.f32 %v304, %v1653
    %v1655 = vpop.f32.mrf.mxu0
    %v1656 = vpop.f32.mrf.mxu0
    %1657 = vdwg.mxu0
    %1658 = vmatprep.subr.bf16.mxu0 %v1290
    %1659 = vmatpush1.bf16.msra.mxu0 %v1289
    %1660 = vmatprep.subr.bf16.mxu0 %v1282
    %1661 = vmatpush1.bf16.msra.mxu0 %v1281
    %1662 = vmatprep.subr.bf16.mxu0 %v1274
    %1663 = vmatpush1.bf16.msra.mxu0 %v1273
    %1664 = vmatprep.subr.bf16.mxu0 %v1266
    %1665 = vmatpush1.bf16.msra.mxu0 %v1265
    %1666 = vmatprep.subr.bf16.mxu0 %v1258
    %1667 = vmatpush1.bf16.msra.mxu0 %v1257
    %1668 = vmatprep.subr.bf16.mxu0 %v1250
    %1669 = vmatpush1.bf16.msra.mxu0 %v1249
    %1670 = vmatprep.subr.bf16.mxu0 %v1242
    %1671 = vmatpush1.bf16.msra.mxu0 %v1241
    %1672 = vmatprep.subr.bf16.mxu0 %v1234
    %1673 = vmatpush1.bf16.msra.mxu0 %v1233
    %1674 = vmatprep.subr.bf16.mxu0 %v1354
    %1675 = vmatpush2.bf16.msra.mxu0 %v1353
    %1676 = vmatprep.subr.bf16.mxu0 %v1346
    %1677 = vmatpush2.bf16.msra.mxu0 %v1345
    %1678 = vmatprep.subr.bf16.mxu0 %v1338
    %1679 = vmatpush2.bf16.msra.mxu0 %v1337
    %1680 = vmatprep.subr.bf16.mxu0 %v1330
    %1681 = vmatpush2.bf16.msra.mxu0 %v1329
    %1682 = vmatprep.subr.bf16.mxu0 %v1322
    %1683 = vmatpush2.bf16.msra.mxu0 %v1321
    %1684 = vmatprep.subr.bf16.mxu0 %v1314
    %1685 = vmatpush2.bf16.msra.mxu0 %v1313
    %1686 = vmatprep.subr.bf16.mxu0 %v1306
    %1687 = vmatpush2.bf16.msra.mxu0 %v1305
    %1688 = vmatprep.subr.bf16.mxu0 %v1298
    %1689 = vmatpush2.bf16.msra.mxu0 %v1297
    %1690 = vmatprep.mubr.bf16.mxu0 %v38
    %1691 = vmatmul.mubr.bf16.gmra.mxu0 %v37
    %v1692 = vpop.f32.mrf.mxu0
    %v1693 = vadd.f32 %v1652, %v1692
    %v1694 = vpop.f32.mrf.mxu0
    %v1695 = vadd.f32 %v1654, %v1694
    %v1696 = vpop.f32.mrf.mxu0
    %v1697 = vpop.f32.mrf.mxu0
    %1698 = vdwg.mxu0
    %1699 = vmatprep.subr.bf16.mxu0 %v1164
    %1700 = vmatpush1.bf16.msra.mxu0 %v1163
    %1701 = vmatprep.subr.bf16.mxu0 %v1156
    %1702 = vmatpush1.bf16.msra.mxu0 %v1155
    %1703 = vmatprep.subr.bf16.mxu0 %v1148
    %1704 = vmatpush1.bf16.msra.mxu0 %v1147
    %1705 = vmatprep.subr.bf16.mxu0 %v1140
    %1706 = vmatpush1.bf16.msra.mxu0 %v1139
    %1707 = vmatprep.subr.bf16.mxu0 %v1132
    %1708 = vmatpush1.bf16.msra.mxu0 %v1131
    %1709 = vmatprep.subr.bf16.mxu0 %v1124
    %1710 = vmatpush1.bf16.msra.mxu0 %v1123
    %1711 = vmatprep.subr.bf16.mxu0 %v1116
    %1712 = vmatpush1.bf16.msra.mxu0 %v1115
    %1713 = vmatprep.subr.bf16.mxu0 %v1108
    %1714 = vmatpush1.bf16.msra.mxu0 %v1107
    %1715 = vmatprep.subr.bf16.mxu0 %v1228
    %1716 = vmatpush2.bf16.msra.mxu0 %v1227
    %1717 = vmatprep.subr.bf16.mxu0 %v1220
    %1718 = vmatpush2.bf16.msra.mxu0 %v1219
    %1719 = vmatprep.subr.bf16.mxu0 %v1212
    %1720 = vmatpush2.bf16.msra.mxu0 %v1211
    %1721 = vmatprep.subr.bf16.mxu0 %v1204
    %1722 = vmatpush2.bf16.msra.mxu0 %v1203
    %1723 = vmatprep.subr.bf16.mxu0 %v1196
    %1724 = vmatpush2.bf16.msra.mxu0 %v1195
    %1725 = vmatprep.subr.bf16.mxu0 %v1188
    %1726 = vmatpush2.bf16.msra.mxu0 %v1187
    %1727 = vmatprep.subr.bf16.mxu0 %v1180
    %1728 = vmatpush2.bf16.msra.mxu0 %v1179
    %1729 = vmatprep.subr.bf16.mxu0 %v1172
    %1730 = vmatpush2.bf16.msra.mxu0 %v1171
    %1731 = vmatprep.mubr.bf16.mxu0 %v36
    %1732 = vmatmul.mubr.bf16.gmra.mxu0 %v35
    %v1733 = vpop.f32.mrf.mxu0
    %v1734 = vadd.f32 %v308, %v1733
    %v1735 = vpop.f32.mrf.mxu0
    %v1736 = vadd.f32 %v312, %v1735
    %v1737 = vpop.f32.mrf.mxu0
    %v1738 = vpop.f32.mrf.mxu0
    %1739 = vdwg.mxu0
    %1740 = vmatprep.subr.bf16.mxu0 %v1292
    %1741 = vmatpush1.bf16.msra.mxu0 %v1291
    %1742 = vmatprep.subr.bf16.mxu0 %v1284
    %1743 = vmatpush1.bf16.msra.mxu0 %v1283
    %1744 = vmatprep.subr.bf16.mxu0 %v1276
    %1745 = vmatpush1.bf16.msra.mxu0 %v1275
    %1746 = vmatprep.subr.bf16.mxu0 %v1268
    %1747 = vmatpush1.bf16.msra.mxu0 %v1267
    %1748 = vmatprep.subr.bf16.mxu0 %v1260
    %1749 = vmatpush1.bf16.msra.mxu0 %v1259
    %1750 = vmatprep.subr.bf16.mxu0 %v1252
    %1751 = vmatpush1.bf16.msra.mxu0 %v1251
    %1752 = vmatprep.subr.bf16.mxu0 %v1244
    %1753 = vmatpush1.bf16.msra.mxu0 %v1243
    %1754 = vmatprep.subr.bf16.mxu0 %v1236
    %1755 = vmatpush1.bf16.msra.mxu0 %v1235
    %1756 = vmatprep.subr.bf16.mxu0 %v1356
    %1757 = vmatpush2.bf16.msra.mxu0 %v1355
    %1758 = vmatprep.subr.bf16.mxu0 %v1348
    %1759 = vmatpush2.bf16.msra.mxu0 %v1347
    %1760 = vmatprep.subr.bf16.mxu0 %v1340
    %1761 = vmatpush2.bf16.msra.mxu0 %v1339
    %1762 = vmatprep.subr.bf16.mxu0 %v1332
    %1763 = vmatpush2.bf16.msra.mxu0 %v1331
    %1764 = vmatprep.subr.bf16.mxu0 %v1324
    %1765 = vmatpush2.bf16.msra.mxu0 %v1323
    %1766 = vmatprep.subr.bf16.mxu0 %v1316
    %1767 = vmatpush2.bf16.msra.mxu0 %v1315
    %1768 = vmatprep.subr.bf16.mxu0 %v1308
    %1769 = vmatpush2.bf16.msra.mxu0 %v1307
    %1770 = vmatprep.subr.bf16.mxu0 %v1300
    %1771 = vmatpush2.bf16.msra.mxu0 %v1299
    %1772 = vmatprep.mubr.bf16.mxu0 %v38
    %1773 = vmatmul.mubr.bf16.gmra.mxu0 %v37
    %v1774 = vpop.f32.mrf.mxu0
    %v1775 = vadd.f32 %v1734, %v1774
    %v1776 = vpop.f32.mrf.mxu0
    %v1777 = vadd.f32 %v1736, %v1776
    %v1778 = vpop.f32.mrf.mxu0
    %v1779 = vpop.f32.mrf.mxu0
    %1780 = vdwg.mxu0
    %1781 = vmatprep.subr.bf16.mxu0 %v1166
    %1782 = vmatpush1.bf16.msra.mxu0 %v1165
    %1783 = vmatprep.subr.bf16.mxu0 %v1158
    %1784 = vmatpush1.bf16.msra.mxu0 %v1157
    %1785 = vmatprep.subr.bf16.mxu0 %v1150
    %1786 = vmatpush1.bf16.msra.mxu0 %v1149
    %1787 = vmatprep.subr.bf16.mxu0 %v1142
    %1788 = vmatpush1.bf16.msra.mxu0 %v1141
    %1789 = vmatprep.subr.bf16.mxu0 %v1134
    %1790 = vmatpush1.bf16.msra.mxu0 %v1133
    %1791 = vmatprep.subr.bf16.mxu0 %v1126
    %1792 = vmatpush1.bf16.msra.mxu0 %v1125
    %1793 = vmatprep.subr.bf16.mxu0 %v1118
    %1794 = vmatpush1.bf16.msra.mxu0 %v1117
    %1795 = vmatprep.subr.bf16.mxu0 %v1110
    %1796 = vmatpush1.bf16.msra.mxu0 %v1109
    %1797 = vmatprep.subr.bf16.mxu0 %v1230
    %1798 = vmatpush2.bf16.msra.mxu0 %v1229
    %1799 = vmatprep.subr.bf16.mxu0 %v1222
    %1800 = vmatpush2.bf16.msra.mxu0 %v1221
    %1801 = vmatprep.subr.bf16.mxu0 %v1214
    %1802 = vmatpush2.bf16.msra.mxu0 %v1213
    %1803 = vmatprep.subr.bf16.mxu0 %v1206
    %1804 = vmatpush2.bf16.msra.mxu0 %v1205
    %1805 = vmatprep.subr.bf16.mxu0 %v1198
    %1806 = vmatpush2.bf16.msra.mxu0 %v1197
    %1807 = vmatprep.subr.bf16.mxu0 %v1190
    %1808 = vmatpush2.bf16.msra.mxu0 %v1189
    %1809 = vmatprep.subr.bf16.mxu0 %v1182
    %1810 = vmatpush2.bf16.msra.mxu0 %v1181
    %1811 = vmatprep.subr.bf16.mxu0 %v1174
    %1812 = vmatpush2.bf16.msra.mxu0 %v1173
    %1813 = vmatprep.mubr.bf16.mxu0 %v36
    %1814 = vmatmul.mubr.bf16.gmra.mxu0 %v35
    %v1815 = vpop.f32.mrf.mxu0
    %v1816 = vadd.f32 %v316, %v1815
    %v1817 = vpop.f32.mrf.mxu0
    %v1818 = vadd.f32 %v320, %v1817
    %v1819 = vpop.f32.mrf.mxu0
    %v1820 = vpop.f32.mrf.mxu0
    %1821 = vdwg.mxu0
    %1822 = vmatprep.subr.bf16.mxu0 %v1294
    %1823 = vmatpush1.bf16.msra.mxu0 %v1293
    %1824 = vmatprep.subr.bf16.mxu0 %v1286
    %1825 = vmatpush1.bf16.msra.mxu0 %v1285
    %1826 = vmatprep.subr.bf16.mxu0 %v1278
    %1827 = vmatpush1.bf16.msra.mxu0 %v1277
    %1828 = vmatprep.subr.bf16.mxu0 %v1270
    %1829 = vmatpush1.bf16.msra.mxu0 %v1269
    %1830 = vmatprep.subr.bf16.mxu0 %v1262
    %1831 = vmatpush1.bf16.msra.mxu0 %v1261
    %1832 = vmatprep.subr.bf16.mxu0 %v1254
    %1833 = vmatpush1.bf16.msra.mxu0 %v1253
    %1834 = vmatprep.subr.bf16.mxu0 %v1246
    %1835 = vmatpush1.bf16.msra.mxu0 %v1245
    %1836 = vmatprep.subr.bf16.mxu0 %v1238
    %1837 = vmatpush1.bf16.msra.mxu0 %v1237
    %1838 = vmatprep.subr.bf16.mxu0 %v1358
    %1839 = vmatpush2.bf16.msra.mxu0 %v1357
    %1840 = vmatprep.subr.bf16.mxu0 %v1350
    %1841 = vmatpush2.bf16.msra.mxu0 %v1349
    %1842 = vmatprep.subr.bf16.mxu0 %v1342
    %1843 = vmatpush2.bf16.msra.mxu0 %v1341
    %1844 = vmatprep.subr.bf16.mxu0 %v1334
    %1845 = vmatpush2.bf16.msra.mxu0 %v1333
    %1846 = vmatprep.subr.bf16.mxu0 %v1326
    %1847 = vmatpush2.bf16.msra.mxu0 %v1325
    %1848 = vmatprep.subr.bf16.mxu0 %v1318
    %1849 = vmatpush2.bf16.msra.mxu0 %v1317
    %1850 = vmatprep.subr.bf16.mxu0 %v1310
    %1851 = vmatpush2.bf16.msra.mxu0 %v1309
    %1852 = vmatprep.subr.bf16.mxu0 %v1302
    %1853 = vmatpush2.bf16.msra.mxu0 %v1301
    %1854 = vmatprep.mubr.bf16.mxu0 %v38
    %1855 = vmatmul.mubr.bf16.gmra.mxu0 %v37
    %v1856 = vpop.f32.mrf.mxu0
    %v1857 = vadd.f32 %v1816, %v1856
    %v1858 = vpop.f32.mrf.mxu0
    %v1859 = vadd.f32 %v1818, %v1858
    %v1860 = vpop.f32.mrf.mxu0
    %v1861 = vpop.f32.mrf.mxu0
    %1862 = vdwg.mxu0
    %1863 = vmatprep.subr.bf16.mxu0 %v1168
    %1864 = vmatpush1.bf16.msra.mxu0 %v1167
    %1865 = vmatprep.subr.bf16.mxu0 %v1160
    %1866 = vmatpush1.bf16.msra.mxu0 %v1159
    %1867 = vmatprep.subr.bf16.mxu0 %v1152
    %1868 = vmatpush1.bf16.msra.mxu0 %v1151
    %1869 = vmatprep.subr.bf16.mxu0 %v1144
    %1870 = vmatpush1.bf16.msra.mxu0 %v1143
    %1871 = vmatprep.subr.bf16.mxu0 %v1136
    %1872 = vmatpush1.bf16.msra.mxu0 %v1135
    %1873 = vmatprep.subr.bf16.mxu0 %v1128
    %1874 = vmatpush1.bf16.msra.mxu0 %v1127
    %1875 = vmatprep.subr.bf16.mxu0 %v1120
    %1876 = vmatpush1.bf16.msra.mxu0 %v1119
    %1877 = vmatprep.subr.bf16.mxu0 %v1112
    %1878 = vmatpush1.bf16.msra.mxu0 %v1111
    %1879 = vmatprep.subr.bf16.mxu0 %v1232
    %1880 = vmatpush2.bf16.msra.mxu0 %v1231
    %1881 = vmatprep.subr.bf16.mxu0 %v1224
    %1882 = vmatpush2.bf16.msra.mxu0 %v1223
    %1883 = vmatprep.subr.bf16.mxu0 %v1216
    %1884 = vmatpush2.bf16.msra.mxu0 %v1215
    %1885 = vmatprep.subr.bf16.mxu0 %v1208
    %1886 = vmatpush2.bf16.msra.mxu0 %v1207
    %1887 = vmatprep.subr.bf16.mxu0 %v1200
    %1888 = vmatpush2.bf16.msra.mxu0 %v1199
    %1889 = vmatprep.subr.bf16.mxu0 %v1192
    %1890 = vmatpush2.bf16.msra.mxu0 %v1191
    %1891 = vmatprep.subr.bf16.mxu0 %v1184
    %1892 = vmatpush2.bf16.msra.mxu0 %v1183
    %1893 = vmatprep.subr.bf16.mxu0 %v1176
    %1894 = vmatpush2.bf16.msra.mxu0 %v1175
    %1895 = vmatprep.mubr.bf16.mxu0 %v36
    %1896 = vmatmul.mubr.bf16.gmra.mxu0 %v35
    %v1897 = vpop.f32.mrf.mxu0
    %v1898 = vadd.f32 %v324, %v1897
    %v1899 = vpop.f32.mrf.mxu0
    %v1900 = vadd.f32 %v328, %v1899
    %v1901 = vpop.f32.mrf.mxu0
    %v1902 = vpop.f32.mrf.mxu0
    %1903 = vdwg.mxu0
    %1904 = vmatprep.subr.bf16.mxu0 %v1296
    %1905 = vmatpush1.bf16.msra.mxu0 %v1295
    %1906 = vmatprep.subr.bf16.mxu0 %v1288
    %1907 = vmatpush1.bf16.msra.mxu0 %v1287
    %1908 = vmatprep.subr.bf16.mxu0 %v1280
    %1909 = vmatpush1.bf16.msra.mxu0 %v1279
    %1910 = vmatprep.subr.bf16.mxu0 %v1272
    %1911 = vmatpush1.bf16.msra.mxu0 %v1271
    %1912 = vmatprep.subr.bf16.mxu0 %v1264
    %1913 = vmatpush1.bf16.msra.mxu0 %v1263
    %1914 = vmatprep.subr.bf16.mxu0 %v1256
    %1915 = vmatpush1.bf16.msra.mxu0 %v1255
    %1916 = vmatprep.subr.bf16.mxu0 %v1248
    %1917 = vmatpush1.bf16.msra.mxu0 %v1247
    %1918 = vmatprep.subr.bf16.mxu0 %v1240
    %1919 = vmatpush1.bf16.msra.mxu0 %v1239
    %1920 = vmatprep.subr.bf16.mxu0 %v1360
    %1921 = vmatpush2.bf16.msra.mxu0 %v1359
    %1922 = vmatprep.subr.bf16.mxu0 %v1352
    %1923 = vmatpush2.bf16.msra.mxu0 %v1351
    %1924 = vmatprep.subr.bf16.mxu0 %v1344
    %1925 = vmatpush2.bf16.msra.mxu0 %v1343
    %1926 = vmatprep.subr.bf16.mxu0 %v1336
    %1927 = vmatpush2.bf16.msra.mxu0 %v1335
    %1928 = vmatprep.subr.bf16.mxu0 %v1328
    %1929 = vmatpush2.bf16.msra.mxu0 %v1327
    %1930 = vmatprep.subr.bf16.mxu0 %v1320
    %1931 = vmatpush2.bf16.msra.mxu0 %v1319
    %1932 = vmatprep.subr.bf16.mxu0 %v1312
    %1933 = vmatpush2.bf16.msra.mxu0 %v1311
    %1934 = vmatprep.subr.bf16.mxu0 %v1304
    %1935 = vmatpush2.bf16.msra.mxu0 %v1303
    %1936 = vmatprep.mubr.bf16.mxu0 %v38
    %1937 = vmatmul.mubr.bf16.gmra.mxu0 %v37
    %v1938 = vpop.f32.mrf.mxu0
    %v1939 = vadd.f32 %v1898, %v1938
    %v1940 = vpop.f32.mrf.mxu0
    %v1941 = vadd.f32 %v1900, %v1940
    %v1942 = vpop.f32.mrf.mxu0
    %v1943 = vpop.f32.mrf.mxu0
    %1944 = vdwg.mxu0
    %v1945 = vmax.f32 %v1693, 0.0
    %v1946 = vmax.f32 %v1695, 0.0
    %v1947 = vmax.f32 %v1775, 0.0
    %v1948 = vmax.f32 %v1777, 0.0
    %v1949 = vmax.f32 %v1857, 0.0
    %v1950 = vmax.f32 %v1859, 0.0
    %v1951 = vmax.f32 %v1939, 0.0
    %v1952 = vmax.f32 %v1941, 0.0
    %v1953 = vpack.c.bf16 %v1945, %v1945
    %v1954 = vpack.c.bf16 %v1946, %v1946
    %v1955 = vpack.c.bf16 %v1947, %v1947
    %v1956 = vpack.c.bf16 %v1948, %v1948
    %v1957 = vpack.c.bf16 %v1949, %v1949
    %v1958 = vpack.c.bf16 %v1950, %v1950
    %v1959 = vpack.c.bf16 %v1951, %v1951
    %v1960 = vpack.c.bf16 %v1952, %v1952
    %v1961 = vld [vmem:[%s3] sm:$0xff]
    %v1962 = vld [vmem:[%s3 + $0x8] sm:$0xff]
    %v1963 = vld [vmem:[%s3 + $0x10] sm:$0xff]
    %v1964 = vld [vmem:[%s3 + $0x18] sm:$0xff]
    %v1965 = vld [vmem:[%s3 + $0x20] sm:$0xff]
    %v1966 = vld [vmem:[%s3 + $0x28] sm:$0xff]
    %v1967 = vld [vmem:[%s3 + $0x30] sm:$0xff]
    %v1968 = vld [vmem:[%s3 + $0x38] sm:$0xff]
    %v1969 = vld [vmem:[%s3 + $0x40] sm:$0xff]
    %v1970 = vld [vmem:[%s3 + $0x48] sm:$0xff]
    %v1971 = vld [vmem:[%s3 + $0x50] sm:$0xff]
    %v1972 = vld [vmem:[%s3 + $0x58] sm:$0xff]
    %v1973 = vld [vmem:[%s3 + $0x60] sm:$0xff]
    %v1974 = vld [vmem:[%s3 + $0x68] sm:$0xff]
    %v1975 = vld [vmem:[%s3 + $0x70] sm:$0xff]
    %v1976 = vld [vmem:[%s3 + $0x78] sm:$0xff]
    %v1977 = vld [vmem:[%s3 + $0x80] sm:$0xff]
    %v1978 = vld [vmem:[%s3 + $0x88] sm:$0xff]
    %v1979 = vld [vmem:[%s3 + $0x90] sm:$0xff]
    %v1980 = vld [vmem:[%s3 + $0x98] sm:$0xff]
    %v1981 = vld [vmem:[%s3 + $0xa0] sm:$0xff]
    %v1982 = vld [vmem:[%s3 + $0xa8] sm:$0xff]
    %v1983 = vld [vmem:[%s3 + $0xb0] sm:$0xff]
    %v1984 = vld [vmem:[%s3 + $0xb8] sm:$0xff]
    %v1985 = vld [vmem:[%s3 + $0xc0] sm:$0xff]
    %v1986 = vld [vmem:[%s3 + $0xc8] sm:$0xff]
    %v1987 = vld [vmem:[%s3 + $0xd0] sm:$0xff]
    %v1988 = vld [vmem:[%s3 + $0xd8] sm:$0xff]
    %v1989 = vld [vmem:[%s3 + $0xe0] sm:$0xff]
    %v1990 = vld [vmem:[%s3 + $0xe8] sm:$0xff]
    %v1991 = vld [vmem:[%s3 + $0xf0] sm:$0xff]
    %v1992 = vld [vmem:[%s3 + $0xf8] sm:$0xff]
    %v1993 = vld [vmem:[%s3 + $0x100] sm:$0xff]
    %v1994 = vld [vmem:[%s3 + $0x108] sm:$0xff]
    %v1995 = vld [vmem:[%s3 + $0x110] sm:$0xff]
    %v1996 = vld [vmem:[%s3 + $0x118] sm:$0xff]
    %v1997 = vld [vmem:[%s3 + $0x120] sm:$0xff]
    %v1998 = vld [vmem:[%s3 + $0x128] sm:$0xff]
    %v1999 = vld [vmem:[%s3 + $0x130] sm:$0xff]
    %v2000 = vld [vmem:[%s3 + $0x138] sm:$0xff]
    %v2001 = vld [vmem:[%s3 + $0x140] sm:$0xff]
    %v2002 = vld [vmem:[%s3 + $0x148] sm:$0xff]
    %v2003 = vld [vmem:[%s3 + $0x150] sm:$0xff]
    %v2004 = vld [vmem:[%s3 + $0x158] sm:$0xff]
    %v2005 = vld [vmem:[%s3 + $0x160] sm:$0xff]
    %v2006 = vld [vmem:[%s3 + $0x168] sm:$0xff]
    %v2007 = vld [vmem:[%s3 + $0x170] sm:$0xff]
    %v2008 = vld [vmem:[%s3 + $0x178] sm:$0xff]
    %v2009 = vld [vmem:[%s3 + $0x180] sm:$0xff]
    %v2010 = vld [vmem:[%s3 + $0x188] sm:$0xff]
    %v2011 = vld [vmem:[%s3 + $0x190] sm:$0xff]
    %v2012 = vld [vmem:[%s3 + $0x198] sm:$0xff]
    %v2013 = vld [vmem:[%s3 + $0x1a0] sm:$0xff]
    %v2014 = vld [vmem:[%s3 + $0x1a8] sm:$0xff]
    %v2015 = vld [vmem:[%s3 + $0x1b0] sm:$0xff]
    %v2016 = vld [vmem:[%s3 + $0x1b8] sm:$0xff]
    %v2017 = vld [vmem:[%s3 + $0x1c0] sm:$0xff]
    %v2018 = vld [vmem:[%s3 + $0x1c8] sm:$0xff]
    %v2019 = vld [vmem:[%s3 + $0x1d0] sm:$0xff]
    %v2020 = vld [vmem:[%s3 + $0x1d8] sm:$0xff]
    %v2021 = vld [vmem:[%s3 + $0x1e0] sm:$0xff]
    %v2022 = vld [vmem:[%s3 + $0x1e8] sm:$0xff]
    %v2023 = vld [vmem:[%s3 + $0x1f0] sm:$0xff]
    %v2024 = vld [vmem:[%s3 + $0x1f8] sm:$0xff]
    %v2025 = vld [vmem:[%s3 + $0x200] sm:$0xff]
    %v2026 = vld [vmem:[%s3 + $0x208] sm:$0xff]
    %v2027 = vld [vmem:[%s3 + $0x210] sm:$0xff]
    %v2028 = vld [vmem:[%s3 + $0x218] sm:$0xff]
    %v2029 = vld [vmem:[%s3 + $0x220] sm:$0xff]
    %v2030 = vld [vmem:[%s3 + $0x228] sm:$0xff]
    %v2031 = vld [vmem:[%s3 + $0x230] sm:$0xff]
    %v2032 = vld [vmem:[%s3 + $0x238] sm:$0xff]
    %v2033 = vld [vmem:[%s3 + $0x240] sm:$0xff]
    %v2034 = vld [vmem:[%s3 + $0x248] sm:$0xff]
    %v2035 = vld [vmem:[%s3 + $0x250] sm:$0xff]
    %v2036 = vld [vmem:[%s3 + $0x258] sm:$0xff]
    %v2037 = vld [vmem:[%s3 + $0x260] sm:$0xff]
    %v2038 = vld [vmem:[%s3 + $0x268] sm:$0xff]
    %v2039 = vld [vmem:[%s3 + $0x270] sm:$0xff]
    %v2040 = vld [vmem:[%s3 + $0x278] sm:$0xff]
    %v2041 = vld [vmem:[%s3 + $0x280] sm:$0xff]
    %v2042 = vld [vmem:[%s3 + $0x288] sm:$0xff]
    %v2043 = vld [vmem:[%s3 + $0x290] sm:$0xff]
    %v2044 = vld [vmem:[%s3 + $0x298] sm:$0xff]
    %v2045 = vld [vmem:[%s3 + $0x2a0] sm:$0xff]
    %v2046 = vld [vmem:[%s3 + $0x2a8] sm:$0xff]
    %v2047 = vld [vmem:[%s3 + $0x2b0] sm:$0xff]
    %v2048 = vld [vmem:[%s3 + $0x2b8] sm:$0xff]
    %v2049 = vld [vmem:[%s3 + $0x2c0] sm:$0xff]
    %v2050 = vld [vmem:[%s3 + $0x2c8] sm:$0xff]
    %v2051 = vld [vmem:[%s3 + $0x2d0] sm:$0xff]
    %v2052 = vld [vmem:[%s3 + $0x2d8] sm:$0xff]
    %v2053 = vld [vmem:[%s3 + $0x2e0] sm:$0xff]
    %v2054 = vld [vmem:[%s3 + $0x2e8] sm:$0xff]
    %v2055 = vld [vmem:[%s3 + $0x2f0] sm:$0xff]
    %v2056 = vld [vmem:[%s3 + $0x2f8] sm:$0xff]
    %v2057 = vld [vmem:[%s3 + $0x300] sm:$0xff]
    %v2058 = vld [vmem:[%s3 + $0x308] sm:$0xff]
    %v2059 = vld [vmem:[%s3 + $0x310] sm:$0xff]
    %v2060 = vld [vmem:[%s3 + $0x318] sm:$0xff]
    %v2061 = vld [vmem:[%s3 + $0x320] sm:$0xff]
    %v2062 = vld [vmem:[%s3 + $0x328] sm:$0xff]
    %v2063 = vld [vmem:[%s3 + $0x330] sm:$0xff]
    %v2064 = vld [vmem:[%s3 + $0x338] sm:$0xff]
    %v2065 = vld [vmem:[%s3 + $0x340] sm:$0xff]
    %v2066 = vld [vmem:[%s3 + $0x348] sm:$0xff]
    %v2067 = vld [vmem:[%s3 + $0x350] sm:$0xff]
    %v2068 = vld [vmem:[%s3 + $0x358] sm:$0xff]
    %v2069 = vld [vmem:[%s3 + $0x360] sm:$0xff]
    %v2070 = vld [vmem:[%s3 + $0x368] sm:$0xff]
    %v2071 = vld [vmem:[%s3 + $0x370] sm:$0xff]
    %v2072 = vld [vmem:[%s3 + $0x378] sm:$0xff]
    %v2073 = vld [vmem:[%s3 + $0x380] sm:$0xff]
    %v2074 = vld [vmem:[%s3 + $0x388] sm:$0xff]
    %v2075 = vld [vmem:[%s3 + $0x390] sm:$0xff]
    %v2076 = vld [vmem:[%s3 + $0x398] sm:$0xff]
    %v2077 = vld [vmem:[%s3 + $0x3a0] sm:$0xff]
    %v2078 = vld [vmem:[%s3 + $0x3a8] sm:$0xff]
    %v2079 = vld [vmem:[%s3 + $0x3b0] sm:$0xff]
    %v2080 = vld [vmem:[%s3 + $0x3b8] sm:$0xff]
    %v2081 = vld [vmem:[%s3 + $0x3c0] sm:$0xff]
    %v2082 = vld [vmem:[%s3 + $0x3c8] sm:$0xff]
    %v2083 = vld [vmem:[%s3 + $0x3d0] sm:$0xff]
    %v2084 = vld [vmem:[%s3 + $0x3d8] sm:$0xff]
    %v2085 = vld [vmem:[%s3 + $0x3e0] sm:$0xff]
    %v2086 = vld [vmem:[%s3 + $0x3e8] sm:$0xff]
    %v2087 = vld [vmem:[%s3 + $0x3f0] sm:$0xff]
    %v2088 = vld [vmem:[%s3 + $0x3f8] sm:$0xff]
    %v2089 = vld [vmem:[%s3 + $0x400] sm:$0xff]
    %v2090 = vld [vmem:[%s3 + $0x408] sm:$0xff]
    %v2091 = vld [vmem:[%s3 + $0x410] sm:$0xff]
    %v2092 = vld [vmem:[%s3 + $0x418] sm:$0xff]
    %v2093 = vld [vmem:[%s3 + $0x420] sm:$0xff]
    %v2094 = vld [vmem:[%s3 + $0x428] sm:$0xff]
    %v2095 = vld [vmem:[%s3 + $0x430] sm:$0xff]
    %v2096 = vld [vmem:[%s3 + $0x438] sm:$0xff]
    %v2097 = vld [vmem:[%s3 + $0x440] sm:$0xff]
    %v2098 = vld [vmem:[%s3 + $0x448] sm:$0xff]
    %v2099 = vld [vmem:[%s3 + $0x450] sm:$0xff]
    %v2100 = vld [vmem:[%s3 + $0x458] sm:$0xff]
    %v2101 = vld [vmem:[%s3 + $0x460] sm:$0xff]
    %v2102 = vld [vmem:[%s3 + $0x468] sm:$0xff]
    %v2103 = vld [vmem:[%s3 + $0x470] sm:$0xff]
    %v2104 = vld [vmem:[%s3 + $0x478] sm:$0xff]
    %v2105 = vld [vmem:[%s3 + $0x480] sm:$0xff]
    %v2106 = vld [vmem:[%s3 + $0x488] sm:$0xff]
    %v2107 = vld [vmem:[%s3 + $0x490] sm:$0xff]
    %v2108 = vld [vmem:[%s3 + $0x498] sm:$0xff]
    %v2109 = vld [vmem:[%s3 + $0x4a0] sm:$0xff]
    %v2110 = vld [vmem:[%s3 + $0x4a8] sm:$0xff]
    %v2111 = vld [vmem:[%s3 + $0x4b0] sm:$0xff]
    %v2112 = vld [vmem:[%s3 + $0x4b8] sm:$0xff]
    %v2113 = vld [vmem:[%s3 + $0x4c0] sm:$0xff]
    %v2114 = vld [vmem:[%s3 + $0x4c8] sm:$0xff]
    %v2115 = vld [vmem:[%s3 + $0x4d0] sm:$0xff]
    %v2116 = vld [vmem:[%s3 + $0x4d8] sm:$0xff]
    %v2117 = vld [vmem:[%s3 + $0x4e0] sm:$0xff]
    %v2118 = vld [vmem:[%s3 + $0x4e8] sm:$0xff]
    %v2119 = vld [vmem:[%s3 + $0x4f0] sm:$0xff]
    %v2120 = vld [vmem:[%s3 + $0x4f8] sm:$0xff]
    %v2121 = vld [vmem:[%s3 + $0x500] sm:$0xff]
    %v2122 = vld [vmem:[%s3 + $0x508] sm:$0xff]
    %v2123 = vld [vmem:[%s3 + $0x510] sm:$0xff]
    %v2124 = vld [vmem:[%s3 + $0x518] sm:$0xff]
    %v2125 = vld [vmem:[%s3 + $0x520] sm:$0xff]
    %v2126 = vld [vmem:[%s3 + $0x528] sm:$0xff]
    %v2127 = vld [vmem:[%s3 + $0x530] sm:$0xff]
    %v2128 = vld [vmem:[%s3 + $0x538] sm:$0xff]
    %v2129 = vld [vmem:[%s3 + $0x540] sm:$0xff]
    %v2130 = vld [vmem:[%s3 + $0x548] sm:$0xff]
    %v2131 = vld [vmem:[%s3 + $0x550] sm:$0xff]
    %v2132 = vld [vmem:[%s3 + $0x558] sm:$0xff]
    %v2133 = vld [vmem:[%s3 + $0x560] sm:$0xff]
    %v2134 = vld [vmem:[%s3 + $0x568] sm:$0xff]
    %v2135 = vld [vmem:[%s3 + $0x570] sm:$0xff]
    %v2136 = vld [vmem:[%s3 + $0x578] sm:$0xff]
    %v2137 = vld [vmem:[%s3 + $0x580] sm:$0xff]
    %v2138 = vld [vmem:[%s3 + $0x588] sm:$0xff]
    %v2139 = vld [vmem:[%s3 + $0x590] sm:$0xff]
    %v2140 = vld [vmem:[%s3 + $0x598] sm:$0xff]
    %v2141 = vld [vmem:[%s3 + $0x5a0] sm:$0xff]
    %v2142 = vld [vmem:[%s3 + $0x5a8] sm:$0xff]
    %v2143 = vld [vmem:[%s3 + $0x5b0] sm:$0xff]
    %v2144 = vld [vmem:[%s3 + $0x5b8] sm:$0xff]
    %v2145 = vld [vmem:[%s3 + $0x5c0] sm:$0xff]
    %v2146 = vld [vmem:[%s3 + $0x5c8] sm:$0xff]
    %v2147 = vld [vmem:[%s3 + $0x5d0] sm:$0xff]
    %v2148 = vld [vmem:[%s3 + $0x5d8] sm:$0xff]
    %v2149 = vld [vmem:[%s3 + $0x5e0] sm:$0xff]
    %v2150 = vld [vmem:[%s3 + $0x5e8] sm:$0xff]
    %v2151 = vld [vmem:[%s3 + $0x5f0] sm:$0xff]
    %v2152 = vld [vmem:[%s3 + $0x5f8] sm:$0xff]
    %v2153 = vld [vmem:[%s3 + $0x600] sm:$0xff]
    %v2154 = vld [vmem:[%s3 + $0x608] sm:$0xff]
    %v2155 = vld [vmem:[%s3 + $0x610] sm:$0xff]
    %v2156 = vld [vmem:[%s3 + $0x618] sm:$0xff]
    %v2157 = vld [vmem:[%s3 + $0x620] sm:$0xff]
    %v2158 = vld [vmem:[%s3 + $0x628] sm:$0xff]
    %v2159 = vld [vmem:[%s3 + $0x630] sm:$0xff]
    %v2160 = vld [vmem:[%s3 + $0x638] sm:$0xff]
    %v2161 = vld [vmem:[%s3 + $0x640] sm:$0xff]
    %v2162 = vld [vmem:[%s3 + $0x648] sm:$0xff]
    %v2163 = vld [vmem:[%s3 + $0x650] sm:$0xff]
    %v2164 = vld [vmem:[%s3 + $0x658] sm:$0xff]
    %v2165 = vld [vmem:[%s3 + $0x660] sm:$0xff]
    %v2166 = vld [vmem:[%s3 + $0x668] sm:$0xff]
    %v2167 = vld [vmem:[%s3 + $0x670] sm:$0xff]
    %v2168 = vld [vmem:[%s3 + $0x678] sm:$0xff]
    %v2169 = vld [vmem:[%s3 + $0x680] sm:$0xff]
    %v2170 = vld [vmem:[%s3 + $0x688] sm:$0xff]
    %v2171 = vld [vmem:[%s3 + $0x690] sm:$0xff]
    %v2172 = vld [vmem:[%s3 + $0x698] sm:$0xff]
    %v2173 = vld [vmem:[%s3 + $0x6a0] sm:$0xff]
    %v2174 = vld [vmem:[%s3 + $0x6a8] sm:$0xff]
    %v2175 = vld [vmem:[%s3 + $0x6b0] sm:$0xff]
    %v2176 = vld [vmem:[%s3 + $0x6b8] sm:$0xff]
    %v2177 = vld [vmem:[%s3 + $0x6c0] sm:$0xff]
    %v2178 = vld [vmem:[%s3 + $0x6c8] sm:$0xff]
    %v2179 = vld [vmem:[%s3 + $0x6d0] sm:$0xff]
    %v2180 = vld [vmem:[%s3 + $0x6d8] sm:$0xff]
    %v2181 = vld [vmem:[%s3 + $0x6e0] sm:$0xff]
    %v2182 = vld [vmem:[%s3 + $0x6e8] sm:$0xff]
    %v2183 = vld [vmem:[%s3 + $0x6f0] sm:$0xff]
    %v2184 = vld [vmem:[%s3 + $0x6f8] sm:$0xff]
    %v2185 = vld [vmem:[%s3 + $0x700] sm:$0xff]
    %v2186 = vld [vmem:[%s3 + $0x708] sm:$0xff]
    %v2187 = vld [vmem:[%s3 + $0x710] sm:$0xff]
    %v2188 = vld [vmem:[%s3 + $0x718] sm:$0xff]
    %v2189 = vld [vmem:[%s3 + $0x720] sm:$0xff]
    %v2190 = vld [vmem:[%s3 + $0x728] sm:$0xff]
    %v2191 = vld [vmem:[%s3 + $0x730] sm:$0xff]
    %v2192 = vld [vmem:[%s3 + $0x738] sm:$0xff]
    %v2193 = vld [vmem:[%s3 + $0x740] sm:$0xff]
    %v2194 = vld [vmem:[%s3 + $0x748] sm:$0xff]
    %v2195 = vld [vmem:[%s3 + $0x750] sm:$0xff]
    %v2196 = vld [vmem:[%s3 + $0x758] sm:$0xff]
    %v2197 = vld [vmem:[%s3 + $0x760] sm:$0xff]
    %v2198 = vld [vmem:[%s3 + $0x768] sm:$0xff]
    %v2199 = vld [vmem:[%s3 + $0x770] sm:$0xff]
    %v2200 = vld [vmem:[%s3 + $0x778] sm:$0xff]
    %v2201 = vld [vmem:[%s3 + $0x780] sm:$0xff]
    %v2202 = vld [vmem:[%s3 + $0x788] sm:$0xff]
    %v2203 = vld [vmem:[%s3 + $0x790] sm:$0xff]
    %v2204 = vld [vmem:[%s3 + $0x798] sm:$0xff]
    %v2205 = vld [vmem:[%s3 + $0x7a0] sm:$0xff]
    %v2206 = vld [vmem:[%s3 + $0x7a8] sm:$0xff]
    %v2207 = vld [vmem:[%s3 + $0x7b0] sm:$0xff]
    %v2208 = vld [vmem:[%s3 + $0x7b8] sm:$0xff]
    %v2209 = vld [vmem:[%s3 + $0x7c0] sm:$0xff]
    %v2210 = vld [vmem:[%s3 + $0x7c8] sm:$0xff]
    %v2211 = vld [vmem:[%s3 + $0x7d0] sm:$0xff]
    %v2212 = vld [vmem:[%s3 + $0x7d8] sm:$0xff]
    %v2213 = vld [vmem:[%s3 + $0x7e0] sm:$0xff]
    %v2214 = vld [vmem:[%s3 + $0x7e8] sm:$0xff]
    %v2215 = vld [vmem:[%s3 + $0x7f0] sm:$0xff]
    %v2216 = vld [vmem:[%s3 + $0x7f8] sm:$0xff]
    %v2473 = vunpack.c.l.b16 %v1961
    %v2474 = vunpack.c.h.b16 %v1961
    %v2475 = vunpack.c.l.b16 %v1962
    %v2476 = vunpack.c.h.b16 %v1962
    %v2477 = vunpack.c.l.b16 %v1963
    %v2478 = vunpack.c.h.b16 %v1963
    %v2479 = vunpack.c.l.b16 %v1964
    %v2480 = vunpack.c.h.b16 %v1964
    %v2481 = vunpack.c.l.b16 %v1965
    %v2482 = vunpack.c.h.b16 %v1965
    %v2483 = vunpack.c.l.b16 %v1966
    %v2484 = vunpack.c.h.b16 %v1966
    %v2485 = vunpack.c.l.b16 %v1967
    %v2486 = vunpack.c.h.b16 %v1967
    %v2487 = vunpack.c.l.b16 %v1968
    %v2488 = vunpack.c.h.b16 %v1968
    %v2489 = vunpack.c.l.b16 %v1969
    %v2490 = vunpack.c.h.b16 %v1969
    %v2491 = vunpack.c.l.b16 %v1970
    %v2492 = vunpack.c.h.b16 %v1970
    %v2493 = vunpack.c.l.b16 %v1971
    %v2494 = vunpack.c.h.b16 %v1971
    %v2495 = vunpack.c.l.b16 %v1972
    %v2496 = vunpack.c.h.b16 %v1972
    %v2497 = vunpack.c.l.b16 %v1973
    %v2498 = vunpack.c.h.b16 %v1973
    %v2499 = vunpack.c.l.b16 %v1974
    %v2500 = vunpack.c.h.b16 %v1974
    %v2501 = vunpack.c.l.b16 %v1975
    %v2502 = vunpack.c.h.b16 %v1975
    %v2503 = vunpack.c.l.b16 %v1976
    %v2504 = vunpack.c.h.b16 %v1976
    %v2505 = vunpack.c.l.b16 %v1977
    %v2506 = vunpack.c.h.b16 %v1977
    %v2507 = vunpack.c.l.b16 %v1978
    %v2508 = vunpack.c.h.b16 %v1978
    %v2509 = vunpack.c.l.b16 %v1979
    %v2510 = vunpack.c.h.b16 %v1979
    %v2511 = vunpack.c.l.b16 %v1980
    %v2512 = vunpack.c.h.b16 %v1980
    %v2513 = vunpack.c.l.b16 %v1981
    %v2514 = vunpack.c.h.b16 %v1981
    %v2515 = vunpack.c.l.b16 %v1982
    %v2516 = vunpack.c.h.b16 %v1982
    %v2517 = vunpack.c.l.b16 %v1983
    %v2518 = vunpack.c.h.b16 %v1983
    %v2519 = vunpack.c.l.b16 %v1984
    %v2520 = vunpack.c.h.b16 %v1984
    %v2521 = vunpack.c.l.b16 %v1985
    %v2522 = vunpack.c.h.b16 %v1985
    %v2523 = vunpack.c.l.b16 %v1986
    %v2524 = vunpack.c.h.b16 %v1986
    %v2525 = vunpack.c.l.b16 %v1987
    %v2526 = vunpack.c.h.b16 %v1987
    %v2527 = vunpack.c.l.b16 %v1988
    %v2528 = vunpack.c.h.b16 %v1988
    %v2529 = vunpack.c.l.b16 %v1989
    %v2530 = vunpack.c.h.b16 %v1989
    %v2531 = vunpack.c.l.b16 %v1990
    %v2532 = vunpack.c.h.b16 %v1990
    %v2533 = vunpack.c.l.b16 %v1991
    %v2534 = vunpack.c.h.b16 %v1991
    %v2535 = vunpack.c.l.b16 %v1992
    %v2536 = vunpack.c.h.b16 %v1992
    %v2537 = vunpack.c.l.b16 %v1993
    %v2538 = vunpack.c.h.b16 %v1993
    %v2539 = vunpack.c.l.b16 %v1994
    %v2540 = vunpack.c.h.b16 %v1994
    %v2541 = vunpack.c.l.b16 %v1995
    %v2542 = vunpack.c.h.b16 %v1995
    %v2543 = vunpack.c.l.b16 %v1996
    %v2544 = vunpack.c.h.b16 %v1996
    %v2545 = vunpack.c.l.b16 %v1997
    %v2546 = vunpack.c.h.b16 %v1997
    %v2547 = vunpack.c.l.b16 %v1998
    %v2548 = vunpack.c.h.b16 %v1998
    %v2549 = vunpack.c.l.b16 %v1999
    %v2550 = vunpack.c.h.b16 %v1999
    %v2551 = vunpack.c.l.b16 %v2000
    %v2552 = vunpack.c.h.b16 %v2000
    %v2553 = vunpack.c.l.b16 %v2001
    %v2554 = vunpack.c.h.b16 %v2001
    %v2555 = vunpack.c.l.b16 %v2002
    %v2556 = vunpack.c.h.b16 %v2002
    %v2557 = vunpack.c.l.b16 %v2003
    %v2558 = vunpack.c.h.b16 %v2003
    %v2559 = vunpack.c.l.b16 %v2004
    %v2560 = vunpack.c.h.b16 %v2004
    %v2561 = vunpack.c.l.b16 %v2005
    %v2562 = vunpack.c.h.b16 %v2005
    %v2563 = vunpack.c.l.b16 %v2006
    %v2564 = vunpack.c.h.b16 %v2006
    %v2565 = vunpack.c.l.b16 %v2007
    %v2566 = vunpack.c.h.b16 %v2007
    %v2567 = vunpack.c.l.b16 %v2008
    %v2568 = vunpack.c.h.b16 %v2008
    %v2569 = vunpack.c.l.b16 %v2009
    %v2570 = vunpack.c.h.b16 %v2009
    %v2571 = vunpack.c.l.b16 %v2010
    %v2572 = vunpack.c.h.b16 %v2010
    %v2573 = vunpack.c.l.b16 %v2011
    %v2574 = vunpack.c.h.b16 %v2011
    %v2575 = vunpack.c.l.b16 %v2012
    %v2576 = vunpack.c.h.b16 %v2012
    %v2577 = vunpack.c.l.b16 %v2013
    %v2578 = vunpack.c.h.b16 %v2013
    %v2579 = vunpack.c.l.b16 %v2014
    %v2580 = vunpack.c.h.b16 %v2014
    %v2581 = vunpack.c.l.b16 %v2015
    %v2582 = vunpack.c.h.b16 %v2015
    %v2583 = vunpack.c.l.b16 %v2016
    %v2584 = vunpack.c.h.b16 %v2016
    %v2585 = vunpack.c.l.b16 %v2017
    %v2586 = vunpack.c.h.b16 %v2017
    %v2587 = vunpack.c.l.b16 %v2018
    %v2588 = vunpack.c.h.b16 %v2018
    %v2589 = vunpack.c.l.b16 %v2019
    %v2590 = vunpack.c.h.b16 %v2019
    %v2591 = vunpack.c.l.b16 %v2020
    %v2592 = vunpack.c.h.b16 %v2020
    %v2593 = vunpack.c.l.b16 %v2021
    %v2594 = vunpack.c.h.b16 %v2021
    %v2595 = vunpack.c.l.b16 %v2022
    %v2596 = vunpack.c.h.b16 %v2022
    %v2597 = vunpack.c.l.b16 %v2023
    %v2598 = vunpack.c.h.b16 %v2023
    %v2599 = vunpack.c.l.b16 %v2024
    %v2600 = vunpack.c.h.b16 %v2024
    %v2601 = vunpack.c.l.b16 %v2025
    %v2602 = vunpack.c.h.b16 %v2025
    %v2603 = vunpack.c.l.b16 %v2026
    %v2604 = vunpack.c.h.b16 %v2026
    %v2605 = vunpack.c.l.b16 %v2027
    %v2606 = vunpack.c.h.b16 %v2027
    %v2607 = vunpack.c.l.b16 %v2028
    %v2608 = vunpack.c.h.b16 %v2028
    %v2609 = vunpack.c.l.b16 %v2029
    %v2610 = vunpack.c.h.b16 %v2029
    %v2611 = vunpack.c.l.b16 %v2030
    %v2612 = vunpack.c.h.b16 %v2030
    %v2613 = vunpack.c.l.b16 %v2031
    %v2614 = vunpack.c.h.b16 %v2031
    %v2615 = vunpack.c.l.b16 %v2032
    %v2616 = vunpack.c.h.b16 %v2032
    %v2617 = vunpack.c.l.b16 %v2033
    %v2618 = vunpack.c.h.b16 %v2033
    %v2619 = vunpack.c.l.b16 %v2034
    %v2620 = vunpack.c.h.b16 %v2034
    %v2621 = vunpack.c.l.b16 %v2035
    %v2622 = vunpack.c.h.b16 %v2035
    %v2623 = vunpack.c.l.b16 %v2036
    %v2624 = vunpack.c.h.b16 %v2036
    %v2625 = vunpack.c.l.b16 %v2037
    %v2626 = vunpack.c.h.b16 %v2037
    %v2627 = vunpack.c.l.b16 %v2038
    %v2628 = vunpack.c.h.b16 %v2038
    %v2629 = vunpack.c.l.b16 %v2039
    %v2630 = vunpack.c.h.b16 %v2039
    %v2631 = vunpack.c.l.b16 %v2040
    %v2632 = vunpack.c.h.b16 %v2040
    %v2633 = vunpack.c.l.b16 %v2041
    %v2634 = vunpack.c.h.b16 %v2041
    %v2635 = vunpack.c.l.b16 %v2042
    %v2636 = vunpack.c.h.b16 %v2042
    %v2637 = vunpack.c.l.b16 %v2043
    %v2638 = vunpack.c.h.b16 %v2043
    %v2639 = vunpack.c.l.b16 %v2044
    %v2640 = vunpack.c.h.b16 %v2044
    %v2641 = vunpack.c.l.b16 %v2045
    %v2642 = vunpack.c.h.b16 %v2045
    %v2643 = vunpack.c.l.b16 %v2046
    %v2644 = vunpack.c.h.b16 %v2046
    %v2645 = vunpack.c.l.b16 %v2047
    %v2646 = vunpack.c.h.b16 %v2047
    %v2647 = vunpack.c.l.b16 %v2048
    %v2648 = vunpack.c.h.b16 %v2048
    %v2649 = vunpack.c.l.b16 %v2049
    %v2650 = vunpack.c.h.b16 %v2049
    %v2651 = vunpack.c.l.b16 %v2050
    %v2652 = vunpack.c.h.b16 %v2050
    %v2653 = vunpack.c.l.b16 %v2051
    %v2654 = vunpack.c.h.b16 %v2051
    %v2655 = vunpack.c.l.b16 %v2052
    %v2656 = vunpack.c.h.b16 %v2052
    %v2657 = vunpack.c.l.b16 %v2053
    %v2658 = vunpack.c.h.b16 %v2053
    %v2659 = vunpack.c.l.b16 %v2054
    %v2660 = vunpack.c.h.b16 %v2054
    %v2661 = vunpack.c.l.b16 %v2055
    %v2662 = vunpack.c.h.b16 %v2055
    %v2663 = vunpack.c.l.b16 %v2056
    %v2664 = vunpack.c.h.b16 %v2056
    %v2665 = vunpack.c.l.b16 %v2057
    %v2666 = vunpack.c.h.b16 %v2057
    %v2667 = vunpack.c.l.b16 %v2058
    %v2668 = vunpack.c.h.b16 %v2058
    %v2669 = vunpack.c.l.b16 %v2059
    %v2670 = vunpack.c.h.b16 %v2059
    %v2671 = vunpack.c.l.b16 %v2060
    %v2672 = vunpack.c.h.b16 %v2060
    %v2673 = vunpack.c.l.b16 %v2061
    %v2674 = vunpack.c.h.b16 %v2061
    %v2675 = vunpack.c.l.b16 %v2062
    %v2676 = vunpack.c.h.b16 %v2062
    %v2677 = vunpack.c.l.b16 %v2063
    %v2678 = vunpack.c.h.b16 %v2063
    %v2679 = vunpack.c.l.b16 %v2064
    %v2680 = vunpack.c.h.b16 %v2064
    %v2681 = vunpack.c.l.b16 %v2065
    %v2682 = vunpack.c.h.b16 %v2065
    %v2683 = vunpack.c.l.b16 %v2066
    %v2684 = vunpack.c.h.b16 %v2066
    %v2685 = vunpack.c.l.b16 %v2067
    %v2686 = vunpack.c.h.b16 %v2067
    %v2687 = vunpack.c.l.b16 %v2068
    %v2688 = vunpack.c.h.b16 %v2068
    %v2689 = vunpack.c.l.b16 %v2069
    %v2690 = vunpack.c.h.b16 %v2069
    %v2691 = vunpack.c.l.b16 %v2070
    %v2692 = vunpack.c.h.b16 %v2070
    %v2693 = vunpack.c.l.b16 %v2071
    %v2694 = vunpack.c.h.b16 %v2071
    %v2695 = vunpack.c.l.b16 %v2072
    %v2696 = vunpack.c.h.b16 %v2072
    %v2697 = vunpack.c.l.b16 %v2073
    %v2698 = vunpack.c.h.b16 %v2073
    %v2699 = vunpack.c.l.b16 %v2074
    %v2700 = vunpack.c.h.b16 %v2074
    %v2701 = vunpack.c.l.b16 %v2075
    %v2702 = vunpack.c.h.b16 %v2075
    %v2703 = vunpack.c.l.b16 %v2076
    %v2704 = vunpack.c.h.b16 %v2076
    %v2705 = vunpack.c.l.b16 %v2077
    %v2706 = vunpack.c.h.b16 %v2077
    %v2707 = vunpack.c.l.b16 %v2078
    %v2708 = vunpack.c.h.b16 %v2078
    %v2709 = vunpack.c.l.b16 %v2079
    %v2710 = vunpack.c.h.b16 %v2079
    %v2711 = vunpack.c.l.b16 %v2080
    %v2712 = vunpack.c.h.b16 %v2080
    %v2713 = vunpack.c.l.b16 %v2081
    %v2714 = vunpack.c.h.b16 %v2081
    %v2715 = vunpack.c.l.b16 %v2082
    %v2716 = vunpack.c.h.b16 %v2082
    %v2717 = vunpack.c.l.b16 %v2083
    %v2718 = vunpack.c.h.b16 %v2083
    %v2719 = vunpack.c.l.b16 %v2084
    %v2720 = vunpack.c.h.b16 %v2084
    %v2721 = vunpack.c.l.b16 %v2085
    %v2722 = vunpack.c.h.b16 %v2085
    %v2723 = vunpack.c.l.b16 %v2086
    %v2724 = vunpack.c.h.b16 %v2086
    %v2725 = vunpack.c.l.b16 %v2087
    %v2726 = vunpack.c.h.b16 %v2087
    %v2727 = vunpack.c.l.b16 %v2088
    %v2728 = vunpack.c.h.b16 %v2088
    %v2729 = vunpack.c.l.b16 %v2089
    %v2730 = vunpack.c.h.b16 %v2089
    %v2731 = vunpack.c.l.b16 %v2090
    %v2732 = vunpack.c.h.b16 %v2090
    %v2733 = vunpack.c.l.b16 %v2091
    %v2734 = vunpack.c.h.b16 %v2091
    %v2735 = vunpack.c.l.b16 %v2092
    %v2736 = vunpack.c.h.b16 %v2092
    %v2737 = vunpack.c.l.b16 %v2093
    %v2738 = vunpack.c.h.b16 %v2093
    %v2739 = vunpack.c.l.b16 %v2094
    %v2740 = vunpack.c.h.b16 %v2094
    %v2741 = vunpack.c.l.b16 %v2095
    %v2742 = vunpack.c.h.b16 %v2095
    %v2743 = vunpack.c.l.b16 %v2096
    %v2744 = vunpack.c.h.b16 %v2096
    %v2745 = vunpack.c.l.b16 %v2097
    %v2746 = vunpack.c.h.b16 %v2097
    %v2747 = vunpack.c.l.b16 %v2098
    %v2748 = vunpack.c.h.b16 %v2098
    %v2749 = vunpack.c.l.b16 %v2099
    %v2750 = vunpack.c.h.b16 %v2099
    %v2751 = vunpack.c.l.b16 %v2100
    %v2752 = vunpack.c.h.b16 %v2100
    %v2753 = vunpack.c.l.b16 %v2101
    %v2754 = vunpack.c.h.b16 %v2101
    %v2755 = vunpack.c.l.b16 %v2102
    %v2756 = vunpack.c.h.b16 %v2102
    %v2757 = vunpack.c.l.b16 %v2103
    %v2758 = vunpack.c.h.b16 %v2103
    %v2759 = vunpack.c.l.b16 %v2104
    %v2760 = vunpack.c.h.b16 %v2104
    %v2761 = vunpack.c.l.b16 %v2105
    %v2762 = vunpack.c.h.b16 %v2105
    %v2763 = vunpack.c.l.b16 %v2106
    %v2764 = vunpack.c.h.b16 %v2106
    %v2765 = vunpack.c.l.b16 %v2107
    %v2766 = vunpack.c.h.b16 %v2107
    %v2767 = vunpack.c.l.b16 %v2108
    %v2768 = vunpack.c.h.b16 %v2108
    %v2769 = vunpack.c.l.b16 %v2109
    %v2770 = vunpack.c.h.b16 %v2109
    %v2771 = vunpack.c.l.b16 %v2110
    %v2772 = vunpack.c.h.b16 %v2110
    %v2773 = vunpack.c.l.b16 %v2111
    %v2774 = vunpack.c.h.b16 %v2111
    %v2775 = vunpack.c.l.b16 %v2112
    %v2776 = vunpack.c.h.b16 %v2112
    %v2777 = vunpack.c.l.b16 %v2113
    %v2778 = vunpack.c.h.b16 %v2113
    %v2779 = vunpack.c.l.b16 %v2114
    %v2780 = vunpack.c.h.b16 %v2114
    %v2781 = vunpack.c.l.b16 %v2115
    %v2782 = vunpack.c.h.b16 %v2115
    %v2783 = vunpack.c.l.b16 %v2116
    %v2784 = vunpack.c.h.b16 %v2116
    %v2785 = vunpack.c.l.b16 %v2117
    %v2786 = vunpack.c.h.b16 %v2117
    %v2787 = vunpack.c.l.b16 %v2118
    %v2788 = vunpack.c.h.b16 %v2118
    %v2789 = vunpack.c.l.b16 %v2119
    %v2790 = vunpack.c.h.b16 %v2119
    %v2791 = vunpack.c.l.b16 %v2120
    %v2792 = vunpack.c.h.b16 %v2120
    %v2793 = vunpack.c.l.b16 %v2121
    %v2794 = vunpack.c.h.b16 %v2121
    %v2795 = vunpack.c.l.b16 %v2122
    %v2796 = vunpack.c.h.b16 %v2122
    %v2797 = vunpack.c.l.b16 %v2123
    %v2798 = vunpack.c.h.b16 %v2123
    %v2799 = vunpack.c.l.b16 %v2124
    %v2800 = vunpack.c.h.b16 %v2124
    %v2801 = vunpack.c.l.b16 %v2125
    %v2802 = vunpack.c.h.b16 %v2125
    %v2803 = vunpack.c.l.b16 %v2126
    %v2804 = vunpack.c.h.b16 %v2126
    %v2805 = vunpack.c.l.b16 %v2127
    %v2806 = vunpack.c.h.b16 %v2127
    %v2807 = vunpack.c.l.b16 %v2128
    %v2808 = vunpack.c.h.b16 %v2128
    %v2809 = vunpack.c.l.b16 %v2129
    %v2810 = vunpack.c.h.b16 %v2129
    %v2811 = vunpack.c.l.b16 %v2130
    %v2812 = vunpack.c.h.b16 %v2130
    %v2813 = vunpack.c.l.b16 %v2131
    %v2814 = vunpack.c.h.b16 %v2131
    %v2815 = vunpack.c.l.b16 %v2132
    %v2816 = vunpack.c.h.b16 %v2132
    %v2817 = vunpack.c.l.b16 %v2133
    %v2818 = vunpack.c.h.b16 %v2133
    %v2819 = vunpack.c.l.b16 %v2134
    %v2820 = vunpack.c.h.b16 %v2134
    %v2821 = vunpack.c.l.b16 %v2135
    %v2822 = vunpack.c.h.b16 %v2135
    %v2823 = vunpack.c.l.b16 %v2136
    %v2824 = vunpack.c.h.b16 %v2136
    %v2825 = vunpack.c.l.b16 %v2137
    %v2826 = vunpack.c.h.b16 %v2137
    %v2827 = vunpack.c.l.b16 %v2138
    %v2828 = vunpack.c.h.b16 %v2138
    %v2829 = vunpack.c.l.b16 %v2139
    %v2830 = vunpack.c.h.b16 %v2139
    %v2831 = vunpack.c.l.b16 %v2140
    %v2832 = vunpack.c.h.b16 %v2140
    %v2833 = vunpack.c.l.b16 %v2141
    %v2834 = vunpack.c.h.b16 %v2141
    %v2835 = vunpack.c.l.b16 %v2142
    %v2836 = vunpack.c.h.b16 %v2142
    %v2837 = vunpack.c.l.b16 %v2143
    %v2838 = vunpack.c.h.b16 %v2143
    %v2839 = vunpack.c.l.b16 %v2144
    %v2840 = vunpack.c.h.b16 %v2144
    %v2841 = vunpack.c.l.b16 %v2145
    %v2842 = vunpack.c.h.b16 %v2145
    %v2843 = vunpack.c.l.b16 %v2146
    %v2844 = vunpack.c.h.b16 %v2146
    %v2845 = vunpack.c.l.b16 %v2147
    %v2846 = vunpack.c.h.b16 %v2147
    %v2847 = vunpack.c.l.b16 %v2148
    %v2848 = vunpack.c.h.b16 %v2148
    %v2849 = vunpack.c.l.b16 %v2149
    %v2850 = vunpack.c.h.b16 %v2149
    %v2851 = vunpack.c.l.b16 %v2150
    %v2852 = vunpack.c.h.b16 %v2150
    %v2853 = vunpack.c.l.b16 %v2151
    %v2854 = vunpack.c.h.b16 %v2151
    %v2855 = vunpack.c.l.b16 %v2152
    %v2856 = vunpack.c.h.b16 %v2152
    %v2857 = vunpack.c.l.b16 %v2153
    %v2858 = vunpack.c.h.b16 %v2153
    %v2859 = vunpack.c.l.b16 %v2154
    %v2860 = vunpack.c.h.b16 %v2154
    %v2861 = vunpack.c.l.b16 %v2155
    %v2862 = vunpack.c.h.b16 %v2155
    %v2863 = vunpack.c.l.b16 %v2156
    %v2864 = vunpack.c.h.b16 %v2156
    %v2865 = vunpack.c.l.b16 %v2157
    %v2866 = vunpack.c.h.b16 %v2157
    %v2867 = vunpack.c.l.b16 %v2158
    %v2868 = vunpack.c.h.b16 %v2158
    %v2869 = vunpack.c.l.b16 %v2159
    %v2870 = vunpack.c.h.b16 %v2159
    %v2871 = vunpack.c.l.b16 %v2160
    %v2872 = vunpack.c.h.b16 %v2160
    %v2873 = vunpack.c.l.b16 %v2161
    %v2874 = vunpack.c.h.b16 %v2161
    %v2875 = vunpack.c.l.b16 %v2162
    %v2876 = vunpack.c.h.b16 %v2162
    %v2877 = vunpack.c.l.b16 %v2163
    %v2878 = vunpack.c.h.b16 %v2163
    %v2879 = vunpack.c.l.b16 %v2164
    %v2880 = vunpack.c.h.b16 %v2164
    %v2881 = vunpack.c.l.b16 %v2165
    %v2882 = vunpack.c.h.b16 %v2165
    %v2883 = vunpack.c.l.b16 %v2166
    %v2884 = vunpack.c.h.b16 %v2166
    %v2885 = vunpack.c.l.b16 %v2167
    %v2886 = vunpack.c.h.b16 %v2167
    %v2887 = vunpack.c.l.b16 %v2168
    %v2888 = vunpack.c.h.b16 %v2168
    %v2889 = vunpack.c.l.b16 %v2169
    %v2890 = vunpack.c.h.b16 %v2169
    %v2891 = vunpack.c.l.b16 %v2170
    %v2892 = vunpack.c.h.b16 %v2170
    %v2893 = vunpack.c.l.b16 %v2171
    %v2894 = vunpack.c.h.b16 %v2171
    %v2895 = vunpack.c.l.b16 %v2172
    %v2896 = vunpack.c.h.b16 %v2172
    %v2897 = vunpack.c.l.b16 %v2173
    %v2898 = vunpack.c.h.b16 %v2173
    %v2899 = vunpack.c.l.b16 %v2174
    %v2900 = vunpack.c.h.b16 %v2174
    %v2901 = vunpack.c.l.b16 %v2175
    %v2902 = vunpack.c.h.b16 %v2175
    %v2903 = vunpack.c.l.b16 %v2176
    %v2904 = vunpack.c.h.b16 %v2176
    %v2905 = vunpack.c.l.b16 %v2177
    %v2906 = vunpack.c.h.b16 %v2177
    %v2907 = vunpack.c.l.b16 %v2178
    %v2908 = vunpack.c.h.b16 %v2178
    %v2909 = vunpack.c.l.b16 %v2179
    %v2910 = vunpack.c.h.b16 %v2179
    %v2911 = vunpack.c.l.b16 %v2180
    %v2912 = vunpack.c.h.b16 %v2180
    %v2913 = vunpack.c.l.b16 %v2181
    %v2914 = vunpack.c.h.b16 %v2181
    %v2915 = vunpack.c.l.b16 %v2182
    %v2916 = vunpack.c.h.b16 %v2182
    %v2917 = vunpack.c.l.b16 %v2183
    %v2918 = vunpack.c.h.b16 %v2183
    %v2919 = vunpack.c.l.b16 %v2184
    %v2920 = vunpack.c.h.b16 %v2184
    %v2921 = vunpack.c.l.b16 %v2185
    %v2922 = vunpack.c.h.b16 %v2185
    %v2923 = vunpack.c.l.b16 %v2186
    %v2924 = vunpack.c.h.b16 %v2186
    %v2925 = vunpack.c.l.b16 %v2187
    %v2926 = vunpack.c.h.b16 %v2187
    %v2927 = vunpack.c.l.b16 %v2188
    %v2928 = vunpack.c.h.b16 %v2188
    %v2929 = vunpack.c.l.b16 %v2189
    %v2930 = vunpack.c.h.b16 %v2189
    %v2931 = vunpack.c.l.b16 %v2190
    %v2932 = vunpack.c.h.b16 %v2190
    %v2933 = vunpack.c.l.b16 %v2191
    %v2934 = vunpack.c.h.b16 %v2191
    %v2935 = vunpack.c.l.b16 %v2192
    %v2936 = vunpack.c.h.b16 %v2192
    %v2937 = vunpack.c.l.b16 %v2193
    %v2938 = vunpack.c.h.b16 %v2193
    %v2939 = vunpack.c.l.b16 %v2194
    %v2940 = vunpack.c.h.b16 %v2194
    %v2941 = vunpack.c.l.b16 %v2195
    %v2942 = vunpack.c.h.b16 %v2195
    %v2943 = vunpack.c.l.b16 %v2196
    %v2944 = vunpack.c.h.b16 %v2196
    %v2945 = vunpack.c.l.b16 %v2197
    %v2946 = vunpack.c.h.b16 %v2197
    %v2947 = vunpack.c.l.b16 %v2198
    %v2948 = vunpack.c.h.b16 %v2198
    %v2949 = vunpack.c.l.b16 %v2199
    %v2950 = vunpack.c.h.b16 %v2199
    %v2951 = vunpack.c.l.b16 %v2200
    %v2952 = vunpack.c.h.b16 %v2200
    %v2953 = vunpack.c.l.b16 %v2201
    %v2954 = vunpack.c.h.b16 %v2201
    %v2955 = vunpack.c.l.b16 %v2202
    %v2956 = vunpack.c.h.b16 %v2202
    %v2957 = vunpack.c.l.b16 %v2203
    %v2958 = vunpack.c.h.b16 %v2203
    %v2959 = vunpack.c.l.b16 %v2204
    %v2960 = vunpack.c.h.b16 %v2204
    %v2961 = vunpack.c.l.b16 %v2205
    %v2962 = vunpack.c.h.b16 %v2205
    %v2963 = vunpack.c.l.b16 %v2206
    %v2964 = vunpack.c.h.b16 %v2206
    %v2965 = vunpack.c.l.b16 %v2207
    %v2966 = vunpack.c.h.b16 %v2207
    %v2967 = vunpack.c.l.b16 %v2208
    %v2968 = vunpack.c.h.b16 %v2208
    %v2969 = vunpack.c.l.b16 %v2209
    %v2970 = vunpack.c.h.b16 %v2209
    %v2971 = vunpack.c.l.b16 %v2210
    %v2972 = vunpack.c.h.b16 %v2210
    %v2973 = vunpack.c.l.b16 %v2211
    %v2974 = vunpack.c.h.b16 %v2211
    %v2975 = vunpack.c.l.b16 %v2212
    %v2976 = vunpack.c.h.b16 %v2212
    %v2977 = vunpack.c.l.b16 %v2213
    %v2978 = vunpack.c.h.b16 %v2213
    %v2979 = vunpack.c.l.b16 %v2214
    %v2980 = vunpack.c.h.b16 %v2214
    %v2981 = vunpack.c.l.b16 %v2215
    %v2982 = vunpack.c.h.b16 %v2215
    %v2983 = vunpack.c.l.b16 %v2216
    %v2984 = vunpack.c.h.b16 %v2216
    %v2985 = vpack.c.b16 %v2477, %v2473
    %v2986 = vpack.c.b16 %v2478, %v2474
    %v2987 = vpack.c.b16 %v2479, %v2475
    %v2988 = vpack.c.b16 %v2480, %v2476
    %v2989 = vpack.c.b16 %v2485, %v2481
    %v2990 = vpack.c.b16 %v2486, %v2482
    %v2991 = vpack.c.b16 %v2487, %v2483
    %v2992 = vpack.c.b16 %v2488, %v2484
    %v2993 = vpack.c.b16 %v2493, %v2489
    %v2994 = vpack.c.b16 %v2494, %v2490
    %v2995 = vpack.c.b16 %v2495, %v2491
    %v2996 = vpack.c.b16 %v2496, %v2492
    %v2997 = vpack.c.b16 %v2501, %v2497
    %v2998 = vpack.c.b16 %v2502, %v2498
    %v2999 = vpack.c.b16 %v2503, %v2499
    %v3000 = vpack.c.b16 %v2504, %v2500
    %v3001 = vpack.c.b16 %v2509, %v2505
    %v3002 = vpack.c.b16 %v2510, %v2506
    %v3003 = vpack.c.b16 %v2511, %v2507
    %v3004 = vpack.c.b16 %v2512, %v2508
    %v3005 = vpack.c.b16 %v2517, %v2513
    %v3006 = vpack.c.b16 %v2518, %v2514
    %v3007 = vpack.c.b16 %v2519, %v2515
    %v3008 = vpack.c.b16 %v2520, %v2516
    %v3009 = vpack.c.b16 %v2525, %v2521
    %v3010 = vpack.c.b16 %v2526, %v2522
    %v3011 = vpack.c.b16 %v2527, %v2523
    %v3012 = vpack.c.b16 %v2528, %v2524
    %v3013 = vpack.c.b16 %v2533, %v2529
    %v3014 = vpack.c.b16 %v2534, %v2530
    %v3015 = vpack.c.b16 %v2535, %v2531
    %v3016 = vpack.c.b16 %v2536, %v2532
    %v3017 = vpack.c.b16 %v2541, %v2537
    %v3018 = vpack.c.b16 %v2542, %v2538
    %v3019 = vpack.c.b16 %v2543, %v2539
    %v3020 = vpack.c.b16 %v2544, %v2540
    %v3021 = vpack.c.b16 %v2549, %v2545
    %v3022 = vpack.c.b16 %v2550, %v2546
    %v3023 = vpack.c.b16 %v2551, %v2547
    %v3024 = vpack.c.b16 %v2552, %v2548
    %v3025 = vpack.c.b16 %v2557, %v2553
    %v3026 = vpack.c.b16 %v2558, %v2554
    %v3027 = vpack.c.b16 %v2559, %v2555
    %v3028 = vpack.c.b16 %v2560, %v2556
    %v3029 = vpack.c.b16 %v2565, %v2561
    %v3030 = vpack.c.b16 %v2566, %v2562
    %v3031 = vpack.c.b16 %v2567, %v2563
    %v3032 = vpack.c.b16 %v2568, %v2564
    %v3033 = vpack.c.b16 %v2573, %v2569
    %v3034 = vpack.c.b16 %v2574, %v2570
    %v3035 = vpack.c.b16 %v2575, %v2571
    %v3036 = vpack.c.b16 %v2576, %v2572
    %v3037 = vpack.c.b16 %v2581, %v2577
    %v3038 = vpack.c.b16 %v2582, %v2578
    %v3039 = vpack.c.b16 %v2583, %v2579
    %v3040 = vpack.c.b16 %v2584, %v2580
    %v3041 = vpack.c.b16 %v2589, %v2585
    %v3042 = vpack.c.b16 %v2590, %v2586
    %v3043 = vpack.c.b16 %v2591, %v2587
    %v3044 = vpack.c.b16 %v2592, %v2588
    %v3045 = vpack.c.b16 %v2597, %v2593
    %v3046 = vpack.c.b16 %v2598, %v2594
    %v3047 = vpack.c.b16 %v2599, %v2595
    %v3048 = vpack.c.b16 %v2600, %v2596
    %v3049 = vpack.c.b16 %v2605, %v2601
    %v3050 = vpack.c.b16 %v2606, %v2602
    %v3051 = vpack.c.b16 %v2607, %v2603
    %v3052 = vpack.c.b16 %v2608, %v2604
    %v3053 = vpack.c.b16 %v2613, %v2609
    %v3054 = vpack.c.b16 %v2614, %v2610
    %v3055 = vpack.c.b16 %v2615, %v2611
    %v3056 = vpack.c.b16 %v2616, %v2612
    %v3057 = vpack.c.b16 %v2621, %v2617
    %v3058 = vpack.c.b16 %v2622, %v2618
    %v3059 = vpack.c.b16 %v2623, %v2619
    %v3060 = vpack.c.b16 %v2624, %v2620
    %v3061 = vpack.c.b16 %v2629, %v2625
    %v3062 = vpack.c.b16 %v2630, %v2626
    %v3063 = vpack.c.b16 %v2631, %v2627
    %v3064 = vpack.c.b16 %v2632, %v2628
    %v3065 = vpack.c.b16 %v2637, %v2633
    %v3066 = vpack.c.b16 %v2638, %v2634
    %v3067 = vpack.c.b16 %v2639, %v2635
    %v3068 = vpack.c.b16 %v2640, %v2636
    %v3069 = vpack.c.b16 %v2645, %v2641
    %v3070 = vpack.c.b16 %v2646, %v2642
    %v3071 = vpack.c.b16 %v2647, %v2643
    %v3072 = vpack.c.b16 %v2648, %v2644
    %v3073 = vpack.c.b16 %v2653, %v2649
    %v3074 = vpack.c.b16 %v2654, %v2650
    %v3075 = vpack.c.b16 %v2655, %v2651
    %v3076 = vpack.c.b16 %v2656, %v2652
    %v3077 = vpack.c.b16 %v2661, %v2657
    %v3078 = vpack.c.b16 %v2662, %v2658
    %v3079 = vpack.c.b16 %v2663, %v2659
    %v3080 = vpack.c.b16 %v2664, %v2660
    %v3081 = vpack.c.b16 %v2669, %v2665
    %v3082 = vpack.c.b16 %v2670, %v2666
    %v3083 = vpack.c.b16 %v2671, %v2667
    %v3084 = vpack.c.b16 %v2672, %v2668
    %v3085 = vpack.c.b16 %v2677, %v2673
    %v3086 = vpack.c.b16 %v2678, %v2674
    %v3087 = vpack.c.b16 %v2679, %v2675
    %v3088 = vpack.c.b16 %v2680, %v2676
    %v3089 = vpack.c.b16 %v2685, %v2681
    %v3090 = vpack.c.b16 %v2686, %v2682
    %v3091 = vpack.c.b16 %v2687, %v2683
    %v3092 = vpack.c.b16 %v2688, %v2684
    %v3093 = vpack.c.b16 %v2693, %v2689
    %v3094 = vpack.c.b16 %v2694, %v2690
    %v3095 = vpack.c.b16 %v2695, %v2691
    %v3096 = vpack.c.b16 %v2696, %v2692
    %v3097 = vpack.c.b16 %v2701, %v2697
    %v3098 = vpack.c.b16 %v2702, %v2698
    %v3099 = vpack.c.b16 %v2703, %v2699
    %v3100 = vpack.c.b16 %v2704, %v2700
    %v3101 = vpack.c.b16 %v2709, %v2705
    %v3102 = vpack.c.b16 %v2710, %v2706
    %v3103 = vpack.c.b16 %v2711, %v2707
    %v3104 = vpack.c.b16 %v2712, %v2708
    %v3105 = vpack.c.b16 %v2717, %v2713
    %v3106 = vpack.c.b16 %v2718, %v2714
    %v3107 = vpack.c.b16 %v2719, %v2715
    %v3108 = vpack.c.b16 %v2720, %v2716
    %v3109 = vpack.c.b16 %v2725, %v2721
    %v3110 = vpack.c.b16 %v2726, %v2722
    %v3111 = vpack.c.b16 %v2727, %v2723
    %v3112 = vpack.c.b16 %v2728, %v2724
    %v3113 = vpack.c.b16 %v2733, %v2729
    %v3114 = vpack.c.b16 %v2734, %v2730
    %v3115 = vpack.c.b16 %v2735, %v2731
    %v3116 = vpack.c.b16 %v2736, %v2732
    %v3117 = vpack.c.b16 %v2741, %v2737
    %v3118 = vpack.c.b16 %v2742, %v2738
    %v3119 = vpack.c.b16 %v2743, %v2739
    %v3120 = vpack.c.b16 %v2744, %v2740
    %v3121 = vpack.c.b16 %v2749, %v2745
    %v3122 = vpack.c.b16 %v2750, %v2746
    %v3123 = vpack.c.b16 %v2751, %v2747
    %v3124 = vpack.c.b16 %v2752, %v2748
    %v3125 = vpack.c.b16 %v2757, %v2753
    %v3126 = vpack.c.b16 %v2758, %v2754
    %v3127 = vpack.c.b16 %v2759, %v2755
    %v3128 = vpack.c.b16 %v2760, %v2756
    %v3129 = vpack.c.b16 %v2765, %v2761
    %v3130 = vpack.c.b16 %v2766, %v2762
    %v3131 = vpack.c.b16 %v2767, %v2763
    %v3132 = vpack.c.b16 %v2768, %v2764
    %v3133 = vpack.c.b16 %v2773, %v2769
    %v3134 = vpack.c.b16 %v2774, %v2770
    %v3135 = vpack.c.b16 %v2775, %v2771
    %v3136 = vpack.c.b16 %v2776, %v2772
    %v3137 = vpack.c.b16 %v2781, %v2777
    %v3138 = vpack.c.b16 %v2782, %v2778
    %v3139 = vpack.c.b16 %v2783, %v2779
    %v3140 = vpack.c.b16 %v2784, %v2780
    %v3141 = vpack.c.b16 %v2789, %v2785
    %v3142 = vpack.c.b16 %v2790, %v2786
    %v3143 = vpack.c.b16 %v2791, %v2787
    %v3144 = vpack.c.b16 %v2792, %v2788
    %v3145 = vpack.c.b16 %v2797, %v2793
    %v3146 = vpack.c.b16 %v2798, %v2794
    %v3147 = vpack.c.b16 %v2799, %v2795
    %v3148 = vpack.c.b16 %v2800, %v2796
    %v3149 = vpack.c.b16 %v2805, %v2801
    %v3150 = vpack.c.b16 %v2806, %v2802
    %v3151 = vpack.c.b16 %v2807, %v2803
    %v3152 = vpack.c.b16 %v2808, %v2804
    %v3153 = vpack.c.b16 %v2813, %v2809
    %v3154 = vpack.c.b16 %v2814, %v2810
    %v3155 = vpack.c.b16 %v2815, %v2811
    %v3156 = vpack.c.b16 %v2816, %v2812
    %v3157 = vpack.c.b16 %v2821, %v2817
    %v3158 = vpack.c.b16 %v2822, %v2818
    %v3159 = vpack.c.b16 %v2823, %v2819
    %v3160 = vpack.c.b16 %v2824, %v2820
    %v3161 = vpack.c.b16 %v2829, %v2825
    %v3162 = vpack.c.b16 %v2830, %v2826
    %v3163 = vpack.c.b16 %v2831, %v2827
    %v3164 = vpack.c.b16 %v2832, %v2828
    %v3165 = vpack.c.b16 %v2837, %v2833
    %v3166 = vpack.c.b16 %v2838, %v2834
    %v3167 = vpack.c.b16 %v2839, %v2835
    %v3168 = vpack.c.b16 %v2840, %v2836
    %v3169 = vpack.c.b16 %v2845, %v2841
    %v3170 = vpack.c.b16 %v2846, %v2842
    %v3171 = vpack.c.b16 %v2847, %v2843
    %v3172 = vpack.c.b16 %v2848, %v2844
    %v3173 = vpack.c.b16 %v2853, %v2849
    %v3174 = vpack.c.b16 %v2854, %v2850
    %v3175 = vpack.c.b16 %v2855, %v2851
    %v3176 = vpack.c.b16 %v2856, %v2852
    %v3177 = vpack.c.b16 %v2861, %v2857
    %v3178 = vpack.c.b16 %v2862, %v2858
    %v3179 = vpack.c.b16 %v2863, %v2859
    %v3180 = vpack.c.b16 %v2864, %v2860
    %v3181 = vpack.c.b16 %v2869, %v2865
    %v3182 = vpack.c.b16 %v2870, %v2866
    %v3183 = vpack.c.b16 %v2871, %v2867
    %v3184 = vpack.c.b16 %v2872, %v2868
    %v3185 = vpack.c.b16 %v2877, %v2873
    %v3186 = vpack.c.b16 %v2878, %v2874
    %v3187 = vpack.c.b16 %v2879, %v2875
    %v3188 = vpack.c.b16 %v2880, %v2876
    %v3189 = vpack.c.b16 %v2885, %v2881
    %v3190 = vpack.c.b16 %v2886, %v2882
    %v3191 = vpack.c.b16 %v2887, %v2883
    %v3192 = vpack.c.b16 %v2888, %v2884
    %v3193 = vpack.c.b16 %v2893, %v2889
    %v3194 = vpack.c.b16 %v2894, %v2890
    %v3195 = vpack.c.b16 %v2895, %v2891
    %v3196 = vpack.c.b16 %v2896, %v2892
    %v3197 = vpack.c.b16 %v2901, %v2897
    %v3198 = vpack.c.b16 %v2902, %v2898
    %v3199 = vpack.c.b16 %v2903, %v2899
    %v3200 = vpack.c.b16 %v2904, %v2900
    %v3201 = vpack.c.b16 %v2909, %v2905
    %v3202 = vpack.c.b16 %v2910, %v2906
    %v3203 = vpack.c.b16 %v2911, %v2907
    %v3204 = vpack.c.b16 %v2912, %v2908
    %v3205 = vpack.c.b16 %v2917, %v2913
    %v3206 = vpack.c.b16 %v2918, %v2914
    %v3207 = vpack.c.b16 %v2919, %v2915
    %v3208 = vpack.c.b16 %v2920, %v2916
    %v3209 = vpack.c.b16 %v2925, %v2921
    %v3210 = vpack.c.b16 %v2926, %v2922
    %v3211 = vpack.c.b16 %v2927, %v2923
    %v3212 = vpack.c.b16 %v2928, %v2924
    %v3213 = vpack.c.b16 %v2933, %v2929
    %v3214 = vpack.c.b16 %v2934, %v2930
    %v3215 = vpack.c.b16 %v2935, %v2931
    %v3216 = vpack.c.b16 %v2936, %v2932
    %v3217 = vpack.c.b16 %v2941, %v2937
    %v3218 = vpack.c.b16 %v2942, %v2938
    %v3219 = vpack.c.b16 %v2943, %v2939
    %v3220 = vpack.c.b16 %v2944, %v2940
    %v3221 = vpack.c.b16 %v2949, %v2945
    %v3222 = vpack.c.b16 %v2950, %v2946
    %v3223 = vpack.c.b16 %v2951, %v2947
    %v3224 = vpack.c.b16 %v2952, %v2948
    %v3225 = vpack.c.b16 %v2957, %v2953
    %v3226 = vpack.c.b16 %v2958, %v2954
    %v3227 = vpack.c.b16 %v2959, %v2955
    %v3228 = vpack.c.b16 %v2960, %v2956
    %v3229 = vpack.c.b16 %v2965, %v2961
    %v3230 = vpack.c.b16 %v2966, %v2962
    %v3231 = vpack.c.b16 %v2967, %v2963
    %v3232 = vpack.c.b16 %v2968, %v2964
    %v3233 = vpack.c.b16 %v2973, %v2969
    %v3234 = vpack.c.b16 %v2974, %v2970
    %v3235 = vpack.c.b16 %v2975, %v2971
    %v3236 = vpack.c.b16 %v2976, %v2972
    %v3237 = vpack.c.b16 %v2981, %v2977
    %v3238 = vpack.c.b16 %v2982, %v2978
    %v3239 = vpack.c.b16 %v2983, %v2979
    %v3240 = vpack.c.b16 %v2984, %v2980
    %3497 = vmatprep.subr.bf16.mxu0 %v3014
    %3498 = vmatpush1.bf16.msra.mxu0 %v3013
    %3499 = vmatprep.subr.bf16.mxu0 %v3010
    %3500 = vmatpush1.bf16.msra.mxu0 %v3009
    %3501 = vmatprep.subr.bf16.mxu0 %v3006
    %3502 = vmatpush1.bf16.msra.mxu0 %v3005
    %3503 = vmatprep.subr.bf16.mxu0 %v3002
    %3504 = vmatpush1.bf16.msra.mxu0 %v3001
    %3505 = vmatprep.subr.bf16.mxu0 %v2998
    %3506 = vmatpush1.bf16.msra.mxu0 %v2997
    %3507 = vmatprep.subr.bf16.mxu0 %v2994
    %3508 = vmatpush1.bf16.msra.mxu0 %v2993
    %3509 = vmatprep.subr.bf16.mxu0 %v2990
    %3510 = vmatpush1.bf16.msra.mxu0 %v2989
    %3511 = vmatprep.subr.bf16.mxu0 %v2986
    %3512 = vmatpush1.bf16.msra.mxu0 %v2985
    %3513 = vmatprep.subr.bf16.mxu0 %v3046
    %3514 = vmatpush2.bf16.msra.mxu0 %v3045
    %3515 = vmatprep.subr.bf16.mxu0 %v3042
    %3516 = vmatpush2.bf16.msra.mxu0 %v3041
    %3517 = vmatprep.subr.bf16.mxu0 %v3038
    %3518 = vmatpush2.bf16.msra.mxu0 %v3037
    %3519 = vmatprep.subr.bf16.mxu0 %v3034
    %3520 = vmatpush2.bf16.msra.mxu0 %v3033
    %3521 = vmatprep.subr.bf16.mxu0 %v3030
    %3522 = vmatpush2.bf16.msra.mxu0 %v3029
    %3523 = vmatprep.subr.bf16.mxu0 %v3026
    %3524 = vmatpush2.bf16.msra.mxu0 %v3025
    %3525 = vmatprep.subr.bf16.mxu0 %v3022
    %3526 = vmatpush2.bf16.msra.mxu0 %v3021
    %3527 = vmatprep.subr.bf16.mxu0 %v3018
    %3528 = vmatpush2.bf16.msra.mxu0 %v3017
    %3529 = vmatprep.mubr.bf16.mxu0 %v1954
    %3530 = vmatmul.mubr.bf16.gmra.mxu0 %v1953
    %v3531 = vpop.f32.mrf.mxu0
    %v3532 = vadd.f32 0.0, %v3531
    %v3533 = vpop.f32.mrf.mxu0
    %v3534 = vadd.f32 0.0, %v3533
    %v3535 = vpop.f32.mrf.mxu0
    %v3536 = vpop.f32.mrf.mxu0
    %3537 = vdwg.mxu0
    %3538 = vmatprep.subr.bf16.mxu0 %v3078
    %3539 = vmatpush1.bf16.msra.mxu0 %v3077
    %3540 = vmatprep.subr.bf16.mxu0 %v3074
    %3541 = vmatpush1.bf16.msra.mxu0 %v3073
    %3542 = vmatprep.subr.bf16.mxu0 %v3070
    %3543 = vmatpush1.bf16.msra.mxu0 %v3069
    %3544 = vmatprep.subr.bf16.mxu0 %v3066
    %3545 = vmatpush1.bf16.msra.mxu0 %v3065
    %3546 = vmatprep.subr.bf16.mxu0 %v3062
    %3547 = vmatpush1.bf16.msra.mxu0 %v3061
    %3548 = vmatprep.subr.bf16.mxu0 %v3058
    %3549 = vmatpush1.bf16.msra.mxu0 %v3057
    %3550 = vmatprep.subr.bf16.mxu0 %v3054
    %3551 = vmatpush1.bf16.msra.mxu0 %v3053
    %3552 = vmatprep.subr.bf16.mxu0 %v3050
    %3553 = vmatpush1.bf16.msra.mxu0 %v3049
    %3554 = vmatprep.subr.bf16.mxu0 %v3110
    %3555 = vmatpush2.bf16.msra.mxu0 %v3109
    %3556 = vmatprep.subr.bf16.mxu0 %v3106
    %3557 = vmatpush2.bf16.msra.mxu0 %v3105
    %3558 = vmatprep.subr.bf16.mxu0 %v3102
    %3559 = vmatpush2.bf16.msra.mxu0 %v3101
    %3560 = vmatprep.subr.bf16.mxu0 %v3098
    %3561 = vmatpush2.bf16.msra.mxu0 %v3097
    %3562 = vmatprep.subr.bf16.mxu0 %v3094
    %3563 = vmatpush2.bf16.msra.mxu0 %v3093
    %3564 = vmatprep.subr.bf16.mxu0 %v3090
    %3565 = vmatpush2.bf16.msra.mxu0 %v3089
    %3566 = vmatprep.subr.bf16.mxu0 %v3086
    %3567 = vmatpush2.bf16.msra.mxu0 %v3085
    %3568 = vmatprep.subr.bf16.mxu0 %v3082
    %3569 = vmatpush2.bf16.msra.mxu0 %v3081
    %3570 = vmatprep.mubr.bf16.mxu0 %v1956
    %3571 = vmatmul.mubr.bf16.gmra.mxu0 %v1955
    %v3572 = vpop.f32.mrf.mxu0
    %v3573 = vadd.f32 %v3532, %v3572
    %v3574 = vpop.f32.mrf.mxu0
    %v3575 = vadd.f32 %v3534, %v3574
    %v3576 = vpop.f32.mrf.mxu0
    %v3577 = vpop.f32.mrf.mxu0
    %3578 = vdwg.mxu0
    %3579 = vmatprep.subr.bf16.mxu0 %v3142
    %3580 = vmatpush1.bf16.msra.mxu0 %v3141
    %3581 = vmatprep.subr.bf16.mxu0 %v3138
    %3582 = vmatpush1.bf16.msra.mxu0 %v3137
    %3583 = vmatprep.subr.bf16.mxu0 %v3134
    %3584 = vmatpush1.bf16.msra.mxu0 %v3133
    %3585 = vmatprep.subr.bf16.mxu0 %v3130
    %3586 = vmatpush1.bf16.msra.mxu0 %v3129
    %3587 = vmatprep.subr.bf16.mxu0 %v3126
    %3588 = vmatpush1.bf16.msra.mxu0 %v3125
    %3589 = vmatprep.subr.bf16.mxu0 %v3122
    %3590 = vmatpush1.bf16.msra.mxu0 %v3121
    %3591 = vmatprep.subr.bf16.mxu0 %v3118
    %3592 = vmatpush1.bf16.msra.mxu0 %v3117
    %3593 = vmatprep.subr.bf16.mxu0 %v3114
    %3594 = vmatpush1.bf16.msra.mxu0 %v3113
    %3595 = vmatprep.subr.bf16.mxu0 %v3174
    %3596 = vmatpush2.bf16.msra.mxu0 %v3173
    %3597 = vmatprep.subr.bf16.mxu0 %v3170
    %3598 = vmatpush2.bf16.msra.mxu0 %v3169
    %3599 = vmatprep.subr.bf16.mxu0 %v3166
    %3600 = vmatpush2.bf16.msra.mxu0 %v3165
    %3601 = vmatprep.subr.bf16.mxu0 %v3162
    %3602 = vmatpush2.bf16.msra.mxu0 %v3161
    %3603 = vmatprep.subr.bf16.mxu0 %v3158
    %3604 = vmatpush2.bf16.msra.mxu0 %v3157
    %3605 = vmatprep.subr.bf16.mxu0 %v3154
    %3606 = vmatpush2.bf16.msra.mxu0 %v3153
    %3607 = vmatprep.subr.bf16.mxu0 %v3150
    %3608 = vmatpush2.bf16.msra.mxu0 %v3149
    %3609 = vmatprep.subr.bf16.mxu0 %v3146
    %3610 = vmatpush2.bf16.msra.mxu0 %v3145
    %3611 = vmatprep.mubr.bf16.mxu0 %v1958
    %3612 = vmatmul.mubr.bf16.gmra.mxu0 %v1957
    %v3613 = vpop.f32.mrf.mxu0
    %v3614 = vadd.f32 %v3573, %v3613
    %v3615 = vpop.f32.mrf.mxu0
    %v3616 = vadd.f32 %v3575, %v3615
    %v3617 = vpop.f32.mrf.mxu0
    %v3618 = vpop.f32.mrf.mxu0
    %3619 = vdwg.mxu0
    %3620 = vmatprep.subr.bf16.mxu0 %v3206
    %3621 = vmatpush1.bf16.msra.mxu0 %v3205
    %3622 = vmatprep.subr.bf16.mxu0 %v3202
    %3623 = vmatpush1.bf16.msra.mxu0 %v3201
    %3624 = vmatprep.subr.bf16.mxu0 %v3198
    %3625 = vmatpush1.bf16.msra.mxu0 %v3197
    %3626 = vmatprep.subr.bf16.mxu0 %v3194
    %3627 = vmatpush1.bf16.msra.mxu0 %v3193
    %3628 = vmatprep.subr.bf16.mxu0 %v3190
    %3629 = vmatpush1.bf16.msra.mxu0 %v3189
    %3630 = vmatprep.subr.bf16.mxu0 %v3186
    %3631 = vmatpush1.bf16.msra.mxu0 %v3185
    %3632 = vmatprep.subr.bf16.mxu0 %v3182
    %3633 = vmatpush1.bf16.msra.mxu0 %v3181
    %3634 = vmatprep.subr.bf16.mxu0 %v3178
    %3635 = vmatpush1.bf16.msra.mxu0 %v3177
    %3636 = vmatprep.subr.bf16.mxu0 %v3238
    %3637 = vmatpush2.bf16.msra.mxu0 %v3237
    %3638 = vmatprep.subr.bf16.mxu0 %v3234
    %3639 = vmatpush2.bf16.msra.mxu0 %v3233
    %3640 = vmatprep.subr.bf16.mxu0 %v3230
    %3641 = vmatpush2.bf16.msra.mxu0 %v3229
    %3642 = vmatprep.subr.bf16.mxu0 %v3226
    %3643 = vmatpush2.bf16.msra.mxu0 %v3225
    %3644 = vmatprep.subr.bf16.mxu0 %v3222
    %3645 = vmatpush2.bf16.msra.mxu0 %v3221
    %3646 = vmatprep.subr.bf16.mxu0 %v3218
    %3647 = vmatpush2.bf16.msra.mxu0 %v3217
    %3648 = vmatprep.subr.bf16.mxu0 %v3214
    %3649 = vmatpush2.bf16.msra.mxu0 %v3213
    %3650 = vmatprep.subr.bf16.mxu0 %v3210
    %3651 = vmatpush2.bf16.msra.mxu0 %v3209
    %3652 = vmatprep.mubr.bf16.mxu0 %v1960
    %3653 = vmatmul.mubr.bf16.gmra.mxu0 %v1959
    %v3654 = vpop.f32.mrf.mxu0
    %v3655 = vadd.f32 %v3614, %v3654
    %v3656 = vpop.f32.mrf.mxu0
    %v3657 = vadd.f32 %v3616, %v3656
    %v3658 = vpop.f32.mrf.mxu0
    %v3659 = vpop.f32.mrf.mxu0
    %3660 = vdwg.mxu0
    %3661 = vmatprep.subr.bf16.mxu0 %v3016
    %3662 = vmatpush1.bf16.msra.mxu0 %v3015
    %3663 = vmatprep.subr.bf16.mxu0 %v3012
    %3664 = vmatpush1.bf16.msra.mxu0 %v3011
    %3665 = vmatprep.subr.bf16.mxu0 %v3008
    %3666 = vmatpush1.bf16.msra.mxu0 %v3007
    %3667 = vmatprep.subr.bf16.mxu0 %v3004
    %3668 = vmatpush1.bf16.msra.mxu0 %v3003
    %3669 = vmatprep.subr.bf16.mxu0 %v3000
    %3670 = vmatpush1.bf16.msra.mxu0 %v2999
    %3671 = vmatprep.subr.bf16.mxu0 %v2996
    %3672 = vmatpush1.bf16.msra.mxu0 %v2995
    %3673 = vmatprep.subr.bf16.mxu0 %v2992
    %3674 = vmatpush1.bf16.msra.mxu0 %v2991
    %3675 = vmatprep.subr.bf16.mxu0 %v2988
    %3676 = vmatpush1.bf16.msra.mxu0 %v2987
    %3677 = vmatprep.subr.bf16.mxu0 %v3048
    %3678 = vmatpush2.bf16.msra.mxu0 %v3047
    %3679 = vmatprep.subr.bf16.mxu0 %v3044
    %3680 = vmatpush2.bf16.msra.mxu0 %v3043
    %3681 = vmatprep.subr.bf16.mxu0 %v3040
    %3682 = vmatpush2.bf16.msra.mxu0 %v3039
    %3683 = vmatprep.subr.bf16.mxu0 %v3036
    %3684 = vmatpush2.bf16.msra.mxu0 %v3035
    %3685 = vmatprep.subr.bf16.mxu0 %v3032
    %3686 = vmatpush2.bf16.msra.mxu0 %v3031
    %3687 = vmatprep.subr.bf16.mxu0 %v3028
    %3688 = vmatpush2.bf16.msra.mxu0 %v3027
    %3689 = vmatprep.subr.bf16.mxu0 %v3024
    %3690 = vmatpush2.bf16.msra.mxu0 %v3023
    %3691 = vmatprep.subr.bf16.mxu0 %v3020
    %3692 = vmatpush2.bf16.msra.mxu0 %v3019
    %3693 = vmatprep.mubr.bf16.mxu0 %v1954
    %3694 = vmatmul.mubr.bf16.gmra.mxu0 %v1953
    %v3695 = vpop.f32.mrf.mxu0
    %v3696 = vadd.f32 0.0, %v3695
    %v3697 = vpop.f32.mrf.mxu0
    %v3698 = vadd.f32 0.0, %v3697
    %v3699 = vpop.f32.mrf.mxu0
    %v3700 = vpop.f32.mrf.mxu0
    %3701 = vdwg.mxu0
    %3702 = vmatprep.subr.bf16.mxu0 %v3080
    %3703 = vmatpush1.bf16.msra.mxu0 %v3079
    %3704 = vmatprep.subr.bf16.mxu0 %v3076
    %3705 = vmatpush1.bf16.msra.mxu0 %v3075
    %3706 = vmatprep.subr.bf16.mxu0 %v3072
    %3707 = vmatpush1.bf16.msra.mxu0 %v3071
    %3708 = vmatprep.subr.bf16.mxu0 %v3068
    %3709 = vmatpush1.bf16.msra.mxu0 %v3067
    %3710 = vmatprep.subr.bf16.mxu0 %v3064
    %3711 = vmatpush1.bf16.msra.mxu0 %v3063
    %3712 = vmatprep.subr.bf16.mxu0 %v3060
    %3713 = vmatpush1.bf16.msra.mxu0 %v3059
    %3714 = vmatprep.subr.bf16.mxu0 %v3056
    %3715 = vmatpush1.bf16.msra.mxu0 %v3055
    %3716 = vmatprep.subr.bf16.mxu0 %v3052
    %3717 = vmatpush1.bf16.msra.mxu0 %v3051
    %3718 = vmatprep.subr.bf16.mxu0 %v3112
    %3719 = vmatpush2.bf16.msra.mxu0 %v3111
    %3720 = vmatprep.subr.bf16.mxu0 %v3108
    %3721 = vmatpush2.bf16.msra.mxu0 %v3107
    %3722 = vmatprep.subr.bf16.mxu0 %v3104
    %3723 = vmatpush2.bf16.msra.mxu0 %v3103
    %3724 = vmatprep.subr.bf16.mxu0 %v3100
    %3725 = vmatpush2.bf16.msra.mxu0 %v3099
    %3726 = vmatprep.subr.bf16.mxu0 %v3096
    %3727 = vmatpush2.bf16.msra.mxu0 %v3095
    %3728 = vmatprep.subr.bf16.mxu0 %v3092
    %3729 = vmatpush2.bf16.msra.mxu0 %v3091
    %3730 = vmatprep.subr.bf16.mxu0 %v3088
    %3731 = vmatpush2.bf16.msra.mxu0 %v3087
    %3732 = vmatprep.subr.bf16.mxu0 %v3084
    %3733 = vmatpush2.bf16.msra.mxu0 %v3083
    %3734 = vmatprep.mubr.bf16.mxu0 %v1956
    %3735 = vmatmul.mubr.bf16.gmra.mxu0 %v1955
    %v3736 = vpop.f32.mrf.mxu0
    %v3737 = vadd.f32 %v3696, %v3736
    %v3738 = vpop.f32.mrf.mxu0
    %v3739 = vadd.f32 %v3698, %v3738
    %v3740 = vpop.f32.mrf.mxu0
    %v3741 = vpop.f32.mrf.mxu0
    %3742 = vdwg.mxu0
    %3743 = vmatprep.subr.bf16.mxu0 %v3144
    %3744 = vmatpush1.bf16.msra.mxu0 %v3143
    %3745 = vmatprep.subr.bf16.mxu0 %v3140
    %3746 = vmatpush1.bf16.msra.mxu0 %v3139
    %3747 = vmatprep.subr.bf16.mxu0 %v3136
    %3748 = vmatpush1.bf16.msra.mxu0 %v3135
    %3749 = vmatprep.subr.bf16.mxu0 %v3132
    %3750 = vmatpush1.bf16.msra.mxu0 %v3131
    %3751 = vmatprep.subr.bf16.mxu0 %v3128
    %3752 = vmatpush1.bf16.msra.mxu0 %v3127
    %3753 = vmatprep.subr.bf16.mxu0 %v3124
    %3754 = vmatpush1.bf16.msra.mxu0 %v3123
    %3755 = vmatprep.subr.bf16.mxu0 %v3120
    %3756 = vmatpush1.bf16.msra.mxu0 %v3119
    %3757 = vmatprep.subr.bf16.mxu0 %v3116
    %3758 = vmatpush1.bf16.msra.mxu0 %v3115
    %3759 = vmatprep.subr.bf16.mxu0 %v3176
    %3760 = vmatpush2.bf16.msra.mxu0 %v3175
    %3761 = vmatprep.subr.bf16.mxu0 %v3172
    %3762 = vmatpush2.bf16.msra.mxu0 %v3171
    %3763 = vmatprep.subr.bf16.mxu0 %v3168
    %3764 = vmatpush2.bf16.msra.mxu0 %v3167
    %3765 = vmatprep.subr.bf16.mxu0 %v3164
    %3766 = vmatpush2.bf16.msra.mxu0 %v3163
    %3767 = vmatprep.subr.bf16.mxu0 %v3160
    %3768 = vmatpush2.bf16.msra.mxu0 %v3159
    %3769 = vmatprep.subr.bf16.mxu0 %v3156
    %3770 = vmatpush2.bf16.msra.mxu0 %v3155
    %3771 = vmatprep.subr.bf16.mxu0 %v3152
    %3772 = vmatpush2.bf16.msra.mxu0 %v3151
    %3773 = vmatprep.subr.bf16.mxu0 %v3148
    %3774 = vmatpush2.bf16.msra.mxu0 %v3147
    %3775 = vmatprep.mubr.bf16.mxu0 %v1958
    %3776 = vmatmul.mubr.bf16.gmra.mxu0 %v1957
    %v3777 = vpop.f32.mrf.mxu0
    %v3778 = vadd.f32 %v3737, %v3777
    %v3779 = vpop.f32.mrf.mxu0
    %v3780 = vadd.f32 %v3739, %v3779
    %v3781 = vpop.f32.mrf.mxu0
    %v3782 = vpop.f32.mrf.mxu0
    %3783 = vdwg.mxu0
    %3784 = vmatprep.subr.bf16.mxu0 %v3208
    %3785 = vmatpush1.bf16.msra.mxu0 %v3207
    %3786 = vmatprep.subr.bf16.mxu0 %v3204
    %3787 = vmatpush1.bf16.msra.mxu0 %v3203
    %3788 = vmatprep.subr.bf16.mxu0 %v3200
    %3789 = vmatpush1.bf16.msra.mxu0 %v3199
    %3790 = vmatprep.subr.bf16.mxu0 %v3196
    %3791 = vmatpush1.bf16.msra.mxu0 %v3195
    %3792 = vmatprep.subr.bf16.mxu0 %v3192
    %3793 = vmatpush1.bf16.msra.mxu0 %v3191
    %3794 = vmatprep.subr.bf16.mxu0 %v3188
    %3795 = vmatpush1.bf16.msra.mxu0 %v3187
    %3796 = vmatprep.subr.bf16.mxu0 %v3184
    %3797 = vmatpush1.bf16.msra.mxu0 %v3183
    %3798 = vmatprep.subr.bf16.mxu0 %v3180
    %3799 = vmatpush1.bf16.msra.mxu0 %v3179
    %3800 = vmatprep.subr.bf16.mxu0 %v3240
    %3801 = vmatpush2.bf16.msra.mxu0 %v3239
    %3802 = vmatprep.subr.bf16.mxu0 %v3236
    %3803 = vmatpush2.bf16.msra.mxu0 %v3235
    %3804 = vmatprep.subr.bf16.mxu0 %v3232
    %3805 = vmatpush2.bf16.msra.mxu0 %v3231
    %3806 = vmatprep.subr.bf16.mxu0 %v3228
    %3807 = vmatpush2.bf16.msra.mxu0 %v3227
    %3808 = vmatprep.subr.bf16.mxu0 %v3224
    %3809 = vmatpush2.bf16.msra.mxu0 %v3223
    %3810 = vmatprep.subr.bf16.mxu0 %v3220
    %3811 = vmatpush2.bf16.msra.mxu0 %v3219
    %3812 = vmatprep.subr.bf16.mxu0 %v3216
    %3813 = vmatpush2.bf16.msra.mxu0 %v3215
    %3814 = vmatprep.subr.bf16.mxu0 %v3212
    %3815 = vmatpush2.bf16.msra.mxu0 %v3211
    %3816 = vmatprep.mubr.bf16.mxu0 %v1960
    %3817 = vmatmul.mubr.bf16.gmra.mxu0 %v1959
    %v3818 = vpop.f32.mrf.mxu0
    %v3819 = vadd.f32 %v3778, %v3818
    %v3820 = vpop.f32.mrf.mxu0
    %v3821 = vadd.f32 %v3780, %v3820
    %v3822 = vpop.f32.mrf.mxu0
    %v3823 = vpop.f32.mrf.mxu0
    %3824 = vdwg.mxu0
    %v3825 = vld [vmem:[%s4] sm:$0xff]
    %v3826 = vld [vmem:[%s4 + $0x8] sm:$0xff]
    %v3827 = vld [vmem:[%s4 + $0x10] sm:$0xff]
    %v3828 = vld [vmem:[%s4 + $0x18] sm:$0xff]
    %v3829 = vld [vmem:[%s4 + $0x20] sm:$0xff]
    %v3830 = vld [vmem:[%s4 + $0x28] sm:$0xff]
    %v3831 = vld [vmem:[%s4 + $0x30] sm:$0xff]
    %v3832 = vld [vmem:[%s4 + $0x38] sm:$0xff]
    %v3833 = vld [vmem:[%s4 + $0x40] sm:$0xff]
    %v3834 = vld [vmem:[%s4 + $0x48] sm:$0xff]
    %v3835 = vld [vmem:[%s4 + $0x50] sm:$0xff]
    %v3836 = vld [vmem:[%s4 + $0x58] sm:$0xff]
    %v3837 = vld [vmem:[%s4 + $0x60] sm:$0xff]
    %v3838 = vld [vmem:[%s4 + $0x68] sm:$0xff]
    %v3839 = vld [vmem:[%s4 + $0x70] sm:$0xff]
    %v3840 = vld [vmem:[%s4 + $0x78] sm:$0xff]
    %v3841 = vld [vmem:[%s4 + $0x80] sm:$0xff]
    %v3842 = vld [vmem:[%s4 + $0x88] sm:$0xff]
    %v3843 = vld [vmem:[%s4 + $0x90] sm:$0xff]
    %v3844 = vld [vmem:[%s4 + $0x98] sm:$0xff]
    %v3845 = vld [vmem:[%s4 + $0xa0] sm:$0xff]
    %v3846 = vld [vmem:[%s4 + $0xa8] sm:$0xff]
    %v3847 = vld [vmem:[%s4 + $0xb0] sm:$0xff]
    %v3848 = vld [vmem:[%s4 + $0xb8] sm:$0xff]
    %v3849 = vld [vmem:[%s4 + $0xc0] sm:$0xff]
    %v3850 = vld [vmem:[%s4 + $0xc8] sm:$0xff]
    %v3851 = vld [vmem:[%s4 + $0xd0] sm:$0xff]
    %v3852 = vld [vmem:[%s4 + $0xd8] sm:$0xff]
    %v3853 = vld [vmem:[%s4 + $0xe0] sm:$0xff]
    %v3854 = vld [vmem:[%s4 + $0xe8] sm:$0xff]
    %v3855 = vld [vmem:[%s4 + $0xf0] sm:$0xff]
    %v3856 = vld [vmem:[%s4 + $0xf8] sm:$0xff]
    %v3857 = vld [vmem:[%s4 + $0x100] sm:$0xff]
    %v3858 = vld [vmem:[%s4 + $0x108] sm:$0xff]
    %v3859 = vld [vmem:[%s4 + $0x110] sm:$0xff]
    %v3860 = vld [vmem:[%s4 + $0x118] sm:$0xff]
    %v3861 = vld [vmem:[%s4 + $0x120] sm:$0xff]
    %v3862 = vld [vmem:[%s4 + $0x128] sm:$0xff]
    %v3863 = vld [vmem:[%s4 + $0x130] sm:$0xff]
    %v3864 = vld [vmem:[%s4 + $0x138] sm:$0xff]
    %v3865 = vld [vmem:[%s4 + $0x140] sm:$0xff]
    %v3866 = vld [vmem:[%s4 + $0x148] sm:$0xff]
    %v3867 = vld [vmem:[%s4 + $0x150] sm:$0xff]
    %v3868 = vld [vmem:[%s4 + $0x158] sm:$0xff]
    %v3869 = vld [vmem:[%s4 + $0x160] sm:$0xff]
    %v3870 = vld [vmem:[%s4 + $0x168] sm:$0xff]
    %v3871 = vld [vmem:[%s4 + $0x170] sm:$0xff]
    %v3872 = vld [vmem:[%s4 + $0x178] sm:$0xff]
    %v3873 = vld [vmem:[%s4 + $0x180] sm:$0xff]
    %v3874 = vld [vmem:[%s4 + $0x188] sm:$0xff]
    %v3875 = vld [vmem:[%s4 + $0x190] sm:$0xff]
    %v3876 = vld [vmem:[%s4 + $0x198] sm:$0xff]
    %v3877 = vld [vmem:[%s4 + $0x1a0] sm:$0xff]
    %v3878 = vld [vmem:[%s4 + $0x1a8] sm:$0xff]
    %v3879 = vld [vmem:[%s4 + $0x1b0] sm:$0xff]
    %v3880 = vld [vmem:[%s4 + $0x1b8] sm:$0xff]
    %v3881 = vld [vmem:[%s4 + $0x1c0] sm:$0xff]
    %v3882 = vld [vmem:[%s4 + $0x1c8] sm:$0xff]
    %v3883 = vld [vmem:[%s4 + $0x1d0] sm:$0xff]
    %v3884 = vld [vmem:[%s4 + $0x1d8] sm:$0xff]
    %v3885 = vld [vmem:[%s4 + $0x1e0] sm:$0xff]
    %v3886 = vld [vmem:[%s4 + $0x1e8] sm:$0xff]
    %v3887 = vld [vmem:[%s4 + $0x1f0] sm:$0xff]
    %v3888 = vld [vmem:[%s4 + $0x1f8] sm:$0xff]
    %v3889 = vld [vmem:[%s4 + $0x200] sm:$0xff]
    %v3890 = vld [vmem:[%s4 + $0x208] sm:$0xff]
    %v3891 = vld [vmem:[%s4 + $0x210] sm:$0xff]
    %v3892 = vld [vmem:[%s4 + $0x218] sm:$0xff]
    %v3893 = vld [vmem:[%s4 + $0x220] sm:$0xff]
    %v3894 = vld [vmem:[%s4 + $0x228] sm:$0xff]
    %v3895 = vld [vmem:[%s4 + $0x230] sm:$0xff]
    %v3896 = vld [vmem:[%s4 + $0x238] sm:$0xff]
    %v3897 = vld [vmem:[%s4 + $0x240] sm:$0xff]
    %v3898 = vld [vmem:[%s4 + $0x248] sm:$0xff]
    %v3899 = vld [vmem:[%s4 + $0x250] sm:$0xff]
    %v3900 = vld [vmem:[%s4 + $0x258] sm:$0xff]
    %v3901 = vld [vmem:[%s4 + $0x260] sm:$0xff]
    %v3902 = vld [vmem:[%s4 + $0x268] sm:$0xff]
    %v3903 = vld [vmem:[%s4 + $0x270] sm:$0xff]
    %v3904 = vld [vmem:[%s4 + $0x278] sm:$0xff]
    %v3905 = vld [vmem:[%s4 + $0x280] sm:$0xff]
    %v3906 = vld [vmem:[%s4 + $0x288] sm:$0xff]
    %v3907 = vld [vmem:[%s4 + $0x290] sm:$0xff]
    %v3908 = vld [vmem:[%s4 + $0x298] sm:$0xff]
    %v3909 = vld [vmem:[%s4 + $0x2a0] sm:$0xff]
    %v3910 = vld [vmem:[%s4 + $0x2a8] sm:$0xff]
    %v3911 = vld [vmem:[%s4 + $0x2b0] sm:$0xff]
    %v3912 = vld [vmem:[%s4 + $0x2b8] sm:$0xff]
    %v3913 = vld [vmem:[%s4 + $0x2c0] sm:$0xff]
    %v3914 = vld [vmem:[%s4 + $0x2c8] sm:$0xff]
    %v3915 = vld [vmem:[%s4 + $0x2d0] sm:$0xff]
    %v3916 = vld [vmem:[%s4 + $0x2d8] sm:$0xff]
    %v3917 = vld [vmem:[%s4 + $0x2e0] sm:$0xff]
    %v3918 = vld [vmem:[%s4 + $0x2e8] sm:$0xff]
    %v3919 = vld [vmem:[%s4 + $0x2f0] sm:$0xff]
    %v3920 = vld [vmem:[%s4 + $0x2f8] sm:$0xff]
    %v3921 = vld [vmem:[%s4 + $0x300] sm:$0xff]
    %v3922 = vld [vmem:[%s4 + $0x308] sm:$0xff]
    %v3923 = vld [vmem:[%s4 + $0x310] sm:$0xff]
    %v3924 = vld [vmem:[%s4 + $0x318] sm:$0xff]
    %v3925 = vld [vmem:[%s4 + $0x320] sm:$0xff]
    %v3926 = vld [vmem:[%s4 + $0x328] sm:$0xff]
    %v3927 = vld [vmem:[%s4 + $0x330] sm:$0xff]
    %v3928 = vld [vmem:[%s4 + $0x338] sm:$0xff]
    %v3929 = vld [vmem:[%s4 + $0x340] sm:$0xff]
    %v3930 = vld [vmem:[%s4 + $0x348] sm:$0xff]
    %v3931 = vld [vmem:[%s4 + $0x350] sm:$0xff]
    %v3932 = vld [vmem:[%s4 + $0x358] sm:$0xff]
    %v3933 = vld [vmem:[%s4 + $0x360] sm:$0xff]
    %v3934 = vld [vmem:[%s4 + $0x368] sm:$0xff]
    %v3935 = vld [vmem:[%s4 + $0x370] sm:$0xff]
    %v3936 = vld [vmem:[%s4 + $0x378] sm:$0xff]
    %v3937 = vld [vmem:[%s4 + $0x380] sm:$0xff]
    %v3938 = vld [vmem:[%s4 + $0x388] sm:$0xff]
    %v3939 = vld [vmem:[%s4 + $0x390] sm:$0xff]
    %v3940 = vld [vmem:[%s4 + $0x398] sm:$0xff]
    %v3941 = vld [vmem:[%s4 + $0x3a0] sm:$0xff]
    %v3942 = vld [vmem:[%s4 + $0x3a8] sm:$0xff]
    %v3943 = vld [vmem:[%s4 + $0x3b0] sm:$0xff]
    %v3944 = vld [vmem:[%s4 + $0x3b8] sm:$0xff]
    %v3945 = vld [vmem:[%s4 + $0x3c0] sm:$0xff]
    %v3946 = vld [vmem:[%s4 + $0x3c8] sm:$0xff]
    %v3947 = vld [vmem:[%s4 + $0x3d0] sm:$0xff]
    %v3948 = vld [vmem:[%s4 + $0x3d8] sm:$0xff]
    %v3949 = vld [vmem:[%s4 + $0x3e0] sm:$0xff]
    %v3950 = vld [vmem:[%s4 + $0x3e8] sm:$0xff]
    %v3951 = vld [vmem:[%s4 + $0x3f0] sm:$0xff]
    %v3952 = vld [vmem:[%s4 + $0x3f8] sm:$0xff]
    %v3953 = vld [vmem:[%s4 + $0x400] sm:$0xff]
    %v3954 = vld [vmem:[%s4 + $0x408] sm:$0xff]
    %v3955 = vld [vmem:[%s4 + $0x410] sm:$0xff]
    %v3956 = vld [vmem:[%s4 + $0x418] sm:$0xff]
    %v3957 = vld [vmem:[%s4 + $0x420] sm:$0xff]
    %v3958 = vld [vmem:[%s4 + $0x428] sm:$0xff]
    %v3959 = vld [vmem:[%s4 + $0x430] sm:$0xff]
    %v3960 = vld [vmem:[%s4 + $0x438] sm:$0xff]
    %v3961 = vld [vmem:[%s4 + $0x440] sm:$0xff]
    %v3962 = vld [vmem:[%s4 + $0x448] sm:$0xff]
    %v3963 = vld [vmem:[%s4 + $0x450] sm:$0xff]
    %v3964 = vld [vmem:[%s4 + $0x458] sm:$0xff]
    %v3965 = vld [vmem:[%s4 + $0x460] sm:$0xff]
    %v3966 = vld [vmem:[%s4 + $0x468] sm:$0xff]
    %v3967 = vld [vmem:[%s4 + $0x470] sm:$0xff]
    %v3968 = vld [vmem:[%s4 + $0x478] sm:$0xff]
    %v3969 = vld [vmem:[%s4 + $0x480] sm:$0xff]
    %v3970 = vld [vmem:[%s4 + $0x488] sm:$0xff]
    %v3971 = vld [vmem:[%s4 + $0x490] sm:$0xff]
    %v3972 = vld [vmem:[%s4 + $0x498] sm:$0xff]
    %v3973 = vld [vmem:[%s4 + $0x4a0] sm:$0xff]
    %v3974 = vld [vmem:[%s4 + $0x4a8] sm:$0xff]
    %v3975 = vld [vmem:[%s4 + $0x4b0] sm:$0xff]
    %v3976 = vld [vmem:[%s4 + $0x4b8] sm:$0xff]
    %v3977 = vld [vmem:[%s4 + $0x4c0] sm:$0xff]
    %v3978 = vld [vmem:[%s4 + $0x4c8] sm:$0xff]
    %v3979 = vld [vmem:[%s4 + $0x4d0] sm:$0xff]
    %v3980 = vld [vmem:[%s4 + $0x4d8] sm:$0xff]
    %v3981 = vld [vmem:[%s4 + $0x4e0] sm:$0xff]
    %v3982 = vld [vmem:[%s4 + $0x4e8] sm:$0xff]
    %v3983 = vld [vmem:[%s4 + $0x4f0] sm:$0xff]
    %v3984 = vld [vmem:[%s4 + $0x4f8] sm:$0xff]
    %v3985 = vld [vmem:[%s4 + $0x500] sm:$0xff]
    %v3986 = vld [vmem:[%s4 + $0x508] sm:$0xff]
    %v3987 = vld [vmem:[%s4 + $0x510] sm:$0xff]
    %v3988 = vld [vmem:[%s4 + $0x518] sm:$0xff]
    %v3989 = vld [vmem:[%s4 + $0x520] sm:$0xff]
    %v3990 = vld [vmem:[%s4 + $0x528] sm:$0xff]
    %v3991 = vld [vmem:[%s4 + $0x530] sm:$0xff]
    %v3992 = vld [vmem:[%s4 + $0x538] sm:$0xff]
    %v3993 = vld [vmem:[%s4 + $0x540] sm:$0xff]
    %v3994 = vld [vmem:[%s4 + $0x548] sm:$0xff]
    %v3995 = vld [vmem:[%s4 + $0x550] sm:$0xff]
    %v3996 = vld [vmem:[%s4 + $0x558] sm:$0xff]
    %v3997 = vld [vmem:[%s4 + $0x560] sm:$0xff]
    %v3998 = vld [vmem:[%s4 + $0x568] sm:$0xff]
    %v3999 = vld [vmem:[%s4 + $0x570] sm:$0xff]
    %v4000 = vld [vmem:[%s4 + $0x578] sm:$0xff]
    %v4001 = vld [vmem:[%s4 + $0x580] sm:$0xff]
    %v4002 = vld [vmem:[%s4 + $0x588] sm:$0xff]
    %v4003 = vld [vmem:[%s4 + $0x590] sm:$0xff]
    %v4004 = vld [vmem:[%s4 + $0x598] sm:$0xff]
    %v4005 = vld [vmem:[%s4 + $0x5a0] sm:$0xff]
    %v4006 = vld [vmem:[%s4 + $0x5a8] sm:$0xff]
    %v4007 = vld [vmem:[%s4 + $0x5b0] sm:$0xff]
    %v4008 = vld [vmem:[%s4 + $0x5b8] sm:$0xff]
    %v4009 = vld [vmem:[%s4 + $0x5c0] sm:$0xff]
    %v4010 = vld [vmem:[%s4 + $0x5c8] sm:$0xff]
    %v4011 = vld [vmem:[%s4 + $0x5d0] sm:$0xff]
    %v4012 = vld [vmem:[%s4 + $0x5d8] sm:$0xff]
    %v4013 = vld [vmem:[%s4 + $0x5e0] sm:$0xff]
    %v4014 = vld [vmem:[%s4 + $0x5e8] sm:$0xff]
    %v4015 = vld [vmem:[%s4 + $0x5f0] sm:$0xff]
    %v4016 = vld [vmem:[%s4 + $0x5f8] sm:$0xff]
    %v4017 = vld [vmem:[%s4 + $0x600] sm:$0xff]
    %v4018 = vld [vmem:[%s4 + $0x608] sm:$0xff]
    %v4019 = vld [vmem:[%s4 + $0x610] sm:$0xff]
    %v4020 = vld [vmem:[%s4 + $0x618] sm:$0xff]
    %v4021 = vld [vmem:[%s4 + $0x620] sm:$0xff]
    %v4022 = vld [vmem:[%s4 + $0x628] sm:$0xff]
    %v4023 = vld [vmem:[%s4 + $0x630] sm:$0xff]
    %v4024 = vld [vmem:[%s4 + $0x638] sm:$0xff]
    %v4025 = vld [vmem:[%s4 + $0x640] sm:$0xff]
    %v4026 = vld [vmem:[%s4 + $0x648] sm:$0xff]
    %v4027 = vld [vmem:[%s4 + $0x650] sm:$0xff]
    %v4028 = vld [vmem:[%s4 + $0x658] sm:$0xff]
    %v4029 = vld [vmem:[%s4 + $0x660] sm:$0xff]
    %v4030 = vld [vmem:[%s4 + $0x668] sm:$0xff]
    %v4031 = vld [vmem:[%s4 + $0x670] sm:$0xff]
    %v4032 = vld [vmem:[%s4 + $0x678] sm:$0xff]
    %v4033 = vld [vmem:[%s4 + $0x680] sm:$0xff]
    %v4034 = vld [vmem:[%s4 + $0x688] sm:$0xff]
    %v4035 = vld [vmem:[%s4 + $0x690] sm:$0xff]
    %v4036 = vld [vmem:[%s4 + $0x698] sm:$0xff]
    %v4037 = vld [vmem:[%s4 + $0x6a0] sm:$0xff]
    %v4038 = vld [vmem:[%s4 + $0x6a8] sm:$0xff]
    %v4039 = vld [vmem:[%s4 + $0x6b0] sm:$0xff]
    %v4040 = vld [vmem:[%s4 + $0x6b8] sm:$0xff]
    %v4041 = vld [vmem:[%s4 + $0x6c0] sm:$0xff]
    %v4042 = vld [vmem:[%s4 + $0x6c8] sm:$0xff]
    %v4043 = vld [vmem:[%s4 + $0x6d0] sm:$0xff]
    %v4044 = vld [vmem:[%s4 + $0x6d8] sm:$0xff]
    %v4045 = vld [vmem:[%s4 + $0x6e0] sm:$0xff]
    %v4046 = vld [vmem:[%s4 + $0x6e8] sm:$0xff]
    %v4047 = vld [vmem:[%s4 + $0x6f0] sm:$0xff]
    %v4048 = vld [vmem:[%s4 + $0x6f8] sm:$0xff]
    %v4049 = vld [vmem:[%s4 + $0x700] sm:$0xff]
    %v4050 = vld [vmem:[%s4 + $0x708] sm:$0xff]
    %v4051 = vld [vmem:[%s4 + $0x710] sm:$0xff]
    %v4052 = vld [vmem:[%s4 + $0x718] sm:$0xff]
    %v4053 = vld [vmem:[%s4 + $0x720] sm:$0xff]
    %v4054 = vld [vmem:[%s4 + $0x728] sm:$0xff]
    %v4055 = vld [vmem:[%s4 + $0x730] sm:$0xff]
    %v4056 = vld [vmem:[%s4 + $0x738] sm:$0xff]
    %v4057 = vld [vmem:[%s4 + $0x740] sm:$0xff]
    %v4058 = vld [vmem:[%s4 + $0x748] sm:$0xff]
    %v4059 = vld [vmem:[%s4 + $0x750] sm:$0xff]
    %v4060 = vld [vmem:[%s4 + $0x758] sm:$0xff]
    %v4061 = vld [vmem:[%s4 + $0x760] sm:$0xff]
    %v4062 = vld [vmem:[%s4 + $0x768] sm:$0xff]
    %v4063 = vld [vmem:[%s4 + $0x770] sm:$0xff]
    %v4064 = vld [vmem:[%s4 + $0x778] sm:$0xff]
    %v4065 = vld [vmem:[%s4 + $0x780] sm:$0xff]
    %v4066 = vld [vmem:[%s4 + $0x788] sm:$0xff]
    %v4067 = vld [vmem:[%s4 + $0x790] sm:$0xff]
    %v4068 = vld [vmem:[%s4 + $0x798] sm:$0xff]
    %v4069 = vld [vmem:[%s4 + $0x7a0] sm:$0xff]
    %v4070 = vld [vmem:[%s4 + $0x7a8] sm:$0xff]
    %v4071 = vld [vmem:[%s4 + $0x7b0] sm:$0xff]
    %v4072 = vld [vmem:[%s4 + $0x7b8] sm:$0xff]
    %v4073 = vld [vmem:[%s4 + $0x7c0] sm:$0xff]
    %v4074 = vld [vmem:[%s4 + $0x7c8] sm:$0xff]
    %v4075 = vld [vmem:[%s4 + $0x7d0] sm:$0xff]
    %v4076 = vld [vmem:[%s4 + $0x7d8] sm:$0xff]
    %v4077 = vld [vmem:[%s4 + $0x7e0] sm:$0xff]
    %v4078 = vld [vmem:[%s4 + $0x7e8] sm:$0xff]
    %v4079 = vld [vmem:[%s4 + $0x7f0] sm:$0xff]
    %v4080 = vld [vmem:[%s4 + $0x7f8] sm:$0xff]
    %v4089 = vrot.slane %v1953, 1
    %v4090 = vrot.slane %v1954, 1
    %v4091 = vrot.slane %v1955, 1
    %v4092 = vrot.slane %v1956, 1
    %v4093 = vrot.slane %v1957, 1
    %v4094 = vrot.slane %v1958, 1
    %v4095 = vrot.slane %v1959, 1
    %v4096 = vrot.slane %v1960, 1
    %v4361 = vunpack.c.l.b16 %v3825
    %v4362 = vunpack.c.h.b16 %v3825
    %v4363 = vunpack.c.l.b16 %v3826
    %v4364 = vunpack.c.h.b16 %v3826
    %v4365 = vunpack.c.l.b16 %v3827
    %v4366 = vunpack.c.h.b16 %v3827
    %v4367 = vunpack.c.l.b16 %v3828
    %v4368 = vunpack.c.h.b16 %v3828
    %v4369 = vunpack.c.l.b16 %v3829
    %v4370 = vunpack.c.h.b16 %v3829
    %v4371 = vunpack.c.l.b16 %v3830
    %v4372 = vunpack.c.h.b16 %v3830
    %v4373 = vunpack.c.l.b16 %v3831
    %v4374 = vunpack.c.h.b16 %v3831
    %v4375 = vunpack.c.l.b16 %v3832
    %v4376 = vunpack.c.h.b16 %v3832
    %v4377 = vunpack.c.l.b16 %v3833
    %v4378 = vunpack.c.h.b16 %v3833
    %v4379 = vunpack.c.l.b16 %v3834
    %v4380 = vunpack.c.h.b16 %v3834
    %v4381 = vunpack.c.l.b16 %v3835
    %v4382 = vunpack.c.h.b16 %v3835
    %v4383 = vunpack.c.l.b16 %v3836
    %v4384 = vunpack.c.h.b16 %v3836
    %v4385 = vunpack.c.l.b16 %v3837
    %v4386 = vunpack.c.h.b16 %v3837
    %v4387 = vunpack.c.l.b16 %v3838
    %v4388 = vunpack.c.h.b16 %v3838
    %v4389 = vunpack.c.l.b16 %v3839
    %v4390 = vunpack.c.h.b16 %v3839
    %v4391 = vunpack.c.l.b16 %v3840
    %v4392 = vunpack.c.h.b16 %v3840
    %v4393 = vunpack.c.l.b16 %v3841
    %v4394 = vunpack.c.h.b16 %v3841
    %v4395 = vunpack.c.l.b16 %v3842
    %v4396 = vunpack.c.h.b16 %v3842
    %v4397 = vunpack.c.l.b16 %v3843
    %v4398 = vunpack.c.h.b16 %v3843
    %v4399 = vunpack.c.l.b16 %v3844
    %v4400 = vunpack.c.h.b16 %v3844
    %v4401 = vunpack.c.l.b16 %v3845
    %v4402 = vunpack.c.h.b16 %v3845
    %v4403 = vunpack.c.l.b16 %v3846
    %v4404 = vunpack.c.h.b16 %v3846
    %v4405 = vunpack.c.l.b16 %v3847
    %v4406 = vunpack.c.h.b16 %v3847
    %v4407 = vunpack.c.l.b16 %v3848
    %v4408 = vunpack.c.h.b16 %v3848
    %v4409 = vunpack.c.l.b16 %v3849
    %v4410 = vunpack.c.h.b16 %v3849
    %v4411 = vunpack.c.l.b16 %v3850
    %v4412 = vunpack.c.h.b16 %v3850
    %v4413 = vunpack.c.l.b16 %v3851
    %v4414 = vunpack.c.h.b16 %v3851
    %v4415 = vunpack.c.l.b16 %v3852
    %v4416 = vunpack.c.h.b16 %v3852
    %v4417 = vunpack.c.l.b16 %v3853
    %v4418 = vunpack.c.h.b16 %v3853
    %v4419 = vunpack.c.l.b16 %v3854
    %v4420 = vunpack.c.h.b16 %v3854
    %v4421 = vunpack.c.l.b16 %v3855
    %v4422 = vunpack.c.h.b16 %v3855
    %v4423 = vunpack.c.l.b16 %v3856
    %v4424 = vunpack.c.h.b16 %v3856
    %v4425 = vunpack.c.l.b16 %v3857
    %v4426 = vunpack.c.h.b16 %v3857
    %v4427 = vunpack.c.l.b16 %v3858
    %v4428 = vunpack.c.h.b16 %v3858
    %v4429 = vunpack.c.l.b16 %v3859
    %v4430 = vunpack.c.h.b16 %v3859
    %v4431 = vunpack.c.l.b16 %v3860
    %v4432 = vunpack.c.h.b16 %v3860
    %v4433 = vunpack.c.l.b16 %v3861
    %v4434 = vunpack.c.h.b16 %v3861
    %v4435 = vunpack.c.l.b16 %v3862
    %v4436 = vunpack.c.h.b16 %v3862
    %v4437 = vunpack.c.l.b16 %v3863
    %v4438 = vunpack.c.h.b16 %v3863
    %v4439 = vunpack.c.l.b16 %v3864
    %v4440 = vunpack.c.h.b16 %v3864
    %v4441 = vunpack.c.l.b16 %v3865
    %v4442 = vunpack.c.h.b16 %v3865
    %v4443 = vunpack.c.l.b16 %v3866
    %v4444 = vunpack.c.h.b16 %v3866
    %v4445 = vunpack.c.l.b16 %v3867
    %v4446 = vunpack.c.h.b16 %v3867
    %v4447 = vunpack.c.l.b16 %v3868
    %v4448 = vunpack.c.h.b16 %v3868
    %v4449 = vunpack.c.l.b16 %v3869
    %v4450 = vunpack.c.h.b16 %v3869
    %v4451 = vunpack.c.l.b16 %v3870
    %v4452 = vunpack.c.h.b16 %v3870
    %v4453 = vunpack.c.l.b16 %v3871
    %v4454 = vunpack.c.h.b16 %v3871
    %v4455 = vunpack.c.l.b16 %v3872
    %v4456 = vunpack.c.h.b16 %v3872
    %v4457 = vunpack.c.l.b16 %v3873
    %v4458 = vunpack.c.h.b16 %v3873
    %v4459 = vunpack.c.l.b16 %v3874
    %v4460 = vunpack.c.h.b16 %v3874
    %v4461 = vunpack.c.l.b16 %v3875
    %v4462 = vunpack.c.h.b16 %v3875
    %v4463 = vunpack.c.l.b16 %v3876
    %v4464 = vunpack.c.h.b16 %v3876
    %v4465 = vunpack.c.l.b16 %v3877
    %v4466 = vunpack.c.h.b16 %v3877
    %v4467 = vunpack.c.l.b16 %v3878
    %v4468 = vunpack.c.h.b16 %v3878
    %v4469 = vunpack.c.l.b16 %v3879
    %v4470 = vunpack.c.h.b16 %v3879
    %v4471 = vunpack.c.l.b16 %v3880
    %v4472 = vunpack.c.h.b16 %v3880
    %v4473 = vunpack.c.l.b16 %v3881
    %v4474 = vunpack.c.h.b16 %v3881
    %v4475 = vunpack.c.l.b16 %v3882
    %v4476 = vunpack.c.h.b16 %v3882
    %v4477 = vunpack.c.l.b16 %v3883
    %v4478 = vunpack.c.h.b16 %v3883
    %v4479 = vunpack.c.l.b16 %v3884
    %v4480 = vunpack.c.h.b16 %v3884
    %v4481 = vunpack.c.l.b16 %v3885
    %v4482 = vunpack.c.h.b16 %v3885
    %v4483 = vunpack.c.l.b16 %v3886
    %v4484 = vunpack.c.h.b16 %v3886
    %v4485 = vunpack.c.l.b16 %v3887
    %v4486 = vunpack.c.h.b16 %v3887
    %v4487 = vunpack.c.l.b16 %v3888
    %v4488 = vunpack.c.h.b16 %v3888
    %v4489 = vunpack.c.l.b16 %v3889
    %v4490 = vunpack.c.h.b16 %v3889
    %v4491 = vunpack.c.l.b16 %v3890
    %v4492 = vunpack.c.h.b16 %v3890
    %v4493 = vunpack.c.l.b16 %v3891
    %v4494 = vunpack.c.h.b16 %v3891
    %v4495 = vunpack.c.l.b16 %v3892
    %v4496 = vunpack.c.h.b16 %v3892
    %v4497 = vunpack.c.l.b16 %v3893
    %v4498 = vunpack.c.h.b16 %v3893
    %v4499 = vunpack.c.l.b16 %v3894
    %v4500 = vunpack.c.h.b16 %v3894
    %v4501 = vunpack.c.l.b16 %v3895
    %v4502 = vunpack.c.h.b16 %v3895
    %v4503 = vunpack.c.l.b16 %v3896
    %v4504 = vunpack.c.h.b16 %v3896
    %v4505 = vunpack.c.l.b16 %v3897
    %v4506 = vunpack.c.h.b16 %v3897
    %v4507 = vunpack.c.l.b16 %v3898
    %v4508 = vunpack.c.h.b16 %v3898
    %v4509 = vunpack.c.l.b16 %v3899
    %v4510 = vunpack.c.h.b16 %v3899
    %v4511 = vunpack.c.l.b16 %v3900
    %v4512 = vunpack.c.h.b16 %v3900
    %v4513 = vunpack.c.l.b16 %v3901
    %v4514 = vunpack.c.h.b16 %v3901
    %v4515 = vunpack.c.l.b16 %v3902
    %v4516 = vunpack.c.h.b16 %v3902
    %v4517 = vunpack.c.l.b16 %v3903
    %v4518 = vunpack.c.h.b16 %v3903
    %v4519 = vunpack.c.l.b16 %v3904
    %v4520 = vunpack.c.h.b16 %v3904
    %v4521 = vunpack.c.l.b16 %v3905
    %v4522 = vunpack.c.h.b16 %v3905
    %v4523 = vunpack.c.l.b16 %v3906
    %v4524 = vunpack.c.h.b16 %v3906
    %v4525 = vunpack.c.l.b16 %v3907
    %v4526 = vunpack.c.h.b16 %v3907
    %v4527 = vunpack.c.l.b16 %v3908
    %v4528 = vunpack.c.h.b16 %v3908
    %v4529 = vunpack.c.l.b16 %v3909
    %v4530 = vunpack.c.h.b16 %v3909
    %v4531 = vunpack.c.l.b16 %v3910
    %v4532 = vunpack.c.h.b16 %v3910
    %v4533 = vunpack.c.l.b16 %v3911
    %v4534 = vunpack.c.h.b16 %v3911
    %v4535 = vunpack.c.l.b16 %v3912
    %v4536 = vunpack.c.h.b16 %v3912
    %v4537 = vunpack.c.l.b16 %v3913
    %v4538 = vunpack.c.h.b16 %v3913
    %v4539 = vunpack.c.l.b16 %v3914
    %v4540 = vunpack.c.h.b16 %v3914
    %v4541 = vunpack.c.l.b16 %v3915
    %v4542 = vunpack.c.h.b16 %v3915
    %v4543 = vunpack.c.l.b16 %v3916
    %v4544 = vunpack.c.h.b16 %v3916
    %v4545 = vunpack.c.l.b16 %v3917
    %v4546 = vunpack.c.h.b16 %v3917
    %v4547 = vunpack.c.l.b16 %v3918
    %v4548 = vunpack.c.h.b16 %v3918
    %v4549 = vunpack.c.l.b16 %v3919
    %v4550 = vunpack.c.h.b16 %v3919
    %v4551 = vunpack.c.l.b16 %v3920
    %v4552 = vunpack.c.h.b16 %v3920
    %v4553 = vunpack.c.l.b16 %v3921
    %v4554 = vunpack.c.h.b16 %v3921
    %v4555 = vunpack.c.l.b16 %v3922
    %v4556 = vunpack.c.h.b16 %v3922
    %v4557 = vunpack.c.l.b16 %v3923
    %v4558 = vunpack.c.h.b16 %v3923
    %v4559 = vunpack.c.l.b16 %v3924
    %v4560 = vunpack.c.h.b16 %v3924
    %v4561 = vunpack.c.l.b16 %v3925
    %v4562 = vunpack.c.h.b16 %v3925
    %v4563 = vunpack.c.l.b16 %v3926
    %v4564 = vunpack.c.h.b16 %v3926
    %v4565 = vunpack.c.l.b16 %v3927
    %v4566 = vunpack.c.h.b16 %v3927
    %v4567 = vunpack.c.l.b16 %v3928
    %v4568 = vunpack.c.h.b16 %v3928
    %v4569 = vunpack.c.l.b16 %v3929
    %v4570 = vunpack.c.h.b16 %v3929
    %v4571 = vunpack.c.l.b16 %v3930
    %v4572 = vunpack.c.h.b16 %v3930
    %v4573 = vunpack.c.l.b16 %v3931
    %v4574 = vunpack.c.h.b16 %v3931
    %v4575 = vunpack.c.l.b16 %v3932
    %v4576 = vunpack.c.h.b16 %v3932
    %v4577 = vunpack.c.l.b16 %v3933
    %v4578 = vunpack.c.h.b16 %v3933
    %v4579 = vunpack.c.l.b16 %v3934
    %v4580 = vunpack.c.h.b16 %v3934
    %v4581 = vunpack.c.l.b16 %v3935
    %v4582 = vunpack.c.h.b16 %v3935
    %v4583 = vunpack.c.l.b16 %v3936
    %v4584 = vunpack.c.h.b16 %v3936
    %v4585 = vunpack.c.l.b16 %v3937
    %v4586 = vunpack.c.h.b16 %v3937
    %v4587 = vunpack.c.l.b16 %v3938
    %v4588 = vunpack.c.h.b16 %v3938
    %v4589 = vunpack.c.l.b16 %v3939
    %v4590 = vunpack.c.h.b16 %v3939
    %v4591 = vunpack.c.l.b16 %v3940
    %v4592 = vunpack.c.h.b16 %v3940
    %v4593 = vunpack.c.l.b16 %v3941
    %v4594 = vunpack.c.h.b16 %v3941
    %v4595 = vunpack.c.l.b16 %v3942
    %v4596 = vunpack.c.h.b16 %v3942
    %v4597 = vunpack.c.l.b16 %v3943
    %v4598 = vunpack.c.h.b16 %v3943
    %v4599 = vunpack.c.l.b16 %v3944
    %v4600 = vunpack.c.h.b16 %v3944
    %v4601 = vunpack.c.l.b16 %v3945
    %v4602 = vunpack.c.h.b16 %v3945
    %v4603 = vunpack.c.l.b16 %v3946
    %v4604 = vunpack.c.h.b16 %v3946
    %v4605 = vunpack.c.l.b16 %v3947
    %v4606 = vunpack.c.h.b16 %v3947
    %v4607 = vunpack.c.l.b16 %v3948
    %v4608 = vunpack.c.h.b16 %v3948
    %v4609 = vunpack.c.l.b16 %v3949
    %v4610 = vunpack.c.h.b16 %v3949
    %v4611 = vunpack.c.l.b16 %v3950
    %v4612 = vunpack.c.h.b16 %v3950
    %v4613 = vunpack.c.l.b16 %v3951
    %v4614 = vunpack.c.h.b16 %v3951
    %v4615 = vunpack.c.l.b16 %v3952
    %v4616 = vunpack.c.h.b16 %v3952
    %v4617 = vunpack.c.l.b16 %v3953
    %v4618 = vunpack.c.h.b16 %v3953
    %v4619 = vunpack.c.l.b16 %v3954
    %v4620 = vunpack.c.h.b16 %v3954
    %v4621 = vunpack.c.l.b16 %v3955
    %v4622 = vunpack.c.h.b16 %v3955
    %v4623 = vunpack.c.l.b16 %v3956
    %v4624 = vunpack.c.h.b16 %v3956
    %v4625 = vunpack.c.l.b16 %v3957
    %v4626 = vunpack.c.h.b16 %v3957
    %v4627 = vunpack.c.l.b16 %v3958
    %v4628 = vunpack.c.h.b16 %v3958
    %v4629 = vunpack.c.l.b16 %v3959
    %v4630 = vunpack.c.h.b16 %v3959
    %v4631 = vunpack.c.l.b16 %v3960
    %v4632 = vunpack.c.h.b16 %v3960
    %v4633 = vunpack.c.l.b16 %v3961
    %v4634 = vunpack.c.h.b16 %v3961
    %v4635 = vunpack.c.l.b16 %v3962
    %v4636 = vunpack.c.h.b16 %v3962
    %v4637 = vunpack.c.l.b16 %v3963
    %v4638 = vunpack.c.h.b16 %v3963
    %v4639 = vunpack.c.l.b16 %v3964
    %v4640 = vunpack.c.h.b16 %v3964
    %v4641 = vunpack.c.l.b16 %v3965
    %v4642 = vunpack.c.h.b16 %v3965
    %v4643 = vunpack.c.l.b16 %v3966
    %v4644 = vunpack.c.h.b16 %v3966
    %v4645 = vunpack.c.l.b16 %v3967
    %v4646 = vunpack.c.h.b16 %v3967
    %v4647 = vunpack.c.l.b16 %v3968
    %v4648 = vunpack.c.h.b16 %v3968
    %v4649 = vunpack.c.l.b16 %v3969
    %v4650 = vunpack.c.h.b16 %v3969
    %v4651 = vunpack.c.l.b16 %v3970
    %v4652 = vunpack.c.h.b16 %v3970
    %v4653 = vunpack.c.l.b16 %v3971
    %v4654 = vunpack.c.h.b16 %v3971
    %v4655 = vunpack.c.l.b16 %v3972
    %v4656 = vunpack.c.h.b16 %v3972
    %v4657 = vunpack.c.l.b16 %v3973
    %v4658 = vunpack.c.h.b16 %v3973
    %v4659 = vunpack.c.l.b16 %v3974
    %v4660 = vunpack.c.h.b16 %v3974
    %v4661 = vunpack.c.l.b16 %v3975
    %v4662 = vunpack.c.h.b16 %v3975
    %v4663 = vunpack.c.l.b16 %v3976
    %v4664 = vunpack.c.h.b16 %v3976
    %v4665 = vunpack.c.l.b16 %v3977
    %v4666 = vunpack.c.h.b16 %v3977
    %v4667 = vunpack.c.l.b16 %v3978
    %v4668 = vunpack.c.h.b16 %v3978
    %v4669 = vunpack.c.l.b16 %v3979
    %v4670 = vunpack.c.h.b16 %v3979
    %v4671 = vunpack.c.l.b16 %v3980
    %v4672 = vunpack.c.h.b16 %v3980
    %v4673 = vunpack.c.l.b16 %v3981
    %v4674 = vunpack.c.h.b16 %v3981
    %v4675 = vunpack.c.l.b16 %v3982
    %v4676 = vunpack.c.h.b16 %v3982
    %v4677 = vunpack.c.l.b16 %v3983
    %v4678 = vunpack.c.h.b16 %v3983
    %v4679 = vunpack.c.l.b16 %v3984
    %v4680 = vunpack.c.h.b16 %v3984
    %v4681 = vunpack.c.l.b16 %v3985
    %v4682 = vunpack.c.h.b16 %v3985
    %v4683 = vunpack.c.l.b16 %v3986
    %v4684 = vunpack.c.h.b16 %v3986
    %v4685 = vunpack.c.l.b16 %v3987
    %v4686 = vunpack.c.h.b16 %v3987
    %v4687 = vunpack.c.l.b16 %v3988
    %v4688 = vunpack.c.h.b16 %v3988
    %v4689 = vunpack.c.l.b16 %v3989
    %v4690 = vunpack.c.h.b16 %v3989
    %v4691 = vunpack.c.l.b16 %v3990
    %v4692 = vunpack.c.h.b16 %v3990
    %v4693 = vunpack.c.l.b16 %v3991
    %v4694 = vunpack.c.h.b16 %v3991
    %v4695 = vunpack.c.l.b16 %v3992
    %v4696 = vunpack.c.h.b16 %v3992
    %v4697 = vunpack.c.l.b16 %v3993
    %v4698 = vunpack.c.h.b16 %v3993
    %v4699 = vunpack.c.l.b16 %v3994
    %v4700 = vunpack.c.h.b16 %v3994
    %v4701 = vunpack.c.l.b16 %v3995
    %v4702 = vunpack.c.h.b16 %v3995
    %v4703 = vunpack.c.l.b16 %v3996
    %v4704 = vunpack.c.h.b16 %v3996
    %v4705 = vunpack.c.l.b16 %v3997
    %v4706 = vunpack.c.h.b16 %v3997
    %v4707 = vunpack.c.l.b16 %v3998
    %v4708 = vunpack.c.h.b16 %v3998
    %v4709 = vunpack.c.l.b16 %v3999
    %v4710 = vunpack.c.h.b16 %v3999
    %v4711 = vunpack.c.l.b16 %v4000
    %v4712 = vunpack.c.h.b16 %v4000
    %v4713 = vunpack.c.l.b16 %v4001
    %v4714 = vunpack.c.h.b16 %v4001
    %v4715 = vunpack.c.l.b16 %v4002
    %v4716 = vunpack.c.h.b16 %v4002
    %v4717 = vunpack.c.l.b16 %v4003
    %v4718 = vunpack.c.h.b16 %v4003
    %v4719 = vunpack.c.l.b16 %v4004
    %v4720 = vunpack.c.h.b16 %v4004
    %v4721 = vunpack.c.l.b16 %v4005
    %v4722 = vunpack.c.h.b16 %v4005
    %v4723 = vunpack.c.l.b16 %v4006
    %v4724 = vunpack.c.h.b16 %v4006
    %v4725 = vunpack.c.l.b16 %v4007
    %v4726 = vunpack.c.h.b16 %v4007
    %v4727 = vunpack.c.l.b16 %v4008
    %v4728 = vunpack.c.h.b16 %v4008
    %v4729 = vunpack.c.l.b16 %v4009
    %v4730 = vunpack.c.h.b16 %v4009
    %v4731 = vunpack.c.l.b16 %v4010
    %v4732 = vunpack.c.h.b16 %v4010
    %v4733 = vunpack.c.l.b16 %v4011
    %v4734 = vunpack.c.h.b16 %v4011
    %v4735 = vunpack.c.l.b16 %v4012
    %v4736 = vunpack.c.h.b16 %v4012
    %v4737 = vunpack.c.l.b16 %v4013
    %v4738 = vunpack.c.h.b16 %v4013
    %v4739 = vunpack.c.l.b16 %v4014
    %v4740 = vunpack.c.h.b16 %v4014
    %v4741 = vunpack.c.l.b16 %v4015
    %v4742 = vunpack.c.h.b16 %v4015
    %v4743 = vunpack.c.l.b16 %v4016
    %v4744 = vunpack.c.h.b16 %v4016
    %v4745 = vunpack.c.l.b16 %v4017
    %v4746 = vunpack.c.h.b16 %v4017
    %v4747 = vunpack.c.l.b16 %v4018
    %v4748 = vunpack.c.h.b16 %v4018
    %v4749 = vunpack.c.l.b16 %v4019
    %v4750 = vunpack.c.h.b16 %v4019
    %v4751 = vunpack.c.l.b16 %v4020
    %v4752 = vunpack.c.h.b16 %v4020
    %v4753 = vunpack.c.l.b16 %v4021
    %v4754 = vunpack.c.h.b16 %v4021
    %v4755 = vunpack.c.l.b16 %v4022
    %v4756 = vunpack.c.h.b16 %v4022
    %v4757 = vunpack.c.l.b16 %v4023
    %v4758 = vunpack.c.h.b16 %v4023
    %v4759 = vunpack.c.l.b16 %v4024
    %v4760 = vunpack.c.h.b16 %v4024
    %v4761 = vunpack.c.l.b16 %v4025
    %v4762 = vunpack.c.h.b16 %v4025
    %v4763 = vunpack.c.l.b16 %v4026
    %v4764 = vunpack.c.h.b16 %v4026
    %v4765 = vunpack.c.l.b16 %v4027
    %v4766 = vunpack.c.h.b16 %v4027
    %v4767 = vunpack.c.l.b16 %v4028
    %v4768 = vunpack.c.h.b16 %v4028
    %v4769 = vunpack.c.l.b16 %v4029
    %v4770 = vunpack.c.h.b16 %v4029
    %v4771 = vunpack.c.l.b16 %v4030
    %v4772 = vunpack.c.h.b16 %v4030
    %v4773 = vunpack.c.l.b16 %v4031
    %v4774 = vunpack.c.h.b16 %v4031
    %v4775 = vunpack.c.l.b16 %v4032
    %v4776 = vunpack.c.h.b16 %v4032
    %v4777 = vunpack.c.l.b16 %v4033
    %v4778 = vunpack.c.h.b16 %v4033
    %v4779 = vunpack.c.l.b16 %v4034
    %v4780 = vunpack.c.h.b16 %v4034
    %v4781 = vunpack.c.l.b16 %v4035
    %v4782 = vunpack.c.h.b16 %v4035
    %v4783 = vunpack.c.l.b16 %v4036
    %v4784 = vunpack.c.h.b16 %v4036
    %v4785 = vunpack.c.l.b16 %v4037
    %v4786 = vunpack.c.h.b16 %v4037
    %v4787 = vunpack.c.l.b16 %v4038
    %v4788 = vunpack.c.h.b16 %v4038
    %v4789 = vunpack.c.l.b16 %v4039
    %v4790 = vunpack.c.h.b16 %v4039
    %v4791 = vunpack.c.l.b16 %v4040
    %v4792 = vunpack.c.h.b16 %v4040
    %v4793 = vunpack.c.l.b16 %v4041
    %v4794 = vunpack.c.h.b16 %v4041
    %v4795 = vunpack.c.l.b16 %v4042
    %v4796 = vunpack.c.h.b16 %v4042
    %v4797 = vunpack.c.l.b16 %v4043
    %v4798 = vunpack.c.h.b16 %v4043
    %v4799 = vunpack.c.l.b16 %v4044
    %v4800 = vunpack.c.h.b16 %v4044
    %v4801 = vunpack.c.l.b16 %v4045
    %v4802 = vunpack.c.h.b16 %v4045
    %v4803 = vunpack.c.l.b16 %v4046
    %v4804 = vunpack.c.h.b16 %v4046
    %v4805 = vunpack.c.l.b16 %v4047
    %v4806 = vunpack.c.h.b16 %v4047
    %v4807 = vunpack.c.l.b16 %v4048
    %v4808 = vunpack.c.h.b16 %v4048
    %v4809 = vunpack.c.l.b16 %v4049
    %v4810 = vunpack.c.h.b16 %v4049
    %v4811 = vunpack.c.l.b16 %v4050
    %v4812 = vunpack.c.h.b16 %v4050
    %v4813 = vunpack.c.l.b16 %v4051
    %v4814 = vunpack.c.h.b16 %v4051
    %v4815 = vunpack.c.l.b16 %v4052
    %v4816 = vunpack.c.h.b16 %v4052
    %v4817 = vunpack.c.l.b16 %v4053
    %v4818 = vunpack.c.h.b16 %v4053
    %v4819 = vunpack.c.l.b16 %v4054
    %v4820 = vunpack.c.h.b16 %v4054
    %v4821 = vunpack.c.l.b16 %v4055
    %v4822 = vunpack.c.h.b16 %v4055
    %v4823 = vunpack.c.l.b16 %v4056
    %v4824 = vunpack.c.h.b16 %v4056
    %v4825 = vunpack.c.l.b16 %v4057
    %v4826 = vunpack.c.h.b16 %v4057
    %v4827 = vunpack.c.l.b16 %v4058
    %v4828 = vunpack.c.h.b16 %v4058
    %v4829 = vunpack.c.l.b16 %v4059
    %v4830 = vunpack.c.h.b16 %v4059
    %v4831 = vunpack.c.l.b16 %v4060
    %v4832 = vunpack.c.h.b16 %v4060
    %v4833 = vunpack.c.l.b16 %v4061
    %v4834 = vunpack.c.h.b16 %v4061
    %v4835 = vunpack.c.l.b16 %v4062
    %v4836 = vunpack.c.h.b16 %v4062
    %v4837 = vunpack.c.l.b16 %v4063
    %v4838 = vunpack.c.h.b16 %v4063
    %v4839 = vunpack.c.l.b16 %v4064
    %v4840 = vunpack.c.h.b16 %v4064
    %v4841 = vunpack.c.l.b16 %v4065
    %v4842 = vunpack.c.h.b16 %v4065
    %v4843 = vunpack.c.l.b16 %v4066
    %v4844 = vunpack.c.h.b16 %v4066
    %v4845 = vunpack.c.l.b16 %v4067
    %v4846 = vunpack.c.h.b16 %v4067
    %v4847 = vunpack.c.l.b16 %v4068
    %v4848 = vunpack.c.h.b16 %v4068
    %v4849 = vunpack.c.l.b16 %v4069
    %v4850 = vunpack.c.h.b16 %v4069
    %v4851 = vunpack.c.l.b16 %v4070
    %v4852 = vunpack.c.h.b16 %v4070
    %v4853 = vunpack.c.l.b16 %v4071
    %v4854 = vunpack.c.h.b16 %v4071
    %v4855 = vunpack.c.l.b16 %v4072
    %v4856 = vunpack.c.h.b16 %v4072
    %v4857 = vunpack.c.l.b16 %v4073
    %v4858 = vunpack.c.h.b16 %v4073
    %v4859 = vunpack.c.l.b16 %v4074
    %v4860 = vunpack.c.h.b16 %v4074
    %v4861 = vunpack.c.l.b16 %v4075
    %v4862 = vunpack.c.h.b16 %v4075
    %v4863 = vunpack.c.l.b16 %v4076
    %v4864 = vunpack.c.h.b16 %v4076
    %v4865 = vunpack.c.l.b16 %v4077
    %v4866 = vunpack.c.h.b16 %v4077
    %v4867 = vunpack.c.l.b16 %v4078
    %v4868 = vunpack.c.h.b16 %v4078
    %v4869 = vunpack.c.l.b16 %v4079
    %v4870 = vunpack.c.h.b16 %v4079
    %v4871 = vunpack.c.l.b16 %v4080
    %v4872 = vunpack.c.h.b16 %v4080
    %v4873 = vpack.c.b16 %v4365, %v4361
    %v4874 = vpack.c.b16 %v4366, %v4362
    %v4875 = vpack.c.b16 %v4367, %v4363
    %v4876 = vpack.c.b16 %v4368, %v4364
    %v4877 = vpack.c.b16 %v4373, %v4369
    %v4878 = vpack.c.b16 %v4374, %v4370
    %v4879 = vpack.c.b16 %v4375, %v4371
    %v4880 = vpack.c.b16 %v4376, %v4372
    %v4881 = vpack.c.b16 %v4381, %v4377
    %v4882 = vpack.c.b16 %v4382, %v4378
    %v4883 = vpack.c.b16 %v4383, %v4379
    %v4884 = vpack.c.b16 %v4384, %v4380
    %v4885 = vpack.c.b16 %v4389, %v4385
    %v4886 = vpack.c.b16 %v4390, %v4386
    %v4887 = vpack.c.b16 %v4391, %v4387
    %v4888 = vpack.c.b16 %v4392, %v4388
    %v4889 = vpack.c.b16 %v4397, %v4393
    %v4890 = vpack.c.b16 %v4398, %v4394
    %v4891 = vpack.c.b16 %v4399, %v4395
    %v4892 = vpack.c.b16 %v4400, %v4396
    %v4893 = vpack.c.b16 %v4405, %v4401
    %v4894 = vpack.c.b16 %v4406, %v4402
    %v4895 = vpack.c.b16 %v4407, %v4403
    %v4896 = vpack.c.b16 %v4408, %v4404
    %v4897 = vpack.c.b16 %v4413, %v4409
    %v4898 = vpack.c.b16 %v4414, %v4410
    %v4899 = vpack.c.b16 %v4415, %v4411
    %v4900 = vpack.c.b16 %v4416, %v4412
    %v4901 = vpack.c.b16 %v4421, %v4417
    %v4902 = vpack.c.b16 %v4422, %v4418
    %v4903 = vpack.c.b16 %v4423, %v4419
    %v4904 = vpack.c.b16 %v4424, %v4420
    %v4905 = vpack.c.b16 %v4429, %v4425
    %v4906 = vpack.c.b16 %v4430, %v4426
    %v4907 = vpack.c.b16 %v4431, %v4427
    %v4908 = vpack.c.b16 %v4432, %v4428
    %v4909 = vpack.c.b16 %v4437, %v4433
    %v4910 = vpack.c.b16 %v4438, %v4434
    %v4911 = vpack.c.b16 %v4439, %v4435
    %v4912 = vpack.c.b16 %v4440, %v4436
    %v4913 = vpack.c.b16 %v4445, %v4441
    %v4914 = vpack.c.b16 %v4446, %v4442
    %v4915 = vpack.c.b16 %v4447, %v4443
    %v4916 = vpack.c.b16 %v4448, %v4444
    %v4917 = vpack.c.b16 %v4453, %v4449
    %v4918 = vpack.c.b16 %v4454, %v4450
    %v4919 = vpack.c.b16 %v4455, %v4451
    %v4920 = vpack.c.b16 %v4456, %v4452
    %v4921 = vpack.c.b16 %v4461, %v4457
    %v4922 = vpack.c.b16 %v4462, %v4458
    %v4923 = vpack.c.b16 %v4463, %v4459
    %v4924 = vpack.c.b16 %v4464, %v4460
    %v4925 = vpack.c.b16 %v4469, %v4465
    %v4926 = vpack.c.b16 %v4470, %v4466
    %v4927 = vpack.c.b16 %v4471, %v4467
    %v4928 = vpack.c.b16 %v4472, %v4468
    %v4929 = vpack.c.b16 %v4477, %v4473
    %v4930 = vpack.c.b16 %v4478, %v4474
    %v4931 = vpack.c.b16 %v4479, %v4475
    %v4932 = vpack.c.b16 %v4480, %v4476
    %v4933 = vpack.c.b16 %v4485, %v4481
    %v4934 = vpack.c.b16 %v4486, %v4482
    %v4935 = vpack.c.b16 %v4487, %v4483
    %v4936 = vpack.c.b16 %v4488, %v4484
    %v4937 = vpack.c.b16 %v4493, %v4489
    %v4938 = vpack.c.b16 %v4494, %v4490
    %v4939 = vpack.c.b16 %v4495, %v4491
    %v4940 = vpack.c.b16 %v4496, %v4492
    %v4941 = vpack.c.b16 %v4501, %v4497
    %v4942 = vpack.c.b16 %v4502, %v4498
    %v4943 = vpack.c.b16 %v4503, %v4499
    %v4944 = vpack.c.b16 %v4504, %v4500
    %v4945 = vpack.c.b16 %v4509, %v4505
    %v4946 = vpack.c.b16 %v4510, %v4506
    %v4947 = vpack.c.b16 %v4511, %v4507
    %v4948 = vpack.c.b16 %v4512, %v4508
    %v4949 = vpack.c.b16 %v4517, %v4513
    %v4950 = vpack.c.b16 %v4518, %v4514
    %v4951 = vpack.c.b16 %v4519, %v4515
    %v4952 = vpack.c.b16 %v4520, %v4516
    %v4953 = vpack.c.b16 %v4525, %v4521
    %v4954 = vpack.c.b16 %v4526, %v4522
    %v4955 = vpack.c.b16 %v4527, %v4523
    %v4956 = vpack.c.b16 %v4528, %v4524
    %v4957 = vpack.c.b16 %v4533, %v4529
    %v4958 = vpack.c.b16 %v4534, %v4530
    %v4959 = vpack.c.b16 %v4535, %v4531
    %v4960 = vpack.c.b16 %v4536, %v4532
    %v4961 = vpack.c.b16 %v4541, %v4537
    %v4962 = vpack.c.b16 %v4542, %v4538
    %v4963 = vpack.c.b16 %v4543, %v4539
    %v4964 = vpack.c.b16 %v4544, %v4540
    %v4965 = vpack.c.b16 %v4549, %v4545
    %v4966 = vpack.c.b16 %v4550, %v4546
    %v4967 = vpack.c.b16 %v4551, %v4547
    %v4968 = vpack.c.b16 %v4552, %v4548
    %v4969 = vpack.c.b16 %v4557, %v4553
    %v4970 = vpack.c.b16 %v4558, %v4554
    %v4971 = vpack.c.b16 %v4559, %v4555
    %v4972 = vpack.c.b16 %v4560, %v4556
    %v4973 = vpack.c.b16 %v4565, %v4561
    %v4974 = vpack.c.b16 %v4566, %v4562
    %v4975 = vpack.c.b16 %v4567, %v4563
    %v4976 = vpack.c.b16 %v4568, %v4564
    %v4977 = vpack.c.b16 %v4573, %v4569
    %v4978 = vpack.c.b16 %v4574, %v4570
    %v4979 = vpack.c.b16 %v4575, %v4571
    %v4980 = vpack.c.b16 %v4576, %v4572
    %v4981 = vpack.c.b16 %v4581, %v4577
    %v4982 = vpack.c.b16 %v4582, %v4578
    %v4983 = vpack.c.b16 %v4583, %v4579
    %v4984 = vpack.c.b16 %v4584, %v4580
    %v4985 = vpack.c.b16 %v4589, %v4585
    %v4986 = vpack.c.b16 %v4590, %v4586
    %v4987 = vpack.c.b16 %v4591, %v4587
    %v4988 = vpack.c.b16 %v4592, %v4588
    %v4989 = vpack.c.b16 %v4597, %v4593
    %v4990 = vpack.c.b16 %v4598, %v4594
    %v4991 = vpack.c.b16 %v4599, %v4595
    %v4992 = vpack.c.b16 %v4600, %v4596
    %v4993 = vpack.c.b16 %v4605, %v4601
    %v4994 = vpack.c.b16 %v4606, %v4602
    %v4995 = vpack.c.b16 %v4607, %v4603
    %v4996 = vpack.c.b16 %v4608, %v4604
    %v4997 = vpack.c.b16 %v4613, %v4609
    %v4998 = vpack.c.b16 %v4614, %v4610
    %v4999 = vpack.c.b16 %v4615, %v4611
    %v5000 = vpack.c.b16 %v4616, %v4612
    %v5001 = vpack.c.b16 %v4621, %v4617
    %v5002 = vpack.c.b16 %v4622, %v4618
    %v5003 = vpack.c.b16 %v4623, %v4619
    %v5004 = vpack.c.b16 %v4624, %v4620
    %v5005 = vpack.c.b16 %v4629, %v4625
    %v5006 = vpack.c.b16 %v4630, %v4626
    %v5007 = vpack.c.b16 %v4631, %v4627
    %v5008 = vpack.c.b16 %v4632, %v4628
    %v5009 = vpack.c.b16 %v4637, %v4633
    %v5010 = vpack.c.b16 %v4638, %v4634
    %v5011 = vpack.c.b16 %v4639, %v4635
    %v5012 = vpack.c.b16 %v4640, %v4636
    %v5013 = vpack.c.b16 %v4645, %v4641
    %v5014 = vpack.c.b16 %v4646, %v4642
    %v5015 = vpack.c.b16 %v4647, %v4643
    %v5016 = vpack.c.b16 %v4648, %v4644
    %v5017 = vpack.c.b16 %v4653, %v4649
    %v5018 = vpack.c.b16 %v4654, %v4650
    %v5019 = vpack.c.b16 %v4655, %v4651
    %v5020 = vpack.c.b16 %v4656, %v4652
    %v5021 = vpack.c.b16 %v4661, %v4657
    %v5022 = vpack.c.b16 %v4662, %v4658
    %v5023 = vpack.c.b16 %v4663, %v4659
    %v5024 = vpack.c.b16 %v4664, %v4660
    %v5025 = vpack.c.b16 %v4669, %v4665
    %v5026 = vpack.c.b16 %v4670, %v4666
    %v5027 = vpack.c.b16 %v4671, %v4667
    %v5028 = vpack.c.b16 %v4672, %v4668
    %v5029 = vpack.c.b16 %v4677, %v4673
    %v5030 = vpack.c.b16 %v4678, %v4674
    %v5031 = vpack.c.b16 %v4679, %v4675
    %v5032 = vpack.c.b16 %v4680, %v4676
    %v5033 = vpack.c.b16 %v4685, %v4681
    %v5034 = vpack.c.b16 %v4686, %v4682
    %v5035 = vpack.c.b16 %v4687, %v4683
    %v5036 = vpack.c.b16 %v4688, %v4684
    %v5037 = vpack.c.b16 %v4693, %v4689
    %v5038 = vpack.c.b16 %v4694, %v4690
    %v5039 = vpack.c.b16 %v4695, %v4691
    %v5040 = vpack.c.b16 %v4696, %v4692
    %v5041 = vpack.c.b16 %v4701, %v4697
    %v5042 = vpack.c.b16 %v4702, %v4698
    %v5043 = vpack.c.b16 %v4703, %v4699
    %v5044 = vpack.c.b16 %v4704, %v4700
    %v5045 = vpack.c.b16 %v4709, %v4705
    %v5046 = vpack.c.b16 %v4710, %v4706
    %v5047 = vpack.c.b16 %v4711, %v4707
    %v5048 = vpack.c.b16 %v4712, %v4708
    %v5049 = vpack.c.b16 %v4717, %v4713
    %v5050 = vpack.c.b16 %v4718, %v4714
    %v5051 = vpack.c.b16 %v4719, %v4715
    %v5052 = vpack.c.b16 %v4720, %v4716
    %v5053 = vpack.c.b16 %v4725, %v4721
    %v5054 = vpack.c.b16 %v4726, %v4722
    %v5055 = vpack.c.b16 %v4727, %v4723
    %v5056 = vpack.c.b16 %v4728, %v4724
    %v5057 = vpack.c.b16 %v4733, %v4729
    %v5058 = vpack.c.b16 %v4734, %v4730
    %v5059 = vpack.c.b16 %v4735, %v4731
    %v5060 = vpack.c.b16 %v4736, %v4732
    %v5061 = vpack.c.b16 %v4741, %v4737
    %v5062 = vpack.c.b16 %v4742, %v4738
    %v5063 = vpack.c.b16 %v4743, %v4739
    %v5064 = vpack.c.b16 %v4744, %v4740
    %v5065 = vpack.c.b16 %v4749, %v4745
    %v5066 = vpack.c.b16 %v4750, %v4746
    %v5067 = vpack.c.b16 %v4751, %v4747
    %v5068 = vpack.c.b16 %v4752, %v4748
    %v5069 = vpack.c.b16 %v4757, %v4753
    %v5070 = vpack.c.b16 %v4758, %v4754
    %v5071 = vpack.c.b16 %v4759, %v4755
    %v5072 = vpack.c.b16 %v4760, %v4756
    %v5073 = vpack.c.b16 %v4765, %v4761
    %v5074 = vpack.c.b16 %v4766, %v4762
    %v5075 = vpack.c.b16 %v4767, %v4763
    %v5076 = vpack.c.b16 %v4768, %v4764
    %v5077 = vpack.c.b16 %v4773, %v4769
    %v5078 = vpack.c.b16 %v4774, %v4770
    %v5079 = vpack.c.b16 %v4775, %v4771
    %v5080 = vpack.c.b16 %v4776, %v4772
    %v5081 = vpack.c.b16 %v4781, %v4777
    %v5082 = vpack.c.b16 %v4782, %v4778
    %v5083 = vpack.c.b16 %v4783, %v4779
    %v5084 = vpack.c.b16 %v4784, %v4780
    %v5085 = vpack.c.b16 %v4789, %v4785
    %v5086 = vpack.c.b16 %v4790, %v4786
    %v5087 = vpack.c.b16 %v4791, %v4787
    %v5088 = vpack.c.b16 %v4792, %v4788
    %v5089 = vpack.c.b16 %v4797, %v4793
    %v5090 = vpack.c.b16 %v4798, %v4794
    %v5091 = vpack.c.b16 %v4799, %v4795
    %v5092 = vpack.c.b16 %v4800, %v4796
    %v5093 = vpack.c.b16 %v4805, %v4801
    %v5094 = vpack.c.b16 %v4806, %v4802
    %v5095 = vpack.c.b16 %v4807, %v4803
    %v5096 = vpack.c.b16 %v4808, %v4804
    %v5097 = vpack.c.b16 %v4813, %v4809
    %v5098 = vpack.c.b16 %v4814, %v4810
    %v5099 = vpack.c.b16 %v4815, %v4811
    %v5100 = vpack.c.b16 %v4816, %v4812
    %v5101 = vpack.c.b16 %v4821, %v4817
    %v5102 = vpack.c.b16 %v4822, %v4818
    %v5103 = vpack.c.b16 %v4823, %v4819
    %v5104 = vpack.c.b16 %v4824, %v4820
    %v5105 = vpack.c.b16 %v4829, %v4825
    %v5106 = vpack.c.b16 %v4830, %v4826
    %v5107 = vpack.c.b16 %v4831, %v4827
    %v5108 = vpack.c.b16 %v4832, %v4828
    %v5109 = vpack.c.b16 %v4837, %v4833
    %v5110 = vpack.c.b16 %v4838, %v4834
    %v5111 = vpack.c.b16 %v4839, %v4835
    %v5112 = vpack.c.b16 %v4840, %v4836
    %v5113 = vpack.c.b16 %v4845, %v4841
    %v5114 = vpack.c.b16 %v4846, %v4842
    %v5115 = vpack.c.b16 %v4847, %v4843
    %v5116 = vpack.c.b16 %v4848, %v4844
    %v5117 = vpack.c.b16 %v4853, %v4849
    %v5118 = vpack.c.b16 %v4854, %v4850
    %v5119 = vpack.c.b16 %v4855, %v4851
    %v5120 = vpack.c.b16 %v4856, %v4852
    %v5121 = vpack.c.b16 %v4861, %v4857
    %v5122 = vpack.c.b16 %v4862, %v4858
    %v5123 = vpack.c.b16 %v4863, %v4859
    %v5124 = vpack.c.b16 %v4864, %v4860
    %v5125 = vpack.c.b16 %v4869, %v4865
    %v5126 = vpack.c.b16 %v4870, %v4866
    %v5127 = vpack.c.b16 %v4871, %v4867
    %v5128 = vpack.c.b16 %v4872, %v4868
    %5385 = vmatprep.subr.bf16.mxu0 %v4902
    %5386 = vmatpush1.bf16.msra.mxu0 %v4901
    %5387 = vmatprep.subr.bf16.mxu0 %v4898
    %5388 = vmatpush1.bf16.msra.mxu0 %v4897
    %5389 = vmatprep.subr.bf16.mxu0 %v4894
    %5390 = vmatpush1.bf16.msra.mxu0 %v4893
    %5391 = vmatprep.subr.bf16.mxu0 %v4890
    %5392 = vmatpush1.bf16.msra.mxu0 %v4889
    %5393 = vmatprep.subr.bf16.mxu0 %v4886
    %5394 = vmatpush1.bf16.msra.mxu0 %v4885
    %5395 = vmatprep.subr.bf16.mxu0 %v4882
    %5396 = vmatpush1.bf16.msra.mxu0 %v4881
    %5397 = vmatprep.subr.bf16.mxu0 %v4878
    %5398 = vmatpush1.bf16.msra.mxu0 %v4877
    %5399 = vmatprep.subr.bf16.mxu0 %v4874
    %5400 = vmatpush1.bf16.msra.mxu0 %v4873
    %5401 = vmatprep.subr.bf16.mxu0 %v4934
    %5402 = vmatpush2.bf16.msra.mxu0 %v4933
    %5403 = vmatprep.subr.bf16.mxu0 %v4930
    %5404 = vmatpush2.bf16.msra.mxu0 %v4929
    %5405 = vmatprep.subr.bf16.mxu0 %v4926
    %5406 = vmatpush2.bf16.msra.mxu0 %v4925
    %5407 = vmatprep.subr.bf16.mxu0 %v4922
    %5408 = vmatpush2.bf16.msra.mxu0 %v4921
    %5409 = vmatprep.subr.bf16.mxu0 %v4918
    %5410 = vmatpush2.bf16.msra.mxu0 %v4917
    %5411 = vmatprep.subr.bf16.mxu0 %v4914
    %5412 = vmatpush2.bf16.msra.mxu0 %v4913
    %5413 = vmatprep.subr.bf16.mxu0 %v4910
    %5414 = vmatpush2.bf16.msra.mxu0 %v4909
    %5415 = vmatprep.subr.bf16.mxu0 %v4906
    %5416 = vmatpush2.bf16.msra.mxu0 %v4905
    %5417 = vmatprep.mubr.bf16.mxu0 %v4090
    %5418 = vmatmul.mubr.bf16.gmra.mxu0 %v4089
    %v5419 = vpop.f32.mrf.mxu0
    %v5420 = vadd.f32 0.0, %v5419
    %v5421 = vpop.f32.mrf.mxu0
    %v5422 = vadd.f32 0.0, %v5421
    %v5423 = vpop.f32.mrf.mxu0
    %v5424 = vpop.f32.mrf.mxu0
    %5425 = vdwg.mxu0
    %5426 = vmatprep.subr.bf16.mxu0 %v4966
    %5427 = vmatpush1.bf16.msra.mxu0 %v4965
    %5428 = vmatprep.subr.bf16.mxu0 %v4962
    %5429 = vmatpush1.bf16.msra.mxu0 %v4961
    %5430 = vmatprep.subr.bf16.mxu0 %v4958
    %5431 = vmatpush1.bf16.msra.mxu0 %v4957
    %5432 = vmatprep.subr.bf16.mxu0 %v4954
    %5433 = vmatpush1.bf16.msra.mxu0 %v4953
    %5434 = vmatprep.subr.bf16.mxu0 %v4950
    %5435 = vmatpush1.bf16.msra.mxu0 %v4949
    %5436 = vmatprep.subr.bf16.mxu0 %v4946
    %5437 = vmatpush1.bf16.msra.mxu0 %v4945
    %5438 = vmatprep.subr.bf16.mxu0 %v4942
    %5439 = vmatpush1.bf16.msra.mxu0 %v4941
    %5440 = vmatprep.subr.bf16.mxu0 %v4938
    %5441 = vmatpush1.bf16.msra.mxu0 %v4937
    %5442 = vmatprep.subr.bf16.mxu0 %v4998
    %5443 = vmatpush2.bf16.msra.mxu0 %v4997
    %5444 = vmatprep.subr.bf16.mxu0 %v4994
    %5445 = vmatpush2.bf16.msra.mxu0 %v4993
    %5446 = vmatprep.subr.bf16.mxu0 %v4990
    %5447 = vmatpush2.bf16.msra.mxu0 %v4989
    %5448 = vmatprep.subr.bf16.mxu0 %v4986
    %5449 = vmatpush2.bf16.msra.mxu0 %v4985
    %5450 = vmatprep.subr.bf16.mxu0 %v4982
    %5451 = vmatpush2.bf16.msra.mxu0 %v4981
    %5452 = vmatprep.subr.bf16.mxu0 %v4978
    %5453 = vmatpush2.bf16.msra.mxu0 %v4977
    %5454 = vmatprep.subr.bf16.mxu0 %v4974
    %5455 = vmatpush2.bf16.msra.mxu0 %v4973
    %5456 = vmatprep.subr.bf16.mxu0 %v4970
    %5457 = vmatpush2.bf16.msra.mxu0 %v4969
    %5458 = vmatprep.mubr.bf16.mxu0 %v4092
    %5459 = vmatmul.mubr.bf16.gmra.mxu0 %v4091
    %v5460 = vpop.f32.mrf.mxu0
    %v5461 = vadd.f32 %v5420, %v5460
    %v5462 = vpop.f32.mrf.mxu0
    %v5463 = vadd.f32 %v5422, %v5462
    %v5464 = vpop.f32.mrf.mxu0
    %v5465 = vpop.f32.mrf.mxu0
    %5466 = vdwg.mxu0
    %5467 = vmatprep.subr.bf16.mxu0 %v5030
    %5468 = vmatpush1.bf16.msra.mxu0 %v5029
    %5469 = vmatprep.subr.bf16.mxu0 %v5026
    %5470 = vmatpush1.bf16.msra.mxu0 %v5025
    %5471 = vmatprep.subr.bf16.mxu0 %v5022
    %5472 = vmatpush1.bf16.msra.mxu0 %v5021
    %5473 = vmatprep.subr.bf16.mxu0 %v5018
    %5474 = vmatpush1.bf16.msra.mxu0 %v5017
    %5475 = vmatprep.subr.bf16.mxu0 %v5014
    %5476 = vmatpush1.bf16.msra.mxu0 %v5013
    %5477 = vmatprep.subr.bf16.mxu0 %v5010
    %5478 = vmatpush1.bf16.msra.mxu0 %v5009
    %5479 = vmatprep.subr.bf16.mxu0 %v5006
    %5480 = vmatpush1.bf16.msra.mxu0 %v5005
    %5481 = vmatprep.subr.bf16.mxu0 %v5002
    %5482 = vmatpush1.bf16.msra.mxu0 %v5001
    %5483 = vmatprep.subr.bf16.mxu0 %v5062
    %5484 = vmatpush2.bf16.msra.mxu0 %v5061
    %5485 = vmatprep.subr.bf16.mxu0 %v5058
    %5486 = vmatpush2.bf16.msra.mxu0 %v5057
    %5487 = vmatprep.subr.bf16.mxu0 %v5054
    %5488 = vmatpush2.bf16.msra.mxu0 %v5053
    %5489 = vmatprep.subr.bf16.mxu0 %v5050
    %5490 = vmatpush2.bf16.msra.mxu0 %v5049
    %5491 = vmatprep.subr.bf16.mxu0 %v5046
    %5492 = vmatpush2.bf16.msra.mxu0 %v5045
    %5493 = vmatprep.subr.bf16.mxu0 %v5042
    %5494 = vmatpush2.bf16.msra.mxu0 %v5041
    %5495 = vmatprep.subr.bf16.mxu0 %v5038
    %5496 = vmatpush2.bf16.msra.mxu0 %v5037
    %5497 = vmatprep.subr.bf16.mxu0 %v5034
    %5498 = vmatpush2.bf16.msra.mxu0 %v5033
    %5499 = vmatprep.mubr.bf16.mxu0 %v4094
    %5500 = vmatmul.mubr.bf16.gmra.mxu0 %v4093
    %v5501 = vpop.f32.mrf.mxu0
    %v5502 = vadd.f32 %v5461, %v5501
    %v5503 = vpop.f32.mrf.mxu0
    %v5504 = vadd.f32 %v5463, %v5503
    %v5505 = vpop.f32.mrf.mxu0
    %v5506 = vpop.f32.mrf.mxu0
    %5507 = vdwg.mxu0
    %5508 = vmatprep.subr.bf16.mxu0 %v5094
    %5509 = vmatpush1.bf16.msra.mxu0 %v5093
    %5510 = vmatprep.subr.bf16.mxu0 %v5090
    %5511 = vmatpush1.bf16.msra.mxu0 %v5089
    %5512 = vmatprep.subr.bf16.mxu0 %v5086
    %5513 = vmatpush1.bf16.msra.mxu0 %v5085
    %5514 = vmatprep.subr.bf16.mxu0 %v5082
    %5515 = vmatpush1.bf16.msra.mxu0 %v5081
    %5516 = vmatprep.subr.bf16.mxu0 %v5078
    %5517 = vmatpush1.bf16.msra.mxu0 %v5077
    %5518 = vmatprep.subr.bf16.mxu0 %v5074
    %5519 = vmatpush1.bf16.msra.mxu0 %v5073
    %5520 = vmatprep.subr.bf16.mxu0 %v5070
    %5521 = vmatpush1.bf16.msra.mxu0 %v5069
    %5522 = vmatprep.subr.bf16.mxu0 %v5066
    %5523 = vmatpush1.bf16.msra.mxu0 %v5065
    %5524 = vmatprep.subr.bf16.mxu0 %v5126
    %5525 = vmatpush2.bf16.msra.mxu0 %v5125
    %5526 = vmatprep.subr.bf16.mxu0 %v5122
    %5527 = vmatpush2.bf16.msra.mxu0 %v5121
    %5528 = vmatprep.subr.bf16.mxu0 %v5118
    %5529 = vmatpush2.bf16.msra.mxu0 %v5117
    %5530 = vmatprep.subr.bf16.mxu0 %v5114
    %5531 = vmatpush2.bf16.msra.mxu0 %v5113
    %5532 = vmatprep.subr.bf16.mxu0 %v5110
    %5533 = vmatpush2.bf16.msra.mxu0 %v5109
    %5534 = vmatprep.subr.bf16.mxu0 %v5106
    %5535 = vmatpush2.bf16.msra.mxu0 %v5105
    %5536 = vmatprep.subr.bf16.mxu0 %v5102
    %5537 = vmatpush2.bf16.msra.mxu0 %v5101
    %5538 = vmatprep.subr.bf16.mxu0 %v5098
    %5539 = vmatpush2.bf16.msra.mxu0 %v5097
    %5540 = vmatprep.mubr.bf16.mxu0 %v4096
    %5541 = vmatmul.mubr.bf16.gmra.mxu0 %v4095
    %v5542 = vpop.f32.mrf.mxu0
    %v5543 = vadd.f32 %v5502, %v5542
    %v5544 = vpop.f32.mrf.mxu0
    %v5545 = vadd.f32 %v5504, %v5544
    %v5546 = vpop.f32.mrf.mxu0
    %v5547 = vpop.f32.mrf.mxu0
    %5548 = vdwg.mxu0
    %5549 = vmatprep.subr.bf16.mxu0 %v4904
    %5550 = vmatpush1.bf16.msra.mxu0 %v4903
    %5551 = vmatprep.subr.bf16.mxu0 %v4900
    %5552 = vmatpush1.bf16.msra.mxu0 %v4899
    %5553 = vmatprep.subr.bf16.mxu0 %v4896
    %5554 = vmatpush1.bf16.msra.mxu0 %v4895
    %5555 = vmatprep.subr.bf16.mxu0 %v4892
    %5556 = vmatpush1.bf16.msra.mxu0 %v4891
    %5557 = vmatprep.subr.bf16.mxu0 %v4888
    %5558 = vmatpush1.bf16.msra.mxu0 %v4887
    %5559 = vmatprep.subr.bf16.mxu0 %v4884
    %5560 = vmatpush1.bf16.msra.mxu0 %v4883
    %5561 = vmatprep.subr.bf16.mxu0 %v4880
    %5562 = vmatpush1.bf16.msra.mxu0 %v4879
    %5563 = vmatprep.subr.bf16.mxu0 %v4876
    %5564 = vmatpush1.bf16.msra.mxu0 %v4875
    %5565 = vmatprep.subr.bf16.mxu0 %v4936
    %5566 = vmatpush2.bf16.msra.mxu0 %v4935
    %5567 = vmatprep.subr.bf16.mxu0 %v4932
    %5568 = vmatpush2.bf16.msra.mxu0 %v4931
    %5569 = vmatprep.subr.bf16.mxu0 %v4928
    %5570 = vmatpush2.bf16.msra.mxu0 %v4927
    %5571 = vmatprep.subr.bf16.mxu0 %v4924
    %5572 = vmatpush2.bf16.msra.mxu0 %v4923
    %5573 = vmatprep.subr.bf16.mxu0 %v4920
    %5574 = vmatpush2.bf16.msra.mxu0 %v4919
    %5575 = vmatprep.subr.bf16.mxu0 %v4916
    %5576 = vmatpush2.bf16.msra.mxu0 %v4915
    %5577 = vmatprep.subr.bf16.mxu0 %v4912
    %5578 = vmatpush2.bf16.msra.mxu0 %v4911
    %5579 = vmatprep.subr.bf16.mxu0 %v4908
    %5580 = vmatpush2.bf16.msra.mxu0 %v4907
    %5581 = vmatprep.mubr.bf16.mxu0 %v4090
    %5582 = vmatmul.mubr.bf16.gmra.mxu0 %v4089
    %v5583 = vpop.f32.mrf.mxu0
    %v5584 = vadd.f32 0.0, %v5583
    %v5585 = vpop.f32.mrf.mxu0
    %v5586 = vadd.f32 0.0, %v5585
    %v5587 = vpop.f32.mrf.mxu0
    %v5588 = vpop.f32.mrf.mxu0
    %5589 = vdwg.mxu0
    %5590 = vmatprep.subr.bf16.mxu0 %v4968
    %5591 = vmatpush1.bf16.msra.mxu0 %v4967
    %5592 = vmatprep.subr.bf16.mxu0 %v4964
    %5593 = vmatpush1.bf16.msra.mxu0 %v4963
    %5594 = vmatprep.subr.bf16.mxu0 %v4960
    %5595 = vmatpush1.bf16.msra.mxu0 %v4959
    %5596 = vmatprep.subr.bf16.mxu0 %v4956
    %5597 = vmatpush1.bf16.msra.mxu0 %v4955
    %5598 = vmatprep.subr.bf16.mxu0 %v4952
    %5599 = vmatpush1.bf16.msra.mxu0 %v4951
    %5600 = vmatprep.subr.bf16.mxu0 %v4948
    %5601 = vmatpush1.bf16.msra.mxu0 %v4947
    %5602 = vmatprep.subr.bf16.mxu0 %v4944
    %5603 = vmatpush1.bf16.msra.mxu0 %v4943
    %5604 = vmatprep.subr.bf16.mxu0 %v4940
    %5605 = vmatpush1.bf16.msra.mxu0 %v4939
    %5606 = vmatprep.subr.bf16.mxu0 %v5000
    %5607 = vmatpush2.bf16.msra.mxu0 %v4999
    %5608 = vmatprep.subr.bf16.mxu0 %v4996
    %5609 = vmatpush2.bf16.msra.mxu0 %v4995
    %5610 = vmatprep.subr.bf16.mxu0 %v4992
    %5611 = vmatpush2.bf16.msra.mxu0 %v4991
    %5612 = vmatprep.subr.bf16.mxu0 %v4988
    %5613 = vmatpush2.bf16.msra.mxu0 %v4987
    %5614 = vmatprep.subr.bf16.mxu0 %v4984
    %5615 = vmatpush2.bf16.msra.mxu0 %v4983
    %5616 = vmatprep.subr.bf16.mxu0 %v4980
    %5617 = vmatpush2.bf16.msra.mxu0 %v4979
    %5618 = vmatprep.subr.bf16.mxu0 %v4976
    %5619 = vmatpush2.bf16.msra.mxu0 %v4975
    %5620 = vmatprep.subr.bf16.mxu0 %v4972
    %5621 = vmatpush2.bf16.msra.mxu0 %v4971
    %5622 = vmatprep.mubr.bf16.mxu0 %v4092
    %5623 = vmatmul.mubr.bf16.gmra.mxu0 %v4091
    %v5624 = vpop.f32.mrf.mxu0
    %v5625 = vadd.f32 %v5584, %v5624
    %v5626 = vpop.f32.mrf.mxu0
    %v5627 = vadd.f32 %v5586, %v5626
    %v5628 = vpop.f32.mrf.mxu0
    %v5629 = vpop.f32.mrf.mxu0
    %5630 = vdwg.mxu0
    %5631 = vmatprep.subr.bf16.mxu0 %v5032
    %5632 = vmatpush1.bf16.msra.mxu0 %v5031
    %5633 = vmatprep.subr.bf16.mxu0 %v5028
    %5634 = vmatpush1.bf16.msra.mxu0 %v5027
    %5635 = vmatprep.subr.bf16.mxu0 %v5024
    %5636 = vmatpush1.bf16.msra.mxu0 %v5023
    %5637 = vmatprep.subr.bf16.mxu0 %v5020
    %5638 = vmatpush1.bf16.msra.mxu0 %v5019
    %5639 = vmatprep.subr.bf16.mxu0 %v5016
    %5640 = vmatpush1.bf16.msra.mxu0 %v5015
    %5641 = vmatprep.subr.bf16.mxu0 %v5012
    %5642 = vmatpush1.bf16.msra.mxu0 %v5011
    %5643 = vmatprep.subr.bf16.mxu0 %v5008
    %5644 = vmatpush1.bf16.msra.mxu0 %v5007
    %5645 = vmatprep.subr.bf16.mxu0 %v5004
    %5646 = vmatpush1.bf16.msra.mxu0 %v5003
    %5647 = vmatprep.subr.bf16.mxu0 %v5064
    %5648 = vmatpush2.bf16.msra.mxu0 %v5063
    %5649 = vmatprep.subr.bf16.mxu0 %v5060
    %5650 = vmatpush2.bf16.msra.mxu0 %v5059
    %5651 = vmatprep.subr.bf16.mxu0 %v5056
    %5652 = vmatpush2.bf16.msra.mxu0 %v5055
    %5653 = vmatprep.subr.bf16.mxu0 %v5052
    %5654 = vmatpush2.bf16.msra.mxu0 %v5051
    %5655 = vmatprep.subr.bf16.mxu0 %v5048
    %5656 = vmatpush2.bf16.msra.mxu0 %v5047
    %5657 = vmatprep.subr.bf16.mxu0 %v5044
    %5658 = vmatpush2.bf16.msra.mxu0 %v5043
    %5659 = vmatprep.subr.bf16.mxu0 %v5040
    %5660 = vmatpush2.bf16.msra.mxu0 %v5039
    %5661 = vmatprep.subr.bf16.mxu0 %v5036
    %5662 = vmatpush2.bf16.msra.mxu0 %v5035
    %5663 = vmatprep.mubr.bf16.mxu0 %v4094
    %5664 = vmatmul.mubr.bf16.gmra.mxu0 %v4093
    %v5665 = vpop.f32.mrf.mxu0
    %v5666 = vadd.f32 %v5625, %v5665
    %v5667 = vpop.f32.mrf.mxu0
    %v5668 = vadd.f32 %v5627, %v5667
    %v5669 = vpop.f32.mrf.mxu0
    %v5670 = vpop.f32.mrf.mxu0
    %5671 = vdwg.mxu0
    %5672 = vmatprep.subr.bf16.mxu0 %v5096
    %5673 = vmatpush1.bf16.msra.mxu0 %v5095
    %5674 = vmatprep.subr.bf16.mxu0 %v5092
    %5675 = vmatpush1.bf16.msra.mxu0 %v5091
    %5676 = vmatprep.subr.bf16.mxu0 %v5088
    %5677 = vmatpush1.bf16.msra.mxu0 %v5087
    %5678 = vmatprep.subr.bf16.mxu0 %v5084
    %5679 = vmatpush1.bf16.msra.mxu0 %v5083
    %5680 = vmatprep.subr.bf16.mxu0 %v5080
    %5681 = vmatpush1.bf16.msra.mxu0 %v5079
    %5682 = vmatprep.subr.bf16.mxu0 %v5076
    %5683 = vmatpush1.bf16.msra.mxu0 %v5075
    %5684 = vmatprep.subr.bf16.mxu0 %v5072
    %5685 = vmatpush1.bf16.msra.mxu0 %v5071
    %5686 = vmatprep.subr.bf16.mxu0 %v5068
    %5687 = vmatpush1.bf16.msra.mxu0 %v5067
    %5688 = vmatprep.subr.bf16.mxu0 %v5128
    %5689 = vmatpush2.bf16.msra.mxu0 %v5127
    %5690 = vmatprep.subr.bf16.mxu0 %v5124
    %5691 = vmatpush2.bf16.msra.mxu0 %v5123
    %5692 = vmatprep.subr.bf16.mxu0 %v5120
    %5693 = vmatpush2.bf16.msra.mxu0 %v5119
    %5694 = vmatprep.subr.bf16.mxu0 %v5116
    %5695 = vmatpush2.bf16.msra.mxu0 %v5115
    %5696 = vmatprep.subr.bf16.mxu0 %v5112
    %5697 = vmatpush2.bf16.msra.mxu0 %v5111
    %5698 = vmatprep.subr.bf16.mxu0 %v5108
    %5699 = vmatpush2.bf16.msra.mxu0 %v5107
    %5700 = vmatprep.subr.bf16.mxu0 %v5104
    %5701 = vmatpush2.bf16.msra.mxu0 %v5103
    %5702 = vmatprep.subr.bf16.mxu0 %v5100
    %5703 = vmatpush2.bf16.msra.mxu0 %v5099
    %5704 = vmatprep.mubr.bf16.mxu0 %v4096
    %5705 = vmatmul.mubr.bf16.gmra.mxu0 %v4095
    %v5706 = vpop.f32.mrf.mxu0
    %v5707 = vadd.f32 %v5666, %v5706
    %v5708 = vpop.f32.mrf.mxu0
    %v5709 = vadd.f32 %v5668, %v5708
    %v5710 = vpop.f32.mrf.mxu0
    %v5711 = vpop.f32.mrf.mxu0
    %5712 = vdwg.mxu0
    %v5713 = vld [vmem:[%s5] sm:$0xf]
    %v5714 = vadd.f32 %v3655, %v5543
    %v5715 = vadd.f32 %v3657, %v5545
    %v5716 = vadd.f32 %v3819, %v5707
    %v5717 = vadd.f32 %v3821, %v5709
    %v5719 = vlaneseq
    %v5720 = vshrl.u32 %v5719, 7
    %v5721 = vsub.s32 0, %v5720
    %v5722 = vrot.slane %v5713, %v5721
    %v5723 = vlaneseq
    %v5724 = vshrl.u32 %v5723, 7
    %v5725 = vsub.s32 1, %v5724
    %v5726 = vrot.slane %v5713, %v5725
    %v5727 = vlaneseq
    %v5728 = vshrl.u32 %v5727, 7
    %v5729 = vsub.s32 2, %v5728
    %v5730 = vrot.slane %v5713, %v5729
    %v5731 = vlaneseq
    %v5732 = vshrl.u32 %v5731, 7
    %v5733 = vsub.s32 3, %v5732
    %v5734 = vrot.slane %v5713, %v5733
    %v5739 = vadd.f32 %v5714, %v5722
    %v5740 = vadd.f32 %v5715, %v5726
    %v5741 = vadd.f32 %v5716, %v5730
    %v5742 = vadd.f32 %v5717, %v5734
    %v5743 = vmax.f32 %v5739, 0.0
    %v5744 = vmax.f32 %v5740, 0.0
    %v5745 = vmax.f32 %v5741, 0.0
    %v5746 = vmax.f32 %v5742, 0.0
    %v5747 = vpack.c.bf16 %v5743, %v5743
    %v5748 = vpack.c.bf16 %v5744, %v5744
    %v5749 = vpack.c.bf16 %v5745, %v5745
    %v5750 = vpack.c.bf16 %v5746, %v5746
    %v5751 = vld [vmem:[%s6] sm:$0xf]
    %v5752 = vld [vmem:[%s6 + $0x4] sm:$0xf]
    %v5753 = vld [vmem:[%s6 + $0x8] sm:$0xf]
    %v5754 = vld [vmem:[%s6 + $0xc] sm:$0xf]
    %v5755 = vld [vmem:[%s6 + $0x10] sm:$0xf]
    %v5756 = vld [vmem:[%s6 + $0x14] sm:$0xf]
    %v5757 = vld [vmem:[%s6 + $0x18] sm:$0xf]
    %v5758 = vld [vmem:[%s6 + $0x1c] sm:$0xf]
    %v5759 = vld [vmem:[%s6 + $0x20] sm:$0xf]
    %v5760 = vld [vmem:[%s6 + $0x24] sm:$0xf]
    %v5761 = vld [vmem:[%s6 + $0x28] sm:$0xf]
    %v5762 = vld [vmem:[%s6 + $0x2c] sm:$0xf]
    %v5763 = vld [vmem:[%s6 + $0x30] sm:$0xf]
    %v5764 = vld [vmem:[%s6 + $0x34] sm:$0xf]
    %v5765 = vld [vmem:[%s6 + $0x38] sm:$0xf]
    %v5766 = vld [vmem:[%s6 + $0x3c] sm:$0xf]
    %v5767 = vld [vmem:[%s6 + $0x40] sm:$0xf]
    %v5768 = vld [vmem:[%s6 + $0x44] sm:$0xf]
    %v5769 = vld [vmem:[%s6 + $0x48] sm:$0xf]
    %v5770 = vld [vmem:[%s6 + $0x4c] sm:$0xf]
    %v5771 = vld [vmem:[%s6 + $0x50] sm:$0xf]
    %v5772 = vld [vmem:[%s6 + $0x54] sm:$0xf]
    %v5773 = vld [vmem:[%s6 + $0x58] sm:$0xf]
    %v5774 = vld [vmem:[%s6 + $0x5c] sm:$0xf]
    %v5775 = vld [vmem:[%s6 + $0x60] sm:$0xf]
    %v5776 = vld [vmem:[%s6 + $0x64] sm:$0xf]
    %v5777 = vld [vmem:[%s6 + $0x68] sm:$0xf]
    %v5778 = vld [vmem:[%s6 + $0x6c] sm:$0xf]
    %v5779 = vld [vmem:[%s6 + $0x70] sm:$0xf]
    %v5780 = vld [vmem:[%s6 + $0x74] sm:$0xf]
    %v5781 = vld [vmem:[%s6 + $0x78] sm:$0xf]
    %v5782 = vld [vmem:[%s6 + $0x7c] sm:$0xf]
    %v5783 = vld [vmem:[%s6 + $0x80] sm:$0xf]
    %v5784 = vld [vmem:[%s6 + $0x84] sm:$0xf]
    %v5785 = vld [vmem:[%s6 + $0x88] sm:$0xf]
    %v5786 = vld [vmem:[%s6 + $0x8c] sm:$0xf]
    %v5787 = vld [vmem:[%s6 + $0x90] sm:$0xf]
    %v5788 = vld [vmem:[%s6 + $0x94] sm:$0xf]
    %v5789 = vld [vmem:[%s6 + $0x98] sm:$0xf]
    %v5790 = vld [vmem:[%s6 + $0x9c] sm:$0xf]
    %v5791 = vld [vmem:[%s6 + $0xa0] sm:$0xf]
    %v5792 = vld [vmem:[%s6 + $0xa4] sm:$0xf]
    %v5793 = vld [vmem:[%s6 + $0xa8] sm:$0xf]
    %v5794 = vld [vmem:[%s6 + $0xac] sm:$0xf]
    %v5795 = vld [vmem:[%s6 + $0xb0] sm:$0xf]
    %v5796 = vld [vmem:[%s6 + $0xb4] sm:$0xf]
    %v5797 = vld [vmem:[%s6 + $0xb8] sm:$0xf]
    %v5798 = vld [vmem:[%s6 + $0xbc] sm:$0xf]
    %v5799 = vld [vmem:[%s6 + $0xc0] sm:$0xf]
    %v5800 = vld [vmem:[%s6 + $0xc4] sm:$0xf]
    %v5801 = vld [vmem:[%s6 + $0xc8] sm:$0xf]
    %v5802 = vld [vmem:[%s6 + $0xcc] sm:$0xf]
    %v5803 = vld [vmem:[%s6 + $0xd0] sm:$0xf]
    %v5804 = vld [vmem:[%s6 + $0xd4] sm:$0xf]
    %v5805 = vld [vmem:[%s6 + $0xd8] sm:$0xf]
    %v5806 = vld [vmem:[%s6 + $0xdc] sm:$0xf]
    %v5807 = vld [vmem:[%s6 + $0xe0] sm:$0xf]
    %v5808 = vld [vmem:[%s6 + $0xe4] sm:$0xf]
    %v5809 = vld [vmem:[%s6 + $0xe8] sm:$0xf]
    %v5810 = vld [vmem:[%s6 + $0xec] sm:$0xf]
    %v5811 = vld [vmem:[%s6 + $0xf0] sm:$0xf]
    %v5812 = vld [vmem:[%s6 + $0xf4] sm:$0xf]
    %v5813 = vld [vmem:[%s6 + $0xf8] sm:$0xf]
    %v5814 = vld [vmem:[%s6 + $0xfc] sm:$0xf]
    %v5819 = vrot.slane %v5543, 2
    %v5820 = vrot.slane %v5545, 2
    %v5821 = vrot.slane %v5707, 2
    %v5822 = vrot.slane %v5709, 2
    %v5827 = vadd.f32 %v3655, %v5819
    %v5828 = vadd.f32 %v3657, %v5820
    %v5829 = vadd.f32 %v3819, %v5821
    %v5830 = vadd.f32 %v3821, %v5822
    %v5831 = vadd.f32 %v5827, %v5722
    %v5832 = vadd.f32 %v5828, %v5726
    %v5833 = vadd.f32 %v5829, %v5730
    %v5834 = vadd.f32 %v5830, %v5734
    %v5835 = vmax.f32 %v5831, 0.0
    %v5836 = vmax.f32 %v5832, 0.0
    %v5837 = vmax.f32 %v5833, 0.0
    %v5838 = vmax.f32 %v5834, 0.0
    %v5839 = vpack.c.bf16 %v5835, %v5835
    %v5840 = vpack.c.bf16 %v5836, %v5836
    %v5841 = vpack.c.bf16 %v5837, %v5837
    %v5842 = vpack.c.bf16 %v5838, %v5838
    %v5843 = vld [vmem:[%s6 + $0x100] sm:$0xf]
    %v5844 = vld [vmem:[%s6 + $0x104] sm:$0xf]
    %v5845 = vld [vmem:[%s6 + $0x108] sm:$0xf]
    %v5846 = vld [vmem:[%s6 + $0x10c] sm:$0xf]
    %v5847 = vld [vmem:[%s6 + $0x110] sm:$0xf]
    %v5848 = vld [vmem:[%s6 + $0x114] sm:$0xf]
    %v5849 = vld [vmem:[%s6 + $0x118] sm:$0xf]
    %v5850 = vld [vmem:[%s6 + $0x11c] sm:$0xf]
    %v5851 = vld [vmem:[%s6 + $0x120] sm:$0xf]
    %v5852 = vld [vmem:[%s6 + $0x124] sm:$0xf]
    %v5853 = vld [vmem:[%s6 + $0x128] sm:$0xf]
    %v5854 = vld [vmem:[%s6 + $0x12c] sm:$0xf]
    %v5855 = vld [vmem:[%s6 + $0x130] sm:$0xf]
    %v5856 = vld [vmem:[%s6 + $0x134] sm:$0xf]
    %v5857 = vld [vmem:[%s6 + $0x138] sm:$0xf]
    %v5858 = vld [vmem:[%s6 + $0x13c] sm:$0xf]
    %v5859 = vld [vmem:[%s6 + $0x140] sm:$0xf]
    %v5860 = vld [vmem:[%s6 + $0x144] sm:$0xf]
    %v5861 = vld [vmem:[%s6 + $0x148] sm:$0xf]
    %v5862 = vld [vmem:[%s6 + $0x14c] sm:$0xf]
    %v5863 = vld [vmem:[%s6 + $0x150] sm:$0xf]
    %v5864 = vld [vmem:[%s6 + $0x154] sm:$0xf]
    %v5865 = vld [vmem:[%s6 + $0x158] sm:$0xf]
    %v5866 = vld [vmem:[%s6 + $0x15c] sm:$0xf]
    %v5867 = vld [vmem:[%s6 + $0x160] sm:$0xf]
    %v5868 = vld [vmem:[%s6 + $0x164] sm:$0xf]
    %v5869 = vld [vmem:[%s6 + $0x168] sm:$0xf]
    %v5870 = vld [vmem:[%s6 + $0x16c] sm:$0xf]
    %v5871 = vld [vmem:[%s6 + $0x170] sm:$0xf]
    %v5872 = vld [vmem:[%s6 + $0x174] sm:$0xf]
    %v5873 = vld [vmem:[%s6 + $0x178] sm:$0xf]
    %v5874 = vld [vmem:[%s6 + $0x17c] sm:$0xf]
    %v5875 = vld [vmem:[%s6 + $0x180] sm:$0xf]
    %v5876 = vld [vmem:[%s6 + $0x184] sm:$0xf]
    %v5877 = vld [vmem:[%s6 + $0x188] sm:$0xf]
    %v5878 = vld [vmem:[%s6 + $0x18c] sm:$0xf]
    %v5879 = vld [vmem:[%s6 + $0x190] sm:$0xf]
    %v5880 = vld [vmem:[%s6 + $0x194] sm:$0xf]
    %v5881 = vld [vmem:[%s6 + $0x198] sm:$0xf]
    %v5882 = vld [vmem:[%s6 + $0x19c] sm:$0xf]
    %v5883 = vld [vmem:[%s6 + $0x1a0] sm:$0xf]
    %v5884 = vld [vmem:[%s6 + $0x1a4] sm:$0xf]
    %v5885 = vld [vmem:[%s6 + $0x1a8] sm:$0xf]
    %v5886 = vld [vmem:[%s6 + $0x1ac] sm:$0xf]
    %v5887 = vld [vmem:[%s6 + $0x1b0] sm:$0xf]
    %v5888 = vld [vmem:[%s6 + $0x1b4] sm:$0xf]
    %v5889 = vld [vmem:[%s6 + $0x1b8] sm:$0xf]
    %v5890 = vld [vmem:[%s6 + $0x1bc] sm:$0xf]
    %v5891 = vld [vmem:[%s6 + $0x1c0] sm:$0xf]
    %v5892 = vld [vmem:[%s6 + $0x1c4] sm:$0xf]
    %v5893 = vld [vmem:[%s6 + $0x1c8] sm:$0xf]
    %v5894 = vld [vmem:[%s6 + $0x1cc] sm:$0xf]
    %v5895 = vld [vmem:[%s6 + $0x1d0] sm:$0xf]
    %v5896 = vld [vmem:[%s6 + $0x1d4] sm:$0xf]
    %v5897 = vld [vmem:[%s6 + $0x1d8] sm:$0xf]
    %v5898 = vld [vmem:[%s6 + $0x1dc] sm:$0xf]
    %v5899 = vld [vmem:[%s6 + $0x1e0] sm:$0xf]
    %v5900 = vld [vmem:[%s6 + $0x1e4] sm:$0xf]
    %v5901 = vld [vmem:[%s6 + $0x1e8] sm:$0xf]
    %v5902 = vld [vmem:[%s6 + $0x1ec] sm:$0xf]
    %v5903 = vld [vmem:[%s6 + $0x1f0] sm:$0xf]
    %v5904 = vld [vmem:[%s6 + $0x1f4] sm:$0xf]
    %v5905 = vld [vmem:[%s6 + $0x1f8] sm:$0xf]
    %v5906 = vld [vmem:[%s6 + $0x1fc] sm:$0xf]
    %v5971 = vunpack.c.l.b16 %v5843
    %v5972 = vunpack.c.l.b16 %v5844
    %v5973 = vunpack.c.l.b16 %v5845
    %v5974 = vunpack.c.l.b16 %v5846
    %v5975 = vunpack.c.l.b16 %v5847
    %v5976 = vunpack.c.l.b16 %v5848
    %v5977 = vunpack.c.l.b16 %v5849
    %v5978 = vunpack.c.l.b16 %v5850
    %v5979 = vunpack.c.l.b16 %v5851
    %v5980 = vunpack.c.l.b16 %v5852
    %v5981 = vunpack.c.l.b16 %v5853
    %v5982 = vunpack.c.l.b16 %v5854
    %v5983 = vunpack.c.l.b16 %v5855
    %v5984 = vunpack.c.l.b16 %v5856
    %v5985 = vunpack.c.l.b16 %v5857
    %v5986 = vunpack.c.l.b16 %v5858
    %v5987 = vunpack.c.l.b16 %v5859
    %v5988 = vunpack.c.l.b16 %v5860
    %v5989 = vunpack.c.l.b16 %v5861
    %v5990 = vunpack.c.l.b16 %v5862
    %v5991 = vunpack.c.l.b16 %v5863
    %v5992 = vunpack.c.l.b16 %v5864
    %v5993 = vunpack.c.l.b16 %v5865
    %v5994 = vunpack.c.l.b16 %v5866
    %v5995 = vunpack.c.l.b16 %v5867
    %v5996 = vunpack.c.l.b16 %v5868
    %v5997 = vunpack.c.l.b16 %v5869
    %v5998 = vunpack.c.l.b16 %v5870
    %v5999 = vunpack.c.l.b16 %v5871
    %v6000 = vunpack.c.l.b16 %v5872
    %v6001 = vunpack.c.l.b16 %v5873
    %v6002 = vunpack.c.l.b16 %v5874
    %v6003 = vunpack.c.l.b16 %v5875
    %v6004 = vunpack.c.l.b16 %v5876
    %v6005 = vunpack.c.l.b16 %v5877
    %v6006 = vunpack.c.l.b16 %v5878
    %v6007 = vunpack.c.l.b16 %v5879
    %v6008 = vunpack.c.l.b16 %v5880
    %v6009 = vunpack.c.l.b16 %v5881
    %v6010 = vunpack.c.l.b16 %v5882
    %v6011 = vunpack.c.l.b16 %v5883
    %v6012 = vunpack.c.l.b16 %v5884
    %v6013 = vunpack.c.l.b16 %v5885
    %v6014 = vunpack.c.l.b16 %v5886
    %v6015 = vunpack.c.l.b16 %v5887
    %v6016 = vunpack.c.l.b16 %v5888
    %v6017 = vunpack.c.l.b16 %v5889
    %v6018 = vunpack.c.l.b16 %v5890
    %v6019 = vunpack.c.l.b16 %v5891
    %v6020 = vunpack.c.l.b16 %v5892
    %v6021 = vunpack.c.l.b16 %v5893
    %v6022 = vunpack.c.l.b16 %v5894
    %v6023 = vunpack.c.l.b16 %v5895
    %v6024 = vunpack.c.l.b16 %v5896
    %v6025 = vunpack.c.l.b16 %v5897
    %v6026 = vunpack.c.l.b16 %v5898
    %v6027 = vunpack.c.l.b16 %v5899
    %v6028 = vunpack.c.l.b16 %v5900
    %v6029 = vunpack.c.l.b16 %v5901
    %v6030 = vunpack.c.l.b16 %v5902
    %v6031 = vunpack.c.l.b16 %v5903
    %v6032 = vunpack.c.l.b16 %v5904
    %v6033 = vunpack.c.l.b16 %v5905
    %v6034 = vunpack.c.l.b16 %v5906
    %v6035 = vpack.c.b16 %v5972, %v5971
    %v6036 = vpack.c.b16 %v5974, %v5973
    %v6037 = vpack.c.b16 %v5976, %v5975
    %v6038 = vpack.c.b16 %v5978, %v5977
    %v6039 = vpack.c.b16 %v5980, %v5979
    %v6040 = vpack.c.b16 %v5982, %v5981
    %v6041 = vpack.c.b16 %v5984, %v5983
    %v6042 = vpack.c.b16 %v5986, %v5985
    %v6043 = vpack.c.b16 %v5988, %v5987
    %v6044 = vpack.c.b16 %v5990, %v5989
    %v6045 = vpack.c.b16 %v5992, %v5991
    %v6046 = vpack.c.b16 %v5994, %v5993
    %v6047 = vpack.c.b16 %v5996, %v5995
    %v6048 = vpack.c.b16 %v5998, %v5997
    %v6049 = vpack.c.b16 %v6000, %v5999
    %v6050 = vpack.c.b16 %v6002, %v6001
    %v6051 = vpack.c.b16 %v6004, %v6003
    %v6052 = vpack.c.b16 %v6006, %v6005
    %v6053 = vpack.c.b16 %v6008, %v6007
    %v6054 = vpack.c.b16 %v6010, %v6009
    %v6055 = vpack.c.b16 %v6012, %v6011
    %v6056 = vpack.c.b16 %v6014, %v6013
    %v6057 = vpack.c.b16 %v6016, %v6015
    %v6058 = vpack.c.b16 %v6018, %v6017
    %v6059 = vpack.c.b16 %v6020, %v6019
    %v6060 = vpack.c.b16 %v6022, %v6021
    %v6061 = vpack.c.b16 %v6024, %v6023
    %v6062 = vpack.c.b16 %v6026, %v6025
    %v6063 = vpack.c.b16 %v6028, %v6027
    %v6064 = vpack.c.b16 %v6030, %v6029
    %v6065 = vpack.c.b16 %v6032, %v6031
    %v6066 = vpack.c.b16 %v6034, %v6033
    %6099 = vmatprep.subr.bf16.mxu0 0
    %6100 = vmatpush1.bf16.msra.mxu0 %v6042
    %6101 = vmatprep.subr.bf16.mxu0 0
    %6102 = vmatpush1.bf16.msra.mxu0 %v6041
    %6103 = vmatprep.subr.bf16.mxu0 0
    %6104 = vmatpush1.bf16.msra.mxu0 %v6040
    %6105 = vmatprep.subr.bf16.mxu0 0
    %6106 = vmatpush1.bf16.msra.mxu0 %v6039
    %6107 = vmatprep.subr.bf16.mxu0 0
    %6108 = vmatpush1.bf16.msra.mxu0 %v6038
    %6109 = vmatprep.subr.bf16.mxu0 0
    %6110 = vmatpush1.bf16.msra.mxu0 %v6037
    %6111 = vmatprep.subr.bf16.mxu0 0
    %6112 = vmatpush1.bf16.msra.mxu0 %v6036
    %6113 = vmatprep.subr.bf16.mxu0 0
    %6114 = vmatpush1.bf16.msra.mxu0 %v6035
    %6115 = vmatprep.subr.bf16.mxu0 0
    %6116 = vmatpush2.bf16.msra.mxu0 %v6050
    %6117 = vmatprep.subr.bf16.mxu0 0
    %6118 = vmatpush2.bf16.msra.mxu0 %v6049
    %6119 = vmatprep.subr.bf16.mxu0 0
    %6120 = vmatpush2.bf16.msra.mxu0 %v6048
    %6121 = vmatprep.subr.bf16.mxu0 0
    %6122 = vmatpush2.bf16.msra.mxu0 %v6047
    %6123 = vmatprep.subr.bf16.mxu0 0
    %6124 = vmatpush2.bf16.msra.mxu0 %v6046
    %6125 = vmatprep.subr.bf16.mxu0 0
    %6126 = vmatpush2.bf16.msra.mxu0 %v6045
    %6127 = vmatprep.subr.bf16.mxu0 0
    %6128 = vmatpush2.bf16.msra.mxu0 %v6044
    %6129 = vmatprep.subr.bf16.mxu0 0
    %6130 = vmatpush2.bf16.msra.mxu0 %v6043
    %6131 = vmatprep.mubr.bf16.mxu0 %v5840
    %6132 = vmatmul.mubr.bf16.gmra.mxu0 %v5839
    %v6133 = vpop.f32.mrf.mxu0
    %v6134 = vadd.f32 0.0, %v6133
    %v6135 = vpop.f32.mrf.mxu0
    %v6136 = vpop.f32.mrf.mxu0
    %v6137 = vpop.f32.mrf.mxu0
    %6138 = vdwg.mxu0
    %6139 = vmatprep.subr.bf16.mxu0 0
    %6140 = vmatpush1.bf16.msra.mxu0 %v6058
    %6141 = vmatprep.subr.bf16.mxu0 0
    %6142 = vmatpush1.bf16.msra.mxu0 %v6057
    %6143 = vmatprep.subr.bf16.mxu0 0
    %6144 = vmatpush1.bf16.msra.mxu0 %v6056
    %6145 = vmatprep.subr.bf16.mxu0 0
    %6146 = vmatpush1.bf16.msra.mxu0 %v6055
    %6147 = vmatprep.subr.bf16.mxu0 0
    %6148 = vmatpush1.bf16.msra.mxu0 %v6054
    %6149 = vmatprep.subr.bf16.mxu0 0
    %6150 = vmatpush1.bf16.msra.mxu0 %v6053
    %6151 = vmatprep.subr.bf16.mxu0 0
    %6152 = vmatpush1.bf16.msra.mxu0 %v6052
    %6153 = vmatprep.subr.bf16.mxu0 0
    %6154 = vmatpush1.bf16.msra.mxu0 %v6051
    %6155 = vmatprep.subr.bf16.mxu0 0
    %6156 = vmatpush2.bf16.msra.mxu0 %v6066
    %6157 = vmatprep.subr.bf16.mxu0 0
    %6158 = vmatpush2.bf16.msra.mxu0 %v6065
    %6159 = vmatprep.subr.bf16.mxu0 0
    %6160 = vmatpush2.bf16.msra.mxu0 %v6064
    %6161 = vmatprep.subr.bf16.mxu0 0
    %6162 = vmatpush2.bf16.msra.mxu0 %v6063
    %6163 = vmatprep.subr.bf16.mxu0 0
    %6164 = vmatpush2.bf16.msra.mxu0 %v6062
    %6165 = vmatprep.subr.bf16.mxu0 0
    %6166 = vmatpush2.bf16.msra.mxu0 %v6061
    %6167 = vmatprep.subr.bf16.mxu0 0
    %6168 = vmatpush2.bf16.msra.mxu0 %v6060
    %6169 = vmatprep.subr.bf16.mxu0 0
    %6170 = vmatpush2.bf16.msra.mxu0 %v6059
    %6171 = vmatprep.mubr.bf16.mxu0 %v5842
    %6172 = vmatmul.mubr.bf16.gmra.mxu0 %v5841
    %v6173 = vpop.f32.mrf.mxu0
    %v6174 = vadd.f32 %v6134, %v6173
    %v6175 = vpop.f32.mrf.mxu0
    %v6176 = vpop.f32.mrf.mxu0
    %v6177 = vpop.f32.mrf.mxu0
    %6178 = vdwg.mxu0
    %v6243 = vunpack.c.l.b16 %v5751
    %v6244 = vunpack.c.l.b16 %v5752
    %v6245 = vunpack.c.l.b16 %v5753
    %v6246 = vunpack.c.l.b16 %v5754
    %v6247 = vunpack.c.l.b16 %v5755
    %v6248 = vunpack.c.l.b16 %v5756
    %v6249 = vunpack.c.l.b16 %v5757
    %v6250 = vunpack.c.l.b16 %v5758
    %v6251 = vunpack.c.l.b16 %v5759
    %v6252 = vunpack.c.l.b16 %v5760
    %v6253 = vunpack.c.l.b16 %v5761
    %v6254 = vunpack.c.l.b16 %v5762
    %v6255 = vunpack.c.l.b16 %v5763
    %v6256 = vunpack.c.l.b16 %v5764
    %v6257 = vunpack.c.l.b16 %v5765
    %v6258 = vunpack.c.l.b16 %v5766
    %v6259 = vunpack.c.l.b16 %v5767
    %v6260 = vunpack.c.l.b16 %v5768
    %v6261 = vunpack.c.l.b16 %v5769
    %v6262 = vunpack.c.l.b16 %v5770
    %v6263 = vunpack.c.l.b16 %v5771
    %v6264 = vunpack.c.l.b16 %v5772
    %v6265 = vunpack.c.l.b16 %v5773
    %v6266 = vunpack.c.l.b16 %v5774
    %v6267 = vunpack.c.l.b16 %v5775
    %v6268 = vunpack.c.l.b16 %v5776
    %v6269 = vunpack.c.l.b16 %v5777
    %v6270 = vunpack.c.l.b16 %v5778
    %v6271 = vunpack.c.l.b16 %v5779
    %v6272 = vunpack.c.l.b16 %v5780
    %v6273 = vunpack.c.l.b16 %v5781
    %v6274 = vunpack.c.l.b16 %v5782
    %v6275 = vunpack.c.l.b16 %v5783
    %v6276 = vunpack.c.l.b16 %v5784
    %v6277 = vunpack.c.l.b16 %v5785
    %v6278 = vunpack.c.l.b16 %v5786
    %v6279 = vunpack.c.l.b16 %v5787
    %v6280 = vunpack.c.l.b16 %v5788
    %v6281 = vunpack.c.l.b16 %v5789
    %v6282 = vunpack.c.l.b16 %v5790
    %v6283 = vunpack.c.l.b16 %v5791
    %v6284 = vunpack.c.l.b16 %v5792
    %v6285 = vunpack.c.l.b16 %v5793
    %v6286 = vunpack.c.l.b16 %v5794
    %v6287 = vunpack.c.l.b16 %v5795
    %v6288 = vunpack.c.l.b16 %v5796
    %v6289 = vunpack.c.l.b16 %v5797
    %v6290 = vunpack.c.l.b16 %v5798
    %v6291 = vunpack.c.l.b16 %v5799
    %v6292 = vunpack.c.l.b16 %v5800
    %v6293 = vunpack.c.l.b16 %v5801
    %v6294 = vunpack.c.l.b16 %v5802
    %v6295 = vunpack.c.l.b16 %v5803
    %v6296 = vunpack.c.l.b16 %v5804
    %v6297 = vunpack.c.l.b16 %v5805
    %v6298 = vunpack.c.l.b16 %v5806
    %v6299 = vunpack.c.l.b16 %v5807
    %v6300 = vunpack.c.l.b16 %v5808
    %v6301 = vunpack.c.l.b16 %v5809
    %v6302 = vunpack.c.l.b16 %v5810
    %v6303 = vunpack.c.l.b16 %v5811
    %v6304 = vunpack.c.l.b16 %v5812
    %v6305 = vunpack.c.l.b16 %v5813
    %v6306 = vunpack.c.l.b16 %v5814
    %v6307 = vpack.c.b16 %v6244, %v6243
    %v6308 = vpack.c.b16 %v6246, %v6245
    %v6309 = vpack.c.b16 %v6248, %v6247
    %v6310 = vpack.c.b16 %v6250, %v6249
    %v6311 = vpack.c.b16 %v6252, %v6251
    %v6312 = vpack.c.b16 %v6254, %v6253
    %v6313 = vpack.c.b16 %v6256, %v6255
    %v6314 = vpack.c.b16 %v6258, %v6257
    %v6315 = vpack.c.b16 %v6260, %v6259
    %v6316 = vpack.c.b16 %v6262, %v6261
    %v6317 = vpack.c.b16 %v6264, %v6263
    %v6318 = vpack.c.b16 %v6266, %v6265
    %v6319 = vpack.c.b16 %v6268, %v6267
    %v6320 = vpack.c.b16 %v6270, %v6269
    %v6321 = vpack.c.b16 %v6272, %v6271
    %v6322 = vpack.c.b16 %v6274, %v6273
    %v6323 = vpack.c.b16 %v6276, %v6275
    %v6324 = vpack.c.b16 %v6278, %v6277
    %v6325 = vpack.c.b16 %v6280, %v6279
    %v6326 = vpack.c.b16 %v6282, %v6281
    %v6327 = vpack.c.b16 %v6284, %v6283
    %v6328 = vpack.c.b16 %v6286, %v6285
    %v6329 = vpack.c.b16 %v6288, %v6287
    %v6330 = vpack.c.b16 %v6290, %v6289
    %v6331 = vpack.c.b16 %v6292, %v6291
    %v6332 = vpack.c.b16 %v6294, %v6293
    %v6333 = vpack.c.b16 %v6296, %v6295
    %v6334 = vpack.c.b16 %v6298, %v6297
    %v6335 = vpack.c.b16 %v6300, %v6299
    %v6336 = vpack.c.b16 %v6302, %v6301
    %v6337 = vpack.c.b16 %v6304, %v6303
    %v6338 = vpack.c.b16 %v6306, %v6305
    %6371 = vmatprep.subr.bf16.mxu0 0
    %6372 = vmatpush1.bf16.msra.mxu0 %v6314
    %6373 = vmatprep.subr.bf16.mxu0 0
    %6374 = vmatpush1.bf16.msra.mxu0 %v6313
    %6375 = vmatprep.subr.bf16.mxu0 0
    %6376 = vmatpush1.bf16.msra.mxu0 %v6312
    %6377 = vmatprep.subr.bf16.mxu0 0
    %6378 = vmatpush1.bf16.msra.mxu0 %v6311
    %6379 = vmatprep.subr.bf16.mxu0 0
    %6380 = vmatpush1.bf16.msra.mxu0 %v6310
    %6381 = vmatprep.subr.bf16.mxu0 0
    %6382 = vmatpush1.bf16.msra.mxu0 %v6309
    %6383 = vmatprep.subr.bf16.mxu0 0
    %6384 = vmatpush1.bf16.msra.mxu0 %v6308
    %6385 = vmatprep.subr.bf16.mxu0 0
    %6386 = vmatpush1.bf16.msra.mxu0 %v6307
    %6387 = vmatprep.subr.bf16.mxu0 0
    %6388 = vmatpush2.bf16.msra.mxu0 %v6322
    %6389 = vmatprep.subr.bf16.mxu0 0
    %6390 = vmatpush2.bf16.msra.mxu0 %v6321
    %6391 = vmatprep.subr.bf16.mxu0 0
    %6392 = vmatpush2.bf16.msra.mxu0 %v6320
    %6393 = vmatprep.subr.bf16.mxu0 0
    %6394 = vmatpush2.bf16.msra.mxu0 %v6319
    %6395 = vmatprep.subr.bf16.mxu0 0
    %6396 = vmatpush2.bf16.msra.mxu0 %v6318
    %6397 = vmatprep.subr.bf16.mxu0 0
    %6398 = vmatpush2.bf16.msra.mxu0 %v6317
    %6399 = vmatprep.subr.bf16.mxu0 0
    %6400 = vmatpush2.bf16.msra.mxu0 %v6316
    %6401 = vmatprep.subr.bf16.mxu0 0
    %6402 = vmatpush2.bf16.msra.mxu0 %v6315
    %6403 = vmatprep.mubr.bf16.mxu0 %v5748
    %6404 = vmatmul.mubr.bf16.gmra.mxu0 %v5747
    %v6405 = vpop.f32.mrf.mxu0
    %v6406 = vadd.f32 %v6174, %v6405
    %v6407 = vpop.f32.mrf.mxu0
    %v6408 = vpop.f32.mrf.mxu0
    %v6409 = vpop.f32.mrf.mxu0
    %6410 = vdwg.mxu0
    %6411 = vmatprep.subr.bf16.mxu0 0
    %6412 = vmatpush1.bf16.msra.mxu0 %v6330
    %6413 = vmatprep.subr.bf16.mxu0 0
    %6414 = vmatpush1.bf16.msra.mxu0 %v6329
    %6415 = vmatprep.subr.bf16.mxu0 0
    %6416 = vmatpush1.bf16.msra.mxu0 %v6328
    %6417 = vmatprep.subr.bf16.mxu0 0
    %6418 = vmatpush1.bf16.msra.mxu0 %v6327
    %6419 = vmatprep.subr.bf16.mxu0 0
    %6420 = vmatpush1.bf16.msra.mxu0 %v6326
    %6421 = vmatprep.subr.bf16.mxu0 0
    %6422 = vmatpush1.bf16.msra.mxu0 %v6325
    %6423 = vmatprep.subr.bf16.mxu0 0
    %6424 = vmatpush1.bf16.msra.mxu0 %v6324
    %6425 = vmatprep.subr.bf16.mxu0 0
    %6426 = vmatpush1.bf16.msra.mxu0 %v6323
    %6427 = vmatprep.subr.bf16.mxu0 0
    %6428 = vmatpush2.bf16.msra.mxu0 %v6338
    %6429 = vmatprep.subr.bf16.mxu0 0
    %6430 = vmatpush2.bf16.msra.mxu0 %v6337
    %6431 = vmatprep.subr.bf16.mxu0 0
    %6432 = vmatpush2.bf16.msra.mxu0 %v6336
    %6433 = vmatprep.subr.bf16.mxu0 0
    %6434 = vmatpush2.bf16.msra.mxu0 %v6335
    %6435 = vmatprep.subr.bf16.mxu0 0
    %6436 = vmatpush2.bf16.msra.mxu0 %v6334
    %6437 = vmatprep.subr.bf16.mxu0 0
    %6438 = vmatpush2.bf16.msra.mxu0 %v6333
    %6439 = vmatprep.subr.bf16.mxu0 0
    %6440 = vmatpush2.bf16.msra.mxu0 %v6332
    %6441 = vmatprep.subr.bf16.mxu0 0
    %6442 = vmatpush2.bf16.msra.mxu0 %v6331
    %6443 = vmatprep.mubr.bf16.mxu0 %v5750
    %6444 = vmatmul.mubr.bf16.gmra.mxu0 %v5749
    %v6445 = vpop.f32.mrf.mxu0
    %v6446 = vadd.f32 %v6406, %v6445
    %v6447 = vpop.f32.mrf.mxu0
    %v6448 = vpop.f32.mrf.mxu0
    %v6449 = vpop.f32.mrf.mxu0
    %6450 = vdwg.mxu0
    %v6451 = vrot.slane %v5543, 4
    %v6452 = vrot.slane %v5545, 4
    %v6453 = vrot.slane %v5707, 4
    %v6454 = vrot.slane %v5709, 4
    %v6459 = vadd.f32 %v3655, %v6451
    %v6460 = vadd.f32 %v3657, %v6452
    %v6461 = vadd.f32 %v3819, %v6453
    %v6462 = vadd.f32 %v3821, %v6454
    %v6463 = vadd.f32 %v6459, %v5722
    %v6464 = vadd.f32 %v6460, %v5726
    %v6465 = vadd.f32 %v6461, %v5730
    %v6466 = vadd.f32 %v6462, %v5734
    %v6467 = vmax.f32 %v6463, 0.0
    %v6468 = vmax.f32 %v6464, 0.0
    %v6469 = vmax.f32 %v6465, 0.0
    %v6470 = vmax.f32 %v6466, 0.0
    %v6471 = vpack.c.bf16 %v6467, %v6467
    %v6472 = vpack.c.bf16 %v6468, %v6468
    %v6473 = vpack.c.bf16 %v6469, %v6469
    %v6474 = vpack.c.bf16 %v6470, %v6470
    %v6475 = vld [vmem:[%s6 + $0x200] sm:$0xf]
    %v6476 = vld [vmem:[%s6 + $0x204] sm:$0xf]
    %v6477 = vld [vmem:[%s6 + $0x208] sm:$0xf]
    %v6478 = vld [vmem:[%s6 + $0x20c] sm:$0xf]
    %v6479 = vld [vmem:[%s6 + $0x210] sm:$0xf]
    %v6480 = vld [vmem:[%s6 + $0x214] sm:$0xf]
    %v6481 = vld [vmem:[%s6 + $0x218] sm:$0xf]
    %v6482 = vld [vmem:[%s6 + $0x21c] sm:$0xf]
    %v6483 = vld [vmem:[%s6 + $0x220] sm:$0xf]
    %v6484 = vld [vmem:[%s6 + $0x224] sm:$0xf]
    %v6485 = vld [vmem:[%s6 + $0x228] sm:$0xf]
    %v6486 = vld [vmem:[%s6 + $0x22c] sm:$0xf]
    %v6487 = vld [vmem:[%s6 + $0x230] sm:$0xf]
    %v6488 = vld [vmem:[%s6 + $0x234] sm:$0xf]
    %v6489 = vld [vmem:[%s6 + $0x238] sm:$0xf]
    %v6490 = vld [vmem:[%s6 + $0x23c] sm:$0xf]
    %v6491 = vld [vmem:[%s6 + $0x240] sm:$0xf]
    %v6492 = vld [vmem:[%s6 + $0x244] sm:$0xf]
    %v6493 = vld [vmem:[%s6 + $0x248] sm:$0xf]
    %v6494 = vld [vmem:[%s6 + $0x24c] sm:$0xf]
    %v6495 = vld [vmem:[%s6 + $0x250] sm:$0xf]
    %v6496 = vld [vmem:[%s6 + $0x254] sm:$0xf]
    %v6497 = vld [vmem:[%s6 + $0x258] sm:$0xf]
    %v6498 = vld [vmem:[%s6 + $0x25c] sm:$0xf]
    %v6499 = vld [vmem:[%s6 + $0x260] sm:$0xf]
    %v6500 = vld [vmem:[%s6 + $0x264] sm:$0xf]
    %v6501 = vld [vmem:[%s6 + $0x268] sm:$0xf]
    %v6502 = vld [vmem:[%s6 + $0x26c] sm:$0xf]
    %v6503 = vld [vmem:[%s6 + $0x270] sm:$0xf]
    %v6504 = vld [vmem:[%s6 + $0x274] sm:$0xf]
    %v6505 = vld [vmem:[%s6 + $0x278] sm:$0xf]
    %v6506 = vld [vmem:[%s6 + $0x27c] sm:$0xf]
    %v6507 = vld [vmem:[%s6 + $0x280] sm:$0xf]
    %v6508 = vld [vmem:[%s6 + $0x284] sm:$0xf]
    %v6509 = vld [vmem:[%s6 + $0x288] sm:$0xf]
    %v6510 = vld [vmem:[%s6 + $0x28c] sm:$0xf]
    %v6511 = vld [vmem:[%s6 + $0x290] sm:$0xf]
    %v6512 = vld [vmem:[%s6 + $0x294] sm:$0xf]
    %v6513 = vld [vmem:[%s6 + $0x298] sm:$0xf]
    %v6514 = vld [vmem:[%s6 + $0x29c] sm:$0xf]
    %v6515 = vld [vmem:[%s6 + $0x2a0] sm:$0xf]
    %v6516 = vld [vmem:[%s6 + $0x2a4] sm:$0xf]
    %v6517 = vld [vmem:[%s6 + $0x2a8] sm:$0xf]
    %v6518 = vld [vmem:[%s6 + $0x2ac] sm:$0xf]
    %v6519 = vld [vmem:[%s6 + $0x2b0] sm:$0xf]
    %v6520 = vld [vmem:[%s6 + $0x2b4] sm:$0xf]
    %v6521 = vld [vmem:[%s6 + $0x2b8] sm:$0xf]
    %v6522 = vld [vmem:[%s6 + $0x2bc] sm:$0xf]
    %v6523 = vld [vmem:[%s6 + $0x2c0] sm:$0xf]
    %v6524 = vld [vmem:[%s6 + $0x2c4] sm:$0xf]
    %v6525 = vld [vmem:[%s6 + $0x2c8] sm:$0xf]
    %v6526 = vld [vmem:[%s6 + $0x2cc] sm:$0xf]
    %v6527 = vld [vmem:[%s6 + $0x2d0] sm:$0xf]
    %v6528 = vld [vmem:[%s6 + $0x2d4] sm:$0xf]
    %v6529 = vld [vmem:[%s6 + $0x2d8] sm:$0xf]
    %v6530 = vld [vmem:[%s6 + $0x2dc] sm:$0xf]
    %v6531 = vld [vmem:[%s6 + $0x2e0] sm:$0xf]
    %v6532 = vld [vmem:[%s6 + $0x2e4] sm:$0xf]
    %v6533 = vld [vmem:[%s6 + $0x2e8] sm:$0xf]
    %v6534 = vld [vmem:[%s6 + $0x2ec] sm:$0xf]
    %v6535 = vld [vmem:[%s6 + $0x2f0] sm:$0xf]
    %v6536 = vld [vmem:[%s6 + $0x2f4] sm:$0xf]
    %v6537 = vld [vmem:[%s6 + $0x2f8] sm:$0xf]
    %v6538 = vld [vmem:[%s6 + $0x2fc] sm:$0xf]
    %v6603 = vunpack.c.l.b16 %v6475
    %v6604 = vunpack.c.l.b16 %v6476
    %v6605 = vunpack.c.l.b16 %v6477
    %v6606 = vunpack.c.l.b16 %v6478
    %v6607 = vunpack.c.l.b16 %v6479
    %v6608 = vunpack.c.l.b16 %v6480
    %v6609 = vunpack.c.l.b16 %v6481
    %v6610 = vunpack.c.l.b16 %v6482
    %v6611 = vunpack.c.l.b16 %v6483
    %v6612 = vunpack.c.l.b16 %v6484
    %v6613 = vunpack.c.l.b16 %v6485
    %v6614 = vunpack.c.l.b16 %v6486
    %v6615 = vunpack.c.l.b16 %v6487
    %v6616 = vunpack.c.l.b16 %v6488
    %v6617 = vunpack.c.l.b16 %v6489
    %v6618 = vunpack.c.l.b16 %v6490
    %v6619 = vunpack.c.l.b16 %v6491
    %v6620 = vunpack.c.l.b16 %v6492
    %v6621 = vunpack.c.l.b16 %v6493
    %v6622 = vunpack.c.l.b16 %v6494
    %v6623 = vunpack.c.l.b16 %v6495
    %v6624 = vunpack.c.l.b16 %v6496
    %v6625 = vunpack.c.l.b16 %v6497
    %v6626 = vunpack.c.l.b16 %v6498
    %v6627 = vunpack.c.l.b16 %v6499
    %v6628 = vunpack.c.l.b16 %v6500
    %v6629 = vunpack.c.l.b16 %v6501
    %v6630 = vunpack.c.l.b16 %v6502
    %v6631 = vunpack.c.l.b16 %v6503
    %v6632 = vunpack.c.l.b16 %v6504
    %v6633 = vunpack.c.l.b16 %v6505
    %v6634 = vunpack.c.l.b16 %v6506
    %v6635 = vunpack.c.l.b16 %v6507
    %v6636 = vunpack.c.l.b16 %v6508
    %v6637 = vunpack.c.l.b16 %v6509
    %v6638 = vunpack.c.l.b16 %v6510
    %v6639 = vunpack.c.l.b16 %v6511
    %v6640 = vunpack.c.l.b16 %v6512
    %v6641 = vunpack.c.l.b16 %v6513
    %v6642 = vunpack.c.l.b16 %v6514
    %v6643 = vunpack.c.l.b16 %v6515
    %v6644 = vunpack.c.l.b16 %v6516
    %v6645 = vunpack.c.l.b16 %v6517
    %v6646 = vunpack.c.l.b16 %v6518
    %v6647 = vunpack.c.l.b16 %v6519
    %v6648 = vunpack.c.l.b16 %v6520
    %v6649 = vunpack.c.l.b16 %v6521
    %v6650 = vunpack.c.l.b16 %v6522
    %v6651 = vunpack.c.l.b16 %v6523
    %v6652 = vunpack.c.l.b16 %v6524
    %v6653 = vunpack.c.l.b16 %v6525
    %v6654 = vunpack.c.l.b16 %v6526
    %v6655 = vunpack.c.l.b16 %v6527
    %v6656 = vunpack.c.l.b16 %v6528
    %v6657 = vunpack.c.l.b16 %v6529
    %v6658 = vunpack.c.l.b16 %v6530
    %v6659 = vunpack.c.l.b16 %v6531
    %v6660 = vunpack.c.l.b16 %v6532
    %v6661 = vunpack.c.l.b16 %v6533
    %v6662 = vunpack.c.l.b16 %v6534
    %v6663 = vunpack.c.l.b16 %v6535
    %v6664 = vunpack.c.l.b16 %v6536
    %v6665 = vunpack.c.l.b16 %v6537
    %v6666 = vunpack.c.l.b16 %v6538
    %v6667 = vpack.c.b16 %v6604, %v6603
    %v6668 = vpack.c.b16 %v6606, %v6605
    %v6669 = vpack.c.b16 %v6608, %v6607
    %v6670 = vpack.c.b16 %v6610, %v6609
    %v6671 = vpack.c.b16 %v6612, %v6611
    %v6672 = vpack.c.b16 %v6614, %v6613
    %v6673 = vpack.c.b16 %v6616, %v6615
    %v6674 = vpack.c.b16 %v6618, %v6617
    %v6675 = vpack.c.b16 %v6620, %v6619
    %v6676 = vpack.c.b16 %v6622, %v6621
    %v6677 = vpack.c.b16 %v6624, %v6623
    %v6678 = vpack.c.b16 %v6626, %v6625
    %v6679 = vpack.c.b16 %v6628, %v6627
    %v6680 = vpack.c.b16 %v6630, %v6629
    %v6681 = vpack.c.b16 %v6632, %v6631
    %v6682 = vpack.c.b16 %v6634, %v6633
    %v6683 = vpack.c.b16 %v6636, %v6635
    %v6684 = vpack.c.b16 %v6638, %v6637
    %v6685 = vpack.c.b16 %v6640, %v6639
    %v6686 = vpack.c.b16 %v6642, %v6641
    %v6687 = vpack.c.b16 %v6644, %v6643
    %v6688 = vpack.c.b16 %v6646, %v6645
    %v6689 = vpack.c.b16 %v6648, %v6647
    %v6690 = vpack.c.b16 %v6650, %v6649
    %v6691 = vpack.c.b16 %v6652, %v6651
    %v6692 = vpack.c.b16 %v6654, %v6653
    %v6693 = vpack.c.b16 %v6656, %v6655
    %v6694 = vpack.c.b16 %v6658, %v6657
    %v6695 = vpack.c.b16 %v6660, %v6659
    %v6696 = vpack.c.b16 %v6662, %v6661
    %v6697 = vpack.c.b16 %v6664, %v6663
    %v6698 = vpack.c.b16 %v6666, %v6665
    %6731 = vmatprep.subr.bf16.mxu0 0
    %6732 = vmatpush1.bf16.msra.mxu0 %v6674
    %6733 = vmatprep.subr.bf16.mxu0 0
    %6734 = vmatpush1.bf16.msra.mxu0 %v6673
    %6735 = vmatprep.subr.bf16.mxu0 0
    %6736 = vmatpush1.bf16.msra.mxu0 %v6672
    %6737 = vmatprep.subr.bf16.mxu0 0
    %6738 = vmatpush1.bf16.msra.mxu0 %v6671
    %6739 = vmatprep.subr.bf16.mxu0 0
    %6740 = vmatpush1.bf16.msra.mxu0 %v6670
    %6741 = vmatprep.subr.bf16.mxu0 0
    %6742 = vmatpush1.bf16.msra.mxu0 %v6669
    %6743 = vmatprep.subr.bf16.mxu0 0
    %6744 = vmatpush1.bf16.msra.mxu0 %v6668
    %6745 = vmatprep.subr.bf16.mxu0 0
    %6746 = vmatpush1.bf16.msra.mxu0 %v6667
    %6747 = vmatprep.subr.bf16.mxu0 0
    %6748 = vmatpush2.bf16.msra.mxu0 %v6682
    %6749 = vmatprep.subr.bf16.mxu0 0
    %6750 = vmatpush2.bf16.msra.mxu0 %v6681
    %6751 = vmatprep.subr.bf16.mxu0 0
    %6752 = vmatpush2.bf16.msra.mxu0 %v6680
    %6753 = vmatprep.subr.bf16.mxu0 0
    %6754 = vmatpush2.bf16.msra.mxu0 %v6679
    %6755 = vmatprep.subr.bf16.mxu0 0
    %6756 = vmatpush2.bf16.msra.mxu0 %v6678
    %6757 = vmatprep.subr.bf16.mxu0 0
    %6758 = vmatpush2.bf16.msra.mxu0 %v6677
    %6759 = vmatprep.subr.bf16.mxu0 0
    %6760 = vmatpush2.bf16.msra.mxu0 %v6676
    %6761 = vmatprep.subr.bf16.mxu0 0
    %6762 = vmatpush2.bf16.msra.mxu0 %v6675
    %6763 = vmatprep.mubr.bf16.mxu0 %v6472
    %6764 = vmatmul.mubr.bf16.gmra.mxu0 %v6471
    %v6765 = vpop.f32.mrf.mxu0
    %v6766 = vadd.f32 0.0, %v6765
    %v6767 = vpop.f32.mrf.mxu0
    %v6768 = vpop.f32.mrf.mxu0
    %v6769 = vpop.f32.mrf.mxu0
    %6770 = vdwg.mxu0
    %6771 = vmatprep.subr.bf16.mxu0 0
    %6772 = vmatpush1.bf16.msra.mxu0 %v6690
    %6773 = vmatprep.subr.bf16.mxu0 0
    %6774 = vmatpush1.bf16.msra.mxu0 %v6689
    %6775 = vmatprep.subr.bf16.mxu0 0
    %6776 = vmatpush1.bf16.msra.mxu0 %v6688
    %6777 = vmatprep.subr.bf16.mxu0 0
    %6778 = vmatpush1.bf16.msra.mxu0 %v6687
    %6779 = vmatprep.subr.bf16.mxu0 0
    %6780 = vmatpush1.bf16.msra.mxu0 %v6686
    %6781 = vmatprep.subr.bf16.mxu0 0
    %6782 = vmatpush1.bf16.msra.mxu0 %v6685
    %6783 = vmatprep.subr.bf16.mxu0 0
    %6784 = vmatpush1.bf16.msra.mxu0 %v6684
    %6785 = vmatprep.subr.bf16.mxu0 0
    %6786 = vmatpush1.bf16.msra.mxu0 %v6683
    %6787 = vmatprep.subr.bf16.mxu0 0
    %6788 = vmatpush2.bf16.msra.mxu0 %v6698
    %6789 = vmatprep.subr.bf16.mxu0 0
    %6790 = vmatpush2.bf16.msra.mxu0 %v6697
    %6791 = vmatprep.subr.bf16.mxu0 0
    %6792 = vmatpush2.bf16.msra.mxu0 %v6696
    %6793 = vmatprep.subr.bf16.mxu0 0
    %6794 = vmatpush2.bf16.msra.mxu0 %v6695
    %6795 = vmatprep.subr.bf16.mxu0 0
    %6796 = vmatpush2.bf16.msra.mxu0 %v6694
    %6797 = vmatprep.subr.bf16.mxu0 0
    %6798 = vmatpush2.bf16.msra.mxu0 %v6693
    %6799 = vmatprep.subr.bf16.mxu0 0
    %6800 = vmatpush2.bf16.msra.mxu0 %v6692
    %6801 = vmatprep.subr.bf16.mxu0 0
    %6802 = vmatpush2.bf16.msra.mxu0 %v6691
    %6803 = vmatprep.mubr.bf16.mxu0 %v6474
    %6804 = vmatmul.mubr.bf16.gmra.mxu0 %v6473
    %v6805 = vpop.f32.mrf.mxu0
    %v6806 = vadd.f32 %v6766, %v6805
    %v6807 = vpop.f32.mrf.mxu0
    %v6808 = vpop.f32.mrf.mxu0
    %v6809 = vpop.f32.mrf.mxu0
    %6810 = vdwg.mxu0
    %v6811 = vadd.f32 %v6446, %v6806
    %v6812 = vld [vmem:[%s6 + $0x300] sm:$0xf]
    %v6813 = vld [vmem:[%s6 + $0x304] sm:$0xf]
    %v6814 = vld [vmem:[%s6 + $0x308] sm:$0xf]
    %v6815 = vld [vmem:[%s6 + $0x30c] sm:$0xf]
    %v6816 = vld [vmem:[%s6 + $0x310] sm:$0xf]
    %v6817 = vld [vmem:[%s6 + $0x314] sm:$0xf]
    %v6818 = vld [vmem:[%s6 + $0x318] sm:$0xf]
    %v6819 = vld [vmem:[%s6 + $0x31c] sm:$0xf]
    %v6820 = vld [vmem:[%s6 + $0x320] sm:$0xf]
    %v6821 = vld [vmem:[%s6 + $0x324] sm:$0xf]
    %v6822 = vld [vmem:[%s6 + $0x328] sm:$0xf]
    %v6823 = vld [vmem:[%s6 + $0x32c] sm:$0xf]
    %v6824 = vld [vmem:[%s6 + $0x330] sm:$0xf]
    %v6825 = vld [vmem:[%s6 + $0x334] sm:$0xf]
    %v6826 = vld [vmem:[%s6 + $0x338] sm:$0xf]
    %v6827 = vld [vmem:[%s6 + $0x33c] sm:$0xf]
    %v6828 = vld [vmem:[%s6 + $0x340] sm:$0xf]
    %v6829 = vld [vmem:[%s6 + $0x344] sm:$0xf]
    %v6830 = vld [vmem:[%s6 + $0x348] sm:$0xf]
    %v6831 = vld [vmem:[%s6 + $0x34c] sm:$0xf]
    %v6832 = vld [vmem:[%s6 + $0x350] sm:$0xf]
    %v6833 = vld [vmem:[%s6 + $0x354] sm:$0xf]
    %v6834 = vld [vmem:[%s6 + $0x358] sm:$0xf]
    %v6835 = vld [vmem:[%s6 + $0x35c] sm:$0xf]
    %v6836 = vld [vmem:[%s6 + $0x360] sm:$0xf]
    %v6837 = vld [vmem:[%s6 + $0x364] sm:$0xf]
    %v6838 = vld [vmem:[%s6 + $0x368] sm:$0xf]
    %v6839 = vld [vmem:[%s6 + $0x36c] sm:$0xf]
    %v6840 = vld [vmem:[%s6 + $0x370] sm:$0xf]
    %v6841 = vld [vmem:[%s6 + $0x374] sm:$0xf]
    %v6842 = vld [vmem:[%s6 + $0x378] sm:$0xf]
    %v6843 = vld [vmem:[%s6 + $0x37c] sm:$0xf]
    %v6844 = vld [vmem:[%s6 + $0x380] sm:$0xf]
    %v6845 = vld [vmem:[%s6 + $0x384] sm:$0xf]
    %v6846 = vld [vmem:[%s6 + $0x388] sm:$0xf]
    %v6847 = vld [vmem:[%s6 + $0x38c] sm:$0xf]
    %v6848 = vld [vmem:[%s6 + $0x390] sm:$0xf]
    %v6849 = vld [vmem:[%s6 + $0x394] sm:$0xf]
    %v6850 = vld [vmem:[%s6 + $0x398] sm:$0xf]
    %v6851 = vld [vmem:[%s6 + $0x39c] sm:$0xf]
    %v6852 = vld [vmem:[%s6 + $0x3a0] sm:$0xf]
    %v6853 = vld [vmem:[%s6 + $0x3a4] sm:$0xf]
    %v6854 = vld [vmem:[%s6 + $0x3a8] sm:$0xf]
    %v6855 = vld [vmem:[%s6 + $0x3ac] sm:$0xf]
    %v6856 = vld [vmem:[%s6 + $0x3b0] sm:$0xf]
    %v6857 = vld [vmem:[%s6 + $0x3b4] sm:$0xf]
    %v6858 = vld [vmem:[%s6 + $0x3b8] sm:$0xf]
    %v6859 = vld [vmem:[%s6 + $0x3bc] sm:$0xf]
    %v6860 = vld [vmem:[%s6 + $0x3c0] sm:$0xf]
    %v6861 = vld [vmem:[%s6 + $0x3c4] sm:$0xf]
    %v6862 = vld [vmem:[%s6 + $0x3c8] sm:$0xf]
    %v6863 = vld [vmem:[%s6 + $0x3cc] sm:$0xf]
    %v6864 = vld [vmem:[%s6 + $0x3d0] sm:$0xf]
    %v6865 = vld [vmem:[%s6 + $0x3d4] sm:$0xf]
    %v6866 = vld [vmem:[%s6 + $0x3d8] sm:$0xf]
    %v6867 = vld [vmem:[%s6 + $0x3dc] sm:$0xf]
    %v6868 = vld [vmem:[%s6 + $0x3e0] sm:$0xf]
    %v6869 = vld [vmem:[%s6 + $0x3e4] sm:$0xf]
    %v6870 = vld [vmem:[%s6 + $0x3e8] sm:$0xf]
    %v6871 = vld [vmem:[%s6 + $0x3ec] sm:$0xf]
    %v6872 = vld [vmem:[%s6 + $0x3f0] sm:$0xf]
    %v6873 = vld [vmem:[%s6 + $0x3f4] sm:$0xf]
    %v6874 = vld [vmem:[%s6 + $0x3f8] sm:$0xf]
    %v6875 = vld [vmem:[%s6 + $0x3fc] sm:$0xf]
    %v6880 = vrot.slane %v5747, 1
    %v6881 = vrot.slane %v5748, 1
    %v6882 = vrot.slane %v5749, 1
    %v6883 = vrot.slane %v5750, 1
    %v6952 = vunpack.c.l.b16 %v6812
    %v6953 = vunpack.c.l.b16 %v6813
    %v6954 = vunpack.c.l.b16 %v6814
    %v6955 = vunpack.c.l.b16 %v6815
    %v6956 = vunpack.c.l.b16 %v6816
    %v6957 = vunpack.c.l.b16 %v6817
    %v6958 = vunpack.c.l.b16 %v6818
    %v6959 = vunpack.c.l.b16 %v6819
    %v6960 = vunpack.c.l.b16 %v6820
    %v6961 = vunpack.c.l.b16 %v6821
    %v6962 = vunpack.c.l.b16 %v6822
    %v6963 = vunpack.c.l.b16 %v6823
    %v6964 = vunpack.c.l.b16 %v6824
    %v6965 = vunpack.c.l.b16 %v6825
    %v6966 = vunpack.c.l.b16 %v6826
    %v6967 = vunpack.c.l.b16 %v6827
    %v6968 = vunpack.c.l.b16 %v6828
    %v6969 = vunpack.c.l.b16 %v6829
    %v6970 = vunpack.c.l.b16 %v6830
    %v6971 = vunpack.c.l.b16 %v6831
    %v6972 = vunpack.c.l.b16 %v6832
    %v6973 = vunpack.c.l.b16 %v6833
    %v6974 = vunpack.c.l.b16 %v6834
    %v6975 = vunpack.c.l.b16 %v6835
    %v6976 = vunpack.c.l.b16 %v6836
    %v6977 = vunpack.c.l.b16 %v6837
    %v6978 = vunpack.c.l.b16 %v6838
    %v6979 = vunpack.c.l.b16 %v6839
    %v6980 = vunpack.c.l.b16 %v6840
    %v6981 = vunpack.c.l.b16 %v6841
    %v6982 = vunpack.c.l.b16 %v6842
    %v6983 = vunpack.c.l.b16 %v6843
    %v6984 = vunpack.c.l.b16 %v6844
    %v6985 = vunpack.c.l.b16 %v6845
    %v6986 = vunpack.c.l.b16 %v6846
    %v6987 = vunpack.c.l.b16 %v6847
    %v6988 = vunpack.c.l.b16 %v6848
    %v6989 = vunpack.c.l.b16 %v6849
    %v6990 = vunpack.c.l.b16 %v6850
    %v6991 = vunpack.c.l.b16 %v6851
    %v6992 = vunpack.c.l.b16 %v6852
    %v6993 = vunpack.c.l.b16 %v6853
    %v6994 = vunpack.c.l.b16 %v6854
    %v6995 = vunpack.c.l.b16 %v6855
    %v6996 = vunpack.c.l.b16 %v6856
    %v6997 = vunpack.c.l.b16 %v6857
    %v6998 = vunpack.c.l.b16 %v6858
    %v6999 = vunpack.c.l.b16 %v6859
    %v7000 = vunpack.c.l.b16 %v6860
    %v7001 = vunpack.c.l.b16 %v6861
    %v7002 = vunpack.c.l.b16 %v6862
    %v7003 = vunpack.c.l.b16 %v6863
    %v7004 = vunpack.c.l.b16 %v6864
    %v7005 = vunpack.c.l.b16 %v6865
    %v7006 = vunpack.c.l.b16 %v6866
    %v7007 = vunpack.c.l.b16 %v6867
    %v7008 = vunpack.c.l.b16 %v6868
    %v7009 = vunpack.c.l.b16 %v6869
    %v7010 = vunpack.c.l.b16 %v6870
    %v7011 = vunpack.c.l.b16 %v6871
    %v7012 = vunpack.c.l.b16 %v6872
    %v7013 = vunpack.c.l.b16 %v6873
    %v7014 = vunpack.c.l.b16 %v6874
    %v7015 = vunpack.c.l.b16 %v6875
    %v7016 = vpack.c.b16 %v6953, %v6952
    %v7017 = vpack.c.b16 %v6955, %v6954
    %v7018 = vpack.c.b16 %v6957, %v6956
    %v7019 = vpack.c.b16 %v6959, %v6958
    %v7020 = vpack.c.b16 %v6961, %v6960
    %v7021 = vpack.c.b16 %v6963, %v6962
    %v7022 = vpack.c.b16 %v6965, %v6964
    %v7023 = vpack.c.b16 %v6967, %v6966
    %v7024 = vpack.c.b16 %v6969, %v6968
    %v7025 = vpack.c.b16 %v6971, %v6970
    %v7026 = vpack.c.b16 %v6973, %v6972
    %v7027 = vpack.c.b16 %v6975, %v6974
    %v7028 = vpack.c.b16 %v6977, %v6976
    %v7029 = vpack.c.b16 %v6979, %v6978
    %v7030 = vpack.c.b16 %v6981, %v6980
    %v7031 = vpack.c.b16 %v6983, %v6982
    %v7032 = vpack.c.b16 %v6985, %v6984
    %v7033 = vpack.c.b16 %v6987, %v6986
    %v7034 = vpack.c.b16 %v6989, %v6988
    %v7035 = vpack.c.b16 %v6991, %v6990
    %v7036 = vpack.c.b16 %v6993, %v6992
    %v7037 = vpack.c.b16 %v6995, %v6994
    %v7038 = vpack.c.b16 %v6997, %v6996
    %v7039 = vpack.c.b16 %v6999, %v6998
    %v7040 = vpack.c.b16 %v7001, %v7000
    %v7041 = vpack.c.b16 %v7003, %v7002
    %v7042 = vpack.c.b16 %v7005, %v7004
    %v7043 = vpack.c.b16 %v7007, %v7006
    %v7044 = vpack.c.b16 %v7009, %v7008
    %v7045 = vpack.c.b16 %v7011, %v7010
    %v7046 = vpack.c.b16 %v7013, %v7012
    %v7047 = vpack.c.b16 %v7015, %v7014
    %7080 = vmatprep.subr.bf16.mxu0 0
    %7081 = vmatpush1.bf16.msra.mxu0 %v7023
    %7082 = vmatprep.subr.bf16.mxu0 0
    %7083 = vmatpush1.bf16.msra.mxu0 %v7022
    %7084 = vmatprep.subr.bf16.mxu0 0
    %7085 = vmatpush1.bf16.msra.mxu0 %v7021
    %7086 = vmatprep.subr.bf16.mxu0 0
    %7087 = vmatpush1.bf16.msra.mxu0 %v7020
    %7088 = vmatprep.subr.bf16.mxu0 0
    %7089 = vmatpush1.bf16.msra.mxu0 %v7019
    %7090 = vmatprep.subr.bf16.mxu0 0
    %7091 = vmatpush1.bf16.msra.mxu0 %v7018
    %7092 = vmatprep.subr.bf16.mxu0 0
    %7093 = vmatpush1.bf16.msra.mxu0 %v7017
    %7094 = vmatprep.subr.bf16.mxu0 0
    %7095 = vmatpush1.bf16.msra.mxu0 %v7016
    %7096 = vmatprep.subr.bf16.mxu0 0
    %7097 = vmatpush2.bf16.msra.mxu0 %v7031
    %7098 = vmatprep.subr.bf16.mxu0 0
    %7099 = vmatpush2.bf16.msra.mxu0 %v7030
    %7100 = vmatprep.subr.bf16.mxu0 0
    %7101 = vmatpush2.bf16.msra.mxu0 %v7029
    %7102 = vmatprep.subr.bf16.mxu0 0
    %7103 = vmatpush2.bf16.msra.mxu0 %v7028
    %7104 = vmatprep.subr.bf16.mxu0 0
    %7105 = vmatpush2.bf16.msra.mxu0 %v7027
    %7106 = vmatprep.subr.bf16.mxu0 0
    %7107 = vmatpush2.bf16.msra.mxu0 %v7026
    %7108 = vmatprep.subr.bf16.mxu0 0
    %7109 = vmatpush2.bf16.msra.mxu0 %v7025
    %7110 = vmatprep.subr.bf16.mxu0 0
    %7111 = vmatpush2.bf16.msra.mxu0 %v7024
    %7112 = vmatprep.mubr.bf16.mxu0 %v6881
    %7113 = vmatmul.mubr.bf16.gmra.mxu0 %v6880
    %v7114 = vpop.f32.mrf.mxu0
    %v7115 = vadd.f32 0.0, %v7114
    %v7116 = vpop.f32.mrf.mxu0
    %v7117 = vpop.f32.mrf.mxu0
    %v7118 = vpop.f32.mrf.mxu0
    %7119 = vdwg.mxu0
    %7120 = vmatprep.subr.bf16.mxu0 0
    %7121 = vmatpush1.bf16.msra.mxu0 %v7039
    %7122 = vmatprep.subr.bf16.mxu0 0
    %7123 = vmatpush1.bf16.msra.mxu0 %v7038
    %7124 = vmatprep.subr.bf16.mxu0 0
    %7125 = vmatpush1.bf16.msra.mxu0 %v7037
    %7126 = vmatprep.subr.bf16.mxu0 0
    %7127 = vmatpush1.bf16.msra.mxu0 %v7036
    %7128 = vmatprep.subr.bf16.mxu0 0
    %7129 = vmatpush1.bf16.msra.mxu0 %v7035
    %7130 = vmatprep.subr.bf16.mxu0 0
    %7131 = vmatpush1.bf16.msra.mxu0 %v7034
    %7132 = vmatprep.subr.bf16.mxu0 0
    %7133 = vmatpush1.bf16.msra.mxu0 %v7033
    %7134 = vmatprep.subr.bf16.mxu0 0
    %7135 = vmatpush1.bf16.msra.mxu0 %v7032
    %7136 = vmatprep.subr.bf16.mxu0 0
    %7137 = vmatpush2.bf16.msra.mxu0 %v7047
    %7138 = vmatprep.subr.bf16.mxu0 0
    %7139 = vmatpush2.bf16.msra.mxu0 %v7046
    %7140 = vmatprep.subr.bf16.mxu0 0
    %7141 = vmatpush2.bf16.msra.mxu0 %v7045
    %7142 = vmatprep.subr.bf16.mxu0 0
    %7143 = vmatpush2.bf16.msra.mxu0 %v7044
    %7144 = vmatprep.subr.bf16.mxu0 0
    %7145 = vmatpush2.bf16.msra.mxu0 %v7043
    %7146 = vmatprep.subr.bf16.mxu0 0
    %7147 = vmatpush2.bf16.msra.mxu0 %v7042
    %7148 = vmatprep.subr.bf16.mxu0 0
    %7149 = vmatpush2.bf16.msra.mxu0 %v7041
    %7150 = vmatprep.subr.bf16.mxu0 0
    %7151 = vmatpush2.bf16.msra.mxu0 %v7040
    %7152 = vmatprep.mubr.bf16.mxu0 %v6883
    %7153 = vmatmul.mubr.bf16.gmra.mxu0 %v6882
    %v7154 = vpop.f32.mrf.mxu0
    %v7155 = vadd.f32 %v7115, %v7154
    %v7156 = vpop.f32.mrf.mxu0
    %v7157 = vpop.f32.mrf.mxu0
    %v7158 = vpop.f32.mrf.mxu0
    %7159 = vdwg.mxu0
    %v7160 = vadd.f32 %v6811, %v7155
    %v7161 = vld [vmem:[%s6 + $0x400] sm:$0xf]
    %v7162 = vld [vmem:[%s6 + $0x404] sm:$0xf]
    %v7163 = vld [vmem:[%s6 + $0x408] sm:$0xf]
    %v7164 = vld [vmem:[%s6 + $0x40c] sm:$0xf]
    %v7165 = vld [vmem:[%s6 + $0x410] sm:$0xf]
    %v7166 = vld [vmem:[%s6 + $0x414] sm:$0xf]
    %v7167 = vld [vmem:[%s6 + $0x418] sm:$0xf]
    %v7168 = vld [vmem:[%s6 + $0x41c] sm:$0xf]
    %v7169 = vld [vmem:[%s6 + $0x420] sm:$0xf]
    %v7170 = vld [vmem:[%s6 + $0x424] sm:$0xf]
    %v7171 = vld [vmem:[%s6 + $0x428] sm:$0xf]
    %v7172 = vld [vmem:[%s6 + $0x42c] sm:$0xf]
    %v7173 = vld [vmem:[%s6 + $0x430] sm:$0xf]
    %v7174 = vld [vmem:[%s6 + $0x434] sm:$0xf]
    %v7175 = vld [vmem:[%s6 + $0x438] sm:$0xf]
    %v7176 = vld [vmem:[%s6 + $0x43c] sm:$0xf]
    %v7177 = vld [vmem:[%s6 + $0x440] sm:$0xf]
    %v7178 = vld [vmem:[%s6 + $0x444] sm:$0xf]
    %v7179 = vld [vmem:[%s6 + $0x448] sm:$0xf]
    %v7180 = vld [vmem:[%s6 + $0x44c] sm:$0xf]
    %v7181 = vld [vmem:[%s6 + $0x450] sm:$0xf]
    %v7182 = vld [vmem:[%s6 + $0x454] sm:$0xf]
    %v7183 = vld [vmem:[%s6 + $0x458] sm:$0xf]
    %v7184 = vld [vmem:[%s6 + $0x45c] sm:$0xf]
    %v7185 = vld [vmem:[%s6 + $0x460] sm:$0xf]
    %v7186 = vld [vmem:[%s6 + $0x464] sm:$0xf]
    %v7187 = vld [vmem:[%s6 + $0x468] sm:$0xf]
    %v7188 = vld [vmem:[%s6 + $0x46c] sm:$0xf]
    %v7189 = vld [vmem:[%s6 + $0x470] sm:$0xf]
    %v7190 = vld [vmem:[%s6 + $0x474] sm:$0xf]
    %v7191 = vld [vmem:[%s6 + $0x478] sm:$0xf]
    %v7192 = vld [vmem:[%s6 + $0x47c] sm:$0xf]
    %v7193 = vld [vmem:[%s6 + $0x480] sm:$0xf]
    %v7194 = vld [vmem:[%s6 + $0x484] sm:$0xf]
    %v7195 = vld [vmem:[%s6 + $0x488] sm:$0xf]
    %v7196 = vld [vmem:[%s6 + $0x48c] sm:$0xf]
    %v7197 = vld [vmem:[%s6 + $0x490] sm:$0xf]
    %v7198 = vld [vmem:[%s6 + $0x494] sm:$0xf]
    %v7199 = vld [vmem:[%s6 + $0x498] sm:$0xf]
    %v7200 = vld [vmem:[%s6 + $0x49c] sm:$0xf]
    %v7201 = vld [vmem:[%s6 + $0x4a0] sm:$0xf]
    %v7202 = vld [vmem:[%s6 + $0x4a4] sm:$0xf]
    %v7203 = vld [vmem:[%s6 + $0x4a8] sm:$0xf]
    %v7204 = vld [vmem:[%s6 + $0x4ac] sm:$0xf]
    %v7205 = vld [vmem:[%s6 + $0x4b0] sm:$0xf]
    %v7206 = vld [vmem:[%s6 + $0x4b4] sm:$0xf]
    %v7207 = vld [vmem:[%s6 + $0x4b8] sm:$0xf]
    %v7208 = vld [vmem:[%s6 + $0x4bc] sm:$0xf]
    %v7209 = vld [vmem:[%s6 + $0x4c0] sm:$0xf]
    %v7210 = vld [vmem:[%s6 + $0x4c4] sm:$0xf]
    %v7211 = vld [vmem:[%s6 + $0x4c8] sm:$0xf]
    %v7212 = vld [vmem:[%s6 + $0x4cc] sm:$0xf]
    %v7213 = vld [vmem:[%s6 + $0x4d0] sm:$0xf]
    %v7214 = vld [vmem:[%s6 + $0x4d4] sm:$0xf]
    %v7215 = vld [vmem:[%s6 + $0x4d8] sm:$0xf]
    %v7216 = vld [vmem:[%s6 + $0x4dc] sm:$0xf]
    %v7217 = vld [vmem:[%s6 + $0x4e0] sm:$0xf]
    %v7218 = vld [vmem:[%s6 + $0x4e4] sm:$0xf]
    %v7219 = vld [vmem:[%s6 + $0x4e8] sm:$0xf]
    %v7220 = vld [vmem:[%s6 + $0x4ec] sm:$0xf]
    %v7221 = vld [vmem:[%s6 + $0x4f0] sm:$0xf]
    %v7222 = vld [vmem:[%s6 + $0x4f4] sm:$0xf]
    %v7223 = vld [vmem:[%s6 + $0x4f8] sm:$0xf]
    %v7224 = vld [vmem:[%s6 + $0x4fc] sm:$0xf]
    %v7229 = vrot.slane %v5839, 1
    %v7230 = vrot.slane %v5840, 1
    %v7231 = vrot.slane %v5841, 1
    %v7232 = vrot.slane %v5842, 1
    %v7301 = vunpack.c.l.b16 %v7161
    %v7302 = vunpack.c.l.b16 %v7162
    %v7303 = vunpack.c.l.b16 %v7163
    %v7304 = vunpack.c.l.b16 %v7164
    %v7305 = vunpack.c.l.b16 %v7165
    %v7306 = vunpack.c.l.b16 %v7166
    %v7307 = vunpack.c.l.b16 %v7167
    %v7308 = vunpack.c.l.b16 %v7168
    %v7309 = vunpack.c.l.b16 %v7169
    %v7310 = vunpack.c.l.b16 %v7170
    %v7311 = vunpack.c.l.b16 %v7171
    %v7312 = vunpack.c.l.b16 %v7172
    %v7313 = vunpack.c.l.b16 %v7173
    %v7314 = vunpack.c.l.b16 %v7174
    %v7315 = vunpack.c.l.b16 %v7175
    %v7316 = vunpack.c.l.b16 %v7176
    %v7317 = vunpack.c.l.b16 %v7177
    %v7318 = vunpack.c.l.b16 %v7178
    %v7319 = vunpack.c.l.b16 %v7179
    %v7320 = vunpack.c.l.b16 %v7180
    %v7321 = vunpack.c.l.b16 %v7181
    %v7322 = vunpack.c.l.b16 %v7182
    %v7323 = vunpack.c.l.b16 %v7183
    %v7324 = vunpack.c.l.b16 %v7184
    %v7325 = vunpack.c.l.b16 %v7185
    %v7326 = vunpack.c.l.b16 %v7186
    %v7327 = vunpack.c.l.b16 %v7187
    %v7328 = vunpack.c.l.b16 %v7188
    %v7329 = vunpack.c.l.b16 %v7189
    %v7330 = vunpack.c.l.b16 %v7190
    %v7331 = vunpack.c.l.b16 %v7191
    %v7332 = vunpack.c.l.b16 %v7192
    %v7333 = vunpack.c.l.b16 %v7193
    %v7334 = vunpack.c.l.b16 %v7194
    %v7335 = vunpack.c.l.b16 %v7195
    %v7336 = vunpack.c.l.b16 %v7196
    %v7337 = vunpack.c.l.b16 %v7197
    %v7338 = vunpack.c.l.b16 %v7198
    %v7339 = vunpack.c.l.b16 %v7199
    %v7340 = vunpack.c.l.b16 %v7200
    %v7341 = vunpack.c.l.b16 %v7201
    %v7342 = vunpack.c.l.b16 %v7202
    %v7343 = vunpack.c.l.b16 %v7203
    %v7344 = vunpack.c.l.b16 %v7204
    %v7345 = vunpack.c.l.b16 %v7205
    %v7346 = vunpack.c.l.b16 %v7206
    %v7347 = vunpack.c.l.b16 %v7207
    %v7348 = vunpack.c.l.b16 %v7208
    %v7349 = vunpack.c.l.b16 %v7209
    %v7350 = vunpack.c.l.b16 %v7210
    %v7351 = vunpack.c.l.b16 %v7211
    %v7352 = vunpack.c.l.b16 %v7212
    %v7353 = vunpack.c.l.b16 %v7213
    %v7354 = vunpack.c.l.b16 %v7214
    %v7355 = vunpack.c.l.b16 %v7215
    %v7356 = vunpack.c.l.b16 %v7216
    %v7357 = vunpack.c.l.b16 %v7217
    %v7358 = vunpack.c.l.b16 %v7218
    %v7359 = vunpack.c.l.b16 %v7219
    %v7360 = vunpack.c.l.b16 %v7220
    %v7361 = vunpack.c.l.b16 %v7221
    %v7362 = vunpack.c.l.b16 %v7222
    %v7363 = vunpack.c.l.b16 %v7223
    %v7364 = vunpack.c.l.b16 %v7224
    %v7365 = vpack.c.b16 %v7302, %v7301
    %v7366 = vpack.c.b16 %v7304, %v7303
    %v7367 = vpack.c.b16 %v7306, %v7305
    %v7368 = vpack.c.b16 %v7308, %v7307
    %v7369 = vpack.c.b16 %v7310, %v7309
    %v7370 = vpack.c.b16 %v7312, %v7311
    %v7371 = vpack.c.b16 %v7314, %v7313
    %v7372 = vpack.c.b16 %v7316, %v7315
    %v7373 = vpack.c.b16 %v7318, %v7317
    %v7374 = vpack.c.b16 %v7320, %v7319
    %v7375 = vpack.c.b16 %v7322, %v7321
    %v7376 = vpack.c.b16 %v7324, %v7323
    %v7377 = vpack.c.b16 %v7326, %v7325
    %v7378 = vpack.c.b16 %v7328, %v7327
    %v7379 = vpack.c.b16 %v7330, %v7329
    %v7380 = vpack.c.b16 %v7332, %v7331
    %v7381 = vpack.c.b16 %v7334, %v7333
    %v7382 = vpack.c.b16 %v7336, %v7335
    %v7383 = vpack.c.b16 %v7338, %v7337
    %v7384 = vpack.c.b16 %v7340, %v7339
    %v7385 = vpack.c.b16 %v7342, %v7341
    %v7386 = vpack.c.b16 %v7344, %v7343
    %v7387 = vpack.c.b16 %v7346, %v7345
    %v7388 = vpack.c.b16 %v7348, %v7347
    %v7389 = vpack.c.b16 %v7350, %v7349
    %v7390 = vpack.c.b16 %v7352, %v7351
    %v7391 = vpack.c.b16 %v7354, %v7353
    %v7392 = vpack.c.b16 %v7356, %v7355
    %v7393 = vpack.c.b16 %v7358, %v7357
    %v7394 = vpack.c.b16 %v7360, %v7359
    %v7395 = vpack.c.b16 %v7362, %v7361
    %v7396 = vpack.c.b16 %v7364, %v7363
    %7429 = vmatprep.subr.bf16.mxu0 0
    %7430 = vmatpush1.bf16.msra.mxu0 %v7372
    %7431 = vmatprep.subr.bf16.mxu0 0
    %7432 = vmatpush1.bf16.msra.mxu0 %v7371
    %7433 = vmatprep.subr.bf16.mxu0 0
    %7434 = vmatpush1.bf16.msra.mxu0 %v7370
    %7435 = vmatprep.subr.bf16.mxu0 0
    %7436 = vmatpush1.bf16.msra.mxu0 %v7369
    %7437 = vmatprep.subr.bf16.mxu0 0
    %7438 = vmatpush1.bf16.msra.mxu0 %v7368
    %7439 = vmatprep.subr.bf16.mxu0 0
    %7440 = vmatpush1.bf16.msra.mxu0 %v7367
    %7441 = vmatprep.subr.bf16.mxu0 0
    %7442 = vmatpush1.bf16.msra.mxu0 %v7366
    %7443 = vmatprep.subr.bf16.mxu0 0
    %7444 = vmatpush1.bf16.msra.mxu0 %v7365
    %7445 = vmatprep.subr.bf16.mxu0 0
    %7446 = vmatpush2.bf16.msra.mxu0 %v7380
    %7447 = vmatprep.subr.bf16.mxu0 0
    %7448 = vmatpush2.bf16.msra.mxu0 %v7379
    %7449 = vmatprep.subr.bf16.mxu0 0
    %7450 = vmatpush2.bf16.msra.mxu0 %v7378
    %7451 = vmatprep.subr.bf16.mxu0 0
    %7452 = vmatpush2.bf16.msra.mxu0 %v7377
    %7453 = vmatprep.subr.bf16.mxu0 0
    %7454 = vmatpush2.bf16.msra.mxu0 %v7376
    %7455 = vmatprep.subr.bf16.mxu0 0
    %7456 = vmatpush2.bf16.msra.mxu0 %v7375
    %7457 = vmatprep.subr.bf16.mxu0 0
    %7458 = vmatpush2.bf16.msra.mxu0 %v7374
    %7459 = vmatprep.subr.bf16.mxu0 0
    %7460 = vmatpush2.bf16.msra.mxu0 %v7373
    %7461 = vmatprep.mubr.bf16.mxu0 %v7230
    %7462 = vmatmul.mubr.bf16.gmra.mxu0 %v7229
    %v7463 = vpop.f32.mrf.mxu0
    %v7464 = vadd.f32 0.0, %v7463
    %v7465 = vpop.f32.mrf.mxu0
    %v7466 = vpop.f32.mrf.mxu0
    %v7467 = vpop.f32.mrf.mxu0
    %7468 = vdwg.mxu0
    %7469 = vmatprep.subr.bf16.mxu0 0
    %7470 = vmatpush1.bf16.msra.mxu0 %v7388
    %7471 = vmatprep.subr.bf16.mxu0 0
    %7472 = vmatpush1.bf16.msra.mxu0 %v7387
    %7473 = vmatprep.subr.bf16.mxu0 0
    %7474 = vmatpush1.bf16.msra.mxu0 %v7386
    %7475 = vmatprep.subr.bf16.mxu0 0
    %7476 = vmatpush1.bf16.msra.mxu0 %v7385
    %7477 = vmatprep.subr.bf16.mxu0 0
    %7478 = vmatpush1.bf16.msra.mxu0 %v7384
    %7479 = vmatprep.subr.bf16.mxu0 0
    %7480 = vmatpush1.bf16.msra.mxu0 %v7383
    %7481 = vmatprep.subr.bf16.mxu0 0
    %7482 = vmatpush1.bf16.msra.mxu0 %v7382
    %7483 = vmatprep.subr.bf16.mxu0 0
    %7484 = vmatpush1.bf16.msra.mxu0 %v7381
    %7485 = vmatprep.subr.bf16.mxu0 0
    %7486 = vmatpush2.bf16.msra.mxu0 %v7396
    %7487 = vmatprep.subr.bf16.mxu0 0
    %7488 = vmatpush2.bf16.msra.mxu0 %v7395
    %7489 = vmatprep.subr.bf16.mxu0 0
    %7490 = vmatpush2.bf16.msra.mxu0 %v7394
    %7491 = vmatprep.subr.bf16.mxu0 0
    %7492 = vmatpush2.bf16.msra.mxu0 %v7393
    %7493 = vmatprep.subr.bf16.mxu0 0
    %7494 = vmatpush2.bf16.msra.mxu0 %v7392
    %7495 = vmatprep.subr.bf16.mxu0 0
    %7496 = vmatpush2.bf16.msra.mxu0 %v7391
    %7497 = vmatprep.subr.bf16.mxu0 0
    %7498 = vmatpush2.bf16.msra.mxu0 %v7390
    %7499 = vmatprep.subr.bf16.mxu0 0
    %7500 = vmatpush2.bf16.msra.mxu0 %v7389
    %7501 = vmatprep.mubr.bf16.mxu0 %v7232
    %7502 = vmatmul.mubr.bf16.gmra.mxu0 %v7231
    %v7503 = vpop.f32.mrf.mxu0
    %v7504 = vadd.f32 %v7464, %v7503
    %v7505 = vpop.f32.mrf.mxu0
    %v7506 = vpop.f32.mrf.mxu0
    %v7507 = vpop.f32.mrf.mxu0
    %7508 = vdwg.mxu0
    %v7509 = vadd.f32 %v7160, %v7504
    %v7510 = vld [vmem:[%s6 + $0x500] sm:$0xf]
    %v7511 = vld [vmem:[%s6 + $0x504] sm:$0xf]
    %v7512 = vld [vmem:[%s6 + $0x508] sm:$0xf]
    %v7513 = vld [vmem:[%s6 + $0x50c] sm:$0xf]
    %v7514 = vld [vmem:[%s6 + $0x510] sm:$0xf]
    %v7515 = vld [vmem:[%s6 + $0x514] sm:$0xf]
    %v7516 = vld [vmem:[%s6 + $0x518] sm:$0xf]
    %v7517 = vld [vmem:[%s6 + $0x51c] sm:$0xf]
    %v7518 = vld [vmem:[%s6 + $0x520] sm:$0xf]
    %v7519 = vld [vmem:[%s6 + $0x524] sm:$0xf]
    %v7520 = vld [vmem:[%s6 + $0x528] sm:$0xf]
    %v7521 = vld [vmem:[%s6 + $0x52c] sm:$0xf]
    %v7522 = vld [vmem:[%s6 + $0x530] sm:$0xf]
    %v7523 = vld [vmem:[%s6 + $0x534] sm:$0xf]
    %v7524 = vld [vmem:[%s6 + $0x538] sm:$0xf]
    %v7525 = vld [vmem:[%s6 + $0x53c] sm:$0xf]
    %v7526 = vld [vmem:[%s6 + $0x540] sm:$0xf]
    %v7527 = vld [vmem:[%s6 + $0x544] sm:$0xf]
    %v7528 = vld [vmem:[%s6 + $0x548] sm:$0xf]
    %v7529 = vld [vmem:[%s6 + $0x54c] sm:$0xf]
    %v7530 = vld [vmem:[%s6 + $0x550] sm:$0xf]
    %v7531 = vld [vmem:[%s6 + $0x554] sm:$0xf]
    %v7532 = vld [vmem:[%s6 + $0x558] sm:$0xf]
    %v7533 = vld [vmem:[%s6 + $0x55c] sm:$0xf]
    %v7534 = vld [vmem:[%s6 + $0x560] sm:$0xf]
    %v7535 = vld [vmem:[%s6 + $0x564] sm:$0xf]
    %v7536 = vld [vmem:[%s6 + $0x568] sm:$0xf]
    %v7537 = vld [vmem:[%s6 + $0x56c] sm:$0xf]
    %v7538 = vld [vmem:[%s6 + $0x570] sm:$0xf]
    %v7539 = vld [vmem:[%s6 + $0x574] sm:$0xf]
    %v7540 = vld [vmem:[%s6 + $0x578] sm:$0xf]
    %v7541 = vld [vmem:[%s6 + $0x57c] sm:$0xf]
    %v7542 = vld [vmem:[%s6 + $0x580] sm:$0xf]
    %v7543 = vld [vmem:[%s6 + $0x584] sm:$0xf]
    %v7544 = vld [vmem:[%s6 + $0x588] sm:$0xf]
    %v7545 = vld [vmem:[%s6 + $0x58c] sm:$0xf]
    %v7546 = vld [vmem:[%s6 + $0x590] sm:$0xf]
    %v7547 = vld [vmem:[%s6 + $0x594] sm:$0xf]
    %v7548 = vld [vmem:[%s6 + $0x598] sm:$0xf]
    %v7549 = vld [vmem:[%s6 + $0x59c] sm:$0xf]
    %v7550 = vld [vmem:[%s6 + $0x5a0] sm:$0xf]
    %v7551 = vld [vmem:[%s6 + $0x5a4] sm:$0xf]
    %v7552 = vld [vmem:[%s6 + $0x5a8] sm:$0xf]
    %v7553 = vld [vmem:[%s6 + $0x5ac] sm:$0xf]
    %v7554 = vld [vmem:[%s6 + $0x5b0] sm:$0xf]
    %v7555 = vld [vmem:[%s6 + $0x5b4] sm:$0xf]
    %v7556 = vld [vmem:[%s6 + $0x5b8] sm:$0xf]
    %v7557 = vld [vmem:[%s6 + $0x5bc] sm:$0xf]
    %v7558 = vld [vmem:[%s6 + $0x5c0] sm:$0xf]
    %v7559 = vld [vmem:[%s6 + $0x5c4] sm:$0xf]
    %v7560 = vld [vmem:[%s6 + $0x5c8] sm:$0xf]
    %v7561 = vld [vmem:[%s6 + $0x5cc] sm:$0xf]
    %v7562 = vld [vmem:[%s6 + $0x5d0] sm:$0xf]
    %v7563 = vld [vmem:[%s6 + $0x5d4] sm:$0xf]
    %v7564 = vld [vmem:[%s6 + $0x5d8] sm:$0xf]
    %v7565 = vld [vmem:[%s6 + $0x5dc] sm:$0xf]
    %v7566 = vld [vmem:[%s6 + $0x5e0] sm:$0xf]
    %v7567 = vld [vmem:[%s6 + $0x5e4] sm:$0xf]
    %v7568 = vld [vmem:[%s6 + $0x5e8] sm:$0xf]
    %v7569 = vld [vmem:[%s6 + $0x5ec] sm:$0xf]
    %v7570 = vld [vmem:[%s6 + $0x5f0] sm:$0xf]
    %v7571 = vld [vmem:[%s6 + $0x5f4] sm:$0xf]
    %v7572 = vld [vmem:[%s6 + $0x5f8] sm:$0xf]
    %v7573 = vld [vmem:[%s6 + $0x5fc] sm:$0xf]
    %v7574 = vrot.slane %v5747, 2
    %v7575 = vrot.slane %v5748, 2
    %v7576 = vrot.slane %v5749, 2
    %v7577 = vrot.slane %v5750, 2
    %v7646 = vunpack.c.l.b16 %v7510
    %v7647 = vunpack.c.l.b16 %v7511
    %v7648 = vunpack.c.l.b16 %v7512
    %v7649 = vunpack.c.l.b16 %v7513
    %v7650 = vunpack.c.l.b16 %v7514
    %v7651 = vunpack.c.l.b16 %v7515
    %v7652 = vunpack.c.l.b16 %v7516
    %v7653 = vunpack.c.l.b16 %v7517
    %v7654 = vunpack.c.l.b16 %v7518
    %v7655 = vunpack.c.l.b16 %v7519
    %v7656 = vunpack.c.l.b16 %v7520
    %v7657 = vunpack.c.l.b16 %v7521
    %v7658 = vunpack.c.l.b16 %v7522
    %v7659 = vunpack.c.l.b16 %v7523
    %v7660 = vunpack.c.l.b16 %v7524
    %v7661 = vunpack.c.l.b16 %v7525
    %v7662 = vunpack.c.l.b16 %v7526
    %v7663 = vunpack.c.l.b16 %v7527
    %v7664 = vunpack.c.l.b16 %v7528
    %v7665 = vunpack.c.l.b16 %v7529
    %v7666 = vunpack.c.l.b16 %v7530
    %v7667 = vunpack.c.l.b16 %v7531
    %v7668 = vunpack.c.l.b16 %v7532
    %v7669 = vunpack.c.l.b16 %v7533
    %v7670 = vunpack.c.l.b16 %v7534
    %v7671 = vunpack.c.l.b16 %v7535
    %v7672 = vunpack.c.l.b16 %v7536
    %v7673 = vunpack.c.l.b16 %v7537
    %v7674 = vunpack.c.l.b16 %v7538
    %v7675 = vunpack.c.l.b16 %v7539
    %v7676 = vunpack.c.l.b16 %v7540
    %v7677 = vunpack.c.l.b16 %v7541
    %v7678 = vunpack.c.l.b16 %v7542
    %v7679 = vunpack.c.l.b16 %v7543
    %v7680 = vunpack.c.l.b16 %v7544
    %v7681 = vunpack.c.l.b16 %v7545
    %v7682 = vunpack.c.l.b16 %v7546
    %v7683 = vunpack.c.l.b16 %v7547
    %v7684 = vunpack.c.l.b16 %v7548
    %v7685 = vunpack.c.l.b16 %v7549
    %v7686 = vunpack.c.l.b16 %v7550
    %v7687 = vunpack.c.l.b16 %v7551
    %v7688 = vunpack.c.l.b16 %v7552
    %v7689 = vunpack.c.l.b16 %v7553
    %v7690 = vunpack.c.l.b16 %v7554
    %v7691 = vunpack.c.l.b16 %v7555
    %v7692 = vunpack.c.l.b16 %v7556
    %v7693 = vunpack.c.l.b16 %v7557
    %v7694 = vunpack.c.l.b16 %v7558
    %v7695 = vunpack.c.l.b16 %v7559
    %v7696 = vunpack.c.l.b16 %v7560
    %v7697 = vunpack.c.l.b16 %v7561
    %v7698 = vunpack.c.l.b16 %v7562
    %v7699 = vunpack.c.l.b16 %v7563
    %v7700 = vunpack.c.l.b16 %v7564
    %v7701 = vunpack.c.l.b16 %v7565
    %v7702 = vunpack.c.l.b16 %v7566
    %v7703 = vunpack.c.l.b16 %v7567
    %v7704 = vunpack.c.l.b16 %v7568
    %v7705 = vunpack.c.l.b16 %v7569
    %v7706 = vunpack.c.l.b16 %v7570
    %v7707 = vunpack.c.l.b16 %v7571
    %v7708 = vunpack.c.l.b16 %v7572
    %v7709 = vunpack.c.l.b16 %v7573
    %v7710 = vpack.c.b16 %v7647, %v7646
    %v7711 = vpack.c.b16 %v7649, %v7648
    %v7712 = vpack.c.b16 %v7651, %v7650
    %v7713 = vpack.c.b16 %v7653, %v7652
    %v7714 = vpack.c.b16 %v7655, %v7654
    %v7715 = vpack.c.b16 %v7657, %v7656
    %v7716 = vpack.c.b16 %v7659, %v7658
    %v7717 = vpack.c.b16 %v7661, %v7660
    %v7718 = vpack.c.b16 %v7663, %v7662
    %v7719 = vpack.c.b16 %v7665, %v7664
    %v7720 = vpack.c.b16 %v7667, %v7666
    %v7721 = vpack.c.b16 %v7669, %v7668
    %v7722 = vpack.c.b16 %v7671, %v7670
    %v7723 = vpack.c.b16 %v7673, %v7672
    %v7724 = vpack.c.b16 %v7675, %v7674
    %v7725 = vpack.c.b16 %v7677, %v7676
    %v7726 = vpack.c.b16 %v7679, %v7678
    %v7727 = vpack.c.b16 %v7681, %v7680
    %v7728 = vpack.c.b16 %v7683, %v7682
    %v7729 = vpack.c.b16 %v7685, %v7684
    %v7730 = vpack.c.b16 %v7687, %v7686
    %v7731 = vpack.c.b16 %v7689, %v7688
    %v7732 = vpack.c.b16 %v7691, %v7690
    %v7733 = vpack.c.b16 %v7693, %v7692
    %v7734 = vpack.c.b16 %v7695, %v7694
    %v7735 = vpack.c.b16 %v7697, %v7696
    %v7736 = vpack.c.b16 %v7699, %v7698
    %v7737 = vpack.c.b16 %v7701, %v7700
    %v7738 = vpack.c.b16 %v7703, %v7702
    %v7739 = vpack.c.b16 %v7705, %v7704
    %v7740 = vpack.c.b16 %v7707, %v7706
    %v7741 = vpack.c.b16 %v7709, %v7708
    %7774 = vmatprep.subr.bf16.mxu0 0
    %7775 = vmatpush1.bf16.msra.mxu0 %v7717
    %7776 = vmatprep.subr.bf16.mxu0 0
    %7777 = vmatpush1.bf16.msra.mxu0 %v7716
    %7778 = vmatprep.subr.bf16.mxu0 0
    %7779 = vmatpush1.bf16.msra.mxu0 %v7715
    %7780 = vmatprep.subr.bf16.mxu0 0
    %7781 = vmatpush1.bf16.msra.mxu0 %v7714
    %7782 = vmatprep.subr.bf16.mxu0 0
    %7783 = vmatpush1.bf16.msra.mxu0 %v7713
    %7784 = vmatprep.subr.bf16.mxu0 0
    %7785 = vmatpush1.bf16.msra.mxu0 %v7712
    %7786 = vmatprep.subr.bf16.mxu0 0
    %7787 = vmatpush1.bf16.msra.mxu0 %v7711
    %7788 = vmatprep.subr.bf16.mxu0 0
    %7789 = vmatpush1.bf16.msra.mxu0 %v7710
    %7790 = vmatprep.subr.bf16.mxu0 0
    %7791 = vmatpush2.bf16.msra.mxu0 %v7725
    %7792 = vmatprep.subr.bf16.mxu0 0
    %7793 = vmatpush2.bf16.msra.mxu0 %v7724
    %7794 = vmatprep.subr.bf16.mxu0 0
    %7795 = vmatpush2.bf16.msra.mxu0 %v7723
    %7796 = vmatprep.subr.bf16.mxu0 0
    %7797 = vmatpush2.bf16.msra.mxu0 %v7722
    %7798 = vmatprep.subr.bf16.mxu0 0
    %7799 = vmatpush2.bf16.msra.mxu0 %v7721
    %7800 = vmatprep.subr.bf16.mxu0 0
    %7801 = vmatpush2.bf16.msra.mxu0 %v7720
    %7802 = vmatprep.subr.bf16.mxu0 0
    %7803 = vmatpush2.bf16.msra.mxu0 %v7719
    %7804 = vmatprep.subr.bf16.mxu0 0
    %7805 = vmatpush2.bf16.msra.mxu0 %v7718
    %7806 = vmatprep.mubr.bf16.mxu0 %v7575
    %7807 = vmatmul.mubr.bf16.gmra.mxu0 %v7574
    %v7808 = vpop.f32.mrf.mxu0
    %v7809 = vadd.f32 0.0, %v7808
    %v7810 = vpop.f32.mrf.mxu0
    %v7811 = vpop.f32.mrf.mxu0
    %v7812 = vpop.f32.mrf.mxu0
    %7813 = vdwg.mxu0
    %7814 = vmatprep.subr.bf16.mxu0 0
    %7815 = vmatpush1.bf16.msra.mxu0 %v7733
    %7816 = vmatprep.subr.bf16.mxu0 0
    %7817 = vmatpush1.bf16.msra.mxu0 %v7732
    %7818 = vmatprep.subr.bf16.mxu0 0
    %7819 = vmatpush1.bf16.msra.mxu0 %v7731
    %7820 = vmatprep.subr.bf16.mxu0 0
    %7821 = vmatpush1.bf16.msra.mxu0 %v7730
    %7822 = vmatprep.subr.bf16.mxu0 0
    %7823 = vmatpush1.bf16.msra.mxu0 %v7729
    %7824 = vmatprep.subr.bf16.mxu0 0
    %7825 = vmatpush1.bf16.msra.mxu0 %v7728
    %7826 = vmatprep.subr.bf16.mxu0 0
    %7827 = vmatpush1.bf16.msra.mxu0 %v7727
    %7828 = vmatprep.subr.bf16.mxu0 0
    %7829 = vmatpush1.bf16.msra.mxu0 %v7726
    %7830 = vmatprep.subr.bf16.mxu0 0
    %7831 = vmatpush2.bf16.msra.mxu0 %v7741
    %7832 = vmatprep.subr.bf16.mxu0 0
    %7833 = vmatpush2.bf16.msra.mxu0 %v7740
    %7834 = vmatprep.subr.bf16.mxu0 0
    %7835 = vmatpush2.bf16.msra.mxu0 %v7739
    %7836 = vmatprep.subr.bf16.mxu0 0
    %7837 = vmatpush2.bf16.msra.mxu0 %v7738
    %7838 = vmatprep.subr.bf16.mxu0 0
    %7839 = vmatpush2.bf16.msra.mxu0 %v7737
    %7840 = vmatprep.subr.bf16.mxu0 0
    %7841 = vmatpush2.bf16.msra.mxu0 %v7736
    %7842 = vmatprep.subr.bf16.mxu0 0
    %7843 = vmatpush2.bf16.msra.mxu0 %v7735
    %7844 = vmatprep.subr.bf16.mxu0 0
    %7845 = vmatpush2.bf16.msra.mxu0 %v7734
    %7846 = vmatprep.mubr.bf16.mxu0 %v7577
    %7847 = vmatmul.mubr.bf16.gmra.mxu0 %v7576
    %v7848 = vpop.f32.mrf.mxu0
    %v7849 = vadd.f32 %v7809, %v7848
    %v7850 = vpop.f32.mrf.mxu0
    %v7851 = vpop.f32.mrf.mxu0
    %v7852 = vpop.f32.mrf.mxu0
    %7853 = vdwg.mxu0
    %v7854 = vadd.f32 %v7509, %v7849
    %v7855 = vld [vmem:[%s7] sm:$0x1]
    %v7857 = vlaneseq
    %v7858 = vshrl.u32 %v7857, 7
    %v7859 = vsub.s32 0, %v7858
    %v7860 = vrot.slane %v7855, %v7859
    %v7862 = vadd.f32 %v7854, %v7860
    %7863 = vst [vmem:[#allocation2] sm:$0x3] %v7862
    // Predicated region
    $region34: #{cnn3d_opn_forward.3} parent=1 // pred_check
      _
    $region35: #{cnn3d_opn_forward.3} parent=1 // pred_check_branch
      %7865 = sbr.rel (0) target = $region37
    $region36: #{cnn3d_opn_forward.3} parent=1 // pred_region
      %s7867 = ssub.s32 32, 32
      %7868 = vsyncadd [#allocation3], %s7867
      %s7870 = sshll.u32 [#allocation2], 4
      %s7871 = int_to_ptr.vmem [resolvable:$true] %s7870
      %7873 = dma.vmem_to_hbm [thread:$0]  %s7871, 32, %s8, [#allocation3]
    $region37: #{cnn3d_opn_forward.3} parent=1 // pred_fallthru
      _
    // Predicated region
    $region38: #{cnn3d_opn_forward.3} parent=1 // pred_check
      _
    $region39: #{cnn3d_opn_forward.3} parent=1 // pred_check_branch
      %7875 = sbr.rel (0) target = $region41
    $region40: #{cnn3d_opn_forward.3} parent=1 // pred_region
      %7876 = dma.done [#allocation3], 32
    $region41: #{cnn3d_opn_forward.3} parent=1 // pred_fallthru
      _
    %7877 = vsyncpa [#allocation3], 1

</llo_original>
